<compile_context>
chip_gen: v7x
topology: tpu7x:2x2x1
jax: 0.10.0
libtpu: 0.0.40
codegen_flags: <defaults>
</compile_context>

<pallas_src>
import jax
import jax.numpy as jnp
from jax import lax
from jax.experimental import pallas as pl
from jax.experimental.pallas import tpu as pltpu


_COUT_PAD = 128                      # lane-dense conv output channels
_VMEM_LIMIT = 64 * 1024 * 1024       # fits v7x physical VMEM, bounds tiling


# ----------------------------- Pallas kernels -----------------------------

def conv_relu_pool_kernel(p_ref, w_ref, b_ref, o_ref):
    """p_ref: (4, tm, K) bf16 pool-phase patches; w_ref: (K, 128) bf16;
    b_ref: (1, 128) f32; o_ref: (tm, 128) f32.

    Computes relu(max_t(p[t] @ W) + b) == maxpool2x2(relu(conv + bias)).
    Bias-add and ReLU are done once after the phase max (exact, saves VPU work).
    """
    w = w_ref[...]
    z = jnp.dot(p_ref[0], w, preferred_element_type=jnp.float32)
    for t in range(1, 4):
        z = jnp.maximum(z, jnp.dot(p_ref[t], w, preferred_element_type=jnp.float32))
    o_ref[...] = jnp.maximum(z + b_ref[...], 0.0)


def fc_fused_kernel(x_ref, w1_ref, b1_ref, w2_ref, b2_ref, o_ref):
    """Fused fc1 + ReLU (+ identity dropout) + fc2 + log_softmax, one batch tile.

    x_ref: (tn, 1024) bf16; w1: (1024, 512) bf16; w2: (512, 1024) bf16;
    biases f32; o_ref: (tn, 1024) f32 log-probs.
    """
    h = jnp.dot(x_ref[...], w1_ref[...], preferred_element_type=jnp.float32)
    h = jnp.maximum(h + b1_ref[...], 0.0)
    # TODO(synk): dropout(p=0.5) modeled as identity (inference mode); stochastic mask omitted.
    z = jnp.dot(h.astype(jnp.bfloat16), w2_ref[...], preferred_element_type=jnp.float32)
    z = z + b2_ref[...]
    m = jnp.max(z, axis=-1, keepdims=True)
    lse = jnp.log(jnp.sum(jnp.exp(z - m), axis=-1, keepdims=True)) + m
    o_ref[...] = z - lse


# --------------------------- host-side glue / wrappers ---------------------------

def _round_up(x, m):
    return (x + m - 1) // m * m


def _pool_phase_patches(x_nhwc, k):
    """(N, H, W, C) -> (4, N*Hp*Wp, C*k*k) pool-phase im2col patches.

    K columns ordered (c, di, dj) to match PyTorch conv weight.reshape(Cout, -1).
    """
    n, h, w, c = x_nhwc.shape
    ho, wo = h - k + 1, w - k + 1
    hp, wp = ho // 2, wo // 2
    taps = [x_nhwc[:, di:di + ho, dj:dj + wo, :] for di in range(k) for dj in range(k)]
    p = jnp.stack(taps, axis=-1)                       # (N, Ho, Wo, C, k*k)
    p = p.reshape(n, ho, wo, c * k * k)                # K index = c*k*k + di*k + dj
    m = n * hp * wp
    phases = [p[:, a::2, b::2, :].reshape(m, c * k * k) for a in (0, 1) for b in (0, 1)]
    return jnp.stack(phases, axis=0)                   # (4, M, K)


def conv_relu_pool(x_nhwc, w, b, *, k=5, block_m=1024):
    """NHWC in -> NHWC pooled out, via one Pallas kernel (conv+bias+relu+pool)."""
    n, h, wdim, cin = x_nhwc.shape
    cout = w.shape[0]
    ho, wo = h - k + 1, wdim - k + 1
    hp, wp = ho // 2, wo // 2
    kk = cin * k * k

    phases = _pool_phase_patches(x_nhwc, k).astype(jnp.bfloat16)   # (4, M, K)
    m = phases.shape[1]
    tm = min(block_m, _round_up(m, 8))
    m_pad = _round_up(m, tm)
    if m_pad != m:
        phases = jnp.pad(phases, ((0, 0), (0, m_pad - m), (0, 0)))

    # Weight (Cout, Cin, k, k) -> (K, Coutp) bf16, zero-padded to 128 lanes.
    wm = jnp.transpose(w.reshape(cout, kk))
    wm = jnp.pad(wm, ((0, 0), (0, _COUT_PAD - cout))).astype(jnp.bfloat16)
    bm = jnp.pad(b, (0, _COUT_PAD - cout)).reshape(1, _COUT_PAD).astype(jnp.float32)

    out = pl.pallas_call(
        conv_relu_pool_kernel,
        out_shape=jax.ShapeDtypeStruct((m_pad, _COUT_PAD), jnp.float32),
        grid=(m_pad // tm,),
        in_specs=[
            pl.BlockSpec((4, tm, kk), lambda i: (0, i, 0)),     # patch tiles, pipelined
            pl.BlockSpec((kk, _COUT_PAD), lambda i: (0, 0)),    # weights VMEM-resident
            pl.BlockSpec((1, _COUT_PAD), lambda i: (0, 0)),     # bias VMEM-resident
        ],
        out_specs=pl.BlockSpec((tm, _COUT_PAD), lambda i: (i, 0)),
        compiler_params=pltpu.CompilerParams(
            dimension_semantics=("parallel",),
            vmem_limit_bytes=_VMEM_LIMIT),
    )(phases, wm, bm)

    out = out[:m, :cout]                              # drop M padding + channel padding
    return out.reshape(n, hp, wp, cout)               # stay NHWC for the next stage


def fc_fused(x, w1, b1, w2, b2, *, block_n=256):
    """x: (N, 1024) -> (N, 1024) log-probs; fc1+relu+fc2+log_softmax in one kernel."""
    n, k1 = x.shape
    hdim = w1.shape[0]          # 512
    odim = w2.shape[0]          # 1024

    tn = min(block_n, _round_up(n, 8))
    n_pad = _round_up(n, tn)
    xb = x.astype(jnp.bfloat16)
    if n_pad != n:
        xb = jnp.pad(xb, ((0, n_pad - n), (0, 0)))

    w1m = jnp.transpose(w1).astype(jnp.bfloat16)      # (1024, 512)
    w2m = jnp.transpose(w2).astype(jnp.bfloat16)      # (512, 1024)
    b1m = b1.reshape(1, hdim).astype(jnp.float32)
    b2m = b2.reshape(1, odim).astype(jnp.float32)

    out = pl.pallas_call(
        fc_fused_kernel,
        out_shape=jax.ShapeDtypeStruct((n_pad, odim), jnp.float32),
        grid=(n_pad // tn,),
        in_specs=[
            pl.BlockSpec((tn, k1), lambda i: (i, 0)),           # batch tiles, pipelined
            pl.BlockSpec((k1, hdim), lambda i: (0, 0)),         # fc1 weight resident
            pl.BlockSpec((1, hdim), lambda i: (0, 0)),
            pl.BlockSpec((hdim, odim), lambda i: (0, 0)),       # fc2 weight resident
            pl.BlockSpec((1, odim), lambda i: (0, 0)),
        ],
        out_specs=pl.BlockSpec((tn, odim), lambda i: (i, 0)),
        compiler_params=pltpu.CompilerParams(
            dimension_semantics=("parallel",),
            vmem_limit_bytes=_VMEM_LIMIT),
    )(xb, w1m, b1m, w2m, b2m)
    return out[:n]


@jax.jit
def net_forward(x_nchw, params):
    cw1, cb1, cw2, cb2, fw1, fb1, fw2, fb2 = params
    x = jnp.transpose(x_nchw, (0, 2, 3, 1))            # NCHW -> NHWC once at input
    y = conv_relu_pool(x, cw1, cb1)                    # (N, 12, 12, 32) NHWC
    y = conv_relu_pool(y, cw2, cb2)                    # (N, 4, 4, 64)  NHWC
    n = y.shape[0]
    feat = y.reshape(n, -1)                            # NHWC flatten: (h*4+w)*64 + c

    # Permute fc1 weight columns to NHWC flatten order instead of transposing
    # activations back to NCHW (weight-side layout plumbing, done once).
    c, hw = 64, 16
    jj = jnp.arange(c * hw)
    perm = (jj % c) * hw + (jj // c)
    fw1_nhwc = fw1[:, perm]

    return fc_fused(feat, fw1_nhwc, fb1, fw2, fb2)     # (N, 1024) log-probs


# --------------------------- params & reference ---------------------------

def init_params(key):
    def u(k, shape, fan_in):
        bound = 1.0 / jnp.sqrt(jnp.float32(fan_in))
        return jax.random.uniform(k, shape, jnp.float32, -bound, bound)

    ks = jax.random.split(key, 8)
    cw1 = u(ks[0], (32, 1, 5, 5), 1 * 25)
    cb1 = u(ks[1], (32,), 1 * 25)
    cw2 = u(ks[2], (64, 32, 5, 5), 32 * 25)
    cb2 = u(ks[3], (64,), 32 * 25)
    fw1 = u(ks[4], (512, 64 * 4 * 4), 64 * 4 * 4)
    fb1 = u(ks[5], (512,), 64 * 4 * 4)
    fw2 = u(ks[6], (1024, 512), 512)
    fb2 = u(ks[7], (1024,), 512)
    return (cw1, cb1, cw2, cb2, fw1, fb1, fw2, fb2)


def reference_forward(x, params):
    cw1, cb1, cw2, cb2, fw1, fb1, fw2, fb2 = params
    dn = ("NCHW", "OIHW", "NCHW")
    y = lax.conv_general_dilated(x, cw1, (1, 1), "VALID", dimension_numbers=dn)
    y = jnp.maximum(y + cb1[None, :, None, None], 0.0)
    y = lax.reduce_window(y, -jnp.inf, lax.max, (1, 1, 2, 2), (1, 1, 2, 2), "VALID")
    y = lax.conv_general_dilated(y, cw2, (1, 1), "VALID", dimension_numbers=dn)
    y = jnp.maximum(y + cb2[None, :, None, None], 0.0)
    y = lax.reduce_window(y, -jnp.inf, lax.max, (1, 1, 2, 2), (1, 1, 2, 2), "VALID")
    y = y.reshape(y.shape[0], -1)
    y = jnp.maximum(y @ fw1.T + fb1, 0.0)
    z = y @ fw2.T + fb2
    return jax.nn.log_softmax(z, axis=1)


# --------------------------------- main ---------------------------------

if __name__ == "__main__":
    import numpy as np

    key = jax.random.PRNGKey(0)
    kx, kp = jax.random.split(key)
    # MNIST-shaped input (28x28 is required by the fc1 = 64*4*4 view).
    x = jax.random.normal(kx, (2, 1, 28, 28), jnp.float32)
    params = init_params(kp)

    out = net_forward(x, params)
    out = jax.block_until_ready(out)
    assert out.shape == (2, 1024)
    assert bool(jnp.all(jnp.isfinite(out)))

    ref = reference_forward(x, params)
    # bf16 matmul operands (f32 accumulation) -> slightly looser tolerance.
    np.testing.assert_allclose(np.asarray(out), np.asarray(ref), rtol=2e-2, atol=2e-2)

    print("KERNEL_OK")
</pallas_src>

<mosaic_0001>
module attributes {stable_mosaic.version = 11 : i64} {
  func.func @conv_relu_pool_kernel(%arg0: i32, %arg1: memref<4x288x25xbf16, #tpu.memory_space<vmem>>, %arg2: memref<25x128xbf16, #tpu.memory_space<vmem>>, %arg3: memref<1x128xf32, #tpu.memory_space<vmem>>, %arg4: memref<288x128xf32, #tpu.memory_space<vmem>>) attributes {dimension_semantics = [#tpu.dimension_semantics<parallel>], iteration_bounds = array<i64: 1>, scalar_prefetch = 0 : i64, scratch_operands = 0 : i64, tpu.core_type = #tpu.core_type<tc>, window_params = [{transform_indices = @transform_0, window_bounds = array<i64: 4, 288, 25>}, {pipeline_mode = #tpu.pipeline_mode<synchronous>, transform_indices = @transform_1, window_bounds = array<i64: 25, 128>}, {pipeline_mode = #tpu.pipeline_mode<synchronous>, transform_indices = @transform_2, window_bounds = array<i64: 1, 128>}, {transform_indices = @transform_3, window_bounds = array<i64: 288, 128>}]} {
    %c0 = arith.constant 0 : index
    %c0_0 = arith.constant 0 : index
    %0 = vector.load %arg2[%c0, %c0_0] : memref<25x128xbf16, #tpu.memory_space<vmem>>, vector<25x128xbf16>
    %c0_1 = arith.constant 0 : index
    %c0_2 = arith.constant 0 : index
    %c0_3 = arith.constant 0 : index
    %1 = vector.load %arg1[%c0_1, %c0_2, %c0_3] : memref<4x288x25xbf16, #tpu.memory_space<vmem>>, vector<1x288x25xbf16>
    %2 = vector.shape_cast %1 : vector<1x288x25xbf16> to vector<288x25xbf16>
    %cst = arith.constant dense<0.000000e+00> : vector<288x128xf32>
    %3 = tpu.matmul %2, %0, %cst {dimension_numbers = #tpu.dot_dimension_numbers<[1], [0], [0], [1], [0, 0, 1, 1], [], []>} : vector<288x25xbf16>, vector<25x128xbf16>, vector<288x128xf32> -> vector<288x128xf32>
    %c1 = arith.constant 1 : index
    %c0_4 = arith.constant 0 : index
    %c0_5 = arith.constant 0 : index
    %4 = vector.load %arg1[%c1, %c0_4, %c0_5] : memref<4x288x25xbf16, #tpu.memory_space<vmem>>, vector<1x288x25xbf16>
    %5 = vector.shape_cast %4 : vector<1x288x25xbf16> to vector<288x25xbf16>
    %cst_6 = arith.constant dense<0.000000e+00> : vector<288x128xf32>
    %6 = tpu.matmul %5, %0, %cst_6 {dimension_numbers = #tpu.dot_dimension_numbers<[1], [0], [0], [1], [0, 0, 1, 1], [], []>} : vector<288x25xbf16>, vector<25x128xbf16>, vector<288x128xf32> -> vector<288x128xf32>
    %7 = arith.maximumf %3, %6 : vector<288x128xf32>
    %c2 = arith.constant 2 : index
    %c0_7 = arith.constant 0 : index
    %c0_8 = arith.constant 0 : index
    %8 = vector.load %arg1[%c2, %c0_7, %c0_8] : memref<4x288x25xbf16, #tpu.memory_space<vmem>>, vector<1x288x25xbf16>
    %9 = vector.shape_cast %8 : vector<1x288x25xbf16> to vector<288x25xbf16>
    %cst_9 = arith.constant dense<0.000000e+00> : vector<288x128xf32>
    %10 = tpu.matmul %9, %0, %cst_9 {dimension_numbers = #tpu.dot_dimension_numbers<[1], [0], [0], [1], [0, 0, 1, 1], [], []>} : vector<288x25xbf16>, vector<25x128xbf16>, vector<288x128xf32> -> vector<288x128xf32>
    %11 = arith.maximumf %7, %10 : vector<288x128xf32>
    %c3 = arith.constant 3 : index
    %c0_10 = arith.constant 0 : index
    %c0_11 = arith.constant 0 : index
    %12 = vector.load %arg1[%c3, %c0_10, %c0_11] : memref<4x288x25xbf16, #tpu.memory_space<vmem>>, vector<1x288x25xbf16>
    %13 = vector.shape_cast %12 : vector<1x288x25xbf16> to vector<288x25xbf16>
    %cst_12 = arith.constant dense<0.000000e+00> : vector<288x128xf32>
    %14 = tpu.matmul %13, %0, %cst_12 {dimension_numbers = #tpu.dot_dimension_numbers<[1], [0], [0], [1], [0, 0, 1, 1], [], []>} : vector<288x25xbf16>, vector<25x128xbf16>, vector<288x128xf32> -> vector<288x128xf32>
    %15 = arith.maximumf %11, %14 : vector<288x128xf32>
    %c0_13 = arith.constant 0 : index
    %c0_14 = arith.constant 0 : index
    %16 = vector.load %arg3[%c0_13, %c0_14] : memref<1x128xf32, #tpu.memory_space<vmem>>, vector<1x128xf32>
    %17 = vector.broadcast %16 : vector<1x128xf32> to vector<288x128xf32>
    %18 = arith.addf %15, %17 : vector<288x128xf32>
    %cst_15 = arith.constant 0.000000e+00 : f32
    %19 = vector.broadcast %cst_15 : f32 to vector<288x128xf32>
    %20 = arith.maximumf %18, %19 : vector<288x128xf32>
    %c0_16 = arith.constant 0 : index
    %c0_17 = arith.constant 0 : index
    %21 = vector.load %arg4[%c0_16, %c0_17] : memref<288x128xf32, #tpu.memory_space<vmem>>, vector<288x128xf32>
    tpu.vector_store %arg4[%c0_16, %c0_17], %20 {strides = array<i32>} : memref<288x128xf32, #tpu.memory_space<vmem>>, vector<288x128xf32>,
    return
  }
  func.func @transform_0(%arg0: i32) -> (i32, i32, i32) {
    %c0_i32 = arith.constant 0 : i32
    %c0_i32_0 = arith.constant 0 : i32
    %c0_i32_1 = arith.constant 0 : i32
    return %c0_i32, %arg0, %c0_i32_0 : i32, i32, i32
  }
  func.func @transform_1(%arg0: i32) -> (i32, i32) {
    %c0_i32 = arith.constant 0 : i32
    %c0_i32_0 = arith.constant 0 : i32
    %c0_i32_1 = arith.constant 0 : i32
    return %c0_i32, %c0_i32_0 : i32, i32
  }
  func.func @transform_2(%arg0: i32) -> (i32, i32) {
    %c0_i32 = arith.constant 0 : i32
    %c0_i32_0 = arith.constant 0 : i32
    %c0_i32_1 = arith.constant 0 : i32
    return %c0_i32, %c0_i32_0 : i32, i32
  }
  func.func @transform_3(%arg0: i32) -> (i32, i32) {
    %c0_i32 = arith.constant 0 : i32
    %c0_i32_0 = arith.constant 0 : i32
    return %arg0, %c0_i32 : i32, i32
  }
}

module attributes {stable_mosaic.version = 11 : i64} {
  func.func @conv_relu_pool_kernel(%arg0: i32, %arg1: memref<4x32x800xbf16, #tpu.memory_space<vmem>>, %arg2: memref<800x128xbf16, #tpu.memory_space<vmem>>, %arg3: memref<1x128xf32, #tpu.memory_space<vmem>>, %arg4: memref<32x128xf32, #tpu.memory_space<vmem>>) attributes {dimension_semantics = [#tpu.dimension_semantics<parallel>], iteration_bounds = array<i64: 1>, scalar_prefetch = 0 : i64, scratch_operands = 0 : i64, tpu.core_type = #tpu.core_type<tc>, window_params = [{transform_indices = @transform_0, window_bounds = array<i64: 4, 32, 800>}, {pipeline_mode = #tpu.pipeline_mode<synchronous>, transform_indices = @transform_1, window_bounds = array<i64: 800, 128>}, {pipeline_mode = #tpu.pipeline_mode<synchronous>, transform_indices = @transform_2, window_bounds = array<i64: 1, 128>}, {transform_indices = @transform_3, window_bounds = array<i64: 32, 128>}]} {
    %c0 = arith.constant 0 : index
    %c0_0 = arith.constant 0 : index
    %0 = vector.load %arg2[%c0, %c0_0] : memref<800x128xbf16, #tpu.memory_space<vmem>>, vector<800x128xbf16>
    %c0_1 = arith.constant 0 : index
    %c0_2 = arith.constant 0 : index
    %c0_3 = arith.constant 0 : index
    %1 = vector.load %arg1[%c0_1, %c0_2, %c0_3] : memref<4x32x800xbf16, #tpu.memory_space<vmem>>, vector<1x32x800xbf16>
    %2 = vector.shape_cast %1 : vector<1x32x800xbf16> to vector<32x800xbf16>
    %cst = arith.constant dense<0.000000e+00> : vector<32x128xf32>
    %3 = tpu.matmul %2, %0, %cst {dimension_numbers = #tpu.dot_dimension_numbers<[1], [0], [0], [1], [0, 0, 1, 1], [], []>} : vector<32x800xbf16>, vector<800x128xbf16>, vector<32x128xf32> -> vector<32x128xf32>
    %c1 = arith.constant 1 : index
    %c0_4 = arith.constant 0 : index
    %c0_5 = arith.constant 0 : index
    %4 = vector.load %arg1[%c1, %c0_4, %c0_5] : memref<4x32x800xbf16, #tpu.memory_space<vmem>>, vector<1x32x800xbf16>
    %5 = vector.shape_cast %4 : vector<1x32x800xbf16> to vector<32x800xbf16>
    %cst_6 = arith.constant dense<0.000000e+00> : vector<32x128xf32>
    %6 = tpu.matmul %5, %0, %cst_6 {dimension_numbers = #tpu.dot_dimension_numbers<[1], [0], [0], [1], [0, 0, 1, 1], [], []>} : vector<32x800xbf16>, vector<800x128xbf16>, vector<32x128xf32> -> vector<32x128xf32>
    %7 = arith.maximumf %3, %6 : vector<32x128xf32>
    %c2 = arith.constant 2 : index
    %c0_7 = arith.constant 0 : index
    %c0_8 = arith.constant 0 : index
    %8 = vector.load %arg1[%c2, %c0_7, %c0_8] : memref<4x32x800xbf16, #tpu.memory_space<vmem>>, vector<1x32x800xbf16>
    %9 = vector.shape_cast %8 : vector<1x32x800xbf16> to vector<32x800xbf16>
    %cst_9 = arith.constant dense<0.000000e+00> : vector<32x128xf32>
    %10 = tpu.matmul %9, %0, %cst_9 {dimension_numbers = #tpu.dot_dimension_numbers<[1], [0], [0], [1], [0, 0, 1, 1], [], []>} : vector<32x800xbf16>, vector<800x128xbf16>, vector<32x128xf32> -> vector<32x128xf32>
    %11 = arith.maximumf %7, %10 : vector<32x128xf32>
    %c3 = arith.constant 3 : index
    %c0_10 = arith.constant 0 : index
    %c0_11 = arith.constant 0 : index
    %12 = vector.load %arg1[%c3, %c0_10, %c0_11] : memref<4x32x800xbf16, #tpu.memory_space<vmem>>, vector<1x32x800xbf16>
    %13 = vector.shape_cast %12 : vector<1x32x800xbf16> to vector<32x800xbf16>
    %cst_12 = arith.constant dense<0.000000e+00> : vector<32x128xf32>
    %14 = tpu.matmul %13, %0, %cst_12 {dimension_numbers = #tpu.dot_dimension_numbers<[1], [0], [0], [1], [0, 0, 1, 1], [], []>} : vector<32x800xbf16>, vector<800x128xbf16>, vector<32x128xf32> -> vector<32x128xf32>
    %15 = arith.maximumf %11, %14 : vector<32x128xf32>
    %c0_13 = arith.constant 0 : index
    %c0_14 = arith.constant 0 : index
    %16 = vector.load %arg3[%c0_13, %c0_14] : memref<1x128xf32, #tpu.memory_space<vmem>>, vector<1x128xf32>
    %17 = vector.broadcast %16 : vector<1x128xf32> to vector<32x128xf32>
    %18 = arith.addf %15, %17 : vector<32x128xf32>
    %cst_15 = arith.constant 0.000000e+00 : f32
    %19 = vector.broadcast %cst_15 : f32 to vector<32x128xf32>
    %20 = arith.maximumf %18, %19 : vector<32x128xf32>
    %c0_16 = arith.constant 0 : index
    %c0_17 = arith.constant 0 : index
    %21 = vector.load %arg4[%c0_16, %c0_17] : memref<32x128xf32, #tpu.memory_space<vmem>>, vector<32x128xf32>
    tpu.vector_store %arg4[%c0_16, %c0_17], %20 {strides = array<i32>} : memref<32x128xf32, #tpu.memory_space<vmem>>, vector<32x128xf32>,
    return
  }
  func.func @transform_0(%arg0: i32) -> (i32, i32, i32) {
    %c0_i32 = arith.constant 0 : i32
    %c0_i32_0 = arith.constant 0 : i32
    %c0_i32_1 = arith.constant 0 : i32
    return %c0_i32, %arg0, %c0_i32_0 : i32, i32, i32
  }
  func.func @transform_1(%arg0: i32) -> (i32, i32) {
    %c0_i32 = arith.constant 0 : i32
    %c0_i32_0 = arith.constant 0 : i32
    %c0_i32_1 = arith.constant 0 : i32
    return %c0_i32, %c0_i32_0 : i32, i32
  }
  func.func @transform_2(%arg0: i32) -> (i32, i32) {
    %c0_i32 = arith.constant 0 : i32
    %c0_i32_0 = arith.constant 0 : i32
    %c0_i32_1 = arith.constant 0 : i32
    return %c0_i32, %c0_i32_0 : i32, i32
  }
  func.func @transform_3(%arg0: i32) -> (i32, i32) {
    %c0_i32 = arith.constant 0 : i32
    %c0_i32_0 = arith.constant 0 : i32
    return %arg0, %c0_i32 : i32, i32
  }
}

module attributes {stable_mosaic.version = 11 : i64} {
  func.func @fc_fused_kernel(%arg0: i32, %arg1: memref<8x1024xbf16, #tpu.memory_space<vmem>>, %arg2: memref<1024x512xbf16, #tpu.memory_space<vmem>>, %arg3: memref<1x512xf32, #tpu.memory_space<vmem>>, %arg4: memref<512x1024xbf16, #tpu.memory_space<vmem>>, %arg5: memref<1x1024xf32, #tpu.memory_space<vmem>>, %arg6: memref<8x1024xf32, #tpu.memory_space<vmem>>) attributes {dimension_semantics = [#tpu.dimension_semantics<parallel>], iteration_bounds = array<i64: 1>, scalar_prefetch = 0 : i64, scratch_operands = 0 : i64, tpu.core_type = #tpu.core_type<tc>, window_params = [{transform_indices = @transform_0, window_bounds = array<i64: 8, 1024>}, {pipeline_mode = #tpu.pipeline_mode<synchronous>, transform_indices = @transform_1, window_bounds = array<i64: 1024, 512>}, {pipeline_mode = #tpu.pipeline_mode<synchronous>, transform_indices = @transform_2, window_bounds = array<i64: 1, 512>}, {pipeline_mode = #tpu.pipeline_mode<synchronous>, transform_indices = @transform_3, window_bounds = array<i64: 512, 1024>}, {pipeline_mode = #tpu.pipeline_mode<synchronous>, transform_indices = @transform_4, window_bounds = array<i64: 1, 1024>}, {transform_indices = @transform_5, window_bounds = array<i64: 8, 1024>}]} {
    %c0 = arith.constant 0 : index
    %c0_0 = arith.constant 0 : index
    %0 = vector.load %arg1[%c0, %c0_0] : memref<8x1024xbf16, #tpu.memory_space<vmem>>, vector<8x1024xbf16>
    %c0_1 = arith.constant 0 : index
    %c0_2 = arith.constant 0 : index
    %1 = vector.load %arg2[%c0_1, %c0_2] : memref<1024x512xbf16, #tpu.memory_space<vmem>>, vector<1024x512xbf16>
    %cst = arith.constant dense<0.000000e+00> : vector<8x512xf32>
    %2 = tpu.matmul %0, %1, %cst {dimension_numbers = #tpu.dot_dimension_numbers<[1], [0], [0], [1], [0, 0, 1, 1], [], []>} : vector<8x1024xbf16>, vector<1024x512xbf16>, vector<8x512xf32> -> vector<8x512xf32>
    %c0_3 = arith.constant 0 : index
    %c0_4 = arith.constant 0 : index
    %3 = vector.load %arg3[%c0_3, %c0_4] : memref<1x512xf32, #tpu.memory_space<vmem>>, vector<1x512xf32>
    %4 = vector.broadcast %3 : vector<1x512xf32> to vector<8x512xf32>
    %5 = arith.addf %2, %4 : vector<8x512xf32>
    %cst_5 = arith.constant 0.000000e+00 : f32
    %6 = vector.broadcast %cst_5 : f32 to vector<8x512xf32>
    %7 = arith.maximumf %5, %6 : vector<8x512xf32>
    %8 = arith.truncf %7 : vector<8x512xf32> to vector<8x512xbf16>
    %c0_6 = arith.constant 0 : index
    %c0_7 = arith.constant 0 : index
    %9 = vector.load %arg4[%c0_6, %c0_7] : memref<512x1024xbf16, #tpu.memory_space<vmem>>, vector<512x1024xbf16>
    %cst_8 = arith.constant dense<0.000000e+00> : vector<8x1024xf32>
    %10 = tpu.matmul %8, %9, %cst_8 {dimension_numbers = #tpu.dot_dimension_numbers<[1], [0], [0], [1], [0, 0, 1, 1], [], []>} : vector<8x512xbf16>, vector<512x1024xbf16>, vector<8x1024xf32> -> vector<8x1024xf32>
    %c0_9 = arith.constant 0 : index
    %c0_10 = arith.constant 0 : index
    %11 = vector.load %arg5[%c0_9, %c0_10] : memref<1x1024xf32, #tpu.memory_space<vmem>>, vector<1x1024xf32>
    %12 = vector.broadcast %11 : vector<1x1024xf32> to vector<8x1024xf32>
    %13 = arith.addf %10, %12 : vector<8x1024xf32>
    %cst_11 = arith.constant dense<0xFF800000> : vector<8xf32>
    %14 = vector.multi_reduction <maximumf>, %13, %cst_11 [1] : vector<8x1024xf32> to vector<8xf32>
    %15 = vector.shape_cast %14 : vector<8xf32> to vector<8x1xf32>
    %16 = vector.broadcast %15 : vector<8x1xf32> to vector<8x1024xf32>
    %17 = arith.subf %13, %16 : vector<8x1024xf32>
    %18 = math.exp %17 : vector<8x1024xf32>
    %cst_12 = arith.constant dense<0.000000e+00> : vector<8xf32>
    %19 = vector.multi_reduction <add>, %18, %cst_12 [1] : vector<8x1024xf32> to vector<8xf32>
    %20 = vector.shape_cast %19 : vector<8xf32> to vector<8x1xf32>
    %21 = math.log %20 : vector<8x1xf32>
    %22 = arith.addf %21, %15 : vector<8x1xf32>
    %23 = vector.broadcast %22 : vector<8x1xf32> to vector<8x1024xf32>
    %24 = arith.subf %13, %23 : vector<8x1024xf32>
    %c0_13 = arith.constant 0 : index
    %c0_14 = arith.constant 0 : index
    %25 = vector.load %arg6[%c0_13, %c0_14] : memref<8x1024xf32, #tpu.memory_space<vmem>>, vector<8x1024xf32>
    tpu.vector_store %arg6[%c0_13, %c0_14], %24 {strides = array<i32>} : memref<8x1024xf32, #tpu.memory_space<vmem>>, vector<8x1024xf32>,
    return
  }
  func.func @transform_0(%arg0: i32) -> (i32, i32) {
    %c0_i32 = arith.constant 0 : i32
    %c0_i32_0 = arith.constant 0 : i32
    return %arg0, %c0_i32 : i32, i32
  }
  func.func @transform_1(%arg0: i32) -> (i32, i32) {
    %c0_i32 = arith.constant 0 : i32
    %c0_i32_0 = arith.constant 0 : i32
    %c0_i32_1 = arith.constant 0 : i32
    return %c0_i32, %c0_i32_0 : i32, i32
  }
  func.func @transform_2(%arg0: i32) -> (i32, i32) {
    %c0_i32 = arith.constant 0 : i32
    %c0_i32_0 = arith.constant 0 : i32
    %c0_i32_1 = arith.constant 0 : i32
    return %c0_i32, %c0_i32_0 : i32, i32
  }
  func.func @transform_3(%arg0: i32) -> (i32, i32) {
    %c0_i32 = arith.constant 0 : i32
    %c0_i32_0 = arith.constant 0 : i32
    %c0_i32_1 = arith.constant 0 : i32
    return %c0_i32, %c0_i32_0 : i32, i32
  }
  func.func @transform_4(%arg0: i32) -> (i32, i32) {
    %c0_i32 = arith.constant 0 : i32
    %c0_i32_0 = arith.constant 0 : i32
    %c0_i32_1 = arith.constant 0 : i32
    return %c0_i32, %c0_i32_0 : i32, i32
  }
  func.func @transform_5(%arg0: i32) -> (i32, i32) {
    %c0_i32 = arith.constant 0 : i32
    %c0_i32_0 = arith.constant 0 : i32
    return %arg0, %c0_i32 : i32, i32
  }
}

</mosaic_0001>

<llo_original>
// kernel: net_forward.3
$region0: #{net_forward.3}
  #allocation0 [shape = 'u32[]', space=smem, size = 0x4, offset = 0x4, fixed_abs, tag = 'smem constant byte address 0x4 - core index']
  #allocation1 [shape = 'u32[144,128]{1,0:T(1,128)}', space=vmem, size = 0x12000, scoped, tag = 'internal scratch']
  %s0 = inlined_call_operand.hbm [shape: bf16[4,288,25], index: 0, kind: input, shape index: {}]
  %s1 = inlined_call_operand.hbm [shape: bf16[25,128], index: 1, kind: input, shape index: {}]
  %s2 = inlined_call_operand.hbm [shape: f32[1,128], index: 2, kind: input, shape index: {}]
  %s3 = inlined_call_operand.hbm [shape: f32[288,128], index: 3, kind: output, shape index: {}]
  %s4 = sld [smem:[#allocation0]]
  $region34: #{net_forward.3} parent=0
    _
  %s6 = ssub.s32 1, %s4
  %s7 = scalar_select 0, %s6, %s4
  $region1: #{net_forward.3} parent=0
    #allocation2 [shape = 'u8[294912]{0}', space=vmem, size = 0x48000, scoped, tag = 'input window, operand 0, single buffered']
    #allocation3 [shape = 's32[1]{0}', space=sflag, size = 0x4, scoped, tag = 'scoped memory for net_forward.3']
    #allocation4 [shape = 's32[1]{0}', space=sflag, size = 0x4, scoped, tag = 'scoped memory for net_forward.3']
    #allocation5 [shape = 'u8[8192]{0}', space=vmem, size = 0x2000, scoped, tag = 'input window, operand 1, single buffered']
    #allocation6 [shape = 's32[1]{0}', space=sflag, size = 0x4, scoped, tag = 'scoped memory for net_forward.3']
    #allocation7 [shape = 'u8[512]{0}', space=vmem, size = 0x400, scoped, tag = 'input window, operand 2, single buffered']
    #allocation8 [shape = 'u8[147456]{0}', space=vmem, size = 0x24000, scoped, tag = 'output window, operand 0, single buffered']
    %8 = vsyncpa [#allocation3], 0
    %9 = vsyncpa [#allocation6], 0
    %10 = vsyncpa [#allocation4], 0
    // Predicated region
    $region2: #{net_forward.3} parent=1 // pred_check
      _
    $region3: #{net_forward.3} parent=1 // pred_check_branch
      %12 = sbr.rel (0) target = $region5
    $region4: #{net_forward.3} parent=1 // pred_region
      %s14 = ssub.s32 9216, 9216
      %15 = vsyncadd [#allocation3], %s14
      %s16 = sshll.u32 [#allocation2], 4
      %s17 = int_to_ptr.vmem [resolvable:$true] %s16
      %22 = dma.hbm_to_vmem [thread:$0]  %s0, 9216, %s17, [#allocation3], 64, 64, 4
    $region5: #{net_forward.3} parent=1 // pred_fallthru
      _
    // Predicated region
    $region6: #{net_forward.3} parent=1 // pred_check
      _
    $region7: #{net_forward.3} parent=1 // pred_check_branch
      %24 = sbr.rel (0) target = $region9
    $region8: #{net_forward.3} parent=1 // pred_region
      %s26 = ssub.s32 256, 256
      %27 = vsyncadd [#allocation6], %s26
      %s28 = sshll.u32 [#allocation5], 4
      %s29 = int_to_ptr.vmem [resolvable:$true] %s28
      %34 = dma.hbm_to_vmem [thread:$0]  %s1, 256, %s29, [#allocation6], 64, 64, 4
    $region9: #{net_forward.3} parent=1 // pred_fallthru
      _
    // Predicated region
    $region10: #{net_forward.3} parent=1 // pred_check
      _
    $region11: #{net_forward.3} parent=1 // pred_check_branch
      %36 = sbr.rel (0) target = $region13
    $region12: #{net_forward.3} parent=1 // pred_region
      %s38 = ssub.s32 16, 16
      %39 = vsyncadd [#allocation6], %s38
      %s41 = sshll.u32 [#allocation7], 4
      %s42 = int_to_ptr.vmem [resolvable:$true] %s41
      %44 = dma.hbm_to_vmem [thread:$0]  %s2, 16, %s42, [#allocation6]
    $region13: #{net_forward.3} parent=1 // pred_fallthru
      _
    // Predicated region
    $region14: #{net_forward.3} parent=1 // pred_check
      _
    $region15: #{net_forward.3} parent=1 // pred_check_branch
      %46 = sbr.rel (0) target = $region17
    $region16: #{net_forward.3} parent=1 // pred_region
      %47 = dma.done [#allocation3], 9216
    $region17: #{net_forward.3} parent=1 // pred_fallthru
      _
    // Predicated region
    $region18: #{net_forward.3} parent=1 // pred_check
      _
    $region19: #{net_forward.3} parent=1 // pred_check_branch
      %49 = sbr.rel (0) target = $region21
    $region20: #{net_forward.3} parent=1 // pred_region
      %50 = dma.done [#allocation6], 256
    $region21: #{net_forward.3} parent=1 // pred_fallthru
      _
    // Predicated region
    $region22: #{net_forward.3} parent=1 // pred_check
      _
    $region23: #{net_forward.3} parent=1 // pred_check_branch
      %52 = sbr.rel (0) target = $region25
    $region24: #{net_forward.3} parent=1 // pred_region
      %53 = dma.done [#allocation6], 16
    $region25: #{net_forward.3} parent=1 // pred_fallthru
      _
    %v55 = vld [vmem:[#allocation5] sm:$0xf]
    %v56 = vld [vmem:[#allocation5 + $0x4] sm:$0xf]
    %v57 = vld [vmem:[#allocation5 + $0x8] sm:$0xf]
    %v58 = vld [vmem:[#allocation5 + $0xc] sm:$0x1]
    %v59 = vld [vmem:[#allocation2] sm:$0xf]
    %v60 = vld [vmem:[#allocation2 + $0x4] sm:$0xf]
    %v61 = vld [vmem:[#allocation2 + $0x8] sm:$0xf]
    %v62 = vld [vmem:[#allocation2 + $0xc] sm:$0xf]
    %v63 = vld [vmem:[#allocation2 + $0x10] sm:$0xf]
    %v64 = vld [vmem:[#allocation2 + $0x14] sm:$0xf]
    %v65 = vld [vmem:[#allocation2 + $0x18] sm:$0xf]
    %v66 = vld [vmem:[#allocation2 + $0x1c] sm:$0xf]
    %v67 = vld [vmem:[#allocation2 + $0x20] sm:$0xf]
    %v68 = vld [vmem:[#allocation2 + $0x24] sm:$0xf]
    %v69 = vld [vmem:[#allocation2 + $0x28] sm:$0xf]
    %v70 = vld [vmem:[#allocation2 + $0x2c] sm:$0xf]
    %v71 = vld [vmem:[#allocation2 + $0x30] sm:$0xf]
    %v72 = vld [vmem:[#allocation2 + $0x34] sm:$0xf]
    %v73 = vld [vmem:[#allocation2 + $0x38] sm:$0xf]
    %v74 = vld [vmem:[#allocation2 + $0x3c] sm:$0xf]
    %v75 = vld [vmem:[#allocation2 + $0x40] sm:$0xf]
    %v76 = vld [vmem:[#allocation2 + $0x44] sm:$0xf]
    %v77 = vld [vmem:[#allocation2 + $0x48] sm:$0xf]
    %v78 = vld [vmem:[#allocation2 + $0x4c] sm:$0xf]
    %v79 = vld [vmem:[#allocation2 + $0x50] sm:$0xf]
    %v80 = vld [vmem:[#allocation2 + $0x54] sm:$0xf]
    %v81 = vld [vmem:[#allocation2 + $0x58] sm:$0xf]
    %v82 = vld [vmem:[#allocation2 + $0x5c] sm:$0xf]
    %v83 = vld [vmem:[#allocation2 + $0x60] sm:$0xf]
    %v84 = vld [vmem:[#allocation2 + $0x64] sm:$0xf]
    %v85 = vld [vmem:[#allocation2 + $0x68] sm:$0xf]
    %v86 = vld [vmem:[#allocation2 + $0x6c] sm:$0xf]
    %v87 = vld [vmem:[#allocation2 + $0x70] sm:$0xf]
    %v88 = vld [vmem:[#allocation2 + $0x74] sm:$0xf]
    %v89 = vld [vmem:[#allocation2 + $0x78] sm:$0xf]
    %v90 = vld [vmem:[#allocation2 + $0x7c] sm:$0xf]
    %v91 = vld [vmem:[#allocation2 + $0x80] sm:$0xf]
    %v92 = vld [vmem:[#allocation2 + $0x84] sm:$0xf]
    %v93 = vld [vmem:[#allocation2 + $0x88] sm:$0xf]
    %v94 = vld [vmem:[#allocation2 + $0x8c] sm:$0xf]
    %v131 = vunpack.c.l.b16 %v59
    %v132 = vunpack.c.l.b16 %v60
    %v133 = vunpack.c.l.b16 %v61
    %v134 = vunpack.c.l.b16 %v62
    %v135 = vunpack.c.l.b16 %v63
    %v136 = vunpack.c.l.b16 %v64
    %v137 = vunpack.c.l.b16 %v65
    %v138 = vunpack.c.l.b16 %v66
    %v139 = vunpack.c.l.b16 %v67
    %v140 = vunpack.c.l.b16 %v68
    %v141 = vunpack.c.l.b16 %v69
    %v142 = vunpack.c.l.b16 %v70
    %v143 = vunpack.c.l.b16 %v71
    %v144 = vunpack.c.l.b16 %v72
    %v145 = vunpack.c.l.b16 %v73
    %v146 = vunpack.c.l.b16 %v74
    %v147 = vunpack.c.l.b16 %v75
    %v148 = vunpack.c.l.b16 %v76
    %v149 = vunpack.c.l.b16 %v77
    %v150 = vunpack.c.l.b16 %v78
    %v151 = vunpack.c.l.b16 %v79
    %v152 = vunpack.c.l.b16 %v80
    %v153 = vunpack.c.l.b16 %v81
    %v154 = vunpack.c.l.b16 %v82
    %v155 = vunpack.c.l.b16 %v83
    %v156 = vunpack.c.l.b16 %v84
    %v157 = vunpack.c.l.b16 %v85
    %v158 = vunpack.c.l.b16 %v86
    %v159 = vunpack.c.l.b16 %v87
    %v160 = vunpack.c.l.b16 %v88
    %v161 = vunpack.c.l.b16 %v89
    %v162 = vunpack.c.l.b16 %v90
    %v163 = vunpack.c.l.b16 %v91
    %v164 = vunpack.c.l.b16 %v92
    %v165 = vunpack.c.l.b16 %v93
    %v166 = vunpack.c.l.b16 %v94
    %v167 = vpack.c.b16 %v132, %v131
    %v168 = vpack.c.b16 %v134, %v133
    %v169 = vpack.c.b16 %v136, %v135
    %v170 = vpack.c.b16 %v138, %v137
    %v171 = vpack.c.b16 %v140, %v139
    %v172 = vpack.c.b16 %v142, %v141
    %v173 = vpack.c.b16 %v144, %v143
    %v174 = vpack.c.b16 %v146, %v145
    %v175 = vpack.c.b16 %v148, %v147
    %v176 = vpack.c.b16 %v150, %v149
    %v177 = vpack.c.b16 %v152, %v151
    %v178 = vpack.c.b16 %v154, %v153
    %v179 = vpack.c.b16 %v156, %v155
    %v180 = vpack.c.b16 %v158, %v157
    %v181 = vpack.c.b16 %v160, %v159
    %v182 = vpack.c.b16 %v162, %v161
    %v183 = vpack.c.b16 %v164, %v163
    %v184 = vpack.c.b16 %v166, %v165
    %v189 = vunpack.c.l.b16 %v55
    %v190 = vunpack.c.l.b16 %v56
    %v191 = vunpack.c.l.b16 %v57
    %v192 = vunpack.c.l.b16 %v58
    %v193 = vpack.c.b16 %v190, %v189
    %v194 = vpack.c.b16 %v192, %v191
    %vm196 = vcmask 203776
    %v198 = vsel %vm196, %v167, 0
    %v201 = vsel %vm196, %v168, 0
    %v204 = vsel %vm196, %v169, 0
    %v207 = vsel %vm196, %v170, 0
    %v210 = vsel %vm196, %v171, 0
    %v213 = vsel %vm196, %v172, 0
    %v216 = vsel %vm196, %v173, 0
    %v219 = vsel %vm196, %v174, 0
    %v222 = vsel %vm196, %v175, 0
    %v225 = vsel %vm196, %v176, 0
    %v228 = vsel %vm196, %v177, 0
    %v231 = vsel %vm196, %v178, 0
    %v234 = vsel %vm196, %v179, 0
    %v237 = vsel %vm196, %v180, 0
    %v240 = vsel %vm196, %v181, 0
    %v243 = vsel %vm196, %v182, 0
    %v246 = vsel %vm196, %v183, 0
    %v249 = vsel %vm196, %v184, 0
    %vm251 = vcmask 1043456
    %vm252 = vcmask 1044480
    %v253 = vsel %vm251, 4294967295, 65535
    %v254 = vsel %vm252, %v253, 0
    %v256 = vand.u32 %v194, %v254
    %258 = vmatprep.subr.bf16.mxu0 0
    %259 = vmatpush1.bf16.msra.mxu0 %v193
    %260 = vmatprep.subr.bf16.mxu0 0
    %261 = vmatpush1.bf16.msra.mxu0 %v256
    %262 = vmatprep.subr.bf16.mxu0 0
    %263 = vmatpush1.bf16.msra.mxu0 0
    %264 = vmatprep.subr.bf16.mxu0 0
    %265 = vmatpush1.bf16.msra.mxu0 0
    %266 = vmatprep.subr.bf16.mxu0 0
    %267 = vmatpush1.bf16.msra.mxu0 0
    %268 = vmatprep.subr.bf16.mxu0 0
    %269 = vmatpush1.bf16.msra.mxu0 0
    %270 = vmatprep.subr.bf16.mxu0 0
    %271 = vmatpush1.bf16.msra.mxu0 0
    %272 = vmatprep.subr.bf16.mxu0 0
    %273 = vmatpush1.bf16.msra.mxu0 0
    %274 = vmatprep.subr.bf16.mxu0 0
    %275 = vmatpush1.bf16.msra.mxu0 0
    %276 = vmatprep.subr.bf16.mxu0 0
    %277 = vmatpush1.bf16.msra.mxu0 0
    %278 = vmatprep.subr.bf16.mxu0 0
    %279 = vmatpush1.bf16.msra.mxu0 0
    %280 = vmatprep.subr.bf16.mxu0 0
    %281 = vmatpush1.bf16.msra.mxu0 0
    %282 = vmatprep.subr.bf16.mxu0 0
    %283 = vmatpush1.bf16.msra.mxu0 0
    %284 = vmatprep.subr.bf16.mxu0 0
    %285 = vmatpush1.bf16.msra.mxu0 0
    %286 = vmatprep.subr.bf16.mxu0 0
    %287 = vmatpush1.bf16.msra.mxu0 0
    %288 = vmatprep.subr.bf16.mxu0 0
    %289 = vmatpush1.bf16.msra.mxu0 0
    %290 = vmatprep.mubr.bf16.mxu0 0
    %291 = vmatmul.mubr.bf16.gmra.mrb[0].mxu0 %v198
    %v292 = vpop.f32.mrb[0].mxu0
    %v293 = vadd.f32 0.0, %v292
    %v294 = vpop.f32.mrb[0].mxu0
    %v295 = vpop.f32.mrb[0].mxu0
    %v296 = vadd.f32 0.0, %v295
    %v297 = vpop.f32.mrb[0].mxu0
    %298 = vmatprep.mubr.bf16.mxu0 0
    %299 = vmatmul.mubr.bf16.gmra.mrb[0].mxu0 %v201
    %v300 = vpop.f32.mrb[0].mxu0
    %v301 = vadd.f32 0.0, %v300
    %v302 = vpop.f32.mrb[0].mxu0
    %v303 = vpop.f32.mrb[0].mxu0
    %v304 = vadd.f32 0.0, %v303
    %v305 = vpop.f32.mrb[0].mxu0
    %306 = vmatprep.mubr.bf16.mxu0 0
    %307 = vmatmul.mubr.bf16.gmra.mrb[0].mxu0 %v204
    %v308 = vpop.f32.mrb[0].mxu0
    %v309 = vadd.f32 0.0, %v308
    %v310 = vpop.f32.mrb[0].mxu0
    %v311 = vpop.f32.mrb[0].mxu0
    %v312 = vadd.f32 0.0, %v311
    %v313 = vpop.f32.mrb[0].mxu0
    %314 = vmatprep.mubr.bf16.mxu0 0
    %315 = vmatmul.mubr.bf16.gmra.mrb[0].mxu0 %v207
    %v316 = vpop.f32.mrb[0].mxu0
    %v317 = vadd.f32 0.0, %v316
    %v318 = vpop.f32.mrb[0].mxu0
    %v319 = vpop.f32.mrb[0].mxu0
    %v320 = vadd.f32 0.0, %v319
    %v321 = vpop.f32.mrb[0].mxu0
    %322 = vmatprep.mubr.bf16.mxu0 0
    %323 = vmatmul.mubr.bf16.gmra.mrb[0].mxu0 %v210
    %v324 = vpop.f32.mrb[0].mxu0
    %v325 = vadd.f32 0.0, %v324
    %v326 = vpop.f32.mrb[0].mxu0
    %v327 = vpop.f32.mrb[0].mxu0
    %v328 = vadd.f32 0.0, %v327
    %v329 = vpop.f32.mrb[0].mxu0
    %330 = vmatprep.mubr.bf16.mxu0 0
    %331 = vmatmul.mubr.bf16.gmra.mrb[0].mxu0 %v213
    %v332 = vpop.f32.mrb[0].mxu0
    %v333 = vadd.f32 0.0, %v332
    %v334 = vpop.f32.mrb[0].mxu0
    %v335 = vpop.f32.mrb[0].mxu0
    %v336 = vadd.f32 0.0, %v335
    %v337 = vpop.f32.mrb[0].mxu0
    %338 = vmatprep.mubr.bf16.mxu0 0
    %339 = vmatmul.mubr.bf16.gmra.mrb[0].mxu0 %v216
    %v340 = vpop.f32.mrb[0].mxu0
    %v341 = vadd.f32 0.0, %v340
    %v342 = vpop.f32.mrb[0].mxu0
    %v343 = vpop.f32.mrb[0].mxu0
    %v344 = vadd.f32 0.0, %v343
    %v345 = vpop.f32.mrb[0].mxu0
    %346 = vmatprep.mubr.bf16.mxu0 0
    %347 = vmatmul.mubr.bf16.gmra.mrb[0].mxu0 %v219
    %v348 = vpop.f32.mrb[0].mxu0
    %v349 = vadd.f32 0.0, %v348
    %v350 = vpop.f32.mrb[0].mxu0
    %v351 = vpop.f32.mrb[0].mxu0
    %v352 = vadd.f32 0.0, %v351
    %v353 = vpop.f32.mrb[0].mxu0
    %354 = vmatprep.mubr.bf16.mxu0 0
    %355 = vmatmul.mubr.bf16.gmra.mrb[0].mxu0 %v222
    %v356 = vpop.f32.mrb[0].mxu0
    %v357 = vadd.f32 0.0, %v356
    %v358 = vpop.f32.mrb[0].mxu0
    %v359 = vpop.f32.mrb[0].mxu0
    %v360 = vadd.f32 0.0, %v359
    %v361 = vpop.f32.mrb[0].mxu0
    %362 = vmatprep.mubr.bf16.mxu0 0
    %363 = vmatmul.mubr.bf16.gmra.mrb[0].mxu0 %v225
    %v364 = vpop.f32.mrb[0].mxu0
    %v365 = vadd.f32 0.0, %v364
    %v366 = vpop.f32.mrb[0].mxu0
    %v367 = vpop.f32.mrb[0].mxu0
    %v368 = vadd.f32 0.0, %v367
    %v369 = vpop.f32.mrb[0].mxu0
    %370 = vmatprep.mubr.bf16.mxu0 0
    %371 = vmatmul.mubr.bf16.gmra.mrb[0].mxu0 %v228
    %v372 = vpop.f32.mrb[0].mxu0
    %v373 = vadd.f32 0.0, %v372
    %v374 = vpop.f32.mrb[0].mxu0
    %v375 = vpop.f32.mrb[0].mxu0
    %v376 = vadd.f32 0.0, %v375
    %v377 = vpop.f32.mrb[0].mxu0
    %378 = vmatprep.mubr.bf16.mxu0 0
    %379 = vmatmul.mubr.bf16.gmra.mrb[0].mxu0 %v231
    %v380 = vpop.f32.mrb[0].mxu0
    %v381 = vadd.f32 0.0, %v380
    %v382 = vpop.f32.mrb[0].mxu0
    %v383 = vpop.f32.mrb[0].mxu0
    %v384 = vadd.f32 0.0, %v383
    %v385 = vpop.f32.mrb[0].mxu0
    %386 = vmatprep.mubr.bf16.mxu0 0
    %387 = vmatmul.mubr.bf16.gmra.mrb[0].mxu0 %v234
    %v388 = vpop.f32.mrb[0].mxu0
    %v389 = vadd.f32 0.0, %v388
    %v390 = vpop.f32.mrb[0].mxu0
    %v391 = vpop.f32.mrb[0].mxu0
    %v392 = vadd.f32 0.0, %v391
    %v393 = vpop.f32.mrb[0].mxu0
    %394 = vmatprep.mubr.bf16.mxu0 0
    %395 = vmatmul.mubr.bf16.gmra.mrb[0].mxu0 %v237
    %v396 = vpop.f32.mrb[0].mxu0
    %v397 = vadd.f32 0.0, %v396
    %v398 = vpop.f32.mrb[0].mxu0
    %v399 = vpop.f32.mrb[0].mxu0
    %v400 = vadd.f32 0.0, %v399
    %v401 = vpop.f32.mrb[0].mxu0
    %402 = vmatprep.mubr.bf16.mxu0 0
    %403 = vmatmul.mubr.bf16.gmra.mrb[0].mxu0 %v240
    %v404 = vpop.f32.mrb[0].mxu0
    %v405 = vadd.f32 0.0, %v404
    %v406 = vpop.f32.mrb[0].mxu0
    %v407 = vpop.f32.mrb[0].mxu0
    %v408 = vadd.f32 0.0, %v407
    %v409 = vpop.f32.mrb[0].mxu0
    %410 = vmatprep.mubr.bf16.mxu0 0
    %411 = vmatmul.mubr.bf16.gmra.mrb[0].mxu0 %v243
    %v412 = vpop.f32.mrb[0].mxu0
    %v413 = vadd.f32 0.0, %v412
    %v414 = vpop.f32.mrb[0].mxu0
    %v415 = vpop.f32.mrb[0].mxu0
    %v416 = vadd.f32 0.0, %v415
    %v417 = vpop.f32.mrb[0].mxu0
    %418 = vmatprep.mubr.bf16.mxu0 0
    %419 = vmatmul.mubr.bf16.gmra.mrb[0].mxu0 %v246
    %v420 = vpop.f32.mrb[0].mxu0
    %v421 = vadd.f32 0.0, %v420
    %v422 = vpop.f32.mrb[0].mxu0
    %v423 = vpop.f32.mrb[0].mxu0
    %v424 = vadd.f32 0.0, %v423
    %v425 = vpop.f32.mrb[0].mxu0
    %426 = vmatprep.mubr.bf16.mxu0 0
    %427 = vmatmul.mubr.bf16.gmra.mrb[0].mxu0 %v249
    %v428 = vpop.f32.mrb[0].mxu0
    %v429 = vadd.f32 0.0, %v428
    %v430 = vpop.f32.mrb[0].mxu0
    %v431 = vpop.f32.mrb[0].mxu0
    %v432 = vadd.f32 0.0, %v431
    %v433 = vpop.f32.mrb[0].mxu0
    %434 = vdwg.mxu0
    %s435 = scalar_lea.vmem [#allocation2], 144
    %v436 = vld [vmem:[%s435] sm:$0xf]
    %v437 = vld [vmem:[%s435 + $0x4] sm:$0xf]
    %v438 = vld [vmem:[%s435 + $0x8] sm:$0xf]
    %v439 = vld [vmem:[%s435 + $0xc] sm:$0xf]
    %v440 = vld [vmem:[%s435 + $0x10] sm:$0xf]
    %v441 = vld [vmem:[%s435 + $0x14] sm:$0xf]
    %v442 = vld [vmem:[%s435 + $0x18] sm:$0xf]
    %v443 = vld [vmem:[%s435 + $0x1c] sm:$0xf]
    %v444 = vld [vmem:[%s435 + $0x20] sm:$0xf]
    %v445 = vld [vmem:[%s435 + $0x24] sm:$0xf]
    %v446 = vld [vmem:[%s435 + $0x28] sm:$0xf]
    %v447 = vld [vmem:[%s435 + $0x2c] sm:$0xf]
    %v448 = vld [vmem:[%s435 + $0x30] sm:$0xf]
    %v449 = vld [vmem:[%s435 + $0x34] sm:$0xf]
    %v450 = vld [vmem:[%s435 + $0x38] sm:$0xf]
    %v451 = vld [vmem:[%s435 + $0x3c] sm:$0xf]
    %v452 = vld [vmem:[%s435 + $0x40] sm:$0xf]
    %v453 = vld [vmem:[%s435 + $0x44] sm:$0xf]
    %v454 = vld [vmem:[%s435 + $0x48] sm:$0xf]
    %v455 = vld [vmem:[%s435 + $0x4c] sm:$0xf]
    %v456 = vld [vmem:[%s435 + $0x50] sm:$0xf]
    %v457 = vld [vmem:[%s435 + $0x54] sm:$0xf]
    %v458 = vld [vmem:[%s435 + $0x58] sm:$0xf]
    %v459 = vld [vmem:[%s435 + $0x5c] sm:$0xf]
    %v460 = vld [vmem:[%s435 + $0x60] sm:$0xf]
    %v461 = vld [vmem:[%s435 + $0x64] sm:$0xf]
    %v462 = vld [vmem:[%s435 + $0x68] sm:$0xf]
    %v463 = vld [vmem:[%s435 + $0x6c] sm:$0xf]
    %v464 = vld [vmem:[%s435 + $0x70] sm:$0xf]
    %v465 = vld [vmem:[%s435 + $0x74] sm:$0xf]
    %v466 = vld [vmem:[%s435 + $0x78] sm:$0xf]
    %v467 = vld [vmem:[%s435 + $0x7c] sm:$0xf]
    %v468 = vld [vmem:[%s435 + $0x80] sm:$0xf]
    %v469 = vld [vmem:[%s435 + $0x84] sm:$0xf]
    %v470 = vld [vmem:[%s435 + $0x88] sm:$0xf]
    %v471 = vld [vmem:[%s435 + $0x8c] sm:$0xf]
    %v508 = vunpack.c.l.b16 %v436
    %v509 = vunpack.c.l.b16 %v437
    %v510 = vunpack.c.l.b16 %v438
    %v511 = vunpack.c.l.b16 %v439
    %v512 = vunpack.c.l.b16 %v440
    %v513 = vunpack.c.l.b16 %v441
    %v514 = vunpack.c.l.b16 %v442
    %v515 = vunpack.c.l.b16 %v443
    %v516 = vunpack.c.l.b16 %v444
    %v517 = vunpack.c.l.b16 %v445
    %v518 = vunpack.c.l.b16 %v446
    %v519 = vunpack.c.l.b16 %v447
    %v520 = vunpack.c.l.b16 %v448
    %v521 = vunpack.c.l.b16 %v449
    %v522 = vunpack.c.l.b16 %v450
    %v523 = vunpack.c.l.b16 %v451
    %v524 = vunpack.c.l.b16 %v452
    %v525 = vunpack.c.l.b16 %v453
    %v526 = vunpack.c.l.b16 %v454
    %v527 = vunpack.c.l.b16 %v455
    %v528 = vunpack.c.l.b16 %v456
    %v529 = vunpack.c.l.b16 %v457
    %v530 = vunpack.c.l.b16 %v458
    %v531 = vunpack.c.l.b16 %v459
    %v532 = vunpack.c.l.b16 %v460
    %v533 = vunpack.c.l.b16 %v461
    %v534 = vunpack.c.l.b16 %v462
    %v535 = vunpack.c.l.b16 %v463
    %v536 = vunpack.c.l.b16 %v464
    %v537 = vunpack.c.l.b16 %v465
    %v538 = vunpack.c.l.b16 %v466
    %v539 = vunpack.c.l.b16 %v467
    %v540 = vunpack.c.l.b16 %v468
    %v541 = vunpack.c.l.b16 %v469
    %v542 = vunpack.c.l.b16 %v470
    %v543 = vunpack.c.l.b16 %v471
    %v544 = vpack.c.b16 %v509, %v508
    %v545 = vpack.c.b16 %v511, %v510
    %v546 = vpack.c.b16 %v513, %v512
    %v547 = vpack.c.b16 %v515, %v514
    %v548 = vpack.c.b16 %v517, %v516
    %v549 = vpack.c.b16 %v519, %v518
    %v550 = vpack.c.b16 %v521, %v520
    %v551 = vpack.c.b16 %v523, %v522
    %v552 = vpack.c.b16 %v525, %v524
    %v553 = vpack.c.b16 %v527, %v526
    %v554 = vpack.c.b16 %v529, %v528
    %v555 = vpack.c.b16 %v531, %v530
    %v556 = vpack.c.b16 %v533, %v532
    %v557 = vpack.c.b16 %v535, %v534
    %v558 = vpack.c.b16 %v537, %v536
    %v559 = vpack.c.b16 %v539, %v538
    %v560 = vpack.c.b16 %v541, %v540
    %v561 = vpack.c.b16 %v543, %v542
    %v563 = vsel %vm196, %v544, 0
    %v566 = vsel %vm196, %v545, 0
    %v569 = vsel %vm196, %v546, 0
    %v572 = vsel %vm196, %v547, 0
    %v575 = vsel %vm196, %v548, 0
    %v578 = vsel %vm196, %v549, 0
    %v581 = vsel %vm196, %v550, 0
    %v584 = vsel %vm196, %v551, 0
    %v587 = vsel %vm196, %v552, 0
    %v590 = vsel %vm196, %v553, 0
    %v593 = vsel %vm196, %v554, 0
    %v596 = vsel %vm196, %v555, 0
    %v599 = vsel %vm196, %v556, 0
    %v602 = vsel %vm196, %v557, 0
    %v605 = vsel %vm196, %v558, 0
    %v608 = vsel %vm196, %v559, 0
    %v611 = vsel %vm196, %v560, 0
    %v614 = vsel %vm196, %v561, 0
    %616 = vmatprep.subr.bf16.mxu0 0
    %617 = vmatpush1.bf16.msra.mxu0 %v193
    %618 = vmatprep.subr.bf16.mxu0 0
    %619 = vmatpush1.bf16.msra.mxu0 %v256
    %620 = vmatprep.subr.bf16.mxu0 0
    %621 = vmatpush1.bf16.msra.mxu0 0
    %622 = vmatprep.subr.bf16.mxu0 0
    %623 = vmatpush1.bf16.msra.mxu0 0
    %624 = vmatprep.subr.bf16.mxu0 0
    %625 = vmatpush1.bf16.msra.mxu0 0
    %626 = vmatprep.subr.bf16.mxu0 0
    %627 = vmatpush1.bf16.msra.mxu0 0
    %628 = vmatprep.subr.bf16.mxu0 0
    %629 = vmatpush1.bf16.msra.mxu0 0
    %630 = vmatprep.subr.bf16.mxu0 0
    %631 = vmatpush1.bf16.msra.mxu0 0
    %632 = vmatprep.subr.bf16.mxu0 0
    %633 = vmatpush1.bf16.msra.mxu0 0
    %634 = vmatprep.subr.bf16.mxu0 0
    %635 = vmatpush1.bf16.msra.mxu0 0
    %636 = vmatprep.subr.bf16.mxu0 0
    %637 = vmatpush1.bf16.msra.mxu0 0
    %638 = vmatprep.subr.bf16.mxu0 0
    %639 = vmatpush1.bf16.msra.mxu0 0
    %640 = vmatprep.subr.bf16.mxu0 0
    %641 = vmatpush1.bf16.msra.mxu0 0
    %642 = vmatprep.subr.bf16.mxu0 0
    %643 = vmatpush1.bf16.msra.mxu0 0
    %644 = vmatprep.subr.bf16.mxu0 0
    %645 = vmatpush1.bf16.msra.mxu0 0
    %646 = vmatprep.subr.bf16.mxu0 0
    %647 = vmatpush1.bf16.msra.mxu0 0
    %648 = vmatprep.mubr.bf16.mxu0 0
    %649 = vmatmul.mubr.bf16.gmra.mrb[0].mxu0 %v563
    %v650 = vpop.f32.mrb[0].mxu0
    %v651 = vadd.f32 0.0, %v650
    %v652 = vpop.f32.mrb[0].mxu0
    %v653 = vpop.f32.mrb[0].mxu0
    %v654 = vadd.f32 0.0, %v653
    %v655 = vpop.f32.mrb[0].mxu0
    %656 = vmatprep.mubr.bf16.mxu0 0
    %657 = vmatmul.mubr.bf16.gmra.mrb[0].mxu0 %v566
    %v658 = vpop.f32.mrb[0].mxu0
    %v659 = vadd.f32 0.0, %v658
    %v660 = vpop.f32.mrb[0].mxu0
    %v661 = vpop.f32.mrb[0].mxu0
    %v662 = vadd.f32 0.0, %v661
    %v663 = vpop.f32.mrb[0].mxu0
    %664 = vmatprep.mubr.bf16.mxu0 0
    %665 = vmatmul.mubr.bf16.gmra.mrb[0].mxu0 %v569
    %v666 = vpop.f32.mrb[0].mxu0
    %v667 = vadd.f32 0.0, %v666
    %v668 = vpop.f32.mrb[0].mxu0
    %v669 = vpop.f32.mrb[0].mxu0
    %v670 = vadd.f32 0.0, %v669
    %v671 = vpop.f32.mrb[0].mxu0
    %672 = vmatprep.mubr.bf16.mxu0 0
    %673 = vmatmul.mubr.bf16.gmra.mrb[0].mxu0 %v572
    %v674 = vpop.f32.mrb[0].mxu0
    %v675 = vadd.f32 0.0, %v674
    %v676 = vpop.f32.mrb[0].mxu0
    %v677 = vpop.f32.mrb[0].mxu0
    %v678 = vadd.f32 0.0, %v677
    %v679 = vpop.f32.mrb[0].mxu0
    %680 = vmatprep.mubr.bf16.mxu0 0
    %681 = vmatmul.mubr.bf16.gmra.mrb[0].mxu0 %v575
    %v682 = vpop.f32.mrb[0].mxu0
    %v683 = vadd.f32 0.0, %v682
    %v684 = vpop.f32.mrb[0].mxu0
    %v685 = vpop.f32.mrb[0].mxu0
    %v686 = vadd.f32 0.0, %v685
    %v687 = vpop.f32.mrb[0].mxu0
    %688 = vmatprep.mubr.bf16.mxu0 0
    %689 = vmatmul.mubr.bf16.gmra.mrb[0].mxu0 %v578
    %v690 = vpop.f32.mrb[0].mxu0
    %v691 = vadd.f32 0.0, %v690
    %v692 = vpop.f32.mrb[0].mxu0
    %v693 = vpop.f32.mrb[0].mxu0
    %v694 = vadd.f32 0.0, %v693
    %v695 = vpop.f32.mrb[0].mxu0
    %696 = vmatprep.mubr.bf16.mxu0 0
    %697 = vmatmul.mubr.bf16.gmra.mrb[0].mxu0 %v581
    %v698 = vpop.f32.mrb[0].mxu0
    %v699 = vadd.f32 0.0, %v698
    %v700 = vpop.f32.mrb[0].mxu0
    %v701 = vpop.f32.mrb[0].mxu0
    %v702 = vadd.f32 0.0, %v701
    %v703 = vpop.f32.mrb[0].mxu0
    %704 = vmatprep.mubr.bf16.mxu0 0
    %705 = vmatmul.mubr.bf16.gmra.mrb[0].mxu0 %v584
    %v706 = vpop.f32.mrb[0].mxu0
    %v707 = vadd.f32 0.0, %v706
    %v708 = vpop.f32.mrb[0].mxu0
    %v709 = vpop.f32.mrb[0].mxu0
    %v710 = vadd.f32 0.0, %v709
    %v711 = vpop.f32.mrb[0].mxu0
    %712 = vmatprep.mubr.bf16.mxu0 0
    %713 = vmatmul.mubr.bf16.gmra.mrb[0].mxu0 %v587
    %v714 = vpop.f32.mrb[0].mxu0
    %v715 = vadd.f32 0.0, %v714
    %v716 = vpop.f32.mrb[0].mxu0
    %v717 = vpop.f32.mrb[0].mxu0
    %v718 = vadd.f32 0.0, %v717
    %v719 = vpop.f32.mrb[0].mxu0
    %720 = vmatprep.mubr.bf16.mxu0 0
    %721 = vmatmul.mubr.bf16.gmra.mrb[0].mxu0 %v590
    %v722 = vpop.f32.mrb[0].mxu0
    %v723 = vadd.f32 0.0, %v722
    %v724 = vpop.f32.mrb[0].mxu0
    %v725 = vpop.f32.mrb[0].mxu0
    %v726 = vadd.f32 0.0, %v725
    %v727 = vpop.f32.mrb[0].mxu0
    %728 = vmatprep.mubr.bf16.mxu0 0
    %729 = vmatmul.mubr.bf16.gmra.mrb[0].mxu0 %v593
    %v730 = vpop.f32.mrb[0].mxu0
    %v731 = vadd.f32 0.0, %v730
    %v732 = vpop.f32.mrb[0].mxu0
    %v733 = vpop.f32.mrb[0].mxu0
    %v734 = vadd.f32 0.0, %v733
    %v735 = vpop.f32.mrb[0].mxu0
    %736 = vmatprep.mubr.bf16.mxu0 0
    %737 = vmatmul.mubr.bf16.gmra.mrb[0].mxu0 %v596
    %v738 = vpop.f32.mrb[0].mxu0
    %v739 = vadd.f32 0.0, %v738
    %v740 = vpop.f32.mrb[0].mxu0
    %v741 = vpop.f32.mrb[0].mxu0
    %v742 = vadd.f32 0.0, %v741
    %v743 = vpop.f32.mrb[0].mxu0
    %744 = vmatprep.mubr.bf16.mxu0 0
    %745 = vmatmul.mubr.bf16.gmra.mrb[0].mxu0 %v599
    %v746 = vpop.f32.mrb[0].mxu0
    %v747 = vadd.f32 0.0, %v746
    %v748 = vpop.f32.mrb[0].mxu0
    %v749 = vpop.f32.mrb[0].mxu0
    %v750 = vadd.f32 0.0, %v749
    %v751 = vpop.f32.mrb[0].mxu0
    %752 = vmatprep.mubr.bf16.mxu0 0
    %753 = vmatmul.mubr.bf16.gmra.mrb[0].mxu0 %v602
    %v754 = vpop.f32.mrb[0].mxu0
    %v755 = vadd.f32 0.0, %v754
    %v756 = vpop.f32.mrb[0].mxu0
    %v757 = vpop.f32.mrb[0].mxu0
    %v758 = vadd.f32 0.0, %v757
    %v759 = vpop.f32.mrb[0].mxu0
    %760 = vmatprep.mubr.bf16.mxu0 0
    %761 = vmatmul.mubr.bf16.gmra.mrb[0].mxu0 %v605
    %v762 = vpop.f32.mrb[0].mxu0
    %v763 = vadd.f32 0.0, %v762
    %v764 = vpop.f32.mrb[0].mxu0
    %v765 = vpop.f32.mrb[0].mxu0
    %v766 = vadd.f32 0.0, %v765
    %v767 = vpop.f32.mrb[0].mxu0
    %768 = vmatprep.mubr.bf16.mxu0 0
    %769 = vmatmul.mubr.bf16.gmra.mrb[0].mxu0 %v608
    %v770 = vpop.f32.mrb[0].mxu0
    %v771 = vadd.f32 0.0, %v770
    %v772 = vpop.f32.mrb[0].mxu0
    %v773 = vpop.f32.mrb[0].mxu0
    %v774 = vadd.f32 0.0, %v773
    %v775 = vpop.f32.mrb[0].mxu0
    %776 = vmatprep.mubr.bf16.mxu0 0
    %777 = vmatmul.mubr.bf16.gmra.mrb[0].mxu0 %v611
    %v778 = vpop.f32.mrb[0].mxu0
    %v779 = vadd.f32 0.0, %v778
    %v780 = vpop.f32.mrb[0].mxu0
    %v781 = vpop.f32.mrb[0].mxu0
    %v782 = vadd.f32 0.0, %v781
    %v783 = vpop.f32.mrb[0].mxu0
    %784 = vmatprep.mubr.bf16.mxu0 0
    %785 = vmatmul.mubr.bf16.gmra.mrb[0].mxu0 %v614
    %v786 = vpop.f32.mrb[0].mxu0
    %v787 = vadd.f32 0.0, %v786
    %v788 = vpop.f32.mrb[0].mxu0
    %v789 = vpop.f32.mrb[0].mxu0
    %v790 = vadd.f32 0.0, %v789
    %v791 = vpop.f32.mrb[0].mxu0
    %792 = vdwg.mxu0
    %v793 = vmax.f32 %v293, %v651
    %v794 = vmax.f32 %v296, %v654
    %v795 = vmax.f32 %v301, %v659
    %v796 = vmax.f32 %v304, %v662
    %v797 = vmax.f32 %v309, %v667
    %v798 = vmax.f32 %v312, %v670
    %v799 = vmax.f32 %v317, %v675
    %v800 = vmax.f32 %v320, %v678
    %v801 = vmax.f32 %v325, %v683
    %v802 = vmax.f32 %v328, %v686
    %v803 = vmax.f32 %v333, %v691
    %v804 = vmax.f32 %v336, %v694
    %v805 = vmax.f32 %v341, %v699
    %v806 = vmax.f32 %v344, %v702
    %v807 = vmax.f32 %v349, %v707
    %v808 = vmax.f32 %v352, %v710
    %v809 = vmax.f32 %v357, %v715
    %v810 = vmax.f32 %v360, %v718
    %v811 = vmax.f32 %v365, %v723
    %v812 = vmax.f32 %v368, %v726
    %v813 = vmax.f32 %v373, %v731
    %v814 = vmax.f32 %v376, %v734
    %v815 = vmax.f32 %v381, %v739
    %v816 = vmax.f32 %v384, %v742
    %v817 = vmax.f32 %v389, %v747
    %v818 = vmax.f32 %v392, %v750
    %v819 = vmax.f32 %v397, %v755
    %v820 = vmax.f32 %v400, %v758
    %v821 = vmax.f32 %v405, %v763
    %v822 = vmax.f32 %v408, %v766
    %v823 = vmax.f32 %v413, %v771
    %v824 = vmax.f32 %v416, %v774
    %v825 = vmax.f32 %v421, %v779
    %v826 = vmax.f32 %v424, %v782
    %v827 = vmax.f32 %v429, %v787
    %v828 = vmax.f32 %v432, %v790
    %s829 = scalar_lea.vmem [#allocation2], 288
    %v830 = vld [vmem:[%s829] sm:$0xf]
    %v831 = vld [vmem:[%s829 + $0x4] sm:$0xf]
    %v832 = vld [vmem:[%s829 + $0x8] sm:$0xf]
    %v833 = vld [vmem:[%s829 + $0xc] sm:$0xf]
    %v834 = vld [vmem:[%s829 + $0x10] sm:$0xf]
    %v835 = vld [vmem:[%s829 + $0x14] sm:$0xf]
    %v836 = vld [vmem:[%s829 + $0x18] sm:$0xf]
    %v837 = vld [vmem:[%s829 + $0x1c] sm:$0xf]
    %v838 = vld [vmem:[%s829 + $0x20] sm:$0xf]
    %v839 = vld [vmem:[%s829 + $0x24] sm:$0xf]
    %v840 = vld [vmem:[%s829 + $0x28] sm:$0xf]
    %v841 = vld [vmem:[%s829 + $0x2c] sm:$0xf]
    %v842 = vld [vmem:[%s829 + $0x30] sm:$0xf]
    %v843 = vld [vmem:[%s829 + $0x34] sm:$0xf]
    %v844 = vld [vmem:[%s829 + $0x38] sm:$0xf]
    %v845 = vld [vmem:[%s829 + $0x3c] sm:$0xf]
    %v846 = vld [vmem:[%s829 + $0x40] sm:$0xf]
    %v847 = vld [vmem:[%s829 + $0x44] sm:$0xf]
    %v848 = vld [vmem:[%s829 + $0x48] sm:$0xf]
    %v849 = vld [vmem:[%s829 + $0x4c] sm:$0xf]
    %v850 = vld [vmem:[%s829 + $0x50] sm:$0xf]
    %v851 = vld [vmem:[%s829 + $0x54] sm:$0xf]
    %v852 = vld [vmem:[%s829 + $0x58] sm:$0xf]
    %v853 = vld [vmem:[%s829 + $0x5c] sm:$0xf]
    %v854 = vld [vmem:[%s829 + $0x60] sm:$0xf]
    %v855 = vld [vmem:[%s829 + $0x64] sm:$0xf]
    %v856 = vld [vmem:[%s829 + $0x68] sm:$0xf]
    %v857 = vld [vmem:[%s829 + $0x6c] sm:$0xf]
    %v858 = vld [vmem:[%s829 + $0x70] sm:$0xf]
    %v859 = vld [vmem:[%s829 + $0x74] sm:$0xf]
    %v860 = vld [vmem:[%s829 + $0x78] sm:$0xf]
    %v861 = vld [vmem:[%s829 + $0x7c] sm:$0xf]
    %v862 = vld [vmem:[%s829 + $0x80] sm:$0xf]
    %v863 = vld [vmem:[%s829 + $0x84] sm:$0xf]
    %v864 = vld [vmem:[%s829 + $0x88] sm:$0xf]
    %v865 = vld [vmem:[%s829 + $0x8c] sm:$0xf]
    %v902 = vunpack.c.l.b16 %v830
    %v903 = vunpack.c.l.b16 %v831
    %v904 = vunpack.c.l.b16 %v832
    %v905 = vunpack.c.l.b16 %v833
    %v906 = vunpack.c.l.b16 %v834
    %v907 = vunpack.c.l.b16 %v835
    %v908 = vunpack.c.l.b16 %v836
    %v909 = vunpack.c.l.b16 %v837
    %v910 = vunpack.c.l.b16 %v838
    %v911 = vunpack.c.l.b16 %v839
    %v912 = vunpack.c.l.b16 %v840
    %v913 = vunpack.c.l.b16 %v841
    %v914 = vunpack.c.l.b16 %v842
    %v915 = vunpack.c.l.b16 %v843
    %v916 = vunpack.c.l.b16 %v844
    %v917 = vunpack.c.l.b16 %v845
    %v918 = vunpack.c.l.b16 %v846
    %v919 = vunpack.c.l.b16 %v847
    %v920 = vunpack.c.l.b16 %v848
    %v921 = vunpack.c.l.b16 %v849
    %v922 = vunpack.c.l.b16 %v850
    %v923 = vunpack.c.l.b16 %v851
    %v924 = vunpack.c.l.b16 %v852
    %v925 = vunpack.c.l.b16 %v853
    %v926 = vunpack.c.l.b16 %v854
    %v927 = vunpack.c.l.b16 %v855
    %v928 = vunpack.c.l.b16 %v856
    %v929 = vunpack.c.l.b16 %v857
    %v930 = vunpack.c.l.b16 %v858
    %v931 = vunpack.c.l.b16 %v859
    %v932 = vunpack.c.l.b16 %v860
    %v933 = vunpack.c.l.b16 %v861
    %v934 = vunpack.c.l.b16 %v862
    %v935 = vunpack.c.l.b16 %v863
    %v936 = vunpack.c.l.b16 %v864
    %v937 = vunpack.c.l.b16 %v865
    %v938 = vpack.c.b16 %v903, %v902
    %v939 = vpack.c.b16 %v905, %v904
    %v940 = vpack.c.b16 %v907, %v906
    %v941 = vpack.c.b16 %v909, %v908
    %v942 = vpack.c.b16 %v911, %v910
    %v943 = vpack.c.b16 %v913, %v912
    %v944 = vpack.c.b16 %v915, %v914
    %v945 = vpack.c.b16 %v917, %v916
    %v946 = vpack.c.b16 %v919, %v918
    %v947 = vpack.c.b16 %v921, %v920
    %v948 = vpack.c.b16 %v923, %v922
    %v949 = vpack.c.b16 %v925, %v924
    %v950 = vpack.c.b16 %v927, %v926
    %v951 = vpack.c.b16 %v929, %v928
    %v952 = vpack.c.b16 %v931, %v930
    %v953 = vpack.c.b16 %v933, %v932
    %v954 = vpack.c.b16 %v935, %v934
    %v955 = vpack.c.b16 %v937, %v936
    %v957 = vsel %vm196, %v938, 0
    %v960 = vsel %vm196, %v939, 0
    %v963 = vsel %vm196, %v940, 0
    %v966 = vsel %vm196, %v941, 0
    %v969 = vsel %vm196, %v942, 0
    %v972 = vsel %vm196, %v943, 0
    %v975 = vsel %vm196, %v944, 0
    %v978 = vsel %vm196, %v945, 0
    %v981 = vsel %vm196, %v946, 0
    %v984 = vsel %vm196, %v947, 0
    %v987 = vsel %vm196, %v948, 0
    %v990 = vsel %vm196, %v949, 0
    %v993 = vsel %vm196, %v950, 0
    %v996 = vsel %vm196, %v951, 0
    %v999 = vsel %vm196, %v952, 0
    %v1002 = vsel %vm196, %v953, 0
    %v1005 = vsel %vm196, %v954, 0
    %v1008 = vsel %vm196, %v955, 0
    %1010 = vmatprep.subr.bf16.mxu0 0
    %1011 = vmatpush1.bf16.msra.mxu0 %v193
    %1012 = vmatprep.subr.bf16.mxu0 0
    %1013 = vmatpush1.bf16.msra.mxu0 %v256
    %1014 = vmatprep.subr.bf16.mxu0 0
    %1015 = vmatpush1.bf16.msra.mxu0 0
    %1016 = vmatprep.subr.bf16.mxu0 0
    %1017 = vmatpush1.bf16.msra.mxu0 0
    %1018 = vmatprep.subr.bf16.mxu0 0
    %1019 = vmatpush1.bf16.msra.mxu0 0
    %1020 = vmatprep.subr.bf16.mxu0 0
    %1021 = vmatpush1.bf16.msra.mxu0 0
    %1022 = vmatprep.subr.bf16.mxu0 0
    %1023 = vmatpush1.bf16.msra.mxu0 0
    %1024 = vmatprep.subr.bf16.mxu0 0
    %1025 = vmatpush1.bf16.msra.mxu0 0
    %1026 = vmatprep.subr.bf16.mxu0 0
    %1027 = vmatpush1.bf16.msra.mxu0 0
    %1028 = vmatprep.subr.bf16.mxu0 0
    %1029 = vmatpush1.bf16.msra.mxu0 0
    %1030 = vmatprep.subr.bf16.mxu0 0
    %1031 = vmatpush1.bf16.msra.mxu0 0
    %1032 = vmatprep.subr.bf16.mxu0 0
    %1033 = vmatpush1.bf16.msra.mxu0 0
    %1034 = vmatprep.subr.bf16.mxu0 0
    %1035 = vmatpush1.bf16.msra.mxu0 0
    %1036 = vmatprep.subr.bf16.mxu0 0
    %1037 = vmatpush1.bf16.msra.mxu0 0
    %1038 = vmatprep.subr.bf16.mxu0 0
    %1039 = vmatpush1.bf16.msra.mxu0 0
    %1040 = vmatprep.subr.bf16.mxu0 0
    %1041 = vmatpush1.bf16.msra.mxu0 0
    %1042 = vmatprep.mubr.bf16.mxu0 0
    %1043 = vmatmul.mubr.bf16.gmra.mrb[0].mxu0 %v957
    %v1044 = vpop.f32.mrb[0].mxu0
    %v1045 = vadd.f32 0.0, %v1044
    %v1046 = vpop.f32.mrb[0].mxu0
    %v1047 = vpop.f32.mrb[0].mxu0
    %v1048 = vadd.f32 0.0, %v1047
    %v1049 = vpop.f32.mrb[0].mxu0
    %1050 = vmatprep.mubr.bf16.mxu0 0
    %1051 = vmatmul.mubr.bf16.gmra.mrb[0].mxu0 %v960
    %v1052 = vpop.f32.mrb[0].mxu0
    %v1053 = vadd.f32 0.0, %v1052
    %v1054 = vpop.f32.mrb[0].mxu0
    %v1055 = vpop.f32.mrb[0].mxu0
    %v1056 = vadd.f32 0.0, %v1055
    %v1057 = vpop.f32.mrb[0].mxu0
    %1058 = vmatprep.mubr.bf16.mxu0 0
    %1059 = vmatmul.mubr.bf16.gmra.mrb[0].mxu0 %v963
    %v1060 = vpop.f32.mrb[0].mxu0
    %v1061 = vadd.f32 0.0, %v1060
    %v1062 = vpop.f32.mrb[0].mxu0
    %v1063 = vpop.f32.mrb[0].mxu0
    %v1064 = vadd.f32 0.0, %v1063
    %v1065 = vpop.f32.mrb[0].mxu0
    %1066 = vmatprep.mubr.bf16.mxu0 0
    %1067 = vmatmul.mubr.bf16.gmra.mrb[0].mxu0 %v966
    %v1068 = vpop.f32.mrb[0].mxu0
    %v1069 = vadd.f32 0.0, %v1068
    %v1070 = vpop.f32.mrb[0].mxu0
    %v1071 = vpop.f32.mrb[0].mxu0
    %v1072 = vadd.f32 0.0, %v1071
    %v1073 = vpop.f32.mrb[0].mxu0
    %1074 = vmatprep.mubr.bf16.mxu0 0
    %1075 = vmatmul.mubr.bf16.gmra.mrb[0].mxu0 %v969
    %v1076 = vpop.f32.mrb[0].mxu0
    %v1077 = vadd.f32 0.0, %v1076
    %v1078 = vpop.f32.mrb[0].mxu0
    %v1079 = vpop.f32.mrb[0].mxu0
    %v1080 = vadd.f32 0.0, %v1079
    %v1081 = vpop.f32.mrb[0].mxu0
    %1082 = vmatprep.mubr.bf16.mxu0 0
    %1083 = vmatmul.mubr.bf16.gmra.mrb[0].mxu0 %v972
    %v1084 = vpop.f32.mrb[0].mxu0
    %v1085 = vadd.f32 0.0, %v1084
    %v1086 = vpop.f32.mrb[0].mxu0
    %v1087 = vpop.f32.mrb[0].mxu0
    %v1088 = vadd.f32 0.0, %v1087
    %v1089 = vpop.f32.mrb[0].mxu0
    %1090 = vmatprep.mubr.bf16.mxu0 0
    %1091 = vmatmul.mubr.bf16.gmra.mrb[0].mxu0 %v975
    %v1092 = vpop.f32.mrb[0].mxu0
    %v1093 = vadd.f32 0.0, %v1092
    %v1094 = vpop.f32.mrb[0].mxu0
    %v1095 = vpop.f32.mrb[0].mxu0
    %v1096 = vadd.f32 0.0, %v1095
    %v1097 = vpop.f32.mrb[0].mxu0
    %1098 = vmatprep.mubr.bf16.mxu0 0
    %1099 = vmatmul.mubr.bf16.gmra.mrb[0].mxu0 %v978
    %v1100 = vpop.f32.mrb[0].mxu0
    %v1101 = vadd.f32 0.0, %v1100
    %v1102 = vpop.f32.mrb[0].mxu0
    %v1103 = vpop.f32.mrb[0].mxu0
    %v1104 = vadd.f32 0.0, %v1103
    %v1105 = vpop.f32.mrb[0].mxu0
    %1106 = vmatprep.mubr.bf16.mxu0 0
    %1107 = vmatmul.mubr.bf16.gmra.mrb[0].mxu0 %v981
    %v1108 = vpop.f32.mrb[0].mxu0
    %v1109 = vadd.f32 0.0, %v1108
    %v1110 = vpop.f32.mrb[0].mxu0
    %v1111 = vpop.f32.mrb[0].mxu0
    %v1112 = vadd.f32 0.0, %v1111
    %v1113 = vpop.f32.mrb[0].mxu0
    %1114 = vmatprep.mubr.bf16.mxu0 0
    %1115 = vmatmul.mubr.bf16.gmra.mrb[0].mxu0 %v984
    %v1116 = vpop.f32.mrb[0].mxu0
    %v1117 = vadd.f32 0.0, %v1116
    %v1118 = vpop.f32.mrb[0].mxu0
    %v1119 = vpop.f32.mrb[0].mxu0
    %v1120 = vadd.f32 0.0, %v1119
    %v1121 = vpop.f32.mrb[0].mxu0
    %1122 = vmatprep.mubr.bf16.mxu0 0
    %1123 = vmatmul.mubr.bf16.gmra.mrb[0].mxu0 %v987
    %v1124 = vpop.f32.mrb[0].mxu0
    %v1125 = vadd.f32 0.0, %v1124
    %v1126 = vpop.f32.mrb[0].mxu0
    %v1127 = vpop.f32.mrb[0].mxu0
    %v1128 = vadd.f32 0.0, %v1127
    %v1129 = vpop.f32.mrb[0].mxu0
    %1130 = vmatprep.mubr.bf16.mxu0 0
    %1131 = vmatmul.mubr.bf16.gmra.mrb[0].mxu0 %v990
    %v1132 = vpop.f32.mrb[0].mxu0
    %v1133 = vadd.f32 0.0, %v1132
    %v1134 = vpop.f32.mrb[0].mxu0
    %v1135 = vpop.f32.mrb[0].mxu0
    %v1136 = vadd.f32 0.0, %v1135
    %v1137 = vpop.f32.mrb[0].mxu0
    %1138 = vmatprep.mubr.bf16.mxu0 0
    %1139 = vmatmul.mubr.bf16.gmra.mrb[0].mxu0 %v993
    %v1140 = vpop.f32.mrb[0].mxu0
    %v1141 = vadd.f32 0.0, %v1140
    %v1142 = vpop.f32.mrb[0].mxu0
    %v1143 = vpop.f32.mrb[0].mxu0
    %v1144 = vadd.f32 0.0, %v1143
    %v1145 = vpop.f32.mrb[0].mxu0
    %1146 = vmatprep.mubr.bf16.mxu0 0
    %1147 = vmatmul.mubr.bf16.gmra.mrb[0].mxu0 %v996
    %v1148 = vpop.f32.mrb[0].mxu0
    %v1149 = vadd.f32 0.0, %v1148
    %v1150 = vpop.f32.mrb[0].mxu0
    %v1151 = vpop.f32.mrb[0].mxu0
    %v1152 = vadd.f32 0.0, %v1151
    %v1153 = vpop.f32.mrb[0].mxu0
    %1154 = vmatprep.mubr.bf16.mxu0 0
    %1155 = vmatmul.mubr.bf16.gmra.mrb[0].mxu0 %v999
    %v1156 = vpop.f32.mrb[0].mxu0
    %v1157 = vadd.f32 0.0, %v1156
    %v1158 = vpop.f32.mrb[0].mxu0
    %v1159 = vpop.f32.mrb[0].mxu0
    %v1160 = vadd.f32 0.0, %v1159
    %v1161 = vpop.f32.mrb[0].mxu0
    %1162 = vmatprep.mubr.bf16.mxu0 0
    %1163 = vmatmul.mubr.bf16.gmra.mrb[0].mxu0 %v1002
    %v1164 = vpop.f32.mrb[0].mxu0
    %v1165 = vadd.f32 0.0, %v1164
    %v1166 = vpop.f32.mrb[0].mxu0
    %v1167 = vpop.f32.mrb[0].mxu0
    %v1168 = vadd.f32 0.0, %v1167
    %v1169 = vpop.f32.mrb[0].mxu0
    %1170 = vmatprep.mubr.bf16.mxu0 0
    %1171 = vmatmul.mubr.bf16.gmra.mrb[0].mxu0 %v1005
    %v1172 = vpop.f32.mrb[0].mxu0
    %v1173 = vadd.f32 0.0, %v1172
    %v1174 = vpop.f32.mrb[0].mxu0
    %v1175 = vpop.f32.mrb[0].mxu0
    %v1176 = vadd.f32 0.0, %v1175
    %v1177 = vpop.f32.mrb[0].mxu0
    %1178 = vmatprep.mubr.bf16.mxu0 0
    %1179 = vmatmul.mubr.bf16.gmra.mrb[0].mxu0 %v1008
    %v1180 = vpop.f32.mrb[0].mxu0
    %v1181 = vadd.f32 0.0, %v1180
    %v1182 = vpop.f32.mrb[0].mxu0
    %v1183 = vpop.f32.mrb[0].mxu0
    %v1184 = vadd.f32 0.0, %v1183
    %v1185 = vpop.f32.mrb[0].mxu0
    %1186 = vdwg.mxu0
    %v1187 = vmax.f32 %v793, %v1045
    %v1188 = vmax.f32 %v794, %v1048
    %v1189 = vmax.f32 %v795, %v1053
    %v1190 = vmax.f32 %v796, %v1056
    %v1191 = vmax.f32 %v797, %v1061
    %v1192 = vmax.f32 %v798, %v1064
    %v1193 = vmax.f32 %v799, %v1069
    %v1194 = vmax.f32 %v800, %v1072
    %v1195 = vmax.f32 %v801, %v1077
    %v1196 = vmax.f32 %v802, %v1080
    %v1197 = vmax.f32 %v803, %v1085
    %v1198 = vmax.f32 %v804, %v1088
    %v1199 = vmax.f32 %v805, %v1093
    %v1200 = vmax.f32 %v806, %v1096
    %v1201 = vmax.f32 %v807, %v1101
    %v1202 = vmax.f32 %v808, %v1104
    %v1203 = vmax.f32 %v809, %v1109
    %v1204 = vmax.f32 %v810, %v1112
    %v1205 = vmax.f32 %v811, %v1117
    %v1206 = vmax.f32 %v812, %v1120
    %v1207 = vmax.f32 %v813, %v1125
    %v1208 = vmax.f32 %v814, %v1128
    %v1209 = vmax.f32 %v815, %v1133
    %v1210 = vmax.f32 %v816, %v1136
    %v1211 = vmax.f32 %v817, %v1141
    %v1212 = vmax.f32 %v818, %v1144
    %v1213 = vmax.f32 %v819, %v1149
    %v1214 = vmax.f32 %v820, %v1152
    %v1215 = vmax.f32 %v821, %v1157
    %v1216 = vmax.f32 %v822, %v1160
    %v1217 = vmax.f32 %v823, %v1165
    %v1218 = vmax.f32 %v824, %v1168
    %v1219 = vmax.f32 %v825, %v1173
    %v1220 = vmax.f32 %v826, %v1176
    %v1221 = vmax.f32 %v827, %v1181
    %v1222 = vmax.f32 %v828, %v1184
    %s1223 = scalar_lea.vmem [#allocation2], 432
    %v1224 = vld [vmem:[%s1223] sm:$0xf]
    %v1225 = vld [vmem:[%s1223 + $0x4] sm:$0xf]
    %v1226 = vld [vmem:[%s1223 + $0x8] sm:$0xf]
    %v1227 = vld [vmem:[%s1223 + $0xc] sm:$0xf]
    %v1228 = vld [vmem:[%s1223 + $0x10] sm:$0xf]
    %v1229 = vld [vmem:[%s1223 + $0x14] sm:$0xf]
    %v1230 = vld [vmem:[%s1223 + $0x18] sm:$0xf]
    %v1231 = vld [vmem:[%s1223 + $0x1c] sm:$0xf]
    %v1232 = vld [vmem:[%s1223 + $0x20] sm:$0xf]
    %v1233 = vld [vmem:[%s1223 + $0x24] sm:$0xf]
    %v1234 = vld [vmem:[%s1223 + $0x28] sm:$0xf]
    %v1235 = vld [vmem:[%s1223 + $0x2c] sm:$0xf]
    %v1236 = vld [vmem:[%s1223 + $0x30] sm:$0xf]
    %v1237 = vld [vmem:[%s1223 + $0x34] sm:$0xf]
    %v1238 = vld [vmem:[%s1223 + $0x38] sm:$0xf]
    %v1239 = vld [vmem:[%s1223 + $0x3c] sm:$0xf]
    %v1240 = vld [vmem:[%s1223 + $0x40] sm:$0xf]
    %v1241 = vld [vmem:[%s1223 + $0x44] sm:$0xf]
    %v1242 = vld [vmem:[%s1223 + $0x48] sm:$0xf]
    %v1243 = vld [vmem:[%s1223 + $0x4c] sm:$0xf]
    %v1244 = vld [vmem:[%s1223 + $0x50] sm:$0xf]
    %v1245 = vld [vmem:[%s1223 + $0x54] sm:$0xf]
    %v1246 = vld [vmem:[%s1223 + $0x58] sm:$0xf]
    %v1247 = vld [vmem:[%s1223 + $0x5c] sm:$0xf]
    %v1248 = vld [vmem:[%s1223 + $0x60] sm:$0xf]
    %v1249 = vld [vmem:[%s1223 + $0x64] sm:$0xf]
    %v1250 = vld [vmem:[%s1223 + $0x68] sm:$0xf]
    %v1251 = vld [vmem:[%s1223 + $0x6c] sm:$0xf]
    %v1252 = vld [vmem:[%s1223 + $0x70] sm:$0xf]
    %v1253 = vld [vmem:[%s1223 + $0x74] sm:$0xf]
    %v1254 = vld [vmem:[%s1223 + $0x78] sm:$0xf]
    %v1255 = vld [vmem:[%s1223 + $0x7c] sm:$0xf]
    %v1256 = vld [vmem:[%s1223 + $0x80] sm:$0xf]
    %v1257 = vld [vmem:[%s1223 + $0x84] sm:$0xf]
    %v1258 = vld [vmem:[%s1223 + $0x88] sm:$0xf]
    %v1259 = vld [vmem:[%s1223 + $0x8c] sm:$0xf]
    %v1296 = vunpack.c.l.b16 %v1224
    %v1297 = vunpack.c.l.b16 %v1225
    %v1298 = vunpack.c.l.b16 %v1226
    %v1299 = vunpack.c.l.b16 %v1227
    %v1300 = vunpack.c.l.b16 %v1228
    %v1301 = vunpack.c.l.b16 %v1229
    %v1302 = vunpack.c.l.b16 %v1230
    %v1303 = vunpack.c.l.b16 %v1231
    %v1304 = vunpack.c.l.b16 %v1232
    %v1305 = vunpack.c.l.b16 %v1233
    %v1306 = vunpack.c.l.b16 %v1234
    %v1307 = vunpack.c.l.b16 %v1235
    %v1308 = vunpack.c.l.b16 %v1236
    %v1309 = vunpack.c.l.b16 %v1237
    %v1310 = vunpack.c.l.b16 %v1238
    %v1311 = vunpack.c.l.b16 %v1239
    %v1312 = vunpack.c.l.b16 %v1240
    %v1313 = vunpack.c.l.b16 %v1241
    %v1314 = vunpack.c.l.b16 %v1242
    %v1315 = vunpack.c.l.b16 %v1243
    %v1316 = vunpack.c.l.b16 %v1244
    %v1317 = vunpack.c.l.b16 %v1245
    %v1318 = vunpack.c.l.b16 %v1246
    %v1319 = vunpack.c.l.b16 %v1247
    %v1320 = vunpack.c.l.b16 %v1248
    %v1321 = vunpack.c.l.b16 %v1249
    %v1322 = vunpack.c.l.b16 %v1250
    %v1323 = vunpack.c.l.b16 %v1251
    %v1324 = vunpack.c.l.b16 %v1252
    %v1325 = vunpack.c.l.b16 %v1253
    %v1326 = vunpack.c.l.b16 %v1254
    %v1327 = vunpack.c.l.b16 %v1255
    %v1328 = vunpack.c.l.b16 %v1256
    %v1329 = vunpack.c.l.b16 %v1257
    %v1330 = vunpack.c.l.b16 %v1258
    %v1331 = vunpack.c.l.b16 %v1259
    %v1332 = vpack.c.b16 %v1297, %v1296
    %v1333 = vpack.c.b16 %v1299, %v1298
    %v1334 = vpack.c.b16 %v1301, %v1300
    %v1335 = vpack.c.b16 %v1303, %v1302
    %v1336 = vpack.c.b16 %v1305, %v1304
    %v1337 = vpack.c.b16 %v1307, %v1306
    %v1338 = vpack.c.b16 %v1309, %v1308
    %v1339 = vpack.c.b16 %v1311, %v1310
    %v1340 = vpack.c.b16 %v1313, %v1312
    %v1341 = vpack.c.b16 %v1315, %v1314
    %v1342 = vpack.c.b16 %v1317, %v1316
    %v1343 = vpack.c.b16 %v1319, %v1318
    %v1344 = vpack.c.b16 %v1321, %v1320
    %v1345 = vpack.c.b16 %v1323, %v1322
    %v1346 = vpack.c.b16 %v1325, %v1324
    %v1347 = vpack.c.b16 %v1327, %v1326
    %v1348 = vpack.c.b16 %v1329, %v1328
    %v1349 = vpack.c.b16 %v1331, %v1330
    %v1351 = vsel %vm196, %v1332, 0
    %v1354 = vsel %vm196, %v1333, 0
    %v1357 = vsel %vm196, %v1334, 0
    %v1360 = vsel %vm196, %v1335, 0
    %v1363 = vsel %vm196, %v1336, 0
    %v1366 = vsel %vm196, %v1337, 0
    %v1369 = vsel %vm196, %v1338, 0
    %v1372 = vsel %vm196, %v1339, 0
    %v1375 = vsel %vm196, %v1340, 0
    %v1378 = vsel %vm196, %v1341, 0
    %v1381 = vsel %vm196, %v1342, 0
    %v1384 = vsel %vm196, %v1343, 0
    %v1387 = vsel %vm196, %v1344, 0
    %v1390 = vsel %vm196, %v1345, 0
    %v1393 = vsel %vm196, %v1346, 0
    %v1396 = vsel %vm196, %v1347, 0
    %v1399 = vsel %vm196, %v1348, 0
    %v1402 = vsel %vm196, %v1349, 0
    %1404 = vmatprep.subr.bf16.mxu0 0
    %1405 = vmatpush1.bf16.msra.mxu0 %v193
    %1406 = vmatprep.subr.bf16.mxu0 0
    %1407 = vmatpush1.bf16.msra.mxu0 %v256
    %1408 = vmatprep.subr.bf16.mxu0 0
    %1409 = vmatpush1.bf16.msra.mxu0 0
    %1410 = vmatprep.subr.bf16.mxu0 0
    %1411 = vmatpush1.bf16.msra.mxu0 0
    %1412 = vmatprep.subr.bf16.mxu0 0
    %1413 = vmatpush1.bf16.msra.mxu0 0
    %1414 = vmatprep.subr.bf16.mxu0 0
    %1415 = vmatpush1.bf16.msra.mxu0 0
    %1416 = vmatprep.subr.bf16.mxu0 0
    %1417 = vmatpush1.bf16.msra.mxu0 0
    %1418 = vmatprep.subr.bf16.mxu0 0
    %1419 = vmatpush1.bf16.msra.mxu0 0
    %1420 = vmatprep.subr.bf16.mxu0 0
    %1421 = vmatpush1.bf16.msra.mxu0 0
    %1422 = vmatprep.subr.bf16.mxu0 0
    %1423 = vmatpush1.bf16.msra.mxu0 0
    %1424 = vmatprep.subr.bf16.mxu0 0
    %1425 = vmatpush1.bf16.msra.mxu0 0
    %1426 = vmatprep.subr.bf16.mxu0 0
    %1427 = vmatpush1.bf16.msra.mxu0 0
    %1428 = vmatprep.subr.bf16.mxu0 0
    %1429 = vmatpush1.bf16.msra.mxu0 0
    %1430 = vmatprep.subr.bf16.mxu0 0
    %1431 = vmatpush1.bf16.msra.mxu0 0
    %1432 = vmatprep.subr.bf16.mxu0 0
    %1433 = vmatpush1.bf16.msra.mxu0 0
    %1434 = vmatprep.subr.bf16.mxu0 0
    %1435 = vmatpush1.bf16.msra.mxu0 0
    %1436 = vmatprep.mubr.bf16.mxu0 0
    %1437 = vmatmul.mubr.bf16.gmra.mrb[0].mxu0 %v1351
    %v1438 = vpop.f32.mrb[0].mxu0
    %v1439 = vadd.f32 0.0, %v1438
    %v1440 = vpop.f32.mrb[0].mxu0
    %v1441 = vpop.f32.mrb[0].mxu0
    %v1442 = vadd.f32 0.0, %v1441
    %v1443 = vpop.f32.mrb[0].mxu0
    %1444 = vmatprep.mubr.bf16.mxu0 0
    %1445 = vmatmul.mubr.bf16.gmra.mrb[0].mxu0 %v1354
    %v1446 = vpop.f32.mrb[0].mxu0
    %v1447 = vadd.f32 0.0, %v1446
    %v1448 = vpop.f32.mrb[0].mxu0
    %v1449 = vpop.f32.mrb[0].mxu0
    %v1450 = vadd.f32 0.0, %v1449
    %v1451 = vpop.f32.mrb[0].mxu0
    %1452 = vmatprep.mubr.bf16.mxu0 0
    %1453 = vmatmul.mubr.bf16.gmra.mrb[0].mxu0 %v1357
    %v1454 = vpop.f32.mrb[0].mxu0
    %v1455 = vadd.f32 0.0, %v1454
    %v1456 = vpop.f32.mrb[0].mxu0
    %v1457 = vpop.f32.mrb[0].mxu0
    %v1458 = vadd.f32 0.0, %v1457
    %v1459 = vpop.f32.mrb[0].mxu0
    %1460 = vmatprep.mubr.bf16.mxu0 0
    %1461 = vmatmul.mubr.bf16.gmra.mrb[0].mxu0 %v1360
    %v1462 = vpop.f32.mrb[0].mxu0
    %v1463 = vadd.f32 0.0, %v1462
    %v1464 = vpop.f32.mrb[0].mxu0
    %v1465 = vpop.f32.mrb[0].mxu0
    %v1466 = vadd.f32 0.0, %v1465
    %v1467 = vpop.f32.mrb[0].mxu0
    %1468 = vmatprep.mubr.bf16.mxu0 0
    %1469 = vmatmul.mubr.bf16.gmra.mrb[0].mxu0 %v1363
    %v1470 = vpop.f32.mrb[0].mxu0
    %v1471 = vadd.f32 0.0, %v1470
    %v1472 = vpop.f32.mrb[0].mxu0
    %v1473 = vpop.f32.mrb[0].mxu0
    %v1474 = vadd.f32 0.0, %v1473
    %v1475 = vpop.f32.mrb[0].mxu0
    %1476 = vmatprep.mubr.bf16.mxu0 0
    %1477 = vmatmul.mubr.bf16.gmra.mrb[0].mxu0 %v1366
    %v1478 = vpop.f32.mrb[0].mxu0
    %v1479 = vadd.f32 0.0, %v1478
    %v1480 = vpop.f32.mrb[0].mxu0
    %v1481 = vpop.f32.mrb[0].mxu0
    %v1482 = vadd.f32 0.0, %v1481
    %v1483 = vpop.f32.mrb[0].mxu0
    %1484 = vmatprep.mubr.bf16.mxu0 0
    %1485 = vmatmul.mubr.bf16.gmra.mrb[0].mxu0 %v1369
    %v1486 = vpop.f32.mrb[0].mxu0
    %v1487 = vadd.f32 0.0, %v1486
    %v1488 = vpop.f32.mrb[0].mxu0
    %v1489 = vpop.f32.mrb[0].mxu0
    %v1490 = vadd.f32 0.0, %v1489
    %v1491 = vpop.f32.mrb[0].mxu0
    %1492 = vmatprep.mubr.bf16.mxu0 0
    %1493 = vmatmul.mubr.bf16.gmra.mrb[0].mxu0 %v1372
    %v1494 = vpop.f32.mrb[0].mxu0
    %v1495 = vadd.f32 0.0, %v1494
    %v1496 = vpop.f32.mrb[0].mxu0
    %v1497 = vpop.f32.mrb[0].mxu0
    %v1498 = vadd.f32 0.0, %v1497
    %v1499 = vpop.f32.mrb[0].mxu0
    %1500 = vmatprep.mubr.bf16.mxu0 0
    %1501 = vmatmul.mubr.bf16.gmra.mrb[0].mxu0 %v1375
    %v1502 = vpop.f32.mrb[0].mxu0
    %v1503 = vadd.f32 0.0, %v1502
    %v1504 = vpop.f32.mrb[0].mxu0
    %v1505 = vpop.f32.mrb[0].mxu0
    %v1506 = vadd.f32 0.0, %v1505
    %v1507 = vpop.f32.mrb[0].mxu0
    %1508 = vmatprep.mubr.bf16.mxu0 0
    %1509 = vmatmul.mubr.bf16.gmra.mrb[0].mxu0 %v1378
    %v1510 = vpop.f32.mrb[0].mxu0
    %v1511 = vadd.f32 0.0, %v1510
    %v1512 = vpop.f32.mrb[0].mxu0
    %v1513 = vpop.f32.mrb[0].mxu0
    %v1514 = vadd.f32 0.0, %v1513
    %v1515 = vpop.f32.mrb[0].mxu0
    %1516 = vmatprep.mubr.bf16.mxu0 0
    %1517 = vmatmul.mubr.bf16.gmra.mrb[0].mxu0 %v1381
    %v1518 = vpop.f32.mrb[0].mxu0
    %v1519 = vadd.f32 0.0, %v1518
    %v1520 = vpop.f32.mrb[0].mxu0
    %v1521 = vpop.f32.mrb[0].mxu0
    %v1522 = vadd.f32 0.0, %v1521
    %v1523 = vpop.f32.mrb[0].mxu0
    %1524 = vmatprep.mubr.bf16.mxu0 0
    %1525 = vmatmul.mubr.bf16.gmra.mrb[0].mxu0 %v1384
    %v1526 = vpop.f32.mrb[0].mxu0
    %v1527 = vadd.f32 0.0, %v1526
    %v1528 = vpop.f32.mrb[0].mxu0
    %v1529 = vpop.f32.mrb[0].mxu0
    %v1530 = vadd.f32 0.0, %v1529
    %v1531 = vpop.f32.mrb[0].mxu0
    %1532 = vmatprep.mubr.bf16.mxu0 0
    %1533 = vmatmul.mubr.bf16.gmra.mrb[0].mxu0 %v1387
    %v1534 = vpop.f32.mrb[0].mxu0
    %v1535 = vadd.f32 0.0, %v1534
    %v1536 = vpop.f32.mrb[0].mxu0
    %v1537 = vpop.f32.mrb[0].mxu0
    %v1538 = vadd.f32 0.0, %v1537
    %v1539 = vpop.f32.mrb[0].mxu0
    %1540 = vmatprep.mubr.bf16.mxu0 0
    %1541 = vmatmul.mubr.bf16.gmra.mrb[0].mxu0 %v1390
    %v1542 = vpop.f32.mrb[0].mxu0
    %v1543 = vadd.f32 0.0, %v1542
    %v1544 = vpop.f32.mrb[0].mxu0
    %v1545 = vpop.f32.mrb[0].mxu0
    %v1546 = vadd.f32 0.0, %v1545
    %v1547 = vpop.f32.mrb[0].mxu0
    %1548 = vmatprep.mubr.bf16.mxu0 0
    %1549 = vmatmul.mubr.bf16.gmra.mrb[0].mxu0 %v1393
    %v1550 = vpop.f32.mrb[0].mxu0
    %v1551 = vadd.f32 0.0, %v1550
    %v1552 = vpop.f32.mrb[0].mxu0
    %v1553 = vpop.f32.mrb[0].mxu0
    %v1554 = vadd.f32 0.0, %v1553
    %v1555 = vpop.f32.mrb[0].mxu0
    %1556 = vmatprep.mubr.bf16.mxu0 0
    %1557 = vmatmul.mubr.bf16.gmra.mrb[0].mxu0 %v1396
    %v1558 = vpop.f32.mrb[0].mxu0
    %v1559 = vadd.f32 0.0, %v1558
    %v1560 = vpop.f32.mrb[0].mxu0
    %v1561 = vpop.f32.mrb[0].mxu0
    %v1562 = vadd.f32 0.0, %v1561
    %v1563 = vpop.f32.mrb[0].mxu0
    %1564 = vmatprep.mubr.bf16.mxu0 0
    %1565 = vmatmul.mubr.bf16.gmra.mrb[0].mxu0 %v1399
    %v1566 = vpop.f32.mrb[0].mxu0
    %v1567 = vadd.f32 0.0, %v1566
    %v1568 = vpop.f32.mrb[0].mxu0
    %v1569 = vpop.f32.mrb[0].mxu0
    %v1570 = vadd.f32 0.0, %v1569
    %v1571 = vpop.f32.mrb[0].mxu0
    %1572 = vmatprep.mubr.bf16.mxu0 0
    %1573 = vmatmul.mubr.bf16.gmra.mrb[0].mxu0 %v1402
    %v1574 = vpop.f32.mrb[0].mxu0
    %v1575 = vadd.f32 0.0, %v1574
    %v1576 = vpop.f32.mrb[0].mxu0
    %v1577 = vpop.f32.mrb[0].mxu0
    %v1578 = vadd.f32 0.0, %v1577
    %v1579 = vpop.f32.mrb[0].mxu0
    %1580 = vdwg.mxu0
    %v1581 = vmax.f32 %v1187, %v1439
    %v1582 = vmax.f32 %v1188, %v1442
    %v1583 = vmax.f32 %v1189, %v1447
    %v1584 = vmax.f32 %v1190, %v1450
    %v1585 = vmax.f32 %v1191, %v1455
    %v1586 = vmax.f32 %v1192, %v1458
    %v1587 = vmax.f32 %v1193, %v1463
    %v1588 = vmax.f32 %v1194, %v1466
    %v1589 = vmax.f32 %v1195, %v1471
    %v1590 = vmax.f32 %v1196, %v1474
    %v1591 = vmax.f32 %v1197, %v1479
    %v1592 = vmax.f32 %v1198, %v1482
    %v1593 = vmax.f32 %v1199, %v1487
    %v1594 = vmax.f32 %v1200, %v1490
    %v1595 = vmax.f32 %v1201, %v1495
    %v1596 = vmax.f32 %v1202, %v1498
    %v1597 = vmax.f32 %v1203, %v1503
    %v1598 = vmax.f32 %v1204, %v1506
    %v1599 = vmax.f32 %v1205, %v1511
    %v1600 = vmax.f32 %v1206, %v1514
    %v1601 = vmax.f32 %v1207, %v1519
    %v1602 = vmax.f32 %v1208, %v1522
    %v1603 = vmax.f32 %v1209, %v1527
    %v1604 = vmax.f32 %v1210, %v1530
    %v1605 = vmax.f32 %v1211, %v1535
    %v1606 = vmax.f32 %v1212, %v1538
    %v1607 = vmax.f32 %v1213, %v1543
    %v1608 = vmax.f32 %v1214, %v1546
    %v1609 = vmax.f32 %v1215, %v1551
    %v1610 = vmax.f32 %v1216, %v1554
    %v1611 = vmax.f32 %v1217, %v1559
    %v1612 = vmax.f32 %v1218, %v1562
    %v1613 = vmax.f32 %v1219, %v1567
    %v1614 = vmax.f32 %v1220, %v1570
    %v1615 = vmax.f32 %v1221, %v1575
    %v1616 = vmax.f32 %v1222, %v1578
    %v1617 = vld [vmem:[#allocation7] sm:$0x1]
    %v1619 = vlaneseq
    %v1620 = vshrl.u32 %v1619, 7
    %v1621 = vsub.s32 0, %v1620
    %v1622 = vrot.slane %v1617, %v1621
    %v1624 = vadd.f32 %v1581, %v1622
    %v1625 = vadd.f32 %v1582, %v1622
    %v1626 = vadd.f32 %v1583, %v1622
    %v1627 = vadd.f32 %v1584, %v1622
    %v1628 = vadd.f32 %v1585, %v1622
    %v1629 = vadd.f32 %v1586, %v1622
    %v1630 = vadd.f32 %v1587, %v1622
    %v1631 = vadd.f32 %v1588, %v1622
    %v1632 = vadd.f32 %v1589, %v1622
    %v1633 = vadd.f32 %v1590, %v1622
    %v1634 = vadd.f32 %v1591, %v1622
    %v1635 = vadd.f32 %v1592, %v1622
    %v1636 = vadd.f32 %v1593, %v1622
    %v1637 = vadd.f32 %v1594, %v1622
    %v1638 = vadd.f32 %v1595, %v1622
    %v1639 = vadd.f32 %v1596, %v1622
    %v1640 = vadd.f32 %v1597, %v1622
    %v1641 = vadd.f32 %v1598, %v1622
    %v1642 = vadd.f32 %v1599, %v1622
    %v1643 = vadd.f32 %v1600, %v1622
    %v1644 = vadd.f32 %v1601, %v1622
    %v1645 = vadd.f32 %v1602, %v1622
    %v1646 = vadd.f32 %v1603, %v1622
    %v1647 = vadd.f32 %v1604, %v1622
    %v1648 = vadd.f32 %v1605, %v1622
    %v1649 = vadd.f32 %v1606, %v1622
    %v1650 = vadd.f32 %v1607, %v1622
    %v1651 = vadd.f32 %v1608, %v1622
    %v1652 = vadd.f32 %v1609, %v1622
    %v1653 = vadd.f32 %v1610, %v1622
    %v1654 = vadd.f32 %v1611, %v1622
    %v1655 = vadd.f32 %v1612, %v1622
    %v1656 = vadd.f32 %v1613, %v1622
    %v1657 = vadd.f32 %v1614, %v1622
    %v1658 = vadd.f32 %v1615, %v1622
    %v1659 = vadd.f32 %v1616, %v1622
    %v1660 = vmax.f32 %v1624, 0.0
    %v1661 = vmax.f32 %v1625, 0.0
    %v1662 = vmax.f32 %v1626, 0.0
    %v1663 = vmax.f32 %v1627, 0.0
    %v1664 = vmax.f32 %v1628, 0.0
    %v1665 = vmax.f32 %v1629, 0.0
    %v1666 = vmax.f32 %v1630, 0.0
    %v1667 = vmax.f32 %v1631, 0.0
    %v1668 = vmax.f32 %v1632, 0.0
    %v1669 = vmax.f32 %v1633, 0.0
    %v1670 = vmax.f32 %v1634, 0.0
    %v1671 = vmax.f32 %v1635, 0.0
    %v1672 = vmax.f32 %v1636, 0.0
    %v1673 = vmax.f32 %v1637, 0.0
    %v1674 = vmax.f32 %v1638, 0.0
    %v1675 = vmax.f32 %v1639, 0.0
    %v1676 = vmax.f32 %v1640, 0.0
    %v1677 = vmax.f32 %v1641, 0.0
    %v1678 = vmax.f32 %v1642, 0.0
    %v1679 = vmax.f32 %v1643, 0.0
    %v1680 = vmax.f32 %v1644, 0.0
    %v1681 = vmax.f32 %v1645, 0.0
    %v1682 = vmax.f32 %v1646, 0.0
    %v1683 = vmax.f32 %v1647, 0.0
    %v1684 = vmax.f32 %v1648, 0.0
    %v1685 = vmax.f32 %v1649, 0.0
    %v1686 = vmax.f32 %v1650, 0.0
    %v1687 = vmax.f32 %v1651, 0.0
    %v1688 = vmax.f32 %v1652, 0.0
    %v1689 = vmax.f32 %v1653, 0.0
    %v1690 = vmax.f32 %v1654, 0.0
    %v1691 = vmax.f32 %v1655, 0.0
    %v1692 = vmax.f32 %v1656, 0.0
    %v1693 = vmax.f32 %v1657, 0.0
    %v1694 = vmax.f32 %v1658, 0.0
    %v1695 = vmax.f32 %v1659, 0.0
    %1696 = vst [vmem:[#allocation8] sm:$0xff] %v1660
    %1697 = vst [vmem:[#allocation8 + $0x8] sm:$0xff] %v1661
    %1698 = vst [vmem:[#allocation8 + $0x10] sm:$0xff] %v1662
    %1699 = vst [vmem:[#allocation8 + $0x18] sm:$0xff] %v1663
    %1700 = vst [vmem:[#allocation8 + $0x20] sm:$0xff] %v1664
    %1701 = vst [vmem:[#allocation8 + $0x28] sm:$0xff] %v1665
    %1702 = vst [vmem:[#allocation8 + $0x30] sm:$0xff] %v1666
    %1703 = vst [vmem:[#allocation8 + $0x38] sm:$0xff] %v1667
    %1704 = vst [vmem:[#allocation8 + $0x40] sm:$0xff] %v1668
    %1705 = vst [vmem:[#allocation8 + $0x48] sm:$0xff] %v1669
    %1706 = vst [vmem:[#allocation8 + $0x50] sm:$0xff] %v1670
    %1707 = vst [vmem:[#allocation8 + $0x58] sm:$0xff] %v1671
    %1708 = vst [vmem:[#allocation8 + $0x60] sm:$0xff] %v1672
    %1709 = vst [vmem:[#allocation8 + $0x68] sm:$0xff] %v1673
    %1710 = vst [vmem:[#allocation8 + $0x70] sm:$0xff] %v1674
    %1711 = vst [vmem:[#allocation8 + $0x78] sm:$0xff] %v1675
    %1712 = vst [vmem:[#allocation8 + $0x80] sm:$0xff] %v1676
    %1713 = vst [vmem:[#allocation8 + $0x88] sm:$0xff] %v1677
    %1714 = vst [vmem:[#allocation8 + $0x90] sm:$0xff] %v1678
    %1715 = vst [vmem:[#allocation8 + $0x98] sm:$0xff] %v1679
    %1716 = vst [vmem:[#allocation8 + $0xa0] sm:$0xff] %v1680
    %1717 = vst [vmem:[#allocation8 + $0xa8] sm:$0xff] %v1681
    %1718 = vst [vmem:[#allocation8 + $0xb0] sm:$0xff] %v1682
    %1719 = vst [vmem:[#allocation8 + $0xb8] sm:$0xff] %v1683
    %1720 = vst [vmem:[#allocation8 + $0xc0] sm:$0xff] %v1684
    %1721 = vst [vmem:[#allocation8 + $0xc8] sm:$0xff] %v1685
    %1722 = vst [vmem:[#allocation8 + $0xd0] sm:$0xff] %v1686
    %1723 = vst [vmem:[#allocation8 + $0xd8] sm:$0xff] %v1687
    %1724 = vst [vmem:[#allocation8 + $0xe0] sm:$0xff] %v1688
    %1725 = vst [vmem:[#allocation8 + $0xe8] sm:$0xff] %v1689
    %1726 = vst [vmem:[#allocation8 + $0xf0] sm:$0xff] %v1690
    %1727 = vst [vmem:[#allocation8 + $0xf8] sm:$0xff] %v1691
    %1728 = vst [vmem:[#allocation8 + $0x100] sm:$0xff] %v1692
    %1729 = vst [vmem:[#allocation8 + $0x108] sm:$0xff] %v1693
    %1730 = vst [vmem:[#allocation8 + $0x110] sm:$0xff] %v1694
    %1731 = vst [vmem:[#allocation8 + $0x118] sm:$0xff] %v1695
    // Predicated region
    $region26: #{net_forward.3} parent=1 // pred_check
      _
    $region27: #{net_forward.3} parent=1 // pred_check_branch
      %1733 = sbr.rel (0) target = $region29
    $region28: #{net_forward.3} parent=1 // pred_region
      %s1735 = ssub.s32 4608, 4608
      %1736 = vsyncadd [#allocation4], %s1735
      %s1737 = sshll.u32 [#allocation8], 4
      %s1738 = int_to_ptr.vmem [resolvable:$true] %s1737
      %1743 = dma.vmem_to_hbm [thread:$0]  %s1738, 4608, %s3, [#allocation4], 128, 128, 8
    $region29: #{net_forward.3} parent=1 // pred_fallthru
      _
    // Predicated region
    $region30: #{net_forward.3} parent=1 // pred_check
      _
    $region31: #{net_forward.3} parent=1 // pred_check_branch
      %1745 = sbr.rel (0) target = $region33
    $region32: #{net_forward.3} parent=1 // pred_region
      %1746 = dma.done [#allocation4], 4608
    $region33: #{net_forward.3} parent=1 // pred_fallthru
      _
    %1747 = vsyncpa [#allocation3], 1
    %1748 = vsyncpa [#allocation6], 1
    %1749 = vsyncpa [#allocation4], 1

// kernel: net_forward.4
$region0: #{net_forward.4}
  #allocation0 [shape = 'u32[]', space=smem, size = 0x4, offset = 0x4, fixed_abs, tag = 'smem constant byte address 0x4 - core index']
  #allocation1 [shape = 'u32[144,128]{1,0:T(1,128)}', space=vmem, size = 0x12000, scoped, tag = 'internal scratch']
  %s0 = inlined_call_operand.hbm [shape: bf16[4,32,800], index: 0, kind: input, shape index: {}]
  %s1 = inlined_call_operand.hbm [shape: bf16[800,128], index: 1, kind: input, shape index: {}]
  %s2 = inlined_call_operand.hbm [shape: f32[1,128], index: 2, kind: input, shape index: {}]
  %s3 = inlined_call_operand.hbm [shape: f32[32,128], index: 3, kind: output, shape index: {}]
  %s4 = sld [smem:[#allocation0]]
  $region34: #{net_forward.4} parent=0
    _
  %s6 = ssub.s32 1, %s4
  %s7 = scalar_select 0, %s6, %s4
  $region1: #{net_forward.4} parent=0
    #allocation2 [shape = 'u8[229376]{0}', space=vmem, size = 0x38000, scoped, tag = 'input window, operand 0, single buffered']
    #allocation3 [shape = 's32[1]{0}', space=sflag, size = 0x4, scoped, tag = 'scoped memory for net_forward.4']
    #allocation4 [shape = 's32[1]{0}', space=sflag, size = 0x4, scoped, tag = 'scoped memory for net_forward.4']
    #allocation5 [shape = 'u8[204800]{0}', space=vmem, size = 0x32000, scoped, tag = 'input window, operand 1, single buffered']
    #allocation6 [shape = 's32[1]{0}', space=sflag, size = 0x4, scoped, tag = 'scoped memory for net_forward.4']
    #allocation7 [shape = 'u8[512]{0}', space=vmem, size = 0x400, scoped, tag = 'input window, operand 2, single buffered']
    #allocation8 [shape = 'u8[16384]{0}', space=vmem, size = 0x4000, scoped, tag = 'output window, operand 0, single buffered']
    %8 = vsyncpa [#allocation3], 0
    %9 = vsyncpa [#allocation6], 0
    %10 = vsyncpa [#allocation4], 0
    // Predicated region
    $region2: #{net_forward.4} parent=1 // pred_check
      _
    $region3: #{net_forward.4} parent=1 // pred_check_branch
      %12 = sbr.rel (0) target = $region5
    $region4: #{net_forward.4} parent=1 // pred_region
      %s14 = ssub.s32 7168, 7168
      %15 = vsyncadd [#allocation3], %s14
      %s16 = sshll.u32 [#allocation2], 4
      %s17 = int_to_ptr.vmem [resolvable:$true] %s16
      %22 = dma.hbm_to_vmem [thread:$0]  %s0, 7168, %s17, [#allocation3], 448, 448, 28
    $region5: #{net_forward.4} parent=1 // pred_fallthru
      _
    // Predicated region
    $region6: #{net_forward.4} parent=1 // pred_check
      _
    $region7: #{net_forward.4} parent=1 // pred_check_branch
      %24 = sbr.rel (0) target = $region9
    $region8: #{net_forward.4} parent=1 // pred_region
      %s26 = ssub.s32 6400, 6400
      %27 = vsyncadd [#allocation6], %s26
      %s28 = sshll.u32 [#allocation5], 4
      %s29 = int_to_ptr.vmem [resolvable:$true] %s28
      %34 = dma.hbm_to_vmem [thread:$0]  %s1, 6400, %s29, [#allocation6], 64, 64, 4
    $region9: #{net_forward.4} parent=1 // pred_fallthru
      _
    // Predicated region
    $region10: #{net_forward.4} parent=1 // pred_check
      _
    $region11: #{net_forward.4} parent=1 // pred_check_branch
      %36 = sbr.rel (0) target = $region13
    $region12: #{net_forward.4} parent=1 // pred_region
      %s38 = ssub.s32 16, 16
      %39 = vsyncadd [#allocation6], %s38
      %s41 = sshll.u32 [#allocation7], 4
      %s42 = int_to_ptr.vmem [resolvable:$true] %s41
      %44 = dma.hbm_to_vmem [thread:$0]  %s2, 16, %s42, [#allocation6]
    $region13: #{net_forward.4} parent=1 // pred_fallthru
      _
    // Predicated region
    $region14: #{net_forward.4} parent=1 // pred_check
      _
    $region15: #{net_forward.4} parent=1 // pred_check_branch
      %46 = sbr.rel (0) target = $region17
    $region16: #{net_forward.4} parent=1 // pred_region
      %47 = dma.done [#allocation3], 7168
    $region17: #{net_forward.4} parent=1 // pred_fallthru
      _
    // Predicated region
    $region18: #{net_forward.4} parent=1 // pred_check
      _
    $region19: #{net_forward.4} parent=1 // pred_check_branch
      %49 = sbr.rel (0) target = $region21
    $region20: #{net_forward.4} parent=1 // pred_region
      %50 = dma.done [#allocation6], 6400
    $region21: #{net_forward.4} parent=1 // pred_fallthru
      _
    // Predicated region
    $region22: #{net_forward.4} parent=1 // pred_check
      _
    $region23: #{net_forward.4} parent=1 // pred_check_branch
      %52 = sbr.rel (0) target = $region25
    $region24: #{net_forward.4} parent=1 // pred_region
      %53 = dma.done [#allocation6], 16
    $region25: #{net_forward.4} parent=1 // pred_fallthru
      _
    %v55 = vld [vmem:[#allocation5] sm:$0xf]
    %v56 = vld [vmem:[#allocation5 + $0x4] sm:$0xf]
    %v57 = vld [vmem:[#allocation5 + $0x8] sm:$0xf]
    %v58 = vld [vmem:[#allocation5 + $0xc] sm:$0xf]
    %v59 = vld [vmem:[#allocation5 + $0x10] sm:$0xf]
    %v60 = vld [vmem:[#allocation5 + $0x14] sm:$0xf]
    %v61 = vld [vmem:[#allocation5 + $0x18] sm:$0xf]
    %v62 = vld [vmem:[#allocation5 + $0x1c] sm:$0xf]
    %v63 = vld [vmem:[#allocation5 + $0x20] sm:$0xf]
    %v64 = vld [vmem:[#allocation5 + $0x24] sm:$0xf]
    %v65 = vld [vmem:[#allocation5 + $0x28] sm:$0xf]
    %v66 = vld [vmem:[#allocation5 + $0x2c] sm:$0xf]
    %v67 = vld [vmem:[#allocation5 + $0x30] sm:$0xf]
    %v68 = vld [vmem:[#allocation5 + $0x34] sm:$0xf]
    %v69 = vld [vmem:[#allocation5 + $0x38] sm:$0xf]
    %v70 = vld [vmem:[#allocation5 + $0x3c] sm:$0xf]
    %v71 = vld [vmem:[#allocation5 + $0x40] sm:$0xf]
    %v72 = vld [vmem:[#allocation5 + $0x44] sm:$0xf]
    %v73 = vld [vmem:[#allocation5 + $0x48] sm:$0xf]
    %v74 = vld [vmem:[#allocation5 + $0x4c] sm:$0xf]
    %v75 = vld [vmem:[#allocation5 + $0x50] sm:$0xf]
    %v76 = vld [vmem:[#allocation5 + $0x54] sm:$0xf]
    %v77 = vld [vmem:[#allocation5 + $0x58] sm:$0xf]
    %v78 = vld [vmem:[#allocation5 + $0x5c] sm:$0xf]
    %v79 = vld [vmem:[#allocation5 + $0x60] sm:$0xf]
    %v80 = vld [vmem:[#allocation5 + $0x64] sm:$0xf]
    %v81 = vld [vmem:[#allocation5 + $0x68] sm:$0xf]
    %v82 = vld [vmem:[#allocation5 + $0x6c] sm:$0xf]
    %v83 = vld [vmem:[#allocation5 + $0x70] sm:$0xf]
    %v84 = vld [vmem:[#allocation5 + $0x74] sm:$0xf]
    %v85 = vld [vmem:[#allocation5 + $0x78] sm:$0xf]
    %v86 = vld [vmem:[#allocation5 + $0x7c] sm:$0xf]
    %v87 = vld [vmem:[#allocation5 + $0x80] sm:$0xf]
    %v88 = vld [vmem:[#allocation5 + $0x84] sm:$0xf]
    %v89 = vld [vmem:[#allocation5 + $0x88] sm:$0xf]
    %v90 = vld [vmem:[#allocation5 + $0x8c] sm:$0xf]
    %v91 = vld [vmem:[#allocation5 + $0x90] sm:$0xf]
    %v92 = vld [vmem:[#allocation5 + $0x94] sm:$0xf]
    %v93 = vld [vmem:[#allocation5 + $0x98] sm:$0xf]
    %v94 = vld [vmem:[#allocation5 + $0x9c] sm:$0xf]
    %v95 = vld [vmem:[#allocation5 + $0xa0] sm:$0xf]
    %v96 = vld [vmem:[#allocation5 + $0xa4] sm:$0xf]
    %v97 = vld [vmem:[#allocation5 + $0xa8] sm:$0xf]
    %v98 = vld [vmem:[#allocation5 + $0xac] sm:$0xf]
    %v99 = vld [vmem:[#allocation5 + $0xb0] sm:$0xf]
    %v100 = vld [vmem:[#allocation5 + $0xb4] sm:$0xf]
    %v101 = vld [vmem:[#allocation5 + $0xb8] sm:$0xf]
    %v102 = vld [vmem:[#allocation5 + $0xbc] sm:$0xf]
    %v103 = vld [vmem:[#allocation5 + $0xc0] sm:$0xf]
    %v104 = vld [vmem:[#allocation5 + $0xc4] sm:$0xf]
    %v105 = vld [vmem:[#allocation5 + $0xc8] sm:$0xf]
    %v106 = vld [vmem:[#allocation5 + $0xcc] sm:$0xf]
    %v107 = vld [vmem:[#allocation5 + $0xd0] sm:$0xf]
    %v108 = vld [vmem:[#allocation5 + $0xd4] sm:$0xf]
    %v109 = vld [vmem:[#allocation5 + $0xd8] sm:$0xf]
    %v110 = vld [vmem:[#allocation5 + $0xdc] sm:$0xf]
    %v111 = vld [vmem:[#allocation5 + $0xe0] sm:$0xf]
    %v112 = vld [vmem:[#allocation5 + $0xe4] sm:$0xf]
    %v113 = vld [vmem:[#allocation5 + $0xe8] sm:$0xf]
    %v114 = vld [vmem:[#allocation5 + $0xec] sm:$0xf]
    %v115 = vld [vmem:[#allocation5 + $0xf0] sm:$0xf]
    %v116 = vld [vmem:[#allocation5 + $0xf4] sm:$0xf]
    %v117 = vld [vmem:[#allocation5 + $0xf8] sm:$0xf]
    %v118 = vld [vmem:[#allocation5 + $0xfc] sm:$0xf]
    %v119 = vld [vmem:[#allocation5 + $0x100] sm:$0xf]
    %v120 = vld [vmem:[#allocation5 + $0x104] sm:$0xf]
    %v121 = vld [vmem:[#allocation5 + $0x108] sm:$0xf]
    %v122 = vld [vmem:[#allocation5 + $0x10c] sm:$0xf]
    %v123 = vld [vmem:[#allocation5 + $0x110] sm:$0xf]
    %v124 = vld [vmem:[#allocation5 + $0x114] sm:$0xf]
    %v125 = vld [vmem:[#allocation5 + $0x118] sm:$0xf]
    %v126 = vld [vmem:[#allocation5 + $0x11c] sm:$0xf]
    %v127 = vld [vmem:[#allocation5 + $0x120] sm:$0xf]
    %v128 = vld [vmem:[#allocation5 + $0x124] sm:$0xf]
    %v129 = vld [vmem:[#allocation5 + $0x128] sm:$0xf]
    %v130 = vld [vmem:[#allocation5 + $0x12c] sm:$0xf]
    %v131 = vld [vmem:[#allocation5 + $0x130] sm:$0xf]
    %v132 = vld [vmem:[#allocation5 + $0x134] sm:$0xf]
    %v133 = vld [vmem:[#allocation5 + $0x138] sm:$0xf]
    %v134 = vld [vmem:[#allocation5 + $0x13c] sm:$0xf]
    %v135 = vld [vmem:[#allocation5 + $0x140] sm:$0xf]
    %v136 = vld [vmem:[#allocation5 + $0x144] sm:$0xf]
    %v137 = vld [vmem:[#allocation5 + $0x148] sm:$0xf]
    %v138 = vld [vmem:[#allocation5 + $0x14c] sm:$0xf]
    %v139 = vld [vmem:[#allocation5 + $0x150] sm:$0xf]
    %v140 = vld [vmem:[#allocation5 + $0x154] sm:$0xf]
    %v141 = vld [vmem:[#allocation5 + $0x158] sm:$0xf]
    %v142 = vld [vmem:[#allocation5 + $0x15c] sm:$0xf]
    %v143 = vld [vmem:[#allocation5 + $0x160] sm:$0xf]
    %v144 = vld [vmem:[#allocation5 + $0x164] sm:$0xf]
    %v145 = vld [vmem:[#allocation5 + $0x168] sm:$0xf]
    %v146 = vld [vmem:[#allocation5 + $0x16c] sm:$0xf]
    %v147 = vld [vmem:[#allocation5 + $0x170] sm:$0xf]
    %v148 = vld [vmem:[#allocation5 + $0x174] sm:$0xf]
    %v149 = vld [vmem:[#allocation5 + $0x178] sm:$0xf]
    %v150 = vld [vmem:[#allocation5 + $0x17c] sm:$0xf]
    %v151 = vld [vmem:[#allocation5 + $0x180] sm:$0xf]
    %v152 = vld [vmem:[#allocation5 + $0x184] sm:$0xf]
    %v153 = vld [vmem:[#allocation5 + $0x188] sm:$0xf]
    %v154 = vld [vmem:[#allocation5 + $0x18c] sm:$0xf]
    %v155 = vld [vmem:[#allocation2] sm:$0xff]
    %v156 = vld [vmem:[#allocation2 + $0x8] sm:$0xff]
    %v157 = vld [vmem:[#allocation2 + $0x10] sm:$0xff]
    %v158 = vld [vmem:[#allocation2 + $0x18] sm:$0xf]
    %v159 = vld [vmem:[#allocation2 + $0x1c] sm:$0xff]
    %v160 = vld [vmem:[#allocation2 + $0x24] sm:$0xff]
    %v161 = vld [vmem:[#allocation2 + $0x2c] sm:$0xff]
    %v162 = vld [vmem:[#allocation2 + $0x34] sm:$0xf]
    %v163 = vld [vmem:[#allocation2 + $0x38] sm:$0xff]
    %v164 = vld [vmem:[#allocation2 + $0x40] sm:$0xff]
    %v165 = vld [vmem:[#allocation2 + $0x48] sm:$0xff]
    %v166 = vld [vmem:[#allocation2 + $0x50] sm:$0xf]
    %v167 = vld [vmem:[#allocation2 + $0x54] sm:$0xff]
    %v168 = vld [vmem:[#allocation2 + $0x5c] sm:$0xff]
    %v169 = vld [vmem:[#allocation2 + $0x64] sm:$0xff]
    %v170 = vld [vmem:[#allocation2 + $0x6c] sm:$0xf]
    %v187 = vunpack.c.l.b16 %v155
    %v188 = vunpack.c.h.b16 %v155
    %v189 = vunpack.c.l.b16 %v156
    %v190 = vunpack.c.h.b16 %v156
    %v191 = vunpack.c.l.b16 %v157
    %v192 = vunpack.c.h.b16 %v157
    %v193 = vunpack.c.l.b16 %v158
    %v194 = vunpack.c.l.b16 %v159
    %v195 = vunpack.c.h.b16 %v159
    %v196 = vunpack.c.l.b16 %v160
    %v197 = vunpack.c.h.b16 %v160
    %v198 = vunpack.c.l.b16 %v161
    %v199 = vunpack.c.h.b16 %v161
    %v200 = vunpack.c.l.b16 %v162
    %v201 = vunpack.c.l.b16 %v163
    %v202 = vunpack.c.h.b16 %v163
    %v203 = vunpack.c.l.b16 %v164
    %v204 = vunpack.c.h.b16 %v164
    %v205 = vunpack.c.l.b16 %v165
    %v206 = vunpack.c.h.b16 %v165
    %v207 = vunpack.c.l.b16 %v166
    %v208 = vunpack.c.l.b16 %v167
    %v209 = vunpack.c.h.b16 %v167
    %v210 = vunpack.c.l.b16 %v168
    %v211 = vunpack.c.h.b16 %v168
    %v212 = vunpack.c.l.b16 %v169
    %v213 = vunpack.c.h.b16 %v169
    %v214 = vunpack.c.l.b16 %v170
    %v215 = vpack.c.b16 %v194, %v187
    %v216 = vpack.c.b16 %v195, %v188
    %v217 = vpack.c.b16 %v196, %v189
    %v218 = vpack.c.b16 %v197, %v190
    %v219 = vpack.c.b16 %v198, %v191
    %v220 = vpack.c.b16 %v199, %v192
    %v221 = vpack.c.b16 %v200, %v193
    %v222 = vpack.c.b16 %v208, %v201
    %v223 = vpack.c.b16 %v209, %v202
    %v224 = vpack.c.b16 %v210, %v203
    %v225 = vpack.c.b16 %v211, %v204
    %v226 = vpack.c.b16 %v212, %v205
    %v227 = vpack.c.b16 %v213, %v206
    %v228 = vpack.c.b16 %v214, %v207
    %v341 = vunpack.c.l.b16 %v55
    %v342 = vunpack.c.l.b16 %v56
    %v343 = vunpack.c.l.b16 %v57
    %v344 = vunpack.c.l.b16 %v58
    %v345 = vunpack.c.l.b16 %v59
    %v346 = vunpack.c.l.b16 %v60
    %v347 = vunpack.c.l.b16 %v61
    %v348 = vunpack.c.l.b16 %v62
    %v349 = vunpack.c.l.b16 %v63
    %v350 = vunpack.c.l.b16 %v64
    %v351 = vunpack.c.l.b16 %v65
    %v352 = vunpack.c.l.b16 %v66
    %v353 = vunpack.c.l.b16 %v67
    %v354 = vunpack.c.l.b16 %v68
    %v355 = vunpack.c.l.b16 %v69
    %v356 = vunpack.c.l.b16 %v70
    %v357 = vunpack.c.l.b16 %v71
    %v358 = vunpack.c.l.b16 %v72
    %v359 = vunpack.c.l.b16 %v73
    %v360 = vunpack.c.l.b16 %v74
    %v361 = vunpack.c.l.b16 %v75
    %v362 = vunpack.c.l.b16 %v76
    %v363 = vunpack.c.l.b16 %v77
    %v364 = vunpack.c.l.b16 %v78
    %v365 = vunpack.c.l.b16 %v79
    %v366 = vunpack.c.l.b16 %v80
    %v367 = vunpack.c.l.b16 %v81
    %v368 = vunpack.c.l.b16 %v82
    %v369 = vunpack.c.l.b16 %v83
    %v370 = vunpack.c.l.b16 %v84
    %v371 = vunpack.c.l.b16 %v85
    %v372 = vunpack.c.l.b16 %v86
    %v373 = vunpack.c.l.b16 %v87
    %v374 = vunpack.c.l.b16 %v88
    %v375 = vunpack.c.l.b16 %v89
    %v376 = vunpack.c.l.b16 %v90
    %v377 = vunpack.c.l.b16 %v91
    %v378 = vunpack.c.l.b16 %v92
    %v379 = vunpack.c.l.b16 %v93
    %v380 = vunpack.c.l.b16 %v94
    %v381 = vunpack.c.l.b16 %v95
    %v382 = vunpack.c.l.b16 %v96
    %v383 = vunpack.c.l.b16 %v97
    %v384 = vunpack.c.l.b16 %v98
    %v385 = vunpack.c.l.b16 %v99
    %v386 = vunpack.c.l.b16 %v100
    %v387 = vunpack.c.l.b16 %v101
    %v388 = vunpack.c.l.b16 %v102
    %v389 = vunpack.c.l.b16 %v103
    %v390 = vunpack.c.l.b16 %v104
    %v391 = vunpack.c.l.b16 %v105
    %v392 = vunpack.c.l.b16 %v106
    %v393 = vunpack.c.l.b16 %v107
    %v394 = vunpack.c.l.b16 %v108
    %v395 = vunpack.c.l.b16 %v109
    %v396 = vunpack.c.l.b16 %v110
    %v397 = vunpack.c.l.b16 %v111
    %v398 = vunpack.c.l.b16 %v112
    %v399 = vunpack.c.l.b16 %v113
    %v400 = vunpack.c.l.b16 %v114
    %v401 = vunpack.c.l.b16 %v115
    %v402 = vunpack.c.l.b16 %v116
    %v403 = vunpack.c.l.b16 %v117
    %v404 = vunpack.c.l.b16 %v118
    %v405 = vunpack.c.l.b16 %v119
    %v406 = vunpack.c.l.b16 %v120
    %v407 = vunpack.c.l.b16 %v121
    %v408 = vunpack.c.l.b16 %v122
    %v409 = vunpack.c.l.b16 %v123
    %v410 = vunpack.c.l.b16 %v124
    %v411 = vunpack.c.l.b16 %v125
    %v412 = vunpack.c.l.b16 %v126
    %v413 = vunpack.c.l.b16 %v127
    %v414 = vunpack.c.l.b16 %v128
    %v415 = vunpack.c.l.b16 %v129
    %v416 = vunpack.c.l.b16 %v130
    %v417 = vunpack.c.l.b16 %v131
    %v418 = vunpack.c.l.b16 %v132
    %v419 = vunpack.c.l.b16 %v133
    %v420 = vunpack.c.l.b16 %v134
    %v421 = vunpack.c.l.b16 %v135
    %v422 = vunpack.c.l.b16 %v136
    %v423 = vunpack.c.l.b16 %v137
    %v424 = vunpack.c.l.b16 %v138
    %v425 = vunpack.c.l.b16 %v139
    %v426 = vunpack.c.l.b16 %v140
    %v427 = vunpack.c.l.b16 %v141
    %v428 = vunpack.c.l.b16 %v142
    %v429 = vunpack.c.l.b16 %v143
    %v430 = vunpack.c.l.b16 %v144
    %v431 = vunpack.c.l.b16 %v145
    %v432 = vunpack.c.l.b16 %v146
    %v433 = vunpack.c.l.b16 %v147
    %v434 = vunpack.c.l.b16 %v148
    %v435 = vunpack.c.l.b16 %v149
    %v436 = vunpack.c.l.b16 %v150
    %v437 = vunpack.c.l.b16 %v151
    %v438 = vunpack.c.l.b16 %v152
    %v439 = vunpack.c.l.b16 %v153
    %v440 = vunpack.c.l.b16 %v154
    %v441 = vpack.c.b16 %v342, %v341
    %v442 = vpack.c.b16 %v344, %v343
    %v443 = vpack.c.b16 %v346, %v345
    %v444 = vpack.c.b16 %v348, %v347
    %v445 = vpack.c.b16 %v350, %v349
    %v446 = vpack.c.b16 %v352, %v351
    %v447 = vpack.c.b16 %v354, %v353
    %v448 = vpack.c.b16 %v356, %v355
    %v449 = vpack.c.b16 %v358, %v357
    %v450 = vpack.c.b16 %v360, %v359
    %v451 = vpack.c.b16 %v362, %v361
    %v452 = vpack.c.b16 %v364, %v363
    %v453 = vpack.c.b16 %v366, %v365
    %v454 = vpack.c.b16 %v368, %v367
    %v455 = vpack.c.b16 %v370, %v369
    %v456 = vpack.c.b16 %v372, %v371
    %v457 = vpack.c.b16 %v374, %v373
    %v458 = vpack.c.b16 %v376, %v375
    %v459 = vpack.c.b16 %v378, %v377
    %v460 = vpack.c.b16 %v380, %v379
    %v461 = vpack.c.b16 %v382, %v381
    %v462 = vpack.c.b16 %v384, %v383
    %v463 = vpack.c.b16 %v386, %v385
    %v464 = vpack.c.b16 %v388, %v387
    %v465 = vpack.c.b16 %v390, %v389
    %v466 = vpack.c.b16 %v392, %v391
    %v467 = vpack.c.b16 %v394, %v393
    %v468 = vpack.c.b16 %v396, %v395
    %v469 = vpack.c.b16 %v398, %v397
    %v470 = vpack.c.b16 %v400, %v399
    %v471 = vpack.c.b16 %v402, %v401
    %v472 = vpack.c.b16 %v404, %v403
    %v473 = vpack.c.b16 %v406, %v405
    %v474 = vpack.c.b16 %v408, %v407
    %v475 = vpack.c.b16 %v410, %v409
    %v476 = vpack.c.b16 %v412, %v411
    %v477 = vpack.c.b16 %v414, %v413
    %v478 = vpack.c.b16 %v416, %v415
    %v479 = vpack.c.b16 %v418, %v417
    %v480 = vpack.c.b16 %v420, %v419
    %v481 = vpack.c.b16 %v422, %v421
    %v482 = vpack.c.b16 %v424, %v423
    %v483 = vpack.c.b16 %v426, %v425
    %v484 = vpack.c.b16 %v428, %v427
    %v485 = vpack.c.b16 %v430, %v429
    %v486 = vpack.c.b16 %v432, %v431
    %v487 = vpack.c.b16 %v434, %v433
    %v488 = vpack.c.b16 %v436, %v435
    %v489 = vpack.c.b16 %v438, %v437
    %v490 = vpack.c.b16 %v440, %v439
    %vm541 = vcmask 261120
    %v543 = vsel %vm541, %v221, 0
    %v546 = vsel %vm541, %v228, 0
    %548 = vmatprep.subr.bf16.mxu0 0
    %549 = vmatpush1.bf16.msra.mxu0 %v441
    %550 = vmatprep.subr.bf16.mxu0 0
    %551 = vmatpush1.bf16.msra.mxu0 %v442
    %552 = vmatprep.subr.bf16.mxu0 0
    %553 = vmatpush1.bf16.msra.mxu0 %v443
    %554 = vmatprep.subr.bf16.mxu0 0
    %555 = vmatpush1.bf16.msra.mxu0 %v444
    %556 = vmatprep.subr.bf16.mxu0 0
    %557 = vmatpush1.bf16.msra.mxu0 %v445
    %558 = vmatprep.subr.bf16.mxu0 0
    %559 = vmatpush1.bf16.msra.mxu0 %v446
    %560 = vmatprep.subr.bf16.mxu0 0
    %561 = vmatpush1.bf16.msra.mxu0 %v447
    %562 = vmatprep.subr.bf16.mxu0 0
    %563 = vmatpush1.bf16.msra.mxu0 %v448
    %564 = vmatprep.subr.bf16.mxu0 0
    %565 = vmatpush1.bf16.msra.mxu0 %v449
    %566 = vmatprep.subr.bf16.mxu0 0
    %567 = vmatpush1.bf16.msra.mxu0 %v450
    %568 = vmatprep.subr.bf16.mxu0 0
    %569 = vmatpush1.bf16.msra.mxu0 %v451
    %570 = vmatprep.subr.bf16.mxu0 0
    %571 = vmatpush1.bf16.msra.mxu0 %v452
    %572 = vmatprep.subr.bf16.mxu0 0
    %573 = vmatpush1.bf16.msra.mxu0 %v453
    %574 = vmatprep.subr.bf16.mxu0 0
    %575 = vmatpush1.bf16.msra.mxu0 %v454
    %576 = vmatprep.subr.bf16.mxu0 0
    %577 = vmatpush1.bf16.msra.mxu0 %v455
    %578 = vmatprep.subr.bf16.mxu0 0
    %579 = vmatpush1.bf16.msra.mxu0 %v456
    %580 = vmatprep.mubr.bf16.mxu0 %v216
    %581 = vmatmul.mubr.bf16.gmra.mrb[0].mxu0 %v215
    %v582 = vpop.f32.mrb[0].mxu0
    %v583 = vadd.f32 0.0, %v582
    %v584 = vpop.f32.mrb[0].mxu0
    %v585 = vpop.f32.mrb[0].mxu0
    %v586 = vadd.f32 0.0, %v585
    %v587 = vpop.f32.mrb[0].mxu0
    %588 = vmatprep.mubr.bf16.mxu0 %v223
    %589 = vmatmul.mubr.bf16.gmra.mrb[0].mxu0 %v222
    %v590 = vpop.f32.mrb[0].mxu0
    %v591 = vadd.f32 0.0, %v590
    %v592 = vpop.f32.mrb[0].mxu0
    %v593 = vpop.f32.mrb[0].mxu0
    %v594 = vadd.f32 0.0, %v593
    %v595 = vpop.f32.mrb[0].mxu0
    %596 = vdwg.mxu0
    %597 = vmatprep.subr.bf16.mxu0 0
    %598 = vmatpush1.bf16.msra.mxu0 %v457
    %599 = vmatprep.subr.bf16.mxu0 0
    %600 = vmatpush1.bf16.msra.mxu0 %v458
    %601 = vmatprep.subr.bf16.mxu0 0
    %602 = vmatpush1.bf16.msra.mxu0 %v459
    %603 = vmatprep.subr.bf16.mxu0 0
    %604 = vmatpush1.bf16.msra.mxu0 %v460
    %605 = vmatprep.subr.bf16.mxu0 0
    %606 = vmatpush1.bf16.msra.mxu0 %v461
    %607 = vmatprep.subr.bf16.mxu0 0
    %608 = vmatpush1.bf16.msra.mxu0 %v462
    %609 = vmatprep.subr.bf16.mxu0 0
    %610 = vmatpush1.bf16.msra.mxu0 %v463
    %611 = vmatprep.subr.bf16.mxu0 0
    %612 = vmatpush1.bf16.msra.mxu0 %v464
    %613 = vmatprep.subr.bf16.mxu0 0
    %614 = vmatpush1.bf16.msra.mxu0 %v465
    %615 = vmatprep.subr.bf16.mxu0 0
    %616 = vmatpush1.bf16.msra.mxu0 %v466
    %617 = vmatprep.subr.bf16.mxu0 0
    %618 = vmatpush1.bf16.msra.mxu0 %v467
    %619 = vmatprep.subr.bf16.mxu0 0
    %620 = vmatpush1.bf16.msra.mxu0 %v468
    %621 = vmatprep.subr.bf16.mxu0 0
    %622 = vmatpush1.bf16.msra.mxu0 %v469
    %623 = vmatprep.subr.bf16.mxu0 0
    %624 = vmatpush1.bf16.msra.mxu0 %v470
    %625 = vmatprep.subr.bf16.mxu0 0
    %626 = vmatpush1.bf16.msra.mxu0 %v471
    %627 = vmatprep.subr.bf16.mxu0 0
    %628 = vmatpush1.bf16.msra.mxu0 %v472
    %629 = vmatprep.mubr.bf16.mxu0 %v218
    %630 = vmatmul.mubr.bf16.gmra.mrb[0].mxu0 %v217
    %v631 = vpop.f32.mrb[0].mxu0
    %v632 = vadd.f32 %v583, %v631
    %v633 = vpop.f32.mrb[0].mxu0
    %v634 = vpop.f32.mrb[0].mxu0
    %v635 = vadd.f32 %v586, %v634
    %v636 = vpop.f32.mrb[0].mxu0
    %637 = vmatprep.mubr.bf16.mxu0 %v225
    %638 = vmatmul.mubr.bf16.gmra.mrb[0].mxu0 %v224
    %v639 = vpop.f32.mrb[0].mxu0
    %v640 = vadd.f32 %v591, %v639
    %v641 = vpop.f32.mrb[0].mxu0
    %v642 = vpop.f32.mrb[0].mxu0
    %v643 = vadd.f32 %v594, %v642
    %v644 = vpop.f32.mrb[0].mxu0
    %645 = vdwg.mxu0
    %646 = vmatprep.subr.bf16.mxu0 0
    %647 = vmatpush1.bf16.msra.mxu0 %v473
    %648 = vmatprep.subr.bf16.mxu0 0
    %649 = vmatpush1.bf16.msra.mxu0 %v474
    %650 = vmatprep.subr.bf16.mxu0 0
    %651 = vmatpush1.bf16.msra.mxu0 %v475
    %652 = vmatprep.subr.bf16.mxu0 0
    %653 = vmatpush1.bf16.msra.mxu0 %v476
    %654 = vmatprep.subr.bf16.mxu0 0
    %655 = vmatpush1.bf16.msra.mxu0 %v477
    %656 = vmatprep.subr.bf16.mxu0 0
    %657 = vmatpush1.bf16.msra.mxu0 %v478
    %658 = vmatprep.subr.bf16.mxu0 0
    %659 = vmatpush1.bf16.msra.mxu0 %v479
    %660 = vmatprep.subr.bf16.mxu0 0
    %661 = vmatpush1.bf16.msra.mxu0 %v480
    %662 = vmatprep.subr.bf16.mxu0 0
    %663 = vmatpush1.bf16.msra.mxu0 %v481
    %664 = vmatprep.subr.bf16.mxu0 0
    %665 = vmatpush1.bf16.msra.mxu0 %v482
    %666 = vmatprep.subr.bf16.mxu0 0
    %667 = vmatpush1.bf16.msra.mxu0 %v483
    %668 = vmatprep.subr.bf16.mxu0 0
    %669 = vmatpush1.bf16.msra.mxu0 %v484
    %670 = vmatprep.subr.bf16.mxu0 0
    %671 = vmatpush1.bf16.msra.mxu0 %v485
    %672 = vmatprep.subr.bf16.mxu0 0
    %673 = vmatpush1.bf16.msra.mxu0 %v486
    %674 = vmatprep.subr.bf16.mxu0 0
    %675 = vmatpush1.bf16.msra.mxu0 %v487
    %676 = vmatprep.subr.bf16.mxu0 0
    %677 = vmatpush1.bf16.msra.mxu0 %v488
    %678 = vmatprep.mubr.bf16.mxu0 %v220
    %679 = vmatmul.mubr.bf16.gmra.mrb[0].mxu0 %v219
    %v680 = vpop.f32.mrb[0].mxu0
    %v681 = vadd.f32 %v632, %v680
    %v682 = vpop.f32.mrb[0].mxu0
    %v683 = vpop.f32.mrb[0].mxu0
    %v684 = vadd.f32 %v635, %v683
    %v685 = vpop.f32.mrb[0].mxu0
    %686 = vmatprep.mubr.bf16.mxu0 %v227
    %687 = vmatmul.mubr.bf16.gmra.mrb[0].mxu0 %v226
    %v688 = vpop.f32.mrb[0].mxu0
    %v689 = vadd.f32 %v640, %v688
    %v690 = vpop.f32.mrb[0].mxu0
    %v691 = vpop.f32.mrb[0].mxu0
    %v692 = vadd.f32 %v643, %v691
    %v693 = vpop.f32.mrb[0].mxu0
    %694 = vdwg.mxu0
    %695 = vmatprep.subr.bf16.mxu0 0
    %696 = vmatpush1.bf16.msra.mxu0 %v489
    %697 = vmatprep.subr.bf16.mxu0 0
    %698 = vmatpush1.bf16.msra.mxu0 %v490
    %699 = vmatprep.subr.bf16.mxu0 0
    %700 = vmatpush1.bf16.msra.mxu0 0
    %701 = vmatprep.subr.bf16.mxu0 0
    %702 = vmatpush1.bf16.msra.mxu0 0
    %703 = vmatprep.subr.bf16.mxu0 0
    %704 = vmatpush1.bf16.msra.mxu0 0
    %705 = vmatprep.subr.bf16.mxu0 0
    %706 = vmatpush1.bf16.msra.mxu0 0
    %707 = vmatprep.subr.bf16.mxu0 0
    %708 = vmatpush1.bf16.msra.mxu0 0
    %709 = vmatprep.subr.bf16.mxu0 0
    %710 = vmatpush1.bf16.msra.mxu0 0
    %711 = vmatprep.subr.bf16.mxu0 0
    %712 = vmatpush1.bf16.msra.mxu0 0
    %713 = vmatprep.subr.bf16.mxu0 0
    %714 = vmatpush1.bf16.msra.mxu0 0
    %715 = vmatprep.subr.bf16.mxu0 0
    %716 = vmatpush1.bf16.msra.mxu0 0
    %717 = vmatprep.subr.bf16.mxu0 0
    %718 = vmatpush1.bf16.msra.mxu0 0
    %719 = vmatprep.subr.bf16.mxu0 0
    %720 = vmatpush1.bf16.msra.mxu0 0
    %721 = vmatprep.subr.bf16.mxu0 0
    %722 = vmatpush1.bf16.msra.mxu0 0
    %723 = vmatprep.subr.bf16.mxu0 0
    %724 = vmatpush1.bf16.msra.mxu0 0
    %725 = vmatprep.subr.bf16.mxu0 0
    %726 = vmatpush1.bf16.msra.mxu0 0
    %727 = vmatprep.mubr.bf16.mxu0 0
    %728 = vmatmul.mubr.bf16.gmra.mrb[0].mxu0 %v543
    %v729 = vpop.f32.mrb[0].mxu0
    %v730 = vadd.f32 %v681, %v729
    %v731 = vpop.f32.mrb[0].mxu0
    %v732 = vpop.f32.mrb[0].mxu0
    %v733 = vadd.f32 %v684, %v732
    %v734 = vpop.f32.mrb[0].mxu0
    %735 = vmatprep.mubr.bf16.mxu0 0
    %736 = vmatmul.mubr.bf16.gmra.mrb[0].mxu0 %v546
    %v737 = vpop.f32.mrb[0].mxu0
    %v738 = vadd.f32 %v689, %v737
    %v739 = vpop.f32.mrb[0].mxu0
    %v740 = vpop.f32.mrb[0].mxu0
    %v741 = vadd.f32 %v692, %v740
    %v742 = vpop.f32.mrb[0].mxu0
    %743 = vdwg.mxu0
    %s744 = scalar_lea.vmem [#allocation2], 112
    %v745 = vld [vmem:[%s744] sm:$0xff]
    %v746 = vld [vmem:[%s744 + $0x8] sm:$0xff]
    %v747 = vld [vmem:[%s744 + $0x10] sm:$0xff]
    %v748 = vld [vmem:[%s744 + $0x18] sm:$0xf]
    %v749 = vld [vmem:[%s744 + $0x1c] sm:$0xff]
    %v750 = vld [vmem:[%s744 + $0x24] sm:$0xff]
    %v751 = vld [vmem:[%s744 + $0x2c] sm:$0xff]
    %v752 = vld [vmem:[%s744 + $0x34] sm:$0xf]
    %v753 = vld [vmem:[%s744 + $0x38] sm:$0xff]
    %v754 = vld [vmem:[%s744 + $0x40] sm:$0xff]
    %v755 = vld [vmem:[%s744 + $0x48] sm:$0xff]
    %v756 = vld [vmem:[%s744 + $0x50] sm:$0xf]
    %v757 = vld [vmem:[%s744 + $0x54] sm:$0xff]
    %v758 = vld [vmem:[%s744 + $0x5c] sm:$0xff]
    %v759 = vld [vmem:[%s744 + $0x64] sm:$0xff]
    %v760 = vld [vmem:[%s744 + $0x6c] sm:$0xf]
    %v777 = vunpack.c.l.b16 %v745
    %v778 = vunpack.c.h.b16 %v745
    %v779 = vunpack.c.l.b16 %v746
    %v780 = vunpack.c.h.b16 %v746
    %v781 = vunpack.c.l.b16 %v747
    %v782 = vunpack.c.h.b16 %v747
    %v783 = vunpack.c.l.b16 %v748
    %v784 = vunpack.c.l.b16 %v749
    %v785 = vunpack.c.h.b16 %v749
    %v786 = vunpack.c.l.b16 %v750
    %v787 = vunpack.c.h.b16 %v750
    %v788 = vunpack.c.l.b16 %v751
    %v789 = vunpack.c.h.b16 %v751
    %v790 = vunpack.c.l.b16 %v752
    %v791 = vunpack.c.l.b16 %v753
    %v792 = vunpack.c.h.b16 %v753
    %v793 = vunpack.c.l.b16 %v754
    %v794 = vunpack.c.h.b16 %v754
    %v795 = vunpack.c.l.b16 %v755
    %v796 = vunpack.c.h.b16 %v755
    %v797 = vunpack.c.l.b16 %v756
    %v798 = vunpack.c.l.b16 %v757
    %v799 = vunpack.c.h.b16 %v757
    %v800 = vunpack.c.l.b16 %v758
    %v801 = vunpack.c.h.b16 %v758
    %v802 = vunpack.c.l.b16 %v759
    %v803 = vunpack.c.h.b16 %v759
    %v804 = vunpack.c.l.b16 %v760
    %v805 = vpack.c.b16 %v784, %v777
    %v806 = vpack.c.b16 %v785, %v778
    %v807 = vpack.c.b16 %v786, %v779
    %v808 = vpack.c.b16 %v787, %v780
    %v809 = vpack.c.b16 %v788, %v781
    %v810 = vpack.c.b16 %v789, %v782
    %v811 = vpack.c.b16 %v790, %v783
    %v812 = vpack.c.b16 %v798, %v791
    %v813 = vpack.c.b16 %v799, %v792
    %v814 = vpack.c.b16 %v800, %v793
    %v815 = vpack.c.b16 %v801, %v794
    %v816 = vpack.c.b16 %v802, %v795
    %v817 = vpack.c.b16 %v803, %v796
    %v818 = vpack.c.b16 %v804, %v797
    %v832 = vsel %vm541, %v811, 0
    %v835 = vsel %vm541, %v818, 0
    %837 = vmatprep.subr.bf16.mxu0 0
    %838 = vmatpush1.bf16.msra.mxu0 %v441
    %839 = vmatprep.subr.bf16.mxu0 0
    %840 = vmatpush1.bf16.msra.mxu0 %v442
    %841 = vmatprep.subr.bf16.mxu0 0
    %842 = vmatpush1.bf16.msra.mxu0 %v443
    %843 = vmatprep.subr.bf16.mxu0 0
    %844 = vmatpush1.bf16.msra.mxu0 %v444
    %845 = vmatprep.subr.bf16.mxu0 0
    %846 = vmatpush1.bf16.msra.mxu0 %v445
    %847 = vmatprep.subr.bf16.mxu0 0
    %848 = vmatpush1.bf16.msra.mxu0 %v446
    %849 = vmatprep.subr.bf16.mxu0 0
    %850 = vmatpush1.bf16.msra.mxu0 %v447
    %851 = vmatprep.subr.bf16.mxu0 0
    %852 = vmatpush1.bf16.msra.mxu0 %v448
    %853 = vmatprep.subr.bf16.mxu0 0
    %854 = vmatpush1.bf16.msra.mxu0 %v449
    %855 = vmatprep.subr.bf16.mxu0 0
    %856 = vmatpush1.bf16.msra.mxu0 %v450
    %857 = vmatprep.subr.bf16.mxu0 0
    %858 = vmatpush1.bf16.msra.mxu0 %v451
    %859 = vmatprep.subr.bf16.mxu0 0
    %860 = vmatpush1.bf16.msra.mxu0 %v452
    %861 = vmatprep.subr.bf16.mxu0 0
    %862 = vmatpush1.bf16.msra.mxu0 %v453
    %863 = vmatprep.subr.bf16.mxu0 0
    %864 = vmatpush1.bf16.msra.mxu0 %v454
    %865 = vmatprep.subr.bf16.mxu0 0
    %866 = vmatpush1.bf16.msra.mxu0 %v455
    %867 = vmatprep.subr.bf16.mxu0 0
    %868 = vmatpush1.bf16.msra.mxu0 %v456
    %869 = vmatprep.mubr.bf16.mxu0 %v806
    %870 = vmatmul.mubr.bf16.gmra.mrb[0].mxu0 %v805
    %v871 = vpop.f32.mrb[0].mxu0
    %v872 = vadd.f32 0.0, %v871
    %v873 = vpop.f32.mrb[0].mxu0
    %v874 = vpop.f32.mrb[0].mxu0
    %v875 = vadd.f32 0.0, %v874
    %v876 = vpop.f32.mrb[0].mxu0
    %877 = vmatprep.mubr.bf16.mxu0 %v813
    %878 = vmatmul.mubr.bf16.gmra.mrb[0].mxu0 %v812
    %v879 = vpop.f32.mrb[0].mxu0
    %v880 = vadd.f32 0.0, %v879
    %v881 = vpop.f32.mrb[0].mxu0
    %v882 = vpop.f32.mrb[0].mxu0
    %v883 = vadd.f32 0.0, %v882
    %v884 = vpop.f32.mrb[0].mxu0
    %885 = vdwg.mxu0
    %886 = vmatprep.subr.bf16.mxu0 0
    %887 = vmatpush1.bf16.msra.mxu0 %v457
    %888 = vmatprep.subr.bf16.mxu0 0
    %889 = vmatpush1.bf16.msra.mxu0 %v458
    %890 = vmatprep.subr.bf16.mxu0 0
    %891 = vmatpush1.bf16.msra.mxu0 %v459
    %892 = vmatprep.subr.bf16.mxu0 0
    %893 = vmatpush1.bf16.msra.mxu0 %v460
    %894 = vmatprep.subr.bf16.mxu0 0
    %895 = vmatpush1.bf16.msra.mxu0 %v461
    %896 = vmatprep.subr.bf16.mxu0 0
    %897 = vmatpush1.bf16.msra.mxu0 %v462
    %898 = vmatprep.subr.bf16.mxu0 0
    %899 = vmatpush1.bf16.msra.mxu0 %v463
    %900 = vmatprep.subr.bf16.mxu0 0
    %901 = vmatpush1.bf16.msra.mxu0 %v464
    %902 = vmatprep.subr.bf16.mxu0 0
    %903 = vmatpush1.bf16.msra.mxu0 %v465
    %904 = vmatprep.subr.bf16.mxu0 0
    %905 = vmatpush1.bf16.msra.mxu0 %v466
    %906 = vmatprep.subr.bf16.mxu0 0
    %907 = vmatpush1.bf16.msra.mxu0 %v467
    %908 = vmatprep.subr.bf16.mxu0 0
    %909 = vmatpush1.bf16.msra.mxu0 %v468
    %910 = vmatprep.subr.bf16.mxu0 0
    %911 = vmatpush1.bf16.msra.mxu0 %v469
    %912 = vmatprep.subr.bf16.mxu0 0
    %913 = vmatpush1.bf16.msra.mxu0 %v470
    %914 = vmatprep.subr.bf16.mxu0 0
    %915 = vmatpush1.bf16.msra.mxu0 %v471
    %916 = vmatprep.subr.bf16.mxu0 0
    %917 = vmatpush1.bf16.msra.mxu0 %v472
    %918 = vmatprep.mubr.bf16.mxu0 %v808
    %919 = vmatmul.mubr.bf16.gmra.mrb[0].mxu0 %v807
    %v920 = vpop.f32.mrb[0].mxu0
    %v921 = vadd.f32 %v872, %v920
    %v922 = vpop.f32.mrb[0].mxu0
    %v923 = vpop.f32.mrb[0].mxu0
    %v924 = vadd.f32 %v875, %v923
    %v925 = vpop.f32.mrb[0].mxu0
    %926 = vmatprep.mubr.bf16.mxu0 %v815
    %927 = vmatmul.mubr.bf16.gmra.mrb[0].mxu0 %v814
    %v928 = vpop.f32.mrb[0].mxu0
    %v929 = vadd.f32 %v880, %v928
    %v930 = vpop.f32.mrb[0].mxu0
    %v931 = vpop.f32.mrb[0].mxu0
    %v932 = vadd.f32 %v883, %v931
    %v933 = vpop.f32.mrb[0].mxu0
    %934 = vdwg.mxu0
    %935 = vmatprep.subr.bf16.mxu0 0
    %936 = vmatpush1.bf16.msra.mxu0 %v473
    %937 = vmatprep.subr.bf16.mxu0 0
    %938 = vmatpush1.bf16.msra.mxu0 %v474
    %939 = vmatprep.subr.bf16.mxu0 0
    %940 = vmatpush1.bf16.msra.mxu0 %v475
    %941 = vmatprep.subr.bf16.mxu0 0
    %942 = vmatpush1.bf16.msra.mxu0 %v476
    %943 = vmatprep.subr.bf16.mxu0 0
    %944 = vmatpush1.bf16.msra.mxu0 %v477
    %945 = vmatprep.subr.bf16.mxu0 0
    %946 = vmatpush1.bf16.msra.mxu0 %v478
    %947 = vmatprep.subr.bf16.mxu0 0
    %948 = vmatpush1.bf16.msra.mxu0 %v479
    %949 = vmatprep.subr.bf16.mxu0 0
    %950 = vmatpush1.bf16.msra.mxu0 %v480
    %951 = vmatprep.subr.bf16.mxu0 0
    %952 = vmatpush1.bf16.msra.mxu0 %v481
    %953 = vmatprep.subr.bf16.mxu0 0
    %954 = vmatpush1.bf16.msra.mxu0 %v482
    %955 = vmatprep.subr.bf16.mxu0 0
    %956 = vmatpush1.bf16.msra.mxu0 %v483
    %957 = vmatprep.subr.bf16.mxu0 0
    %958 = vmatpush1.bf16.msra.mxu0 %v484
    %959 = vmatprep.subr.bf16.mxu0 0
    %960 = vmatpush1.bf16.msra.mxu0 %v485
    %961 = vmatprep.subr.bf16.mxu0 0
    %962 = vmatpush1.bf16.msra.mxu0 %v486
    %963 = vmatprep.subr.bf16.mxu0 0
    %964 = vmatpush1.bf16.msra.mxu0 %v487
    %965 = vmatprep.subr.bf16.mxu0 0
    %966 = vmatpush1.bf16.msra.mxu0 %v488
    %967 = vmatprep.mubr.bf16.mxu0 %v810
    %968 = vmatmul.mubr.bf16.gmra.mrb[0].mxu0 %v809
    %v969 = vpop.f32.mrb[0].mxu0
    %v970 = vadd.f32 %v921, %v969
    %v971 = vpop.f32.mrb[0].mxu0
    %v972 = vpop.f32.mrb[0].mxu0
    %v973 = vadd.f32 %v924, %v972
    %v974 = vpop.f32.mrb[0].mxu0
    %975 = vmatprep.mubr.bf16.mxu0 %v817
    %976 = vmatmul.mubr.bf16.gmra.mrb[0].mxu0 %v816
    %v977 = vpop.f32.mrb[0].mxu0
    %v978 = vadd.f32 %v929, %v977
    %v979 = vpop.f32.mrb[0].mxu0
    %v980 = vpop.f32.mrb[0].mxu0
    %v981 = vadd.f32 %v932, %v980
    %v982 = vpop.f32.mrb[0].mxu0
    %983 = vdwg.mxu0
    %984 = vmatprep.subr.bf16.mxu0 0
    %985 = vmatpush1.bf16.msra.mxu0 %v489
    %986 = vmatprep.subr.bf16.mxu0 0
    %987 = vmatpush1.bf16.msra.mxu0 %v490
    %988 = vmatprep.subr.bf16.mxu0 0
    %989 = vmatpush1.bf16.msra.mxu0 0
    %990 = vmatprep.subr.bf16.mxu0 0
    %991 = vmatpush1.bf16.msra.mxu0 0
    %992 = vmatprep.subr.bf16.mxu0 0
    %993 = vmatpush1.bf16.msra.mxu0 0
    %994 = vmatprep.subr.bf16.mxu0 0
    %995 = vmatpush1.bf16.msra.mxu0 0
    %996 = vmatprep.subr.bf16.mxu0 0
    %997 = vmatpush1.bf16.msra.mxu0 0
    %998 = vmatprep.subr.bf16.mxu0 0
    %999 = vmatpush1.bf16.msra.mxu0 0
    %1000 = vmatprep.subr.bf16.mxu0 0
    %1001 = vmatpush1.bf16.msra.mxu0 0
    %1002 = vmatprep.subr.bf16.mxu0 0
    %1003 = vmatpush1.bf16.msra.mxu0 0
    %1004 = vmatprep.subr.bf16.mxu0 0
    %1005 = vmatpush1.bf16.msra.mxu0 0
    %1006 = vmatprep.subr.bf16.mxu0 0
    %1007 = vmatpush1.bf16.msra.mxu0 0
    %1008 = vmatprep.subr.bf16.mxu0 0
    %1009 = vmatpush1.bf16.msra.mxu0 0
    %1010 = vmatprep.subr.bf16.mxu0 0
    %1011 = vmatpush1.bf16.msra.mxu0 0
    %1012 = vmatprep.subr.bf16.mxu0 0
    %1013 = vmatpush1.bf16.msra.mxu0 0
    %1014 = vmatprep.subr.bf16.mxu0 0
    %1015 = vmatpush1.bf16.msra.mxu0 0
    %1016 = vmatprep.mubr.bf16.mxu0 0
    %1017 = vmatmul.mubr.bf16.gmra.mrb[0].mxu0 %v832
    %v1018 = vpop.f32.mrb[0].mxu0
    %v1019 = vadd.f32 %v970, %v1018
    %v1020 = vpop.f32.mrb[0].mxu0
    %v1021 = vpop.f32.mrb[0].mxu0
    %v1022 = vadd.f32 %v973, %v1021
    %v1023 = vpop.f32.mrb[0].mxu0
    %1024 = vmatprep.mubr.bf16.mxu0 0
    %1025 = vmatmul.mubr.bf16.gmra.mrb[0].mxu0 %v835
    %v1026 = vpop.f32.mrb[0].mxu0
    %v1027 = vadd.f32 %v978, %v1026
    %v1028 = vpop.f32.mrb[0].mxu0
    %v1029 = vpop.f32.mrb[0].mxu0
    %v1030 = vadd.f32 %v981, %v1029
    %v1031 = vpop.f32.mrb[0].mxu0
    %1032 = vdwg.mxu0
    %v1033 = vmax.f32 %v730, %v1019
    %v1034 = vmax.f32 %v733, %v1022
    %v1035 = vmax.f32 %v738, %v1027
    %v1036 = vmax.f32 %v741, %v1030
    %s1037 = scalar_lea.vmem [#allocation2], 224
    %v1038 = vld [vmem:[%s1037] sm:$0xff]
    %v1039 = vld [vmem:[%s1037 + $0x8] sm:$0xff]
    %v1040 = vld [vmem:[%s1037 + $0x10] sm:$0xff]
    %v1041 = vld [vmem:[%s1037 + $0x18] sm:$0xf]
    %v1042 = vld [vmem:[%s1037 + $0x1c] sm:$0xff]
    %v1043 = vld [vmem:[%s1037 + $0x24] sm:$0xff]
    %v1044 = vld [vmem:[%s1037 + $0x2c] sm:$0xff]
    %v1045 = vld [vmem:[%s1037 + $0x34] sm:$0xf]
    %v1046 = vld [vmem:[%s1037 + $0x38] sm:$0xff]
    %v1047 = vld [vmem:[%s1037 + $0x40] sm:$0xff]
    %v1048 = vld [vmem:[%s1037 + $0x48] sm:$0xff]
    %v1049 = vld [vmem:[%s1037 + $0x50] sm:$0xf]
    %v1050 = vld [vmem:[%s1037 + $0x54] sm:$0xff]
    %v1051 = vld [vmem:[%s1037 + $0x5c] sm:$0xff]
    %v1052 = vld [vmem:[%s1037 + $0x64] sm:$0xff]
    %v1053 = vld [vmem:[%s1037 + $0x6c] sm:$0xf]
    %v1070 = vunpack.c.l.b16 %v1038
    %v1071 = vunpack.c.h.b16 %v1038
    %v1072 = vunpack.c.l.b16 %v1039
    %v1073 = vunpack.c.h.b16 %v1039
    %v1074 = vunpack.c.l.b16 %v1040
    %v1075 = vunpack.c.h.b16 %v1040
    %v1076 = vunpack.c.l.b16 %v1041
    %v1077 = vunpack.c.l.b16 %v1042
    %v1078 = vunpack.c.h.b16 %v1042
    %v1079 = vunpack.c.l.b16 %v1043
    %v1080 = vunpack.c.h.b16 %v1043
    %v1081 = vunpack.c.l.b16 %v1044
    %v1082 = vunpack.c.h.b16 %v1044
    %v1083 = vunpack.c.l.b16 %v1045
    %v1084 = vunpack.c.l.b16 %v1046
    %v1085 = vunpack.c.h.b16 %v1046
    %v1086 = vunpack.c.l.b16 %v1047
    %v1087 = vunpack.c.h.b16 %v1047
    %v1088 = vunpack.c.l.b16 %v1048
    %v1089 = vunpack.c.h.b16 %v1048
    %v1090 = vunpack.c.l.b16 %v1049
    %v1091 = vunpack.c.l.b16 %v1050
    %v1092 = vunpack.c.h.b16 %v1050
    %v1093 = vunpack.c.l.b16 %v1051
    %v1094 = vunpack.c.h.b16 %v1051
    %v1095 = vunpack.c.l.b16 %v1052
    %v1096 = vunpack.c.h.b16 %v1052
    %v1097 = vunpack.c.l.b16 %v1053
    %v1098 = vpack.c.b16 %v1077, %v1070
    %v1099 = vpack.c.b16 %v1078, %v1071
    %v1100 = vpack.c.b16 %v1079, %v1072
    %v1101 = vpack.c.b16 %v1080, %v1073
    %v1102 = vpack.c.b16 %v1081, %v1074
    %v1103 = vpack.c.b16 %v1082, %v1075
    %v1104 = vpack.c.b16 %v1083, %v1076
    %v1105 = vpack.c.b16 %v1091, %v1084
    %v1106 = vpack.c.b16 %v1092, %v1085
    %v1107 = vpack.c.b16 %v1093, %v1086
    %v1108 = vpack.c.b16 %v1094, %v1087
    %v1109 = vpack.c.b16 %v1095, %v1088
    %v1110 = vpack.c.b16 %v1096, %v1089
    %v1111 = vpack.c.b16 %v1097, %v1090
    %v1125 = vsel %vm541, %v1104, 0
    %v1128 = vsel %vm541, %v1111, 0
    %1130 = vmatprep.subr.bf16.mxu0 0
    %1131 = vmatpush1.bf16.msra.mxu0 %v441
    %1132 = vmatprep.subr.bf16.mxu0 0
    %1133 = vmatpush1.bf16.msra.mxu0 %v442
    %1134 = vmatprep.subr.bf16.mxu0 0
    %1135 = vmatpush1.bf16.msra.mxu0 %v443
    %1136 = vmatprep.subr.bf16.mxu0 0
    %1137 = vmatpush1.bf16.msra.mxu0 %v444
    %1138 = vmatprep.subr.bf16.mxu0 0
    %1139 = vmatpush1.bf16.msra.mxu0 %v445
    %1140 = vmatprep.subr.bf16.mxu0 0
    %1141 = vmatpush1.bf16.msra.mxu0 %v446
    %1142 = vmatprep.subr.bf16.mxu0 0
    %1143 = vmatpush1.bf16.msra.mxu0 %v447
    %1144 = vmatprep.subr.bf16.mxu0 0
    %1145 = vmatpush1.bf16.msra.mxu0 %v448
    %1146 = vmatprep.subr.bf16.mxu0 0
    %1147 = vmatpush1.bf16.msra.mxu0 %v449
    %1148 = vmatprep.subr.bf16.mxu0 0
    %1149 = vmatpush1.bf16.msra.mxu0 %v450
    %1150 = vmatprep.subr.bf16.mxu0 0
    %1151 = vmatpush1.bf16.msra.mxu0 %v451
    %1152 = vmatprep.subr.bf16.mxu0 0
    %1153 = vmatpush1.bf16.msra.mxu0 %v452
    %1154 = vmatprep.subr.bf16.mxu0 0
    %1155 = vmatpush1.bf16.msra.mxu0 %v453
    %1156 = vmatprep.subr.bf16.mxu0 0
    %1157 = vmatpush1.bf16.msra.mxu0 %v454
    %1158 = vmatprep.subr.bf16.mxu0 0
    %1159 = vmatpush1.bf16.msra.mxu0 %v455
    %1160 = vmatprep.subr.bf16.mxu0 0
    %1161 = vmatpush1.bf16.msra.mxu0 %v456
    %1162 = vmatprep.mubr.bf16.mxu0 %v1099
    %1163 = vmatmul.mubr.bf16.gmra.mrb[0].mxu0 %v1098
    %v1164 = vpop.f32.mrb[0].mxu0
    %v1165 = vadd.f32 0.0, %v1164
    %v1166 = vpop.f32.mrb[0].mxu0
    %v1167 = vpop.f32.mrb[0].mxu0
    %v1168 = vadd.f32 0.0, %v1167
    %v1169 = vpop.f32.mrb[0].mxu0
    %1170 = vmatprep.mubr.bf16.mxu0 %v1106
    %1171 = vmatmul.mubr.bf16.gmra.mrb[0].mxu0 %v1105
    %v1172 = vpop.f32.mrb[0].mxu0
    %v1173 = vadd.f32 0.0, %v1172
    %v1174 = vpop.f32.mrb[0].mxu0
    %v1175 = vpop.f32.mrb[0].mxu0
    %v1176 = vadd.f32 0.0, %v1175
    %v1177 = vpop.f32.mrb[0].mxu0
    %1178 = vdwg.mxu0
    %1179 = vmatprep.subr.bf16.mxu0 0
    %1180 = vmatpush1.bf16.msra.mxu0 %v457
    %1181 = vmatprep.subr.bf16.mxu0 0
    %1182 = vmatpush1.bf16.msra.mxu0 %v458
    %1183 = vmatprep.subr.bf16.mxu0 0
    %1184 = vmatpush1.bf16.msra.mxu0 %v459
    %1185 = vmatprep.subr.bf16.mxu0 0
    %1186 = vmatpush1.bf16.msra.mxu0 %v460
    %1187 = vmatprep.subr.bf16.mxu0 0
    %1188 = vmatpush1.bf16.msra.mxu0 %v461
    %1189 = vmatprep.subr.bf16.mxu0 0
    %1190 = vmatpush1.bf16.msra.mxu0 %v462
    %1191 = vmatprep.subr.bf16.mxu0 0
    %1192 = vmatpush1.bf16.msra.mxu0 %v463
    %1193 = vmatprep.subr.bf16.mxu0 0
    %1194 = vmatpush1.bf16.msra.mxu0 %v464
    %1195 = vmatprep.subr.bf16.mxu0 0
    %1196 = vmatpush1.bf16.msra.mxu0 %v465
    %1197 = vmatprep.subr.bf16.mxu0 0
    %1198 = vmatpush1.bf16.msra.mxu0 %v466
    %1199 = vmatprep.subr.bf16.mxu0 0
    %1200 = vmatpush1.bf16.msra.mxu0 %v467
    %1201 = vmatprep.subr.bf16.mxu0 0
    %1202 = vmatpush1.bf16.msra.mxu0 %v468
    %1203 = vmatprep.subr.bf16.mxu0 0
    %1204 = vmatpush1.bf16.msra.mxu0 %v469
    %1205 = vmatprep.subr.bf16.mxu0 0
    %1206 = vmatpush1.bf16.msra.mxu0 %v470
    %1207 = vmatprep.subr.bf16.mxu0 0
    %1208 = vmatpush1.bf16.msra.mxu0 %v471
    %1209 = vmatprep.subr.bf16.mxu0 0
    %1210 = vmatpush1.bf16.msra.mxu0 %v472
    %1211 = vmatprep.mubr.bf16.mxu0 %v1101
    %1212 = vmatmul.mubr.bf16.gmra.mrb[0].mxu0 %v1100
    %v1213 = vpop.f32.mrb[0].mxu0
    %v1214 = vadd.f32 %v1165, %v1213
    %v1215 = vpop.f32.mrb[0].mxu0
    %v1216 = vpop.f32.mrb[0].mxu0
    %v1217 = vadd.f32 %v1168, %v1216
    %v1218 = vpop.f32.mrb[0].mxu0
    %1219 = vmatprep.mubr.bf16.mxu0 %v1108
    %1220 = vmatmul.mubr.bf16.gmra.mrb[0].mxu0 %v1107
    %v1221 = vpop.f32.mrb[0].mxu0
    %v1222 = vadd.f32 %v1173, %v1221
    %v1223 = vpop.f32.mrb[0].mxu0
    %v1224 = vpop.f32.mrb[0].mxu0
    %v1225 = vadd.f32 %v1176, %v1224
    %v1226 = vpop.f32.mrb[0].mxu0
    %1227 = vdwg.mxu0
    %1228 = vmatprep.subr.bf16.mxu0 0
    %1229 = vmatpush1.bf16.msra.mxu0 %v473
    %1230 = vmatprep.subr.bf16.mxu0 0
    %1231 = vmatpush1.bf16.msra.mxu0 %v474
    %1232 = vmatprep.subr.bf16.mxu0 0
    %1233 = vmatpush1.bf16.msra.mxu0 %v475
    %1234 = vmatprep.subr.bf16.mxu0 0
    %1235 = vmatpush1.bf16.msra.mxu0 %v476
    %1236 = vmatprep.subr.bf16.mxu0 0
    %1237 = vmatpush1.bf16.msra.mxu0 %v477
    %1238 = vmatprep.subr.bf16.mxu0 0
    %1239 = vmatpush1.bf16.msra.mxu0 %v478
    %1240 = vmatprep.subr.bf16.mxu0 0
    %1241 = vmatpush1.bf16.msra.mxu0 %v479
    %1242 = vmatprep.subr.bf16.mxu0 0
    %1243 = vmatpush1.bf16.msra.mxu0 %v480
    %1244 = vmatprep.subr.bf16.mxu0 0
    %1245 = vmatpush1.bf16.msra.mxu0 %v481
    %1246 = vmatprep.subr.bf16.mxu0 0
    %1247 = vmatpush1.bf16.msra.mxu0 %v482
    %1248 = vmatprep.subr.bf16.mxu0 0
    %1249 = vmatpush1.bf16.msra.mxu0 %v483
    %1250 = vmatprep.subr.bf16.mxu0 0
    %1251 = vmatpush1.bf16.msra.mxu0 %v484
    %1252 = vmatprep.subr.bf16.mxu0 0
    %1253 = vmatpush1.bf16.msra.mxu0 %v485
    %1254 = vmatprep.subr.bf16.mxu0 0
    %1255 = vmatpush1.bf16.msra.mxu0 %v486
    %1256 = vmatprep.subr.bf16.mxu0 0
    %1257 = vmatpush1.bf16.msra.mxu0 %v487
    %1258 = vmatprep.subr.bf16.mxu0 0
    %1259 = vmatpush1.bf16.msra.mxu0 %v488
    %1260 = vmatprep.mubr.bf16.mxu0 %v1103
    %1261 = vmatmul.mubr.bf16.gmra.mrb[0].mxu0 %v1102
    %v1262 = vpop.f32.mrb[0].mxu0
    %v1263 = vadd.f32 %v1214, %v1262
    %v1264 = vpop.f32.mrb[0].mxu0
    %v1265 = vpop.f32.mrb[0].mxu0
    %v1266 = vadd.f32 %v1217, %v1265
    %v1267 = vpop.f32.mrb[0].mxu0
    %1268 = vmatprep.mubr.bf16.mxu0 %v1110
    %1269 = vmatmul.mubr.bf16.gmra.mrb[0].mxu0 %v1109
    %v1270 = vpop.f32.mrb[0].mxu0
    %v1271 = vadd.f32 %v1222, %v1270
    %v1272 = vpop.f32.mrb[0].mxu0
    %v1273 = vpop.f32.mrb[0].mxu0
    %v1274 = vadd.f32 %v1225, %v1273
    %v1275 = vpop.f32.mrb[0].mxu0
    %1276 = vdwg.mxu0
    %1277 = vmatprep.subr.bf16.mxu0 0
    %1278 = vmatpush1.bf16.msra.mxu0 %v489
    %1279 = vmatprep.subr.bf16.mxu0 0
    %1280 = vmatpush1.bf16.msra.mxu0 %v490
    %1281 = vmatprep.subr.bf16.mxu0 0
    %1282 = vmatpush1.bf16.msra.mxu0 0
    %1283 = vmatprep.subr.bf16.mxu0 0
    %1284 = vmatpush1.bf16.msra.mxu0 0
    %1285 = vmatprep.subr.bf16.mxu0 0
    %1286 = vmatpush1.bf16.msra.mxu0 0
    %1287 = vmatprep.subr.bf16.mxu0 0
    %1288 = vmatpush1.bf16.msra.mxu0 0
    %1289 = vmatprep.subr.bf16.mxu0 0
    %1290 = vmatpush1.bf16.msra.mxu0 0
    %1291 = vmatprep.subr.bf16.mxu0 0
    %1292 = vmatpush1.bf16.msra.mxu0 0
    %1293 = vmatprep.subr.bf16.mxu0 0
    %1294 = vmatpush1.bf16.msra.mxu0 0
    %1295 = vmatprep.subr.bf16.mxu0 0
    %1296 = vmatpush1.bf16.msra.mxu0 0
    %1297 = vmatprep.subr.bf16.mxu0 0
    %1298 = vmatpush1.bf16.msra.mxu0 0
    %1299 = vmatprep.subr.bf16.mxu0 0
    %1300 = vmatpush1.bf16.msra.mxu0 0
    %1301 = vmatprep.subr.bf16.mxu0 0
    %1302 = vmatpush1.bf16.msra.mxu0 0
    %1303 = vmatprep.subr.bf16.mxu0 0
    %1304 = vmatpush1.bf16.msra.mxu0 0
    %1305 = vmatprep.subr.bf16.mxu0 0
    %1306 = vmatpush1.bf16.msra.mxu0 0
    %1307 = vmatprep.subr.bf16.mxu0 0
    %1308 = vmatpush1.bf16.msra.mxu0 0
    %1309 = vmatprep.mubr.bf16.mxu0 0
    %1310 = vmatmul.mubr.bf16.gmra.mrb[0].mxu0 %v1125
    %v1311 = vpop.f32.mrb[0].mxu0
    %v1312 = vadd.f32 %v1263, %v1311
    %v1313 = vpop.f32.mrb[0].mxu0
    %v1314 = vpop.f32.mrb[0].mxu0
    %v1315 = vadd.f32 %v1266, %v1314
    %v1316 = vpop.f32.mrb[0].mxu0
    %1317 = vmatprep.mubr.bf16.mxu0 0
    %1318 = vmatmul.mubr.bf16.gmra.mrb[0].mxu0 %v1128
    %v1319 = vpop.f32.mrb[0].mxu0
    %v1320 = vadd.f32 %v1271, %v1319
    %v1321 = vpop.f32.mrb[0].mxu0
    %v1322 = vpop.f32.mrb[0].mxu0
    %v1323 = vadd.f32 %v1274, %v1322
    %v1324 = vpop.f32.mrb[0].mxu0
    %1325 = vdwg.mxu0
    %v1326 = vmax.f32 %v1033, %v1312
    %v1327 = vmax.f32 %v1034, %v1315
    %v1328 = vmax.f32 %v1035, %v1320
    %v1329 = vmax.f32 %v1036, %v1323
    %s1330 = scalar_lea.vmem [#allocation2], 336
    %v1331 = vld [vmem:[%s1330] sm:$0xff]
    %v1332 = vld [vmem:[%s1330 + $0x8] sm:$0xff]
    %v1333 = vld [vmem:[%s1330 + $0x10] sm:$0xff]
    %v1334 = vld [vmem:[%s1330 + $0x18] sm:$0xf]
    %v1335 = vld [vmem:[%s1330 + $0x1c] sm:$0xff]
    %v1336 = vld [vmem:[%s1330 + $0x24] sm:$0xff]
    %v1337 = vld [vmem:[%s1330 + $0x2c] sm:$0xff]
    %v1338 = vld [vmem:[%s1330 + $0x34] sm:$0xf]
    %v1339 = vld [vmem:[%s1330 + $0x38] sm:$0xff]
    %v1340 = vld [vmem:[%s1330 + $0x40] sm:$0xff]
    %v1341 = vld [vmem:[%s1330 + $0x48] sm:$0xff]
    %v1342 = vld [vmem:[%s1330 + $0x50] sm:$0xf]
    %v1343 = vld [vmem:[%s1330 + $0x54] sm:$0xff]
    %v1344 = vld [vmem:[%s1330 + $0x5c] sm:$0xff]
    %v1345 = vld [vmem:[%s1330 + $0x64] sm:$0xff]
    %v1346 = vld [vmem:[%s1330 + $0x6c] sm:$0xf]
    %v1363 = vunpack.c.l.b16 %v1331
    %v1364 = vunpack.c.h.b16 %v1331
    %v1365 = vunpack.c.l.b16 %v1332
    %v1366 = vunpack.c.h.b16 %v1332
    %v1367 = vunpack.c.l.b16 %v1333
    %v1368 = vunpack.c.h.b16 %v1333
    %v1369 = vunpack.c.l.b16 %v1334
    %v1370 = vunpack.c.l.b16 %v1335
    %v1371 = vunpack.c.h.b16 %v1335
    %v1372 = vunpack.c.l.b16 %v1336
    %v1373 = vunpack.c.h.b16 %v1336
    %v1374 = vunpack.c.l.b16 %v1337
    %v1375 = vunpack.c.h.b16 %v1337
    %v1376 = vunpack.c.l.b16 %v1338
    %v1377 = vunpack.c.l.b16 %v1339
    %v1378 = vunpack.c.h.b16 %v1339
    %v1379 = vunpack.c.l.b16 %v1340
    %v1380 = vunpack.c.h.b16 %v1340
    %v1381 = vunpack.c.l.b16 %v1341
    %v1382 = vunpack.c.h.b16 %v1341
    %v1383 = vunpack.c.l.b16 %v1342
    %v1384 = vunpack.c.l.b16 %v1343
    %v1385 = vunpack.c.h.b16 %v1343
    %v1386 = vunpack.c.l.b16 %v1344
    %v1387 = vunpack.c.h.b16 %v1344
    %v1388 = vunpack.c.l.b16 %v1345
    %v1389 = vunpack.c.h.b16 %v1345
    %v1390 = vunpack.c.l.b16 %v1346
    %v1391 = vpack.c.b16 %v1370, %v1363
    %v1392 = vpack.c.b16 %v1371, %v1364
    %v1393 = vpack.c.b16 %v1372, %v1365
    %v1394 = vpack.c.b16 %v1373, %v1366
    %v1395 = vpack.c.b16 %v1374, %v1367
    %v1396 = vpack.c.b16 %v1375, %v1368
    %v1397 = vpack.c.b16 %v1376, %v1369
    %v1398 = vpack.c.b16 %v1384, %v1377
    %v1399 = vpack.c.b16 %v1385, %v1378
    %v1400 = vpack.c.b16 %v1386, %v1379
    %v1401 = vpack.c.b16 %v1387, %v1380
    %v1402 = vpack.c.b16 %v1388, %v1381
    %v1403 = vpack.c.b16 %v1389, %v1382
    %v1404 = vpack.c.b16 %v1390, %v1383
    %v1418 = vsel %vm541, %v1397, 0
    %v1421 = vsel %vm541, %v1404, 0
    %1423 = vmatprep.subr.bf16.mxu0 0
    %1424 = vmatpush1.bf16.msra.mxu0 %v441
    %1425 = vmatprep.subr.bf16.mxu0 0
    %1426 = vmatpush1.bf16.msra.mxu0 %v442
    %1427 = vmatprep.subr.bf16.mxu0 0
    %1428 = vmatpush1.bf16.msra.mxu0 %v443
    %1429 = vmatprep.subr.bf16.mxu0 0
    %1430 = vmatpush1.bf16.msra.mxu0 %v444
    %1431 = vmatprep.subr.bf16.mxu0 0
    %1432 = vmatpush1.bf16.msra.mxu0 %v445
    %1433 = vmatprep.subr.bf16.mxu0 0
    %1434 = vmatpush1.bf16.msra.mxu0 %v446
    %1435 = vmatprep.subr.bf16.mxu0 0
    %1436 = vmatpush1.bf16.msra.mxu0 %v447
    %1437 = vmatprep.subr.bf16.mxu0 0
    %1438 = vmatpush1.bf16.msra.mxu0 %v448
    %1439 = vmatprep.subr.bf16.mxu0 0
    %1440 = vmatpush1.bf16.msra.mxu0 %v449
    %1441 = vmatprep.subr.bf16.mxu0 0
    %1442 = vmatpush1.bf16.msra.mxu0 %v450
    %1443 = vmatprep.subr.bf16.mxu0 0
    %1444 = vmatpush1.bf16.msra.mxu0 %v451
    %1445 = vmatprep.subr.bf16.mxu0 0
    %1446 = vmatpush1.bf16.msra.mxu0 %v452
    %1447 = vmatprep.subr.bf16.mxu0 0
    %1448 = vmatpush1.bf16.msra.mxu0 %v453
    %1449 = vmatprep.subr.bf16.mxu0 0
    %1450 = vmatpush1.bf16.msra.mxu0 %v454
    %1451 = vmatprep.subr.bf16.mxu0 0
    %1452 = vmatpush1.bf16.msra.mxu0 %v455
    %1453 = vmatprep.subr.bf16.mxu0 0
    %1454 = vmatpush1.bf16.msra.mxu0 %v456
    %1455 = vmatprep.mubr.bf16.mxu0 %v1392
    %1456 = vmatmul.mubr.bf16.gmra.mrb[0].mxu0 %v1391
    %v1457 = vpop.f32.mrb[0].mxu0
    %v1458 = vadd.f32 0.0, %v1457
    %v1459 = vpop.f32.mrb[0].mxu0
    %v1460 = vpop.f32.mrb[0].mxu0
    %v1461 = vadd.f32 0.0, %v1460
    %v1462 = vpop.f32.mrb[0].mxu0
    %1463 = vmatprep.mubr.bf16.mxu0 %v1399
    %1464 = vmatmul.mubr.bf16.gmra.mrb[0].mxu0 %v1398
    %v1465 = vpop.f32.mrb[0].mxu0
    %v1466 = vadd.f32 0.0, %v1465
    %v1467 = vpop.f32.mrb[0].mxu0
    %v1468 = vpop.f32.mrb[0].mxu0
    %v1469 = vadd.f32 0.0, %v1468
    %v1470 = vpop.f32.mrb[0].mxu0
    %1471 = vdwg.mxu0
    %1472 = vmatprep.subr.bf16.mxu0 0
    %1473 = vmatpush1.bf16.msra.mxu0 %v457
    %1474 = vmatprep.subr.bf16.mxu0 0
    %1475 = vmatpush1.bf16.msra.mxu0 %v458
    %1476 = vmatprep.subr.bf16.mxu0 0
    %1477 = vmatpush1.bf16.msra.mxu0 %v459
    %1478 = vmatprep.subr.bf16.mxu0 0
    %1479 = vmatpush1.bf16.msra.mxu0 %v460
    %1480 = vmatprep.subr.bf16.mxu0 0
    %1481 = vmatpush1.bf16.msra.mxu0 %v461
    %1482 = vmatprep.subr.bf16.mxu0 0
    %1483 = vmatpush1.bf16.msra.mxu0 %v462
    %1484 = vmatprep.subr.bf16.mxu0 0
    %1485 = vmatpush1.bf16.msra.mxu0 %v463
    %1486 = vmatprep.subr.bf16.mxu0 0
    %1487 = vmatpush1.bf16.msra.mxu0 %v464
    %1488 = vmatprep.subr.bf16.mxu0 0
    %1489 = vmatpush1.bf16.msra.mxu0 %v465
    %1490 = vmatprep.subr.bf16.mxu0 0
    %1491 = vmatpush1.bf16.msra.mxu0 %v466
    %1492 = vmatprep.subr.bf16.mxu0 0
    %1493 = vmatpush1.bf16.msra.mxu0 %v467
    %1494 = vmatprep.subr.bf16.mxu0 0
    %1495 = vmatpush1.bf16.msra.mxu0 %v468
    %1496 = vmatprep.subr.bf16.mxu0 0
    %1497 = vmatpush1.bf16.msra.mxu0 %v469
    %1498 = vmatprep.subr.bf16.mxu0 0
    %1499 = vmatpush1.bf16.msra.mxu0 %v470
    %1500 = vmatprep.subr.bf16.mxu0 0
    %1501 = vmatpush1.bf16.msra.mxu0 %v471
    %1502 = vmatprep.subr.bf16.mxu0 0
    %1503 = vmatpush1.bf16.msra.mxu0 %v472
    %1504 = vmatprep.mubr.bf16.mxu0 %v1394
    %1505 = vmatmul.mubr.bf16.gmra.mrb[0].mxu0 %v1393
    %v1506 = vpop.f32.mrb[0].mxu0
    %v1507 = vadd.f32 %v1458, %v1506
    %v1508 = vpop.f32.mrb[0].mxu0
    %v1509 = vpop.f32.mrb[0].mxu0
    %v1510 = vadd.f32 %v1461, %v1509
    %v1511 = vpop.f32.mrb[0].mxu0
    %1512 = vmatprep.mubr.bf16.mxu0 %v1401
    %1513 = vmatmul.mubr.bf16.gmra.mrb[0].mxu0 %v1400
    %v1514 = vpop.f32.mrb[0].mxu0
    %v1515 = vadd.f32 %v1466, %v1514
    %v1516 = vpop.f32.mrb[0].mxu0
    %v1517 = vpop.f32.mrb[0].mxu0
    %v1518 = vadd.f32 %v1469, %v1517
    %v1519 = vpop.f32.mrb[0].mxu0
    %1520 = vdwg.mxu0
    %1521 = vmatprep.subr.bf16.mxu0 0
    %1522 = vmatpush1.bf16.msra.mxu0 %v473
    %1523 = vmatprep.subr.bf16.mxu0 0
    %1524 = vmatpush1.bf16.msra.mxu0 %v474
    %1525 = vmatprep.subr.bf16.mxu0 0
    %1526 = vmatpush1.bf16.msra.mxu0 %v475
    %1527 = vmatprep.subr.bf16.mxu0 0
    %1528 = vmatpush1.bf16.msra.mxu0 %v476
    %1529 = vmatprep.subr.bf16.mxu0 0
    %1530 = vmatpush1.bf16.msra.mxu0 %v477
    %1531 = vmatprep.subr.bf16.mxu0 0
    %1532 = vmatpush1.bf16.msra.mxu0 %v478
    %1533 = vmatprep.subr.bf16.mxu0 0
    %1534 = vmatpush1.bf16.msra.mxu0 %v479
    %1535 = vmatprep.subr.bf16.mxu0 0
    %1536 = vmatpush1.bf16.msra.mxu0 %v480
    %1537 = vmatprep.subr.bf16.mxu0 0
    %1538 = vmatpush1.bf16.msra.mxu0 %v481
    %1539 = vmatprep.subr.bf16.mxu0 0
    %1540 = vmatpush1.bf16.msra.mxu0 %v482
    %1541 = vmatprep.subr.bf16.mxu0 0
    %1542 = vmatpush1.bf16.msra.mxu0 %v483
    %1543 = vmatprep.subr.bf16.mxu0 0
    %1544 = vmatpush1.bf16.msra.mxu0 %v484
    %1545 = vmatprep.subr.bf16.mxu0 0
    %1546 = vmatpush1.bf16.msra.mxu0 %v485
    %1547 = vmatprep.subr.bf16.mxu0 0
    %1548 = vmatpush1.bf16.msra.mxu0 %v486
    %1549 = vmatprep.subr.bf16.mxu0 0
    %1550 = vmatpush1.bf16.msra.mxu0 %v487
    %1551 = vmatprep.subr.bf16.mxu0 0
    %1552 = vmatpush1.bf16.msra.mxu0 %v488
    %1553 = vmatprep.mubr.bf16.mxu0 %v1396
    %1554 = vmatmul.mubr.bf16.gmra.mrb[0].mxu0 %v1395
    %v1555 = vpop.f32.mrb[0].mxu0
    %v1556 = vadd.f32 %v1507, %v1555
    %v1557 = vpop.f32.mrb[0].mxu0
    %v1558 = vpop.f32.mrb[0].mxu0
    %v1559 = vadd.f32 %v1510, %v1558
    %v1560 = vpop.f32.mrb[0].mxu0
    %1561 = vmatprep.mubr.bf16.mxu0 %v1403
    %1562 = vmatmul.mubr.bf16.gmra.mrb[0].mxu0 %v1402
    %v1563 = vpop.f32.mrb[0].mxu0
    %v1564 = vadd.f32 %v1515, %v1563
    %v1565 = vpop.f32.mrb[0].mxu0
    %v1566 = vpop.f32.mrb[0].mxu0
    %v1567 = vadd.f32 %v1518, %v1566
    %v1568 = vpop.f32.mrb[0].mxu0
    %1569 = vdwg.mxu0
    %1570 = vmatprep.subr.bf16.mxu0 0
    %1571 = vmatpush1.bf16.msra.mxu0 %v489
    %1572 = vmatprep.subr.bf16.mxu0 0
    %1573 = vmatpush1.bf16.msra.mxu0 %v490
    %1574 = vmatprep.subr.bf16.mxu0 0
    %1575 = vmatpush1.bf16.msra.mxu0 0
    %1576 = vmatprep.subr.bf16.mxu0 0
    %1577 = vmatpush1.bf16.msra.mxu0 0
    %1578 = vmatprep.subr.bf16.mxu0 0
    %1579 = vmatpush1.bf16.msra.mxu0 0
    %1580 = vmatprep.subr.bf16.mxu0 0
    %1581 = vmatpush1.bf16.msra.mxu0 0
    %1582 = vmatprep.subr.bf16.mxu0 0
    %1583 = vmatpush1.bf16.msra.mxu0 0
    %1584 = vmatprep.subr.bf16.mxu0 0
    %1585 = vmatpush1.bf16.msra.mxu0 0
    %1586 = vmatprep.subr.bf16.mxu0 0
    %1587 = vmatpush1.bf16.msra.mxu0 0
    %1588 = vmatprep.subr.bf16.mxu0 0
    %1589 = vmatpush1.bf16.msra.mxu0 0
    %1590 = vmatprep.subr.bf16.mxu0 0
    %1591 = vmatpush1.bf16.msra.mxu0 0
    %1592 = vmatprep.subr.bf16.mxu0 0
    %1593 = vmatpush1.bf16.msra.mxu0 0
    %1594 = vmatprep.subr.bf16.mxu0 0
    %1595 = vmatpush1.bf16.msra.mxu0 0
    %1596 = vmatprep.subr.bf16.mxu0 0
    %1597 = vmatpush1.bf16.msra.mxu0 0
    %1598 = vmatprep.subr.bf16.mxu0 0
    %1599 = vmatpush1.bf16.msra.mxu0 0
    %1600 = vmatprep.subr.bf16.mxu0 0
    %1601 = vmatpush1.bf16.msra.mxu0 0
    %1602 = vmatprep.mubr.bf16.mxu0 0
    %1603 = vmatmul.mubr.bf16.gmra.mrb[0].mxu0 %v1418
    %v1604 = vpop.f32.mrb[0].mxu0
    %v1605 = vadd.f32 %v1556, %v1604
    %v1606 = vpop.f32.mrb[0].mxu0
    %v1607 = vpop.f32.mrb[0].mxu0
    %v1608 = vadd.f32 %v1559, %v1607
    %v1609 = vpop.f32.mrb[0].mxu0
    %1610 = vmatprep.mubr.bf16.mxu0 0
    %1611 = vmatmul.mubr.bf16.gmra.mrb[0].mxu0 %v1421
    %v1612 = vpop.f32.mrb[0].mxu0
    %v1613 = vadd.f32 %v1564, %v1612
    %v1614 = vpop.f32.mrb[0].mxu0
    %v1615 = vpop.f32.mrb[0].mxu0
    %v1616 = vadd.f32 %v1567, %v1615
    %v1617 = vpop.f32.mrb[0].mxu0
    %1618 = vdwg.mxu0
    %v1619 = vmax.f32 %v1326, %v1605
    %v1620 = vmax.f32 %v1327, %v1608
    %v1621 = vmax.f32 %v1328, %v1613
    %v1622 = vmax.f32 %v1329, %v1616
    %v1623 = vld [vmem:[#allocation7] sm:$0x1]
    %v1625 = vlaneseq
    %v1626 = vshrl.u32 %v1625, 7
    %v1627 = vsub.s32 0, %v1626
    %v1628 = vrot.slane %v1623, %v1627
    %v1630 = vadd.f32 %v1619, %v1628
    %v1631 = vadd.f32 %v1620, %v1628
    %v1632 = vadd.f32 %v1621, %v1628
    %v1633 = vadd.f32 %v1622, %v1628
    %v1634 = vmax.f32 %v1630, 0.0
    %v1635 = vmax.f32 %v1631, 0.0
    %v1636 = vmax.f32 %v1632, 0.0
    %v1637 = vmax.f32 %v1633, 0.0
    %1638 = vst [vmem:[#allocation8] sm:$0xff] %v1634
    %1639 = vst [vmem:[#allocation8 + $0x8] sm:$0xff] %v1635
    %1640 = vst [vmem:[#allocation8 + $0x10] sm:$0xff] %v1636
    %1641 = vst [vmem:[#allocation8 + $0x18] sm:$0xff] %v1637
    // Predicated region
    $region26: #{net_forward.4} parent=1 // pred_check
      _
    $region27: #{net_forward.4} parent=1 // pred_check_branch
      %1643 = sbr.rel (0) target = $region29
    $region28: #{net_forward.4} parent=1 // pred_region
      %s1645 = ssub.s32 512, 512
      %1646 = vsyncadd [#allocation4], %s1645
      %s1647 = sshll.u32 [#allocation8], 4
      %s1648 = int_to_ptr.vmem [resolvable:$true] %s1647
      %1653 = dma.vmem_to_hbm [thread:$0]  %s1648, 512, %s3, [#allocation4], 128, 128, 8
    $region29: #{net_forward.4} parent=1 // pred_fallthru
      _
    // Predicated region
    $region30: #{net_forward.4} parent=1 // pred_check
      _
    $region31: #{net_forward.4} parent=1 // pred_check_branch
      %1655 = sbr.rel (0) target = $region33
    $region32: #{net_forward.4} parent=1 // pred_region
      %1656 = dma.done [#allocation4], 512
    $region33: #{net_forward.4} parent=1 // pred_fallthru
      _
    %1657 = vsyncpa [#allocation3], 1
    %1658 = vsyncpa [#allocation6], 1
    %1659 = vsyncpa [#allocation4], 1

// kernel: net_forward.5
$region0: #{net_forward.5}
  #allocation0 [shape = 'u32[]', space=smem, size = 0x4, offset = 0x4, fixed_abs, tag = 'smem constant byte address 0x4 - core index']
  #allocation1 [shape = 'u32[144,128]{1,0:T(1,128)}', space=vmem, size = 0x12000, scoped, tag = 'internal scratch']
  %s0 = inlined_call_operand.hbm [shape: bf16[8,1024], index: 0, kind: input, shape index: {}]
  %s1 = inlined_call_operand.hbm [shape: bf16[1024,512], index: 1, kind: input, shape index: {}]
  %s2 = inlined_call_operand.hbm [shape: f32[1,512], index: 2, kind: input, shape index: {}]
  %s3 = inlined_call_operand.hbm [shape: bf16[512,1024], index: 3, kind: input, shape index: {}]
  %s4 = inlined_call_operand.hbm [shape: f32[1,1024], index: 4, kind: input, shape index: {}]
  %s5 = inlined_call_operand.hbm [shape: f32[8,1024], index: 5, kind: output, shape index: {}]
  %s6 = sld [smem:[#allocation0]]
  $region50: #{net_forward.5} parent=0
    _
  %s8 = ssub.s32 1, %s6
  %s9 = scalar_select 0, %s8, %s6
  $region1: #{net_forward.5} parent=0
    #allocation2 [shape = 'u8[16384]{0}', space=vmem, size = 0x4000, scoped, tag = 'input window, operand 0, single buffered']
    #allocation3 [shape = 's32[1]{0}', space=sflag, size = 0x4, scoped, tag = 'scoped memory for net_forward.5']
    #allocation4 [shape = 's32[1]{0}', space=sflag, size = 0x4, scoped, tag = 'scoped memory for net_forward.5']
    #allocation5 [shape = 'u8[1048576]{0}', space=vmem, size = 0x100000, scoped, tag = 'input window, operand 1, single buffered']
    #allocation6 [shape = 's32[1]{0}', space=sflag, size = 0x4, scoped, tag = 'scoped memory for net_forward.5']
    #allocation7 [shape = 'u8[2048]{0}', space=vmem, size = 0x800, scoped, tag = 'input window, operand 2, single buffered']
    #allocation8 [shape = 'u8[1048576]{0}', space=vmem, size = 0x100000, scoped, tag = 'input window, operand 3, single buffered']
    #allocation9 [shape = 's32[1]{0}', space=sflag, size = 0x4, scoped, tag = 'scoped memory for net_forward.5']
    #allocation10 [shape = 'u8[4096]{0}', space=vmem, size = 0x1000, scoped, tag = 'input window, operand 4, single buffered']
    #allocation11 [shape = 'u8[32768]{0}', space=vmem, size = 0x8000, scoped, tag = 'output window, operand 0, single buffered']
    %10 = vsyncpa [#allocation3], 0
    %11 = vsyncpa [#allocation6], 0
    %12 = vsyncpa [#allocation9], 0
    %13 = vsyncpa [#allocation4], 0
    // Predicated region
    $region2: #{net_forward.5} parent=1 // pred_check
      _
    $region3: #{net_forward.5} parent=1 // pred_check_branch
      %15 = sbr.rel (0) target = $region5
    $region4: #{net_forward.5} parent=1 // pred_region
      %s17 = ssub.s32 512, 512
      %18 = vsyncadd [#allocation3], %s17
      %s20 = sshll.u32 [#allocation2], 4
      %s21 = int_to_ptr.vmem [resolvable:$true] %s20
      %23 = dma.hbm_to_vmem [thread:$0]  %s0, 512, %s21, [#allocation3]
    $region5: #{net_forward.5} parent=1 // pred_fallthru
      _
    // Predicated region
    $region6: #{net_forward.5} parent=1 // pred_check
      _
    $region7: #{net_forward.5} parent=1 // pred_check_branch
      %25 = sbr.rel (0) target = $region9
    $region8: #{net_forward.5} parent=1 // pred_region
      %s27 = ssub.s32 32768, 32768
      %28 = vsyncadd [#allocation6], %s27
      %s29 = sshll.u32 [#allocation5], 4
      %s30 = int_to_ptr.vmem [resolvable:$true] %s29
      %35 = dma.hbm_to_vmem [thread:$0]  %s1, 32768, %s30, [#allocation6], 256, 256, 16
    $region9: #{net_forward.5} parent=1 // pred_fallthru
      _
    // Predicated region
    $region10: #{net_forward.5} parent=1 // pred_check
      _
    $region11: #{net_forward.5} parent=1 // pred_check_branch
      %37 = sbr.rel (0) target = $region13
    $region12: #{net_forward.5} parent=1 // pred_region
      %s39 = ssub.s32 64, 64
      %40 = vsyncadd [#allocation6], %s39
      %s42 = sshll.u32 [#allocation7], 4
      %s43 = int_to_ptr.vmem [resolvable:$true] %s42
      %45 = dma.hbm_to_vmem [thread:$0]  %s2, 64, %s43, [#allocation6]
    $region13: #{net_forward.5} parent=1 // pred_fallthru
      _
    // Predicated region
    $region14: #{net_forward.5} parent=1 // pred_check
      _
    $region15: #{net_forward.5} parent=1 // pred_check_branch
      %47 = sbr.rel (0) target = $region17
    $region16: #{net_forward.5} parent=1 // pred_region
      %s49 = ssub.s32 32768, 32768
      %50 = vsyncadd [#allocation9], %s49
      %s51 = sshll.u32 [#allocation8], 4
      %s52 = int_to_ptr.vmem [resolvable:$true] %s51
      %57 = dma.hbm_to_vmem [thread:$0]  %s3, 32768, %s52, [#allocation9], 512, 512, 32
    $region17: #{net_forward.5} parent=1 // pred_fallthru
      _
    // Predicated region
    $region18: #{net_forward.5} parent=1 // pred_check
      _
    $region19: #{net_forward.5} parent=1 // pred_check_branch
      %59 = sbr.rel (0) target = $region21
    $region20: #{net_forward.5} parent=1 // pred_region
      %s61 = ssub.s32 128, 128
      %62 = vsyncadd [#allocation9], %s61
      %s64 = sshll.u32 [#allocation10], 4
      %s65 = int_to_ptr.vmem [resolvable:$true] %s64
      %67 = dma.hbm_to_vmem [thread:$0]  %s4, 128, %s65, [#allocation9]
    $region21: #{net_forward.5} parent=1 // pred_fallthru
      _
    // Predicated region
    $region22: #{net_forward.5} parent=1 // pred_check
      _
    $region23: #{net_forward.5} parent=1 // pred_check_branch
      %69 = sbr.rel (0) target = $region25
    $region24: #{net_forward.5} parent=1 // pred_region
      %70 = dma.done [#allocation3], 512
    $region25: #{net_forward.5} parent=1 // pred_fallthru
      _
    // Predicated region
    $region26: #{net_forward.5} parent=1 // pred_check
      _
    $region27: #{net_forward.5} parent=1 // pred_check_branch
      %72 = sbr.rel (0) target = $region29
    $region28: #{net_forward.5} parent=1 // pred_region
      %73 = dma.done [#allocation6], 32768
    $region29: #{net_forward.5} parent=1 // pred_fallthru
      _
    // Predicated region
    $region30: #{net_forward.5} parent=1 // pred_check
      _
    $region31: #{net_forward.5} parent=1 // pred_check_branch
      %75 = sbr.rel (0) target = $region33
    $region32: #{net_forward.5} parent=1 // pred_region
      %76 = dma.done [#allocation6], 64
    $region33: #{net_forward.5} parent=1 // pred_fallthru
      _
    // Predicated region
    $region34: #{net_forward.5} parent=1 // pred_check
      _
    $region35: #{net_forward.5} parent=1 // pred_check_branch
      %78 = sbr.rel (0) target = $region37
    $region36: #{net_forward.5} parent=1 // pred_region
      %79 = dma.done [#allocation9], 32768
    $region37: #{net_forward.5} parent=1 // pred_fallthru
      _
    // Predicated region
    $region38: #{net_forward.5} parent=1 // pred_check
      _
    $region39: #{net_forward.5} parent=1 // pred_check_branch
      %81 = sbr.rel (0) target = $region41
    $region40: #{net_forward.5} parent=1 // pred_region
      %82 = dma.done [#allocation9], 128
    $region41: #{net_forward.5} parent=1 // pred_fallthru
      _
    %v83 = vld [vmem:[#allocation2] sm:$0xff]
    %v84 = vld [vmem:[#allocation2 + $0x8] sm:$0xff]
    %v85 = vld [vmem:[#allocation2 + $0x10] sm:$0xff]
    %v86 = vld [vmem:[#allocation2 + $0x18] sm:$0xff]
    %v87 = vld [vmem:[#allocation5] sm:$0xff]
    %v88 = vld [vmem:[#allocation5 + $0x8] sm:$0xff]
    %v89 = vld [vmem:[#allocation5 + $0x10] sm:$0xff]
    %v90 = vld [vmem:[#allocation5 + $0x18] sm:$0xff]
    %v91 = vld [vmem:[#allocation5 + $0x20] sm:$0xff]
    %v92 = vld [vmem:[#allocation5 + $0x28] sm:$0xff]
    %v93 = vld [vmem:[#allocation5 + $0x30] sm:$0xff]
    %v94 = vld [vmem:[#allocation5 + $0x38] sm:$0xff]
    %v95 = vld [vmem:[#allocation5 + $0x40] sm:$0xff]
    %v96 = vld [vmem:[#allocation5 + $0x48] sm:$0xff]
    %v97 = vld [vmem:[#allocation5 + $0x50] sm:$0xff]
    %v98 = vld [vmem:[#allocation5 + $0x58] sm:$0xff]
    %v99 = vld [vmem:[#allocation5 + $0x60] sm:$0xff]
    %v100 = vld [vmem:[#allocation5 + $0x68] sm:$0xff]
    %v101 = vld [vmem:[#allocation5 + $0x70] sm:$0xff]
    %v102 = vld [vmem:[#allocation5 + $0x78] sm:$0xff]
    %v103 = vld [vmem:[#allocation5 + $0x80] sm:$0xff]
    %v104 = vld [vmem:[#allocation5 + $0x88] sm:$0xff]
    %v105 = vld [vmem:[#allocation5 + $0x90] sm:$0xff]
    %v106 = vld [vmem:[#allocation5 + $0x98] sm:$0xff]
    %v107 = vld [vmem:[#allocation5 + $0xa0] sm:$0xff]
    %v108 = vld [vmem:[#allocation5 + $0xa8] sm:$0xff]
    %v109 = vld [vmem:[#allocation5 + $0xb0] sm:$0xff]
    %v110 = vld [vmem:[#allocation5 + $0xb8] sm:$0xff]
    %v111 = vld [vmem:[#allocation5 + $0xc0] sm:$0xff]
    %v112 = vld [vmem:[#allocation5 + $0xc8] sm:$0xff]
    %v113 = vld [vmem:[#allocation5 + $0xd0] sm:$0xff]
    %v114 = vld [vmem:[#allocation5 + $0xd8] sm:$0xff]
    %v115 = vld [vmem:[#allocation5 + $0xe0] sm:$0xff]
    %v116 = vld [vmem:[#allocation5 + $0xe8] sm:$0xff]
    %v117 = vld [vmem:[#allocation5 + $0xf0] sm:$0xff]
    %v118 = vld [vmem:[#allocation5 + $0xf8] sm:$0xff]
    %v119 = vld [vmem:[#allocation5 + $0x100] sm:$0xff]
    %v120 = vld [vmem:[#allocation5 + $0x108] sm:$0xff]
    %v121 = vld [vmem:[#allocation5 + $0x110] sm:$0xff]
    %v122 = vld [vmem:[#allocation5 + $0x118] sm:$0xff]
    %v123 = vld [vmem:[#allocation5 + $0x120] sm:$0xff]
    %v124 = vld [vmem:[#allocation5 + $0x128] sm:$0xff]
    %v125 = vld [vmem:[#allocation5 + $0x130] sm:$0xff]
    %v126 = vld [vmem:[#allocation5 + $0x138] sm:$0xff]
    %v127 = vld [vmem:[#allocation5 + $0x140] sm:$0xff]
    %v128 = vld [vmem:[#allocation5 + $0x148] sm:$0xff]
    %v129 = vld [vmem:[#allocation5 + $0x150] sm:$0xff]
    %v130 = vld [vmem:[#allocation5 + $0x158] sm:$0xff]
    %v131 = vld [vmem:[#allocation5 + $0x160] sm:$0xff]
    %v132 = vld [vmem:[#allocation5 + $0x168] sm:$0xff]
    %v133 = vld [vmem:[#allocation5 + $0x170] sm:$0xff]
    %v134 = vld [vmem:[#allocation5 + $0x178] sm:$0xff]
    %v135 = vld [vmem:[#allocation5 + $0x180] sm:$0xff]
    %v136 = vld [vmem:[#allocation5 + $0x188] sm:$0xff]
    %v137 = vld [vmem:[#allocation5 + $0x190] sm:$0xff]
    %v138 = vld [vmem:[#allocation5 + $0x198] sm:$0xff]
    %v139 = vld [vmem:[#allocation5 + $0x1a0] sm:$0xff]
    %v140 = vld [vmem:[#allocation5 + $0x1a8] sm:$0xff]
    %v141 = vld [vmem:[#allocation5 + $0x1b0] sm:$0xff]
    %v142 = vld [vmem:[#allocation5 + $0x1b8] sm:$0xff]
    %v143 = vld [vmem:[#allocation5 + $0x1c0] sm:$0xff]
    %v144 = vld [vmem:[#allocation5 + $0x1c8] sm:$0xff]
    %v145 = vld [vmem:[#allocation5 + $0x1d0] sm:$0xff]
    %v146 = vld [vmem:[#allocation5 + $0x1d8] sm:$0xff]
    %v147 = vld [vmem:[#allocation5 + $0x1e0] sm:$0xff]
    %v148 = vld [vmem:[#allocation5 + $0x1e8] sm:$0xff]
    %v149 = vld [vmem:[#allocation5 + $0x1f0] sm:$0xff]
    %v150 = vld [vmem:[#allocation5 + $0x1f8] sm:$0xff]
    %v151 = vld [vmem:[#allocation5 + $0x200] sm:$0xff]
    %v152 = vld [vmem:[#allocation5 + $0x208] sm:$0xff]
    %v153 = vld [vmem:[#allocation5 + $0x210] sm:$0xff]
    %v154 = vld [vmem:[#allocation5 + $0x218] sm:$0xff]
    %v155 = vld [vmem:[#allocation5 + $0x220] sm:$0xff]
    %v156 = vld [vmem:[#allocation5 + $0x228] sm:$0xff]
    %v157 = vld [vmem:[#allocation5 + $0x230] sm:$0xff]
    %v158 = vld [vmem:[#allocation5 + $0x238] sm:$0xff]
    %v159 = vld [vmem:[#allocation5 + $0x240] sm:$0xff]
    %v160 = vld [vmem:[#allocation5 + $0x248] sm:$0xff]
    %v161 = vld [vmem:[#allocation5 + $0x250] sm:$0xff]
    %v162 = vld [vmem:[#allocation5 + $0x258] sm:$0xff]
    %v163 = vld [vmem:[#allocation5 + $0x260] sm:$0xff]
    %v164 = vld [vmem:[#allocation5 + $0x268] sm:$0xff]
    %v165 = vld [vmem:[#allocation5 + $0x270] sm:$0xff]
    %v166 = vld [vmem:[#allocation5 + $0x278] sm:$0xff]
    %v167 = vld [vmem:[#allocation5 + $0x280] sm:$0xff]
    %v168 = vld [vmem:[#allocation5 + $0x288] sm:$0xff]
    %v169 = vld [vmem:[#allocation5 + $0x290] sm:$0xff]
    %v170 = vld [vmem:[#allocation5 + $0x298] sm:$0xff]
    %v171 = vld [vmem:[#allocation5 + $0x2a0] sm:$0xff]
    %v172 = vld [vmem:[#allocation5 + $0x2a8] sm:$0xff]
    %v173 = vld [vmem:[#allocation5 + $0x2b0] sm:$0xff]
    %v174 = vld [vmem:[#allocation5 + $0x2b8] sm:$0xff]
    %v175 = vld [vmem:[#allocation5 + $0x2c0] sm:$0xff]
    %v176 = vld [vmem:[#allocation5 + $0x2c8] sm:$0xff]
    %v177 = vld [vmem:[#allocation5 + $0x2d0] sm:$0xff]
    %v178 = vld [vmem:[#allocation5 + $0x2d8] sm:$0xff]
    %v179 = vld [vmem:[#allocation5 + $0x2e0] sm:$0xff]
    %v180 = vld [vmem:[#allocation5 + $0x2e8] sm:$0xff]
    %v181 = vld [vmem:[#allocation5 + $0x2f0] sm:$0xff]
    %v182 = vld [vmem:[#allocation5 + $0x2f8] sm:$0xff]
    %v183 = vld [vmem:[#allocation5 + $0x300] sm:$0xff]
    %v184 = vld [vmem:[#allocation5 + $0x308] sm:$0xff]
    %v185 = vld [vmem:[#allocation5 + $0x310] sm:$0xff]
    %v186 = vld [vmem:[#allocation5 + $0x318] sm:$0xff]
    %v187 = vld [vmem:[#allocation5 + $0x320] sm:$0xff]
    %v188 = vld [vmem:[#allocation5 + $0x328] sm:$0xff]
    %v189 = vld [vmem:[#allocation5 + $0x330] sm:$0xff]
    %v190 = vld [vmem:[#allocation5 + $0x338] sm:$0xff]
    %v191 = vld [vmem:[#allocation5 + $0x340] sm:$0xff]
    %v192 = vld [vmem:[#allocation5 + $0x348] sm:$0xff]
    %v193 = vld [vmem:[#allocation5 + $0x350] sm:$0xff]
    %v194 = vld [vmem:[#allocation5 + $0x358] sm:$0xff]
    %v195 = vld [vmem:[#allocation5 + $0x360] sm:$0xff]
    %v196 = vld [vmem:[#allocation5 + $0x368] sm:$0xff]
    %v197 = vld [vmem:[#allocation5 + $0x370] sm:$0xff]
    %v198 = vld [vmem:[#allocation5 + $0x378] sm:$0xff]
    %v199 = vld [vmem:[#allocation5 + $0x380] sm:$0xff]
    %v200 = vld [vmem:[#allocation5 + $0x388] sm:$0xff]
    %v201 = vld [vmem:[#allocation5 + $0x390] sm:$0xff]
    %v202 = vld [vmem:[#allocation5 + $0x398] sm:$0xff]
    %v203 = vld [vmem:[#allocation5 + $0x3a0] sm:$0xff]
    %v204 = vld [vmem:[#allocation5 + $0x3a8] sm:$0xff]
    %v205 = vld [vmem:[#allocation5 + $0x3b0] sm:$0xff]
    %v206 = vld [vmem:[#allocation5 + $0x3b8] sm:$0xff]
    %v207 = vld [vmem:[#allocation5 + $0x3c0] sm:$0xff]
    %v208 = vld [vmem:[#allocation5 + $0x3c8] sm:$0xff]
    %v209 = vld [vmem:[#allocation5 + $0x3d0] sm:$0xff]
    %v210 = vld [vmem:[#allocation5 + $0x3d8] sm:$0xff]
    %v211 = vld [vmem:[#allocation5 + $0x3e0] sm:$0xff]
    %v212 = vld [vmem:[#allocation5 + $0x3e8] sm:$0xff]
    %v213 = vld [vmem:[#allocation5 + $0x3f0] sm:$0xff]
    %v214 = vld [vmem:[#allocation5 + $0x3f8] sm:$0xff]
    %v215 = vld [vmem:[#allocation5 + $0x400] sm:$0xff]
    %v216 = vld [vmem:[#allocation5 + $0x408] sm:$0xff]
    %v217 = vld [vmem:[#allocation5 + $0x410] sm:$0xff]
    %v218 = vld [vmem:[#allocation5 + $0x418] sm:$0xff]
    %v219 = vld [vmem:[#allocation5 + $0x420] sm:$0xff]
    %v220 = vld [vmem:[#allocation5 + $0x428] sm:$0xff]
    %v221 = vld [vmem:[#allocation5 + $0x430] sm:$0xff]
    %v222 = vld [vmem:[#allocation5 + $0x438] sm:$0xff]
    %v223 = vld [vmem:[#allocation5 + $0x440] sm:$0xff]
    %v224 = vld [vmem:[#allocation5 + $0x448] sm:$0xff]
    %v225 = vld [vmem:[#allocation5 + $0x450] sm:$0xff]
    %v226 = vld [vmem:[#allocation5 + $0x458] sm:$0xff]
    %v227 = vld [vmem:[#allocation5 + $0x460] sm:$0xff]
    %v228 = vld [vmem:[#allocation5 + $0x468] sm:$0xff]
    %v229 = vld [vmem:[#allocation5 + $0x470] sm:$0xff]
    %v230 = vld [vmem:[#allocation5 + $0x478] sm:$0xff]
    %v231 = vld [vmem:[#allocation5 + $0x480] sm:$0xff]
    %v232 = vld [vmem:[#allocation5 + $0x488] sm:$0xff]
    %v233 = vld [vmem:[#allocation5 + $0x490] sm:$0xff]
    %v234 = vld [vmem:[#allocation5 + $0x498] sm:$0xff]
    %v235 = vld [vmem:[#allocation5 + $0x4a0] sm:$0xff]
    %v236 = vld [vmem:[#allocation5 + $0x4a8] sm:$0xff]
    %v237 = vld [vmem:[#allocation5 + $0x4b0] sm:$0xff]
    %v238 = vld [vmem:[#allocation5 + $0x4b8] sm:$0xff]
    %v239 = vld [vmem:[#allocation5 + $0x4c0] sm:$0xff]
    %v240 = vld [vmem:[#allocation5 + $0x4c8] sm:$0xff]
    %v241 = vld [vmem:[#allocation5 + $0x4d0] sm:$0xff]
    %v242 = vld [vmem:[#allocation5 + $0x4d8] sm:$0xff]
    %v243 = vld [vmem:[#allocation5 + $0x4e0] sm:$0xff]
    %v244 = vld [vmem:[#allocation5 + $0x4e8] sm:$0xff]
    %v245 = vld [vmem:[#allocation5 + $0x4f0] sm:$0xff]
    %v246 = vld [vmem:[#allocation5 + $0x4f8] sm:$0xff]
    %v247 = vld [vmem:[#allocation5 + $0x500] sm:$0xff]
    %v248 = vld [vmem:[#allocation5 + $0x508] sm:$0xff]
    %v249 = vld [vmem:[#allocation5 + $0x510] sm:$0xff]
    %v250 = vld [vmem:[#allocation5 + $0x518] sm:$0xff]
    %v251 = vld [vmem:[#allocation5 + $0x520] sm:$0xff]
    %v252 = vld [vmem:[#allocation5 + $0x528] sm:$0xff]
    %v253 = vld [vmem:[#allocation5 + $0x530] sm:$0xff]
    %v254 = vld [vmem:[#allocation5 + $0x538] sm:$0xff]
    %v255 = vld [vmem:[#allocation5 + $0x540] sm:$0xff]
    %v256 = vld [vmem:[#allocation5 + $0x548] sm:$0xff]
    %v257 = vld [vmem:[#allocation5 + $0x550] sm:$0xff]
    %v258 = vld [vmem:[#allocation5 + $0x558] sm:$0xff]
    %v259 = vld [vmem:[#allocation5 + $0x560] sm:$0xff]
    %v260 = vld [vmem:[#allocation5 + $0x568] sm:$0xff]
    %v261 = vld [vmem:[#allocation5 + $0x570] sm:$0xff]
    %v262 = vld [vmem:[#allocation5 + $0x578] sm:$0xff]
    %v263 = vld [vmem:[#allocation5 + $0x580] sm:$0xff]
    %v264 = vld [vmem:[#allocation5 + $0x588] sm:$0xff]
    %v265 = vld [vmem:[#allocation5 + $0x590] sm:$0xff]
    %v266 = vld [vmem:[#allocation5 + $0x598] sm:$0xff]
    %v267 = vld [vmem:[#allocation5 + $0x5a0] sm:$0xff]
    %v268 = vld [vmem:[#allocation5 + $0x5a8] sm:$0xff]
    %v269 = vld [vmem:[#allocation5 + $0x5b0] sm:$0xff]
    %v270 = vld [vmem:[#allocation5 + $0x5b8] sm:$0xff]
    %v271 = vld [vmem:[#allocation5 + $0x5c0] sm:$0xff]
    %v272 = vld [vmem:[#allocation5 + $0x5c8] sm:$0xff]
    %v273 = vld [vmem:[#allocation5 + $0x5d0] sm:$0xff]
    %v274 = vld [vmem:[#allocation5 + $0x5d8] sm:$0xff]
    %v275 = vld [vmem:[#allocation5 + $0x5e0] sm:$0xff]
    %v276 = vld [vmem:[#allocation5 + $0x5e8] sm:$0xff]
    %v277 = vld [vmem:[#allocation5 + $0x5f0] sm:$0xff]
    %v278 = vld [vmem:[#allocation5 + $0x5f8] sm:$0xff]
    %v279 = vld [vmem:[#allocation5 + $0x600] sm:$0xff]
    %v280 = vld [vmem:[#allocation5 + $0x608] sm:$0xff]
    %v281 = vld [vmem:[#allocation5 + $0x610] sm:$0xff]
    %v282 = vld [vmem:[#allocation5 + $0x618] sm:$0xff]
    %v283 = vld [vmem:[#allocation5 + $0x620] sm:$0xff]
    %v284 = vld [vmem:[#allocation5 + $0x628] sm:$0xff]
    %v285 = vld [vmem:[#allocation5 + $0x630] sm:$0xff]
    %v286 = vld [vmem:[#allocation5 + $0x638] sm:$0xff]
    %v287 = vld [vmem:[#allocation5 + $0x640] sm:$0xff]
    %v288 = vld [vmem:[#allocation5 + $0x648] sm:$0xff]
    %v289 = vld [vmem:[#allocation5 + $0x650] sm:$0xff]
    %v290 = vld [vmem:[#allocation5 + $0x658] sm:$0xff]
    %v291 = vld [vmem:[#allocation5 + $0x660] sm:$0xff]
    %v292 = vld [vmem:[#allocation5 + $0x668] sm:$0xff]
    %v293 = vld [vmem:[#allocation5 + $0x670] sm:$0xff]
    %v294 = vld [vmem:[#allocation5 + $0x678] sm:$0xff]
    %v295 = vld [vmem:[#allocation5 + $0x680] sm:$0xff]
    %v296 = vld [vmem:[#allocation5 + $0x688] sm:$0xff]
    %v297 = vld [vmem:[#allocation5 + $0x690] sm:$0xff]
    %v298 = vld [vmem:[#allocation5 + $0x698] sm:$0xff]
    %v299 = vld [vmem:[#allocation5 + $0x6a0] sm:$0xff]
    %v300 = vld [vmem:[#allocation5 + $0x6a8] sm:$0xff]
    %v301 = vld [vmem:[#allocation5 + $0x6b0] sm:$0xff]
    %v302 = vld [vmem:[#allocation5 + $0x6b8] sm:$0xff]
    %v303 = vld [vmem:[#allocation5 + $0x6c0] sm:$0xff]
    %v304 = vld [vmem:[#allocation5 + $0x6c8] sm:$0xff]
    %v305 = vld [vmem:[#allocation5 + $0x6d0] sm:$0xff]
    %v306 = vld [vmem:[#allocation5 + $0x6d8] sm:$0xff]
    %v307 = vld [vmem:[#allocation5 + $0x6e0] sm:$0xff]
    %v308 = vld [vmem:[#allocation5 + $0x6e8] sm:$0xff]
    %v309 = vld [vmem:[#allocation5 + $0x6f0] sm:$0xff]
    %v310 = vld [vmem:[#allocation5 + $0x6f8] sm:$0xff]
    %v311 = vld [vmem:[#allocation5 + $0x700] sm:$0xff]
    %v312 = vld [vmem:[#allocation5 + $0x708] sm:$0xff]
    %v313 = vld [vmem:[#allocation5 + $0x710] sm:$0xff]
    %v314 = vld [vmem:[#allocation5 + $0x718] sm:$0xff]
    %v315 = vld [vmem:[#allocation5 + $0x720] sm:$0xff]
    %v316 = vld [vmem:[#allocation5 + $0x728] sm:$0xff]
    %v317 = vld [vmem:[#allocation5 + $0x730] sm:$0xff]
    %v318 = vld [vmem:[#allocation5 + $0x738] sm:$0xff]
    %v319 = vld [vmem:[#allocation5 + $0x740] sm:$0xff]
    %v320 = vld [vmem:[#allocation5 + $0x748] sm:$0xff]
    %v321 = vld [vmem:[#allocation5 + $0x750] sm:$0xff]
    %v322 = vld [vmem:[#allocation5 + $0x758] sm:$0xff]
    %v323 = vld [vmem:[#allocation5 + $0x760] sm:$0xff]
    %v324 = vld [vmem:[#allocation5 + $0x768] sm:$0xff]
    %v325 = vld [vmem:[#allocation5 + $0x770] sm:$0xff]
    %v326 = vld [vmem:[#allocation5 + $0x778] sm:$0xff]
    %v327 = vld [vmem:[#allocation5 + $0x780] sm:$0xff]
    %v328 = vld [vmem:[#allocation5 + $0x788] sm:$0xff]
    %v329 = vld [vmem:[#allocation5 + $0x790] sm:$0xff]
    %v330 = vld [vmem:[#allocation5 + $0x798] sm:$0xff]
    %v331 = vld [vmem:[#allocation5 + $0x7a0] sm:$0xff]
    %v332 = vld [vmem:[#allocation5 + $0x7a8] sm:$0xff]
    %v333 = vld [vmem:[#allocation5 + $0x7b0] sm:$0xff]
    %v334 = vld [vmem:[#allocation5 + $0x7b8] sm:$0xff]
    %v335 = vld [vmem:[#allocation5 + $0x7c0] sm:$0xff]
    %v336 = vld [vmem:[#allocation5 + $0x7c8] sm:$0xff]
    %v337 = vld [vmem:[#allocation5 + $0x7d0] sm:$0xff]
    %v338 = vld [vmem:[#allocation5 + $0x7d8] sm:$0xff]
    %v339 = vld [vmem:[#allocation5 + $0x7e0] sm:$0xff]
    %v340 = vld [vmem:[#allocation5 + $0x7e8] sm:$0xff]
    %v341 = vld [vmem:[#allocation5 + $0x7f0] sm:$0xff]
    %v342 = vld [vmem:[#allocation5 + $0x7f8] sm:$0xff]
    %v343 = vld [vmem:[#allocation7] sm:$0xf]
    %v345 = vlaneseq
    %v346 = vshrl.u32 %v345, 7
    %v347 = vsub.s32 0, %v346
    %v348 = vrot.slane %v343, %v347
    %v349 = vlaneseq
    %v350 = vshrl.u32 %v349, 7
    %v351 = vsub.s32 1, %v350
    %v352 = vrot.slane %v343, %v351
    %v353 = vlaneseq
    %v354 = vshrl.u32 %v353, 7
    %v355 = vsub.s32 2, %v354
    %v356 = vrot.slane %v343, %v355
    %v357 = vlaneseq
    %v358 = vshrl.u32 %v357, 7
    %v359 = vsub.s32 3, %v358
    %v360 = vrot.slane %v343, %v359
    %v369 = vunpack.c.l.b16 %v83
    %v370 = vunpack.c.h.b16 %v83
    %v371 = vunpack.c.l.b16 %v84
    %v372 = vunpack.c.h.b16 %v84
    %v373 = vunpack.c.l.b16 %v85
    %v374 = vunpack.c.h.b16 %v85
    %v375 = vunpack.c.l.b16 %v86
    %v376 = vunpack.c.h.b16 %v86
    %v377 = vpack.c.b16 %v369, %v369
    %v378 = vpack.c.b16 %v370, %v370
    %v379 = vpack.c.b16 %v371, %v371
    %v380 = vpack.c.b16 %v372, %v372
    %v381 = vpack.c.b16 %v373, %v373
    %v382 = vpack.c.b16 %v374, %v374
    %v383 = vpack.c.b16 %v375, %v375
    %v384 = vpack.c.b16 %v376, %v376
    %v649 = vunpack.c.l.b16 %v87
    %v650 = vunpack.c.h.b16 %v87
    %v651 = vunpack.c.l.b16 %v88
    %v652 = vunpack.c.h.b16 %v88
    %v653 = vunpack.c.l.b16 %v89
    %v654 = vunpack.c.h.b16 %v89
    %v655 = vunpack.c.l.b16 %v90
    %v656 = vunpack.c.h.b16 %v90
    %v657 = vunpack.c.l.b16 %v91
    %v658 = vunpack.c.h.b16 %v91
    %v659 = vunpack.c.l.b16 %v92
    %v660 = vunpack.c.h.b16 %v92
    %v661 = vunpack.c.l.b16 %v93
    %v662 = vunpack.c.h.b16 %v93
    %v663 = vunpack.c.l.b16 %v94
    %v664 = vunpack.c.h.b16 %v94
    %v665 = vunpack.c.l.b16 %v95
    %v666 = vunpack.c.h.b16 %v95
    %v667 = vunpack.c.l.b16 %v96
    %v668 = vunpack.c.h.b16 %v96
    %v669 = vunpack.c.l.b16 %v97
    %v670 = vunpack.c.h.b16 %v97
    %v671 = vunpack.c.l.b16 %v98
    %v672 = vunpack.c.h.b16 %v98
    %v673 = vunpack.c.l.b16 %v99
    %v674 = vunpack.c.h.b16 %v99
    %v675 = vunpack.c.l.b16 %v100
    %v676 = vunpack.c.h.b16 %v100
    %v677 = vunpack.c.l.b16 %v101
    %v678 = vunpack.c.h.b16 %v101
    %v679 = vunpack.c.l.b16 %v102
    %v680 = vunpack.c.h.b16 %v102
    %v681 = vunpack.c.l.b16 %v103
    %v682 = vunpack.c.h.b16 %v103
    %v683 = vunpack.c.l.b16 %v104
    %v684 = vunpack.c.h.b16 %v104
    %v685 = vunpack.c.l.b16 %v105
    %v686 = vunpack.c.h.b16 %v105
    %v687 = vunpack.c.l.b16 %v106
    %v688 = vunpack.c.h.b16 %v106
    %v689 = vunpack.c.l.b16 %v107
    %v690 = vunpack.c.h.b16 %v107
    %v691 = vunpack.c.l.b16 %v108
    %v692 = vunpack.c.h.b16 %v108
    %v693 = vunpack.c.l.b16 %v109
    %v694 = vunpack.c.h.b16 %v109
    %v695 = vunpack.c.l.b16 %v110
    %v696 = vunpack.c.h.b16 %v110
    %v697 = vunpack.c.l.b16 %v111
    %v698 = vunpack.c.h.b16 %v111
    %v699 = vunpack.c.l.b16 %v112
    %v700 = vunpack.c.h.b16 %v112
    %v701 = vunpack.c.l.b16 %v113
    %v702 = vunpack.c.h.b16 %v113
    %v703 = vunpack.c.l.b16 %v114
    %v704 = vunpack.c.h.b16 %v114
    %v705 = vunpack.c.l.b16 %v115
    %v706 = vunpack.c.h.b16 %v115
    %v707 = vunpack.c.l.b16 %v116
    %v708 = vunpack.c.h.b16 %v116
    %v709 = vunpack.c.l.b16 %v117
    %v710 = vunpack.c.h.b16 %v117
    %v711 = vunpack.c.l.b16 %v118
    %v712 = vunpack.c.h.b16 %v118
    %v713 = vunpack.c.l.b16 %v119
    %v714 = vunpack.c.h.b16 %v119
    %v715 = vunpack.c.l.b16 %v120
    %v716 = vunpack.c.h.b16 %v120
    %v717 = vunpack.c.l.b16 %v121
    %v718 = vunpack.c.h.b16 %v121
    %v719 = vunpack.c.l.b16 %v122
    %v720 = vunpack.c.h.b16 %v122
    %v721 = vunpack.c.l.b16 %v123
    %v722 = vunpack.c.h.b16 %v123
    %v723 = vunpack.c.l.b16 %v124
    %v724 = vunpack.c.h.b16 %v124
    %v725 = vunpack.c.l.b16 %v125
    %v726 = vunpack.c.h.b16 %v125
    %v727 = vunpack.c.l.b16 %v126
    %v728 = vunpack.c.h.b16 %v126
    %v729 = vunpack.c.l.b16 %v127
    %v730 = vunpack.c.h.b16 %v127
    %v731 = vunpack.c.l.b16 %v128
    %v732 = vunpack.c.h.b16 %v128
    %v733 = vunpack.c.l.b16 %v129
    %v734 = vunpack.c.h.b16 %v129
    %v735 = vunpack.c.l.b16 %v130
    %v736 = vunpack.c.h.b16 %v130
    %v737 = vunpack.c.l.b16 %v131
    %v738 = vunpack.c.h.b16 %v131
    %v739 = vunpack.c.l.b16 %v132
    %v740 = vunpack.c.h.b16 %v132
    %v741 = vunpack.c.l.b16 %v133
    %v742 = vunpack.c.h.b16 %v133
    %v743 = vunpack.c.l.b16 %v134
    %v744 = vunpack.c.h.b16 %v134
    %v745 = vunpack.c.l.b16 %v135
    %v746 = vunpack.c.h.b16 %v135
    %v747 = vunpack.c.l.b16 %v136
    %v748 = vunpack.c.h.b16 %v136
    %v749 = vunpack.c.l.b16 %v137
    %v750 = vunpack.c.h.b16 %v137
    %v751 = vunpack.c.l.b16 %v138
    %v752 = vunpack.c.h.b16 %v138
    %v753 = vunpack.c.l.b16 %v139
    %v754 = vunpack.c.h.b16 %v139
    %v755 = vunpack.c.l.b16 %v140
    %v756 = vunpack.c.h.b16 %v140
    %v757 = vunpack.c.l.b16 %v141
    %v758 = vunpack.c.h.b16 %v141
    %v759 = vunpack.c.l.b16 %v142
    %v760 = vunpack.c.h.b16 %v142
    %v761 = vunpack.c.l.b16 %v143
    %v762 = vunpack.c.h.b16 %v143
    %v763 = vunpack.c.l.b16 %v144
    %v764 = vunpack.c.h.b16 %v144
    %v765 = vunpack.c.l.b16 %v145
    %v766 = vunpack.c.h.b16 %v145
    %v767 = vunpack.c.l.b16 %v146
    %v768 = vunpack.c.h.b16 %v146
    %v769 = vunpack.c.l.b16 %v147
    %v770 = vunpack.c.h.b16 %v147
    %v771 = vunpack.c.l.b16 %v148
    %v772 = vunpack.c.h.b16 %v148
    %v773 = vunpack.c.l.b16 %v149
    %v774 = vunpack.c.h.b16 %v149
    %v775 = vunpack.c.l.b16 %v150
    %v776 = vunpack.c.h.b16 %v150
    %v777 = vunpack.c.l.b16 %v151
    %v778 = vunpack.c.h.b16 %v151
    %v779 = vunpack.c.l.b16 %v152
    %v780 = vunpack.c.h.b16 %v152
    %v781 = vunpack.c.l.b16 %v153
    %v782 = vunpack.c.h.b16 %v153
    %v783 = vunpack.c.l.b16 %v154
    %v784 = vunpack.c.h.b16 %v154
    %v785 = vunpack.c.l.b16 %v155
    %v786 = vunpack.c.h.b16 %v155
    %v787 = vunpack.c.l.b16 %v156
    %v788 = vunpack.c.h.b16 %v156
    %v789 = vunpack.c.l.b16 %v157
    %v790 = vunpack.c.h.b16 %v157
    %v791 = vunpack.c.l.b16 %v158
    %v792 = vunpack.c.h.b16 %v158
    %v793 = vunpack.c.l.b16 %v159
    %v794 = vunpack.c.h.b16 %v159
    %v795 = vunpack.c.l.b16 %v160
    %v796 = vunpack.c.h.b16 %v160
    %v797 = vunpack.c.l.b16 %v161
    %v798 = vunpack.c.h.b16 %v161
    %v799 = vunpack.c.l.b16 %v162
    %v800 = vunpack.c.h.b16 %v162
    %v801 = vunpack.c.l.b16 %v163
    %v802 = vunpack.c.h.b16 %v163
    %v803 = vunpack.c.l.b16 %v164
    %v804 = vunpack.c.h.b16 %v164
    %v805 = vunpack.c.l.b16 %v165
    %v806 = vunpack.c.h.b16 %v165
    %v807 = vunpack.c.l.b16 %v166
    %v808 = vunpack.c.h.b16 %v166
    %v809 = vunpack.c.l.b16 %v167
    %v810 = vunpack.c.h.b16 %v167
    %v811 = vunpack.c.l.b16 %v168
    %v812 = vunpack.c.h.b16 %v168
    %v813 = vunpack.c.l.b16 %v169
    %v814 = vunpack.c.h.b16 %v169
    %v815 = vunpack.c.l.b16 %v170
    %v816 = vunpack.c.h.b16 %v170
    %v817 = vunpack.c.l.b16 %v171
    %v818 = vunpack.c.h.b16 %v171
    %v819 = vunpack.c.l.b16 %v172
    %v820 = vunpack.c.h.b16 %v172
    %v821 = vunpack.c.l.b16 %v173
    %v822 = vunpack.c.h.b16 %v173
    %v823 = vunpack.c.l.b16 %v174
    %v824 = vunpack.c.h.b16 %v174
    %v825 = vunpack.c.l.b16 %v175
    %v826 = vunpack.c.h.b16 %v175
    %v827 = vunpack.c.l.b16 %v176
    %v828 = vunpack.c.h.b16 %v176
    %v829 = vunpack.c.l.b16 %v177
    %v830 = vunpack.c.h.b16 %v177
    %v831 = vunpack.c.l.b16 %v178
    %v832 = vunpack.c.h.b16 %v178
    %v833 = vunpack.c.l.b16 %v179
    %v834 = vunpack.c.h.b16 %v179
    %v835 = vunpack.c.l.b16 %v180
    %v836 = vunpack.c.h.b16 %v180
    %v837 = vunpack.c.l.b16 %v181
    %v838 = vunpack.c.h.b16 %v181
    %v839 = vunpack.c.l.b16 %v182
    %v840 = vunpack.c.h.b16 %v182
    %v841 = vunpack.c.l.b16 %v183
    %v842 = vunpack.c.h.b16 %v183
    %v843 = vunpack.c.l.b16 %v184
    %v844 = vunpack.c.h.b16 %v184
    %v845 = vunpack.c.l.b16 %v185
    %v846 = vunpack.c.h.b16 %v185
    %v847 = vunpack.c.l.b16 %v186
    %v848 = vunpack.c.h.b16 %v186
    %v849 = vunpack.c.l.b16 %v187
    %v850 = vunpack.c.h.b16 %v187
    %v851 = vunpack.c.l.b16 %v188
    %v852 = vunpack.c.h.b16 %v188
    %v853 = vunpack.c.l.b16 %v189
    %v854 = vunpack.c.h.b16 %v189
    %v855 = vunpack.c.l.b16 %v190
    %v856 = vunpack.c.h.b16 %v190
    %v857 = vunpack.c.l.b16 %v191
    %v858 = vunpack.c.h.b16 %v191
    %v859 = vunpack.c.l.b16 %v192
    %v860 = vunpack.c.h.b16 %v192
    %v861 = vunpack.c.l.b16 %v193
    %v862 = vunpack.c.h.b16 %v193
    %v863 = vunpack.c.l.b16 %v194
    %v864 = vunpack.c.h.b16 %v194
    %v865 = vunpack.c.l.b16 %v195
    %v866 = vunpack.c.h.b16 %v195
    %v867 = vunpack.c.l.b16 %v196
    %v868 = vunpack.c.h.b16 %v196
    %v869 = vunpack.c.l.b16 %v197
    %v870 = vunpack.c.h.b16 %v197
    %v871 = vunpack.c.l.b16 %v198
    %v872 = vunpack.c.h.b16 %v198
    %v873 = vunpack.c.l.b16 %v199
    %v874 = vunpack.c.h.b16 %v199
    %v875 = vunpack.c.l.b16 %v200
    %v876 = vunpack.c.h.b16 %v200
    %v877 = vunpack.c.l.b16 %v201
    %v878 = vunpack.c.h.b16 %v201
    %v879 = vunpack.c.l.b16 %v202
    %v880 = vunpack.c.h.b16 %v202
    %v881 = vunpack.c.l.b16 %v203
    %v882 = vunpack.c.h.b16 %v203
    %v883 = vunpack.c.l.b16 %v204
    %v884 = vunpack.c.h.b16 %v204
    %v885 = vunpack.c.l.b16 %v205
    %v886 = vunpack.c.h.b16 %v205
    %v887 = vunpack.c.l.b16 %v206
    %v888 = vunpack.c.h.b16 %v206
    %v889 = vunpack.c.l.b16 %v207
    %v890 = vunpack.c.h.b16 %v207
    %v891 = vunpack.c.l.b16 %v208
    %v892 = vunpack.c.h.b16 %v208
    %v893 = vunpack.c.l.b16 %v209
    %v894 = vunpack.c.h.b16 %v209
    %v895 = vunpack.c.l.b16 %v210
    %v896 = vunpack.c.h.b16 %v210
    %v897 = vunpack.c.l.b16 %v211
    %v898 = vunpack.c.h.b16 %v211
    %v899 = vunpack.c.l.b16 %v212
    %v900 = vunpack.c.h.b16 %v212
    %v901 = vunpack.c.l.b16 %v213
    %v902 = vunpack.c.h.b16 %v213
    %v903 = vunpack.c.l.b16 %v214
    %v904 = vunpack.c.h.b16 %v214
    %v905 = vunpack.c.l.b16 %v215
    %v906 = vunpack.c.h.b16 %v215
    %v907 = vunpack.c.l.b16 %v216
    %v908 = vunpack.c.h.b16 %v216
    %v909 = vunpack.c.l.b16 %v217
    %v910 = vunpack.c.h.b16 %v217
    %v911 = vunpack.c.l.b16 %v218
    %v912 = vunpack.c.h.b16 %v218
    %v913 = vunpack.c.l.b16 %v219
    %v914 = vunpack.c.h.b16 %v219
    %v915 = vunpack.c.l.b16 %v220
    %v916 = vunpack.c.h.b16 %v220
    %v917 = vunpack.c.l.b16 %v221
    %v918 = vunpack.c.h.b16 %v221
    %v919 = vunpack.c.l.b16 %v222
    %v920 = vunpack.c.h.b16 %v222
    %v921 = vunpack.c.l.b16 %v223
    %v922 = vunpack.c.h.b16 %v223
    %v923 = vunpack.c.l.b16 %v224
    %v924 = vunpack.c.h.b16 %v224
    %v925 = vunpack.c.l.b16 %v225
    %v926 = vunpack.c.h.b16 %v225
    %v927 = vunpack.c.l.b16 %v226
    %v928 = vunpack.c.h.b16 %v226
    %v929 = vunpack.c.l.b16 %v227
    %v930 = vunpack.c.h.b16 %v227
    %v931 = vunpack.c.l.b16 %v228
    %v932 = vunpack.c.h.b16 %v228
    %v933 = vunpack.c.l.b16 %v229
    %v934 = vunpack.c.h.b16 %v229
    %v935 = vunpack.c.l.b16 %v230
    %v936 = vunpack.c.h.b16 %v230
    %v937 = vunpack.c.l.b16 %v231
    %v938 = vunpack.c.h.b16 %v231
    %v939 = vunpack.c.l.b16 %v232
    %v940 = vunpack.c.h.b16 %v232
    %v941 = vunpack.c.l.b16 %v233
    %v942 = vunpack.c.h.b16 %v233
    %v943 = vunpack.c.l.b16 %v234
    %v944 = vunpack.c.h.b16 %v234
    %v945 = vunpack.c.l.b16 %v235
    %v946 = vunpack.c.h.b16 %v235
    %v947 = vunpack.c.l.b16 %v236
    %v948 = vunpack.c.h.b16 %v236
    %v949 = vunpack.c.l.b16 %v237
    %v950 = vunpack.c.h.b16 %v237
    %v951 = vunpack.c.l.b16 %v238
    %v952 = vunpack.c.h.b16 %v238
    %v953 = vunpack.c.l.b16 %v239
    %v954 = vunpack.c.h.b16 %v239
    %v955 = vunpack.c.l.b16 %v240
    %v956 = vunpack.c.h.b16 %v240
    %v957 = vunpack.c.l.b16 %v241
    %v958 = vunpack.c.h.b16 %v241
    %v959 = vunpack.c.l.b16 %v242
    %v960 = vunpack.c.h.b16 %v242
    %v961 = vunpack.c.l.b16 %v243
    %v962 = vunpack.c.h.b16 %v243
    %v963 = vunpack.c.l.b16 %v244
    %v964 = vunpack.c.h.b16 %v244
    %v965 = vunpack.c.l.b16 %v245
    %v966 = vunpack.c.h.b16 %v245
    %v967 = vunpack.c.l.b16 %v246
    %v968 = vunpack.c.h.b16 %v246
    %v969 = vunpack.c.l.b16 %v247
    %v970 = vunpack.c.h.b16 %v247
    %v971 = vunpack.c.l.b16 %v248
    %v972 = vunpack.c.h.b16 %v248
    %v973 = vunpack.c.l.b16 %v249
    %v974 = vunpack.c.h.b16 %v249
    %v975 = vunpack.c.l.b16 %v250
    %v976 = vunpack.c.h.b16 %v250
    %v977 = vunpack.c.l.b16 %v251
    %v978 = vunpack.c.h.b16 %v251
    %v979 = vunpack.c.l.b16 %v252
    %v980 = vunpack.c.h.b16 %v252
    %v981 = vunpack.c.l.b16 %v253
    %v982 = vunpack.c.h.b16 %v253
    %v983 = vunpack.c.l.b16 %v254
    %v984 = vunpack.c.h.b16 %v254
    %v985 = vunpack.c.l.b16 %v255
    %v986 = vunpack.c.h.b16 %v255
    %v987 = vunpack.c.l.b16 %v256
    %v988 = vunpack.c.h.b16 %v256
    %v989 = vunpack.c.l.b16 %v257
    %v990 = vunpack.c.h.b16 %v257
    %v991 = vunpack.c.l.b16 %v258
    %v992 = vunpack.c.h.b16 %v258
    %v993 = vunpack.c.l.b16 %v259
    %v994 = vunpack.c.h.b16 %v259
    %v995 = vunpack.c.l.b16 %v260
    %v996 = vunpack.c.h.b16 %v260
    %v997 = vunpack.c.l.b16 %v261
    %v998 = vunpack.c.h.b16 %v261
    %v999 = vunpack.c.l.b16 %v262
    %v1000 = vunpack.c.h.b16 %v262
    %v1001 = vunpack.c.l.b16 %v263
    %v1002 = vunpack.c.h.b16 %v263
    %v1003 = vunpack.c.l.b16 %v264
    %v1004 = vunpack.c.h.b16 %v264
    %v1005 = vunpack.c.l.b16 %v265
    %v1006 = vunpack.c.h.b16 %v265
    %v1007 = vunpack.c.l.b16 %v266
    %v1008 = vunpack.c.h.b16 %v266
    %v1009 = vunpack.c.l.b16 %v267
    %v1010 = vunpack.c.h.b16 %v267
    %v1011 = vunpack.c.l.b16 %v268
    %v1012 = vunpack.c.h.b16 %v268
    %v1013 = vunpack.c.l.b16 %v269
    %v1014 = vunpack.c.h.b16 %v269
    %v1015 = vunpack.c.l.b16 %v270
    %v1016 = vunpack.c.h.b16 %v270
    %v1017 = vunpack.c.l.b16 %v271
    %v1018 = vunpack.c.h.b16 %v271
    %v1019 = vunpack.c.l.b16 %v272
    %v1020 = vunpack.c.h.b16 %v272
    %v1021 = vunpack.c.l.b16 %v273
    %v1022 = vunpack.c.h.b16 %v273
    %v1023 = vunpack.c.l.b16 %v274
    %v1024 = vunpack.c.h.b16 %v274
    %v1025 = vunpack.c.l.b16 %v275
    %v1026 = vunpack.c.h.b16 %v275
    %v1027 = vunpack.c.l.b16 %v276
    %v1028 = vunpack.c.h.b16 %v276
    %v1029 = vunpack.c.l.b16 %v277
    %v1030 = vunpack.c.h.b16 %v277
    %v1031 = vunpack.c.l.b16 %v278
    %v1032 = vunpack.c.h.b16 %v278
    %v1033 = vunpack.c.l.b16 %v279
    %v1034 = vunpack.c.h.b16 %v279
    %v1035 = vunpack.c.l.b16 %v280
    %v1036 = vunpack.c.h.b16 %v280
    %v1037 = vunpack.c.l.b16 %v281
    %v1038 = vunpack.c.h.b16 %v281
    %v1039 = vunpack.c.l.b16 %v282
    %v1040 = vunpack.c.h.b16 %v282
    %v1041 = vunpack.c.l.b16 %v283
    %v1042 = vunpack.c.h.b16 %v283
    %v1043 = vunpack.c.l.b16 %v284
    %v1044 = vunpack.c.h.b16 %v284
    %v1045 = vunpack.c.l.b16 %v285
    %v1046 = vunpack.c.h.b16 %v285
    %v1047 = vunpack.c.l.b16 %v286
    %v1048 = vunpack.c.h.b16 %v286
    %v1049 = vunpack.c.l.b16 %v287
    %v1050 = vunpack.c.h.b16 %v287
    %v1051 = vunpack.c.l.b16 %v288
    %v1052 = vunpack.c.h.b16 %v288
    %v1053 = vunpack.c.l.b16 %v289
    %v1054 = vunpack.c.h.b16 %v289
    %v1055 = vunpack.c.l.b16 %v290
    %v1056 = vunpack.c.h.b16 %v290
    %v1057 = vunpack.c.l.b16 %v291
    %v1058 = vunpack.c.h.b16 %v291
    %v1059 = vunpack.c.l.b16 %v292
    %v1060 = vunpack.c.h.b16 %v292
    %v1061 = vunpack.c.l.b16 %v293
    %v1062 = vunpack.c.h.b16 %v293
    %v1063 = vunpack.c.l.b16 %v294
    %v1064 = vunpack.c.h.b16 %v294
    %v1065 = vunpack.c.l.b16 %v295
    %v1066 = vunpack.c.h.b16 %v295
    %v1067 = vunpack.c.l.b16 %v296
    %v1068 = vunpack.c.h.b16 %v296
    %v1069 = vunpack.c.l.b16 %v297
    %v1070 = vunpack.c.h.b16 %v297
    %v1071 = vunpack.c.l.b16 %v298
    %v1072 = vunpack.c.h.b16 %v298
    %v1073 = vunpack.c.l.b16 %v299
    %v1074 = vunpack.c.h.b16 %v299
    %v1075 = vunpack.c.l.b16 %v300
    %v1076 = vunpack.c.h.b16 %v300
    %v1077 = vunpack.c.l.b16 %v301
    %v1078 = vunpack.c.h.b16 %v301
    %v1079 = vunpack.c.l.b16 %v302
    %v1080 = vunpack.c.h.b16 %v302
    %v1081 = vunpack.c.l.b16 %v303
    %v1082 = vunpack.c.h.b16 %v303
    %v1083 = vunpack.c.l.b16 %v304
    %v1084 = vunpack.c.h.b16 %v304
    %v1085 = vunpack.c.l.b16 %v305
    %v1086 = vunpack.c.h.b16 %v305
    %v1087 = vunpack.c.l.b16 %v306
    %v1088 = vunpack.c.h.b16 %v306
    %v1089 = vunpack.c.l.b16 %v307
    %v1090 = vunpack.c.h.b16 %v307
    %v1091 = vunpack.c.l.b16 %v308
    %v1092 = vunpack.c.h.b16 %v308
    %v1093 = vunpack.c.l.b16 %v309
    %v1094 = vunpack.c.h.b16 %v309
    %v1095 = vunpack.c.l.b16 %v310
    %v1096 = vunpack.c.h.b16 %v310
    %v1097 = vunpack.c.l.b16 %v311
    %v1098 = vunpack.c.h.b16 %v311
    %v1099 = vunpack.c.l.b16 %v312
    %v1100 = vunpack.c.h.b16 %v312
    %v1101 = vunpack.c.l.b16 %v313
    %v1102 = vunpack.c.h.b16 %v313
    %v1103 = vunpack.c.l.b16 %v314
    %v1104 = vunpack.c.h.b16 %v314
    %v1105 = vunpack.c.l.b16 %v315
    %v1106 = vunpack.c.h.b16 %v315
    %v1107 = vunpack.c.l.b16 %v316
    %v1108 = vunpack.c.h.b16 %v316
    %v1109 = vunpack.c.l.b16 %v317
    %v1110 = vunpack.c.h.b16 %v317
    %v1111 = vunpack.c.l.b16 %v318
    %v1112 = vunpack.c.h.b16 %v318
    %v1113 = vunpack.c.l.b16 %v319
    %v1114 = vunpack.c.h.b16 %v319
    %v1115 = vunpack.c.l.b16 %v320
    %v1116 = vunpack.c.h.b16 %v320
    %v1117 = vunpack.c.l.b16 %v321
    %v1118 = vunpack.c.h.b16 %v321
    %v1119 = vunpack.c.l.b16 %v322
    %v1120 = vunpack.c.h.b16 %v322
    %v1121 = vunpack.c.l.b16 %v323
    %v1122 = vunpack.c.h.b16 %v323
    %v1123 = vunpack.c.l.b16 %v324
    %v1124 = vunpack.c.h.b16 %v324
    %v1125 = vunpack.c.l.b16 %v325
    %v1126 = vunpack.c.h.b16 %v325
    %v1127 = vunpack.c.l.b16 %v326
    %v1128 = vunpack.c.h.b16 %v326
    %v1129 = vunpack.c.l.b16 %v327
    %v1130 = vunpack.c.h.b16 %v327
    %v1131 = vunpack.c.l.b16 %v328
    %v1132 = vunpack.c.h.b16 %v328
    %v1133 = vunpack.c.l.b16 %v329
    %v1134 = vunpack.c.h.b16 %v329
    %v1135 = vunpack.c.l.b16 %v330
    %v1136 = vunpack.c.h.b16 %v330
    %v1137 = vunpack.c.l.b16 %v331
    %v1138 = vunpack.c.h.b16 %v331
    %v1139 = vunpack.c.l.b16 %v332
    %v1140 = vunpack.c.h.b16 %v332
    %v1141 = vunpack.c.l.b16 %v333
    %v1142 = vunpack.c.h.b16 %v333
    %v1143 = vunpack.c.l.b16 %v334
    %v1144 = vunpack.c.h.b16 %v334
    %v1145 = vunpack.c.l.b16 %v335
    %v1146 = vunpack.c.h.b16 %v335
    %v1147 = vunpack.c.l.b16 %v336
    %v1148 = vunpack.c.h.b16 %v336
    %v1149 = vunpack.c.l.b16 %v337
    %v1150 = vunpack.c.h.b16 %v337
    %v1151 = vunpack.c.l.b16 %v338
    %v1152 = vunpack.c.h.b16 %v338
    %v1153 = vunpack.c.l.b16 %v339
    %v1154 = vunpack.c.h.b16 %v339
    %v1155 = vunpack.c.l.b16 %v340
    %v1156 = vunpack.c.h.b16 %v340
    %v1157 = vunpack.c.l.b16 %v341
    %v1158 = vunpack.c.h.b16 %v341
    %v1159 = vunpack.c.l.b16 %v342
    %v1160 = vunpack.c.h.b16 %v342
    %v1161 = vpack.c.b16 %v653, %v649
    %v1162 = vpack.c.b16 %v654, %v650
    %v1163 = vpack.c.b16 %v655, %v651
    %v1164 = vpack.c.b16 %v656, %v652
    %v1165 = vpack.c.b16 %v661, %v657
    %v1166 = vpack.c.b16 %v662, %v658
    %v1167 = vpack.c.b16 %v663, %v659
    %v1168 = vpack.c.b16 %v664, %v660
    %v1169 = vpack.c.b16 %v669, %v665
    %v1170 = vpack.c.b16 %v670, %v666
    %v1171 = vpack.c.b16 %v671, %v667
    %v1172 = vpack.c.b16 %v672, %v668
    %v1173 = vpack.c.b16 %v677, %v673
    %v1174 = vpack.c.b16 %v678, %v674
    %v1175 = vpack.c.b16 %v679, %v675
    %v1176 = vpack.c.b16 %v680, %v676
    %v1177 = vpack.c.b16 %v685, %v681
    %v1178 = vpack.c.b16 %v686, %v682
    %v1179 = vpack.c.b16 %v687, %v683
    %v1180 = vpack.c.b16 %v688, %v684
    %v1181 = vpack.c.b16 %v693, %v689
    %v1182 = vpack.c.b16 %v694, %v690
    %v1183 = vpack.c.b16 %v695, %v691
    %v1184 = vpack.c.b16 %v696, %v692
    %v1185 = vpack.c.b16 %v701, %v697
    %v1186 = vpack.c.b16 %v702, %v698
    %v1187 = vpack.c.b16 %v703, %v699
    %v1188 = vpack.c.b16 %v704, %v700
    %v1189 = vpack.c.b16 %v709, %v705
    %v1190 = vpack.c.b16 %v710, %v706
    %v1191 = vpack.c.b16 %v711, %v707
    %v1192 = vpack.c.b16 %v712, %v708
    %v1193 = vpack.c.b16 %v717, %v713
    %v1194 = vpack.c.b16 %v718, %v714
    %v1195 = vpack.c.b16 %v719, %v715
    %v1196 = vpack.c.b16 %v720, %v716
    %v1197 = vpack.c.b16 %v725, %v721
    %v1198 = vpack.c.b16 %v726, %v722
    %v1199 = vpack.c.b16 %v727, %v723
    %v1200 = vpack.c.b16 %v728, %v724
    %v1201 = vpack.c.b16 %v733, %v729
    %v1202 = vpack.c.b16 %v734, %v730
    %v1203 = vpack.c.b16 %v735, %v731
    %v1204 = vpack.c.b16 %v736, %v732
    %v1205 = vpack.c.b16 %v741, %v737
    %v1206 = vpack.c.b16 %v742, %v738
    %v1207 = vpack.c.b16 %v743, %v739
    %v1208 = vpack.c.b16 %v744, %v740
    %v1209 = vpack.c.b16 %v749, %v745
    %v1210 = vpack.c.b16 %v750, %v746
    %v1211 = vpack.c.b16 %v751, %v747
    %v1212 = vpack.c.b16 %v752, %v748
    %v1213 = vpack.c.b16 %v757, %v753
    %v1214 = vpack.c.b16 %v758, %v754
    %v1215 = vpack.c.b16 %v759, %v755
    %v1216 = vpack.c.b16 %v760, %v756
    %v1217 = vpack.c.b16 %v765, %v761
    %v1218 = vpack.c.b16 %v766, %v762
    %v1219 = vpack.c.b16 %v767, %v763
    %v1220 = vpack.c.b16 %v768, %v764
    %v1221 = vpack.c.b16 %v773, %v769
    %v1222 = vpack.c.b16 %v774, %v770
    %v1223 = vpack.c.b16 %v775, %v771
    %v1224 = vpack.c.b16 %v776, %v772
    %v1225 = vpack.c.b16 %v781, %v777
    %v1226 = vpack.c.b16 %v782, %v778
    %v1227 = vpack.c.b16 %v783, %v779
    %v1228 = vpack.c.b16 %v784, %v780
    %v1229 = vpack.c.b16 %v789, %v785
    %v1230 = vpack.c.b16 %v790, %v786
    %v1231 = vpack.c.b16 %v791, %v787
    %v1232 = vpack.c.b16 %v792, %v788
    %v1233 = vpack.c.b16 %v797, %v793
    %v1234 = vpack.c.b16 %v798, %v794
    %v1235 = vpack.c.b16 %v799, %v795
    %v1236 = vpack.c.b16 %v800, %v796
    %v1237 = vpack.c.b16 %v805, %v801
    %v1238 = vpack.c.b16 %v806, %v802
    %v1239 = vpack.c.b16 %v807, %v803
    %v1240 = vpack.c.b16 %v808, %v804
    %v1241 = vpack.c.b16 %v813, %v809
    %v1242 = vpack.c.b16 %v814, %v810
    %v1243 = vpack.c.b16 %v815, %v811
    %v1244 = vpack.c.b16 %v816, %v812
    %v1245 = vpack.c.b16 %v821, %v817
    %v1246 = vpack.c.b16 %v822, %v818
    %v1247 = vpack.c.b16 %v823, %v819
    %v1248 = vpack.c.b16 %v824, %v820
    %v1249 = vpack.c.b16 %v829, %v825
    %v1250 = vpack.c.b16 %v830, %v826
    %v1251 = vpack.c.b16 %v831, %v827
    %v1252 = vpack.c.b16 %v832, %v828
    %v1253 = vpack.c.b16 %v837, %v833
    %v1254 = vpack.c.b16 %v838, %v834
    %v1255 = vpack.c.b16 %v839, %v835
    %v1256 = vpack.c.b16 %v840, %v836
    %v1257 = vpack.c.b16 %v845, %v841
    %v1258 = vpack.c.b16 %v846, %v842
    %v1259 = vpack.c.b16 %v847, %v843
    %v1260 = vpack.c.b16 %v848, %v844
    %v1261 = vpack.c.b16 %v853, %v849
    %v1262 = vpack.c.b16 %v854, %v850
    %v1263 = vpack.c.b16 %v855, %v851
    %v1264 = vpack.c.b16 %v856, %v852
    %v1265 = vpack.c.b16 %v861, %v857
    %v1266 = vpack.c.b16 %v862, %v858
    %v1267 = vpack.c.b16 %v863, %v859
    %v1268 = vpack.c.b16 %v864, %v860
    %v1269 = vpack.c.b16 %v869, %v865
    %v1270 = vpack.c.b16 %v870, %v866
    %v1271 = vpack.c.b16 %v871, %v867
    %v1272 = vpack.c.b16 %v872, %v868
    %v1273 = vpack.c.b16 %v877, %v873
    %v1274 = vpack.c.b16 %v878, %v874
    %v1275 = vpack.c.b16 %v879, %v875
    %v1276 = vpack.c.b16 %v880, %v876
    %v1277 = vpack.c.b16 %v885, %v881
    %v1278 = vpack.c.b16 %v886, %v882
    %v1279 = vpack.c.b16 %v887, %v883
    %v1280 = vpack.c.b16 %v888, %v884
    %v1281 = vpack.c.b16 %v893, %v889
    %v1282 = vpack.c.b16 %v894, %v890
    %v1283 = vpack.c.b16 %v895, %v891
    %v1284 = vpack.c.b16 %v896, %v892
    %v1285 = vpack.c.b16 %v901, %v897
    %v1286 = vpack.c.b16 %v902, %v898
    %v1287 = vpack.c.b16 %v903, %v899
    %v1288 = vpack.c.b16 %v904, %v900
    %v1289 = vpack.c.b16 %v909, %v905
    %v1290 = vpack.c.b16 %v910, %v906
    %v1291 = vpack.c.b16 %v911, %v907
    %v1292 = vpack.c.b16 %v912, %v908
    %v1293 = vpack.c.b16 %v917, %v913
    %v1294 = vpack.c.b16 %v918, %v914
    %v1295 = vpack.c.b16 %v919, %v915
    %v1296 = vpack.c.b16 %v920, %v916
    %v1297 = vpack.c.b16 %v925, %v921
    %v1298 = vpack.c.b16 %v926, %v922
    %v1299 = vpack.c.b16 %v927, %v923
    %v1300 = vpack.c.b16 %v928, %v924
    %v1301 = vpack.c.b16 %v933, %v929
    %v1302 = vpack.c.b16 %v934, %v930
    %v1303 = vpack.c.b16 %v935, %v931
    %v1304 = vpack.c.b16 %v936, %v932
    %v1305 = vpack.c.b16 %v941, %v937
    %v1306 = vpack.c.b16 %v942, %v938
    %v1307 = vpack.c.b16 %v943, %v939
    %v1308 = vpack.c.b16 %v944, %v940
    %v1309 = vpack.c.b16 %v949, %v945
    %v1310 = vpack.c.b16 %v950, %v946
    %v1311 = vpack.c.b16 %v951, %v947
    %v1312 = vpack.c.b16 %v952, %v948
    %v1313 = vpack.c.b16 %v957, %v953
    %v1314 = vpack.c.b16 %v958, %v954
    %v1315 = vpack.c.b16 %v959, %v955
    %v1316 = vpack.c.b16 %v960, %v956
    %v1317 = vpack.c.b16 %v965, %v961
    %v1318 = vpack.c.b16 %v966, %v962
    %v1319 = vpack.c.b16 %v967, %v963
    %v1320 = vpack.c.b16 %v968, %v964
    %v1321 = vpack.c.b16 %v973, %v969
    %v1322 = vpack.c.b16 %v974, %v970
    %v1323 = vpack.c.b16 %v975, %v971
    %v1324 = vpack.c.b16 %v976, %v972
    %v1325 = vpack.c.b16 %v981, %v977
    %v1326 = vpack.c.b16 %v982, %v978
    %v1327 = vpack.c.b16 %v983, %v979
    %v1328 = vpack.c.b16 %v984, %v980
    %v1329 = vpack.c.b16 %v989, %v985
    %v1330 = vpack.c.b16 %v990, %v986
    %v1331 = vpack.c.b16 %v991, %v987
    %v1332 = vpack.c.b16 %v992, %v988
    %v1333 = vpack.c.b16 %v997, %v993
    %v1334 = vpack.c.b16 %v998, %v994
    %v1335 = vpack.c.b16 %v999, %v995
    %v1336 = vpack.c.b16 %v1000, %v996
    %v1337 = vpack.c.b16 %v1005, %v1001
    %v1338 = vpack.c.b16 %v1006, %v1002
    %v1339 = vpack.c.b16 %v1007, %v1003
    %v1340 = vpack.c.b16 %v1008, %v1004
    %v1341 = vpack.c.b16 %v1013, %v1009
    %v1342 = vpack.c.b16 %v1014, %v1010
    %v1343 = vpack.c.b16 %v1015, %v1011
    %v1344 = vpack.c.b16 %v1016, %v1012
    %v1345 = vpack.c.b16 %v1021, %v1017
    %v1346 = vpack.c.b16 %v1022, %v1018
    %v1347 = vpack.c.b16 %v1023, %v1019
    %v1348 = vpack.c.b16 %v1024, %v1020
    %v1349 = vpack.c.b16 %v1029, %v1025
    %v1350 = vpack.c.b16 %v1030, %v1026
    %v1351 = vpack.c.b16 %v1031, %v1027
    %v1352 = vpack.c.b16 %v1032, %v1028
    %v1353 = vpack.c.b16 %v1037, %v1033
    %v1354 = vpack.c.b16 %v1038, %v1034
    %v1355 = vpack.c.b16 %v1039, %v1035
    %v1356 = vpack.c.b16 %v1040, %v1036
    %v1357 = vpack.c.b16 %v1045, %v1041
    %v1358 = vpack.c.b16 %v1046, %v1042
    %v1359 = vpack.c.b16 %v1047, %v1043
    %v1360 = vpack.c.b16 %v1048, %v1044
    %v1361 = vpack.c.b16 %v1053, %v1049
    %v1362 = vpack.c.b16 %v1054, %v1050
    %v1363 = vpack.c.b16 %v1055, %v1051
    %v1364 = vpack.c.b16 %v1056, %v1052
    %v1365 = vpack.c.b16 %v1061, %v1057
    %v1366 = vpack.c.b16 %v1062, %v1058
    %v1367 = vpack.c.b16 %v1063, %v1059
    %v1368 = vpack.c.b16 %v1064, %v1060
    %v1369 = vpack.c.b16 %v1069, %v1065
    %v1370 = vpack.c.b16 %v1070, %v1066
    %v1371 = vpack.c.b16 %v1071, %v1067
    %v1372 = vpack.c.b16 %v1072, %v1068
    %v1373 = vpack.c.b16 %v1077, %v1073
    %v1374 = vpack.c.b16 %v1078, %v1074
    %v1375 = vpack.c.b16 %v1079, %v1075
    %v1376 = vpack.c.b16 %v1080, %v1076
    %v1377 = vpack.c.b16 %v1085, %v1081
    %v1378 = vpack.c.b16 %v1086, %v1082
    %v1379 = vpack.c.b16 %v1087, %v1083
    %v1380 = vpack.c.b16 %v1088, %v1084
    %v1381 = vpack.c.b16 %v1093, %v1089
    %v1382 = vpack.c.b16 %v1094, %v1090
    %v1383 = vpack.c.b16 %v1095, %v1091
    %v1384 = vpack.c.b16 %v1096, %v1092
    %v1385 = vpack.c.b16 %v1101, %v1097
    %v1386 = vpack.c.b16 %v1102, %v1098
    %v1387 = vpack.c.b16 %v1103, %v1099
    %v1388 = vpack.c.b16 %v1104, %v1100
    %v1389 = vpack.c.b16 %v1109, %v1105
    %v1390 = vpack.c.b16 %v1110, %v1106
    %v1391 = vpack.c.b16 %v1111, %v1107
    %v1392 = vpack.c.b16 %v1112, %v1108
    %v1393 = vpack.c.b16 %v1117, %v1113
    %v1394 = vpack.c.b16 %v1118, %v1114
    %v1395 = vpack.c.b16 %v1119, %v1115
    %v1396 = vpack.c.b16 %v1120, %v1116
    %v1397 = vpack.c.b16 %v1125, %v1121
    %v1398 = vpack.c.b16 %v1126, %v1122
    %v1399 = vpack.c.b16 %v1127, %v1123
    %v1400 = vpack.c.b16 %v1128, %v1124
    %v1401 = vpack.c.b16 %v1133, %v1129
    %v1402 = vpack.c.b16 %v1134, %v1130
    %v1403 = vpack.c.b16 %v1135, %v1131
    %v1404 = vpack.c.b16 %v1136, %v1132
    %v1405 = vpack.c.b16 %v1141, %v1137
    %v1406 = vpack.c.b16 %v1142, %v1138
    %v1407 = vpack.c.b16 %v1143, %v1139
    %v1408 = vpack.c.b16 %v1144, %v1140
    %v1409 = vpack.c.b16 %v1149, %v1145
    %v1410 = vpack.c.b16 %v1150, %v1146
    %v1411 = vpack.c.b16 %v1151, %v1147
    %v1412 = vpack.c.b16 %v1152, %v1148
    %v1413 = vpack.c.b16 %v1157, %v1153
    %v1414 = vpack.c.b16 %v1158, %v1154
    %v1415 = vpack.c.b16 %v1159, %v1155
    %v1416 = vpack.c.b16 %v1160, %v1156
    %1673 = vmatprep.subr.bf16.mxu0 %v1162
    %1674 = vmatpush1.bf16.msra.mxu0 %v1161
    %1675 = vmatprep.subr.bf16.mxu0 %v1166
    %1676 = vmatpush1.bf16.msra.mxu0 %v1165
    %1677 = vmatprep.subr.bf16.mxu0 %v1170
    %1678 = vmatpush1.bf16.msra.mxu0 %v1169
    %1679 = vmatprep.subr.bf16.mxu0 %v1174
    %1680 = vmatpush1.bf16.msra.mxu0 %v1173
    %1681 = vmatprep.subr.bf16.mxu0 %v1178
    %1682 = vmatpush1.bf16.msra.mxu0 %v1177
    %1683 = vmatprep.subr.bf16.mxu0 %v1182
    %1684 = vmatpush1.bf16.msra.mxu0 %v1181
    %1685 = vmatprep.subr.bf16.mxu0 %v1186
    %1686 = vmatpush1.bf16.msra.mxu0 %v1185
    %1687 = vmatprep.subr.bf16.mxu0 %v1190
    %1688 = vmatpush1.bf16.msra.mxu0 %v1189
    %1689 = vmatprep.subr.bf16.mxu0 %v1194
    %1690 = vmatpush1.bf16.msra.mxu0 %v1193
    %1691 = vmatprep.subr.bf16.mxu0 %v1198
    %1692 = vmatpush1.bf16.msra.mxu0 %v1197
    %1693 = vmatprep.subr.bf16.mxu0 %v1202
    %1694 = vmatpush1.bf16.msra.mxu0 %v1201
    %1695 = vmatprep.subr.bf16.mxu0 %v1206
    %1696 = vmatpush1.bf16.msra.mxu0 %v1205
    %1697 = vmatprep.subr.bf16.mxu0 %v1210
    %1698 = vmatpush1.bf16.msra.mxu0 %v1209
    %1699 = vmatprep.subr.bf16.mxu0 %v1214
    %1700 = vmatpush1.bf16.msra.mxu0 %v1213
    %1701 = vmatprep.subr.bf16.mxu0 %v1218
    %1702 = vmatpush1.bf16.msra.mxu0 %v1217
    %1703 = vmatprep.subr.bf16.mxu0 %v1222
    %1704 = vmatpush1.bf16.msra.mxu0 %v1221
    %1705 = vmatprep.mubr.bf16.mxu0 %v378
    %1706 = vmatmul.mubr.bf16.gmra.mrb[0].mxu0 %v377
    %v1707 = vpop.f32.mrb[0].mxu0
    %v1708 = vadd.f32 %v348, %v1707
    %v1709 = vpop.f32.mrb[0].mxu0
    %v1710 = vadd.f32 %v352, %v1709
    %v1711 = vpop.f32.mrb[0].mxu0
    %v1712 = vpop.f32.mrb[0].mxu0
    %1713 = vdwg.mxu0
    %1714 = vmatprep.subr.bf16.mxu0 %v1226
    %1715 = vmatpush1.bf16.msra.mxu0 %v1225
    %1716 = vmatprep.subr.bf16.mxu0 %v1230
    %1717 = vmatpush1.bf16.msra.mxu0 %v1229
    %1718 = vmatprep.subr.bf16.mxu0 %v1234
    %1719 = vmatpush1.bf16.msra.mxu0 %v1233
    %1720 = vmatprep.subr.bf16.mxu0 %v1238
    %1721 = vmatpush1.bf16.msra.mxu0 %v1237
    %1722 = vmatprep.subr.bf16.mxu0 %v1242
    %1723 = vmatpush1.bf16.msra.mxu0 %v1241
    %1724 = vmatprep.subr.bf16.mxu0 %v1246
    %1725 = vmatpush1.bf16.msra.mxu0 %v1245
    %1726 = vmatprep.subr.bf16.mxu0 %v1250
    %1727 = vmatpush1.bf16.msra.mxu0 %v1249
    %1728 = vmatprep.subr.bf16.mxu0 %v1254
    %1729 = vmatpush1.bf16.msra.mxu0 %v1253
    %1730 = vmatprep.subr.bf16.mxu0 %v1258
    %1731 = vmatpush1.bf16.msra.mxu0 %v1257
    %1732 = vmatprep.subr.bf16.mxu0 %v1262
    %1733 = vmatpush1.bf16.msra.mxu0 %v1261
    %1734 = vmatprep.subr.bf16.mxu0 %v1266
    %1735 = vmatpush1.bf16.msra.mxu0 %v1265
    %1736 = vmatprep.subr.bf16.mxu0 %v1270
    %1737 = vmatpush1.bf16.msra.mxu0 %v1269
    %1738 = vmatprep.subr.bf16.mxu0 %v1274
    %1739 = vmatpush1.bf16.msra.mxu0 %v1273
    %1740 = vmatprep.subr.bf16.mxu0 %v1278
    %1741 = vmatpush1.bf16.msra.mxu0 %v1277
    %1742 = vmatprep.subr.bf16.mxu0 %v1282
    %1743 = vmatpush1.bf16.msra.mxu0 %v1281
    %1744 = vmatprep.subr.bf16.mxu0 %v1286
    %1745 = vmatpush1.bf16.msra.mxu0 %v1285
    %1746 = vmatprep.mubr.bf16.mxu0 %v380
    %1747 = vmatmul.mubr.bf16.gmra.mrb[0].mxu0 %v379
    %v1748 = vpop.f32.mrb[0].mxu0
    %v1749 = vadd.f32 %v1708, %v1748
    %v1750 = vpop.f32.mrb[0].mxu0
    %v1751 = vadd.f32 %v1710, %v1750
    %v1752 = vpop.f32.mrb[0].mxu0
    %v1753 = vpop.f32.mrb[0].mxu0
    %1754 = vdwg.mxu0
    %1755 = vmatprep.subr.bf16.mxu0 %v1290
    %1756 = vmatpush1.bf16.msra.mxu0 %v1289
    %1757 = vmatprep.subr.bf16.mxu0 %v1294
    %1758 = vmatpush1.bf16.msra.mxu0 %v1293
    %1759 = vmatprep.subr.bf16.mxu0 %v1298
    %1760 = vmatpush1.bf16.msra.mxu0 %v1297
    %1761 = vmatprep.subr.bf16.mxu0 %v1302
    %1762 = vmatpush1.bf16.msra.mxu0 %v1301
    %1763 = vmatprep.subr.bf16.mxu0 %v1306
    %1764 = vmatpush1.bf16.msra.mxu0 %v1305
    %1765 = vmatprep.subr.bf16.mxu0 %v1310
    %1766 = vmatpush1.bf16.msra.mxu0 %v1309
    %1767 = vmatprep.subr.bf16.mxu0 %v1314
    %1768 = vmatpush1.bf16.msra.mxu0 %v1313
    %1769 = vmatprep.subr.bf16.mxu0 %v1318
    %1770 = vmatpush1.bf16.msra.mxu0 %v1317
    %1771 = vmatprep.subr.bf16.mxu0 %v1322
    %1772 = vmatpush1.bf16.msra.mxu0 %v1321
    %1773 = vmatprep.subr.bf16.mxu0 %v1326
    %1774 = vmatpush1.bf16.msra.mxu0 %v1325
    %1775 = vmatprep.subr.bf16.mxu0 %v1330
    %1776 = vmatpush1.bf16.msra.mxu0 %v1329
    %1777 = vmatprep.subr.bf16.mxu0 %v1334
    %1778 = vmatpush1.bf16.msra.mxu0 %v1333
    %1779 = vmatprep.subr.bf16.mxu0 %v1338
    %1780 = vmatpush1.bf16.msra.mxu0 %v1337
    %1781 = vmatprep.subr.bf16.mxu0 %v1342
    %1782 = vmatpush1.bf16.msra.mxu0 %v1341
    %1783 = vmatprep.subr.bf16.mxu0 %v1346
    %1784 = vmatpush1.bf16.msra.mxu0 %v1345
    %1785 = vmatprep.subr.bf16.mxu0 %v1350
    %1786 = vmatpush1.bf16.msra.mxu0 %v1349
    %1787 = vmatprep.mubr.bf16.mxu0 %v382
    %1788 = vmatmul.mubr.bf16.gmra.mrb[0].mxu0 %v381
    %v1789 = vpop.f32.mrb[0].mxu0
    %v1790 = vadd.f32 %v1749, %v1789
    %v1791 = vpop.f32.mrb[0].mxu0
    %v1792 = vadd.f32 %v1751, %v1791
    %v1793 = vpop.f32.mrb[0].mxu0
    %v1794 = vpop.f32.mrb[0].mxu0
    %1795 = vdwg.mxu0
    %1796 = vmatprep.subr.bf16.mxu0 %v1354
    %1797 = vmatpush1.bf16.msra.mxu0 %v1353
    %1798 = vmatprep.subr.bf16.mxu0 %v1358
    %1799 = vmatpush1.bf16.msra.mxu0 %v1357
    %1800 = vmatprep.subr.bf16.mxu0 %v1362
    %1801 = vmatpush1.bf16.msra.mxu0 %v1361
    %1802 = vmatprep.subr.bf16.mxu0 %v1366
    %1803 = vmatpush1.bf16.msra.mxu0 %v1365
    %1804 = vmatprep.subr.bf16.mxu0 %v1370
    %1805 = vmatpush1.bf16.msra.mxu0 %v1369
    %1806 = vmatprep.subr.bf16.mxu0 %v1374
    %1807 = vmatpush1.bf16.msra.mxu0 %v1373
    %1808 = vmatprep.subr.bf16.mxu0 %v1378
    %1809 = vmatpush1.bf16.msra.mxu0 %v1377
    %1810 = vmatprep.subr.bf16.mxu0 %v1382
    %1811 = vmatpush1.bf16.msra.mxu0 %v1381
    %1812 = vmatprep.subr.bf16.mxu0 %v1386
    %1813 = vmatpush1.bf16.msra.mxu0 %v1385
    %1814 = vmatprep.subr.bf16.mxu0 %v1390
    %1815 = vmatpush1.bf16.msra.mxu0 %v1389
    %1816 = vmatprep.subr.bf16.mxu0 %v1394
    %1817 = vmatpush1.bf16.msra.mxu0 %v1393
    %1818 = vmatprep.subr.bf16.mxu0 %v1398
    %1819 = vmatpush1.bf16.msra.mxu0 %v1397
    %1820 = vmatprep.subr.bf16.mxu0 %v1402
    %1821 = vmatpush1.bf16.msra.mxu0 %v1401
    %1822 = vmatprep.subr.bf16.mxu0 %v1406
    %1823 = vmatpush1.bf16.msra.mxu0 %v1405
    %1824 = vmatprep.subr.bf16.mxu0 %v1410
    %1825 = vmatpush1.bf16.msra.mxu0 %v1409
    %1826 = vmatprep.subr.bf16.mxu0 %v1414
    %1827 = vmatpush1.bf16.msra.mxu0 %v1413
    %1828 = vmatprep.mubr.bf16.mxu0 %v384
    %1829 = vmatmul.mubr.bf16.gmra.mrb[0].mxu0 %v383
    %v1830 = vpop.f32.mrb[0].mxu0
    %v1831 = vadd.f32 %v1790, %v1830
    %v1832 = vpop.f32.mrb[0].mxu0
    %v1833 = vadd.f32 %v1792, %v1832
    %v1834 = vpop.f32.mrb[0].mxu0
    %v1835 = vpop.f32.mrb[0].mxu0
    %1836 = vdwg.mxu0
    %1837 = vmatprep.subr.bf16.mxu0 %v1164
    %1838 = vmatpush1.bf16.msra.mxu0 %v1163
    %1839 = vmatprep.subr.bf16.mxu0 %v1168
    %1840 = vmatpush1.bf16.msra.mxu0 %v1167
    %1841 = vmatprep.subr.bf16.mxu0 %v1172
    %1842 = vmatpush1.bf16.msra.mxu0 %v1171
    %1843 = vmatprep.subr.bf16.mxu0 %v1176
    %1844 = vmatpush1.bf16.msra.mxu0 %v1175
    %1845 = vmatprep.subr.bf16.mxu0 %v1180
    %1846 = vmatpush1.bf16.msra.mxu0 %v1179
    %1847 = vmatprep.subr.bf16.mxu0 %v1184
    %1848 = vmatpush1.bf16.msra.mxu0 %v1183
    %1849 = vmatprep.subr.bf16.mxu0 %v1188
    %1850 = vmatpush1.bf16.msra.mxu0 %v1187
    %1851 = vmatprep.subr.bf16.mxu0 %v1192
    %1852 = vmatpush1.bf16.msra.mxu0 %v1191
    %1853 = vmatprep.subr.bf16.mxu0 %v1196
    %1854 = vmatpush1.bf16.msra.mxu0 %v1195
    %1855 = vmatprep.subr.bf16.mxu0 %v1200
    %1856 = vmatpush1.bf16.msra.mxu0 %v1199
    %1857 = vmatprep.subr.bf16.mxu0 %v1204
    %1858 = vmatpush1.bf16.msra.mxu0 %v1203
    %1859 = vmatprep.subr.bf16.mxu0 %v1208
    %1860 = vmatpush1.bf16.msra.mxu0 %v1207
    %1861 = vmatprep.subr.bf16.mxu0 %v1212
    %1862 = vmatpush1.bf16.msra.mxu0 %v1211
    %1863 = vmatprep.subr.bf16.mxu0 %v1216
    %1864 = vmatpush1.bf16.msra.mxu0 %v1215
    %1865 = vmatprep.subr.bf16.mxu0 %v1220
    %1866 = vmatpush1.bf16.msra.mxu0 %v1219
    %1867 = vmatprep.subr.bf16.mxu0 %v1224
    %1868 = vmatpush1.bf16.msra.mxu0 %v1223
    %1869 = vmatprep.mubr.bf16.mxu0 %v378
    %1870 = vmatmul.mubr.bf16.gmra.mrb[0].mxu0 %v377
    %v1871 = vpop.f32.mrb[0].mxu0
    %v1872 = vadd.f32 %v356, %v1871
    %v1873 = vpop.f32.mrb[0].mxu0
    %v1874 = vadd.f32 %v360, %v1873
    %v1875 = vpop.f32.mrb[0].mxu0
    %v1876 = vpop.f32.mrb[0].mxu0
    %1877 = vdwg.mxu0
    %1878 = vmatprep.subr.bf16.mxu0 %v1228
    %1879 = vmatpush1.bf16.msra.mxu0 %v1227
    %1880 = vmatprep.subr.bf16.mxu0 %v1232
    %1881 = vmatpush1.bf16.msra.mxu0 %v1231
    %1882 = vmatprep.subr.bf16.mxu0 %v1236
    %1883 = vmatpush1.bf16.msra.mxu0 %v1235
    %1884 = vmatprep.subr.bf16.mxu0 %v1240
    %1885 = vmatpush1.bf16.msra.mxu0 %v1239
    %1886 = vmatprep.subr.bf16.mxu0 %v1244
    %1887 = vmatpush1.bf16.msra.mxu0 %v1243
    %1888 = vmatprep.subr.bf16.mxu0 %v1248
    %1889 = vmatpush1.bf16.msra.mxu0 %v1247
    %1890 = vmatprep.subr.bf16.mxu0 %v1252
    %1891 = vmatpush1.bf16.msra.mxu0 %v1251
    %1892 = vmatprep.subr.bf16.mxu0 %v1256
    %1893 = vmatpush1.bf16.msra.mxu0 %v1255
    %1894 = vmatprep.subr.bf16.mxu0 %v1260
    %1895 = vmatpush1.bf16.msra.mxu0 %v1259
    %1896 = vmatprep.subr.bf16.mxu0 %v1264
    %1897 = vmatpush1.bf16.msra.mxu0 %v1263
    %1898 = vmatprep.subr.bf16.mxu0 %v1268
    %1899 = vmatpush1.bf16.msra.mxu0 %v1267
    %1900 = vmatprep.subr.bf16.mxu0 %v1272
    %1901 = vmatpush1.bf16.msra.mxu0 %v1271
    %1902 = vmatprep.subr.bf16.mxu0 %v1276
    %1903 = vmatpush1.bf16.msra.mxu0 %v1275
    %1904 = vmatprep.subr.bf16.mxu0 %v1280
    %1905 = vmatpush1.bf16.msra.mxu0 %v1279
    %1906 = vmatprep.subr.bf16.mxu0 %v1284
    %1907 = vmatpush1.bf16.msra.mxu0 %v1283
    %1908 = vmatprep.subr.bf16.mxu0 %v1288
    %1909 = vmatpush1.bf16.msra.mxu0 %v1287
    %1910 = vmatprep.mubr.bf16.mxu0 %v380
    %1911 = vmatmul.mubr.bf16.gmra.mrb[0].mxu0 %v379
    %v1912 = vpop.f32.mrb[0].mxu0
    %v1913 = vadd.f32 %v1872, %v1912
    %v1914 = vpop.f32.mrb[0].mxu0
    %v1915 = vadd.f32 %v1874, %v1914
    %v1916 = vpop.f32.mrb[0].mxu0
    %v1917 = vpop.f32.mrb[0].mxu0
    %1918 = vdwg.mxu0
    %1919 = vmatprep.subr.bf16.mxu0 %v1292
    %1920 = vmatpush1.bf16.msra.mxu0 %v1291
    %1921 = vmatprep.subr.bf16.mxu0 %v1296
    %1922 = vmatpush1.bf16.msra.mxu0 %v1295
    %1923 = vmatprep.subr.bf16.mxu0 %v1300
    %1924 = vmatpush1.bf16.msra.mxu0 %v1299
    %1925 = vmatprep.subr.bf16.mxu0 %v1304
    %1926 = vmatpush1.bf16.msra.mxu0 %v1303
    %1927 = vmatprep.subr.bf16.mxu0 %v1308
    %1928 = vmatpush1.bf16.msra.mxu0 %v1307
    %1929 = vmatprep.subr.bf16.mxu0 %v1312
    %1930 = vmatpush1.bf16.msra.mxu0 %v1311
    %1931 = vmatprep.subr.bf16.mxu0 %v1316
    %1932 = vmatpush1.bf16.msra.mxu0 %v1315
    %1933 = vmatprep.subr.bf16.mxu0 %v1320
    %1934 = vmatpush1.bf16.msra.mxu0 %v1319
    %1935 = vmatprep.subr.bf16.mxu0 %v1324
    %1936 = vmatpush1.bf16.msra.mxu0 %v1323
    %1937 = vmatprep.subr.bf16.mxu0 %v1328
    %1938 = vmatpush1.bf16.msra.mxu0 %v1327
    %1939 = vmatprep.subr.bf16.mxu0 %v1332
    %1940 = vmatpush1.bf16.msra.mxu0 %v1331
    %1941 = vmatprep.subr.bf16.mxu0 %v1336
    %1942 = vmatpush1.bf16.msra.mxu0 %v1335
    %1943 = vmatprep.subr.bf16.mxu0 %v1340
    %1944 = vmatpush1.bf16.msra.mxu0 %v1339
    %1945 = vmatprep.subr.bf16.mxu0 %v1344
    %1946 = vmatpush1.bf16.msra.mxu0 %v1343
    %1947 = vmatprep.subr.bf16.mxu0 %v1348
    %1948 = vmatpush1.bf16.msra.mxu0 %v1347
    %1949 = vmatprep.subr.bf16.mxu0 %v1352
    %1950 = vmatpush1.bf16.msra.mxu0 %v1351
    %1951 = vmatprep.mubr.bf16.mxu0 %v382
    %1952 = vmatmul.mubr.bf16.gmra.mrb[0].mxu0 %v381
    %v1953 = vpop.f32.mrb[0].mxu0
    %v1954 = vadd.f32 %v1913, %v1953
    %v1955 = vpop.f32.mrb[0].mxu0
    %v1956 = vadd.f32 %v1915, %v1955
    %v1957 = vpop.f32.mrb[0].mxu0
    %v1958 = vpop.f32.mrb[0].mxu0
    %1959 = vdwg.mxu0
    %1960 = vmatprep.subr.bf16.mxu0 %v1356
    %1961 = vmatpush1.bf16.msra.mxu0 %v1355
    %1962 = vmatprep.subr.bf16.mxu0 %v1360
    %1963 = vmatpush1.bf16.msra.mxu0 %v1359
    %1964 = vmatprep.subr.bf16.mxu0 %v1364
    %1965 = vmatpush1.bf16.msra.mxu0 %v1363
    %1966 = vmatprep.subr.bf16.mxu0 %v1368
    %1967 = vmatpush1.bf16.msra.mxu0 %v1367
    %1968 = vmatprep.subr.bf16.mxu0 %v1372
    %1969 = vmatpush1.bf16.msra.mxu0 %v1371
    %1970 = vmatprep.subr.bf16.mxu0 %v1376
    %1971 = vmatpush1.bf16.msra.mxu0 %v1375
    %1972 = vmatprep.subr.bf16.mxu0 %v1380
    %1973 = vmatpush1.bf16.msra.mxu0 %v1379
    %1974 = vmatprep.subr.bf16.mxu0 %v1384
    %1975 = vmatpush1.bf16.msra.mxu0 %v1383
    %1976 = vmatprep.subr.bf16.mxu0 %v1388
    %1977 = vmatpush1.bf16.msra.mxu0 %v1387
    %1978 = vmatprep.subr.bf16.mxu0 %v1392
    %1979 = vmatpush1.bf16.msra.mxu0 %v1391
    %1980 = vmatprep.subr.bf16.mxu0 %v1396
    %1981 = vmatpush1.bf16.msra.mxu0 %v1395
    %1982 = vmatprep.subr.bf16.mxu0 %v1400
    %1983 = vmatpush1.bf16.msra.mxu0 %v1399
    %1984 = vmatprep.subr.bf16.mxu0 %v1404
    %1985 = vmatpush1.bf16.msra.mxu0 %v1403
    %1986 = vmatprep.subr.bf16.mxu0 %v1408
    %1987 = vmatpush1.bf16.msra.mxu0 %v1407
    %1988 = vmatprep.subr.bf16.mxu0 %v1412
    %1989 = vmatpush1.bf16.msra.mxu0 %v1411
    %1990 = vmatprep.subr.bf16.mxu0 %v1416
    %1991 = vmatpush1.bf16.msra.mxu0 %v1415
    %1992 = vmatprep.mubr.bf16.mxu0 %v384
    %1993 = vmatmul.mubr.bf16.gmra.mrb[0].mxu0 %v383
    %v1994 = vpop.f32.mrb[0].mxu0
    %v1995 = vadd.f32 %v1954, %v1994
    %v1996 = vpop.f32.mrb[0].mxu0
    %v1997 = vadd.f32 %v1956, %v1996
    %v1998 = vpop.f32.mrb[0].mxu0
    %v1999 = vpop.f32.mrb[0].mxu0
    %2000 = vdwg.mxu0
    %v2001 = vmax.f32 %v1831, 0.0
    %v2002 = vmax.f32 %v1833, 0.0
    %v2003 = vmax.f32 %v1995, 0.0
    %v2004 = vmax.f32 %v1997, 0.0
    %v2005 = vpack.c.bf16 %v2001, %v2001
    %v2006 = vpack.c.bf16 %v2002, %v2002
    %v2007 = vpack.c.bf16 %v2003, %v2003
    %v2008 = vpack.c.bf16 %v2004, %v2004
    %v2009 = vld [vmem:[#allocation8] sm:$0xff]
    %v2010 = vld [vmem:[#allocation8 + $0x8] sm:$0xff]
    %v2011 = vld [vmem:[#allocation8 + $0x10] sm:$0xff]
    %v2012 = vld [vmem:[#allocation8 + $0x18] sm:$0xff]
    %v2013 = vld [vmem:[#allocation8 + $0x20] sm:$0xff]
    %v2014 = vld [vmem:[#allocation8 + $0x28] sm:$0xff]
    %v2015 = vld [vmem:[#allocation8 + $0x30] sm:$0xff]
    %v2016 = vld [vmem:[#allocation8 + $0x38] sm:$0xff]
    %v2017 = vld [vmem:[#allocation8 + $0x40] sm:$0xff]
    %v2018 = vld [vmem:[#allocation8 + $0x48] sm:$0xff]
    %v2019 = vld [vmem:[#allocation8 + $0x50] sm:$0xff]
    %v2020 = vld [vmem:[#allocation8 + $0x58] sm:$0xff]
    %v2021 = vld [vmem:[#allocation8 + $0x60] sm:$0xff]
    %v2022 = vld [vmem:[#allocation8 + $0x68] sm:$0xff]
    %v2023 = vld [vmem:[#allocation8 + $0x70] sm:$0xff]
    %v2024 = vld [vmem:[#allocation8 + $0x78] sm:$0xff]
    %v2025 = vld [vmem:[#allocation8 + $0x80] sm:$0xff]
    %v2026 = vld [vmem:[#allocation8 + $0x88] sm:$0xff]
    %v2027 = vld [vmem:[#allocation8 + $0x90] sm:$0xff]
    %v2028 = vld [vmem:[#allocation8 + $0x98] sm:$0xff]
    %v2029 = vld [vmem:[#allocation8 + $0xa0] sm:$0xff]
    %v2030 = vld [vmem:[#allocation8 + $0xa8] sm:$0xff]
    %v2031 = vld [vmem:[#allocation8 + $0xb0] sm:$0xff]
    %v2032 = vld [vmem:[#allocation8 + $0xb8] sm:$0xff]
    %v2033 = vld [vmem:[#allocation8 + $0xc0] sm:$0xff]
    %v2034 = vld [vmem:[#allocation8 + $0xc8] sm:$0xff]
    %v2035 = vld [vmem:[#allocation8 + $0xd0] sm:$0xff]
    %v2036 = vld [vmem:[#allocation8 + $0xd8] sm:$0xff]
    %v2037 = vld [vmem:[#allocation8 + $0xe0] sm:$0xff]
    %v2038 = vld [vmem:[#allocation8 + $0xe8] sm:$0xff]
    %v2039 = vld [vmem:[#allocation8 + $0xf0] sm:$0xff]
    %v2040 = vld [vmem:[#allocation8 + $0xf8] sm:$0xff]
    %v2041 = vld [vmem:[#allocation8 + $0x100] sm:$0xff]
    %v2042 = vld [vmem:[#allocation8 + $0x108] sm:$0xff]
    %v2043 = vld [vmem:[#allocation8 + $0x110] sm:$0xff]
    %v2044 = vld [vmem:[#allocation8 + $0x118] sm:$0xff]
    %v2045 = vld [vmem:[#allocation8 + $0x120] sm:$0xff]
    %v2046 = vld [vmem:[#allocation8 + $0x128] sm:$0xff]
    %v2047 = vld [vmem:[#allocation8 + $0x130] sm:$0xff]
    %v2048 = vld [vmem:[#allocation8 + $0x138] sm:$0xff]
    %v2049 = vld [vmem:[#allocation8 + $0x140] sm:$0xff]
    %v2050 = vld [vmem:[#allocation8 + $0x148] sm:$0xff]
    %v2051 = vld [vmem:[#allocation8 + $0x150] sm:$0xff]
    %v2052 = vld [vmem:[#allocation8 + $0x158] sm:$0xff]
    %v2053 = vld [vmem:[#allocation8 + $0x160] sm:$0xff]
    %v2054 = vld [vmem:[#allocation8 + $0x168] sm:$0xff]
    %v2055 = vld [vmem:[#allocation8 + $0x170] sm:$0xff]
    %v2056 = vld [vmem:[#allocation8 + $0x178] sm:$0xff]
    %v2057 = vld [vmem:[#allocation8 + $0x180] sm:$0xff]
    %v2058 = vld [vmem:[#allocation8 + $0x188] sm:$0xff]
    %v2059 = vld [vmem:[#allocation8 + $0x190] sm:$0xff]
    %v2060 = vld [vmem:[#allocation8 + $0x198] sm:$0xff]
    %v2061 = vld [vmem:[#allocation8 + $0x1a0] sm:$0xff]
    %v2062 = vld [vmem:[#allocation8 + $0x1a8] sm:$0xff]
    %v2063 = vld [vmem:[#allocation8 + $0x1b0] sm:$0xff]
    %v2064 = vld [vmem:[#allocation8 + $0x1b8] sm:$0xff]
    %v2065 = vld [vmem:[#allocation8 + $0x1c0] sm:$0xff]
    %v2066 = vld [vmem:[#allocation8 + $0x1c8] sm:$0xff]
    %v2067 = vld [vmem:[#allocation8 + $0x1d0] sm:$0xff]
    %v2068 = vld [vmem:[#allocation8 + $0x1d8] sm:$0xff]
    %v2069 = vld [vmem:[#allocation8 + $0x1e0] sm:$0xff]
    %v2070 = vld [vmem:[#allocation8 + $0x1e8] sm:$0xff]
    %v2071 = vld [vmem:[#allocation8 + $0x1f0] sm:$0xff]
    %v2072 = vld [vmem:[#allocation8 + $0x1f8] sm:$0xff]
    %v2073 = vld [vmem:[#allocation8 + $0x200] sm:$0xff]
    %v2074 = vld [vmem:[#allocation8 + $0x208] sm:$0xff]
    %v2075 = vld [vmem:[#allocation8 + $0x210] sm:$0xff]
    %v2076 = vld [vmem:[#allocation8 + $0x218] sm:$0xff]
    %v2077 = vld [vmem:[#allocation8 + $0x220] sm:$0xff]
    %v2078 = vld [vmem:[#allocation8 + $0x228] sm:$0xff]
    %v2079 = vld [vmem:[#allocation8 + $0x230] sm:$0xff]
    %v2080 = vld [vmem:[#allocation8 + $0x238] sm:$0xff]
    %v2081 = vld [vmem:[#allocation8 + $0x240] sm:$0xff]
    %v2082 = vld [vmem:[#allocation8 + $0x248] sm:$0xff]
    %v2083 = vld [vmem:[#allocation8 + $0x250] sm:$0xff]
    %v2084 = vld [vmem:[#allocation8 + $0x258] sm:$0xff]
    %v2085 = vld [vmem:[#allocation8 + $0x260] sm:$0xff]
    %v2086 = vld [vmem:[#allocation8 + $0x268] sm:$0xff]
    %v2087 = vld [vmem:[#allocation8 + $0x270] sm:$0xff]
    %v2088 = vld [vmem:[#allocation8 + $0x278] sm:$0xff]
    %v2089 = vld [vmem:[#allocation8 + $0x280] sm:$0xff]
    %v2090 = vld [vmem:[#allocation8 + $0x288] sm:$0xff]
    %v2091 = vld [vmem:[#allocation8 + $0x290] sm:$0xff]
    %v2092 = vld [vmem:[#allocation8 + $0x298] sm:$0xff]
    %v2093 = vld [vmem:[#allocation8 + $0x2a0] sm:$0xff]
    %v2094 = vld [vmem:[#allocation8 + $0x2a8] sm:$0xff]
    %v2095 = vld [vmem:[#allocation8 + $0x2b0] sm:$0xff]
    %v2096 = vld [vmem:[#allocation8 + $0x2b8] sm:$0xff]
    %v2097 = vld [vmem:[#allocation8 + $0x2c0] sm:$0xff]
    %v2098 = vld [vmem:[#allocation8 + $0x2c8] sm:$0xff]
    %v2099 = vld [vmem:[#allocation8 + $0x2d0] sm:$0xff]
    %v2100 = vld [vmem:[#allocation8 + $0x2d8] sm:$0xff]
    %v2101 = vld [vmem:[#allocation8 + $0x2e0] sm:$0xff]
    %v2102 = vld [vmem:[#allocation8 + $0x2e8] sm:$0xff]
    %v2103 = vld [vmem:[#allocation8 + $0x2f0] sm:$0xff]
    %v2104 = vld [vmem:[#allocation8 + $0x2f8] sm:$0xff]
    %v2105 = vld [vmem:[#allocation8 + $0x300] sm:$0xff]
    %v2106 = vld [vmem:[#allocation8 + $0x308] sm:$0xff]
    %v2107 = vld [vmem:[#allocation8 + $0x310] sm:$0xff]
    %v2108 = vld [vmem:[#allocation8 + $0x318] sm:$0xff]
    %v2109 = vld [vmem:[#allocation8 + $0x320] sm:$0xff]
    %v2110 = vld [vmem:[#allocation8 + $0x328] sm:$0xff]
    %v2111 = vld [vmem:[#allocation8 + $0x330] sm:$0xff]
    %v2112 = vld [vmem:[#allocation8 + $0x338] sm:$0xff]
    %v2113 = vld [vmem:[#allocation8 + $0x340] sm:$0xff]
    %v2114 = vld [vmem:[#allocation8 + $0x348] sm:$0xff]
    %v2115 = vld [vmem:[#allocation8 + $0x350] sm:$0xff]
    %v2116 = vld [vmem:[#allocation8 + $0x358] sm:$0xff]
    %v2117 = vld [vmem:[#allocation8 + $0x360] sm:$0xff]
    %v2118 = vld [vmem:[#allocation8 + $0x368] sm:$0xff]
    %v2119 = vld [vmem:[#allocation8 + $0x370] sm:$0xff]
    %v2120 = vld [vmem:[#allocation8 + $0x378] sm:$0xff]
    %v2121 = vld [vmem:[#allocation8 + $0x380] sm:$0xff]
    %v2122 = vld [vmem:[#allocation8 + $0x388] sm:$0xff]
    %v2123 = vld [vmem:[#allocation8 + $0x390] sm:$0xff]
    %v2124 = vld [vmem:[#allocation8 + $0x398] sm:$0xff]
    %v2125 = vld [vmem:[#allocation8 + $0x3a0] sm:$0xff]
    %v2126 = vld [vmem:[#allocation8 + $0x3a8] sm:$0xff]
    %v2127 = vld [vmem:[#allocation8 + $0x3b0] sm:$0xff]
    %v2128 = vld [vmem:[#allocation8 + $0x3b8] sm:$0xff]
    %v2129 = vld [vmem:[#allocation8 + $0x3c0] sm:$0xff]
    %v2130 = vld [vmem:[#allocation8 + $0x3c8] sm:$0xff]
    %v2131 = vld [vmem:[#allocation8 + $0x3d0] sm:$0xff]
    %v2132 = vld [vmem:[#allocation8 + $0x3d8] sm:$0xff]
    %v2133 = vld [vmem:[#allocation8 + $0x3e0] sm:$0xff]
    %v2134 = vld [vmem:[#allocation8 + $0x3e8] sm:$0xff]
    %v2135 = vld [vmem:[#allocation8 + $0x3f0] sm:$0xff]
    %v2136 = vld [vmem:[#allocation8 + $0x3f8] sm:$0xff]
    %v2137 = vld [vmem:[#allocation8 + $0x400] sm:$0xff]
    %v2138 = vld [vmem:[#allocation8 + $0x408] sm:$0xff]
    %v2139 = vld [vmem:[#allocation8 + $0x410] sm:$0xff]
    %v2140 = vld [vmem:[#allocation8 + $0x418] sm:$0xff]
    %v2141 = vld [vmem:[#allocation8 + $0x420] sm:$0xff]
    %v2142 = vld [vmem:[#allocation8 + $0x428] sm:$0xff]
    %v2143 = vld [vmem:[#allocation8 + $0x430] sm:$0xff]
    %v2144 = vld [vmem:[#allocation8 + $0x438] sm:$0xff]
    %v2145 = vld [vmem:[#allocation8 + $0x440] sm:$0xff]
    %v2146 = vld [vmem:[#allocation8 + $0x448] sm:$0xff]
    %v2147 = vld [vmem:[#allocation8 + $0x450] sm:$0xff]
    %v2148 = vld [vmem:[#allocation8 + $0x458] sm:$0xff]
    %v2149 = vld [vmem:[#allocation8 + $0x460] sm:$0xff]
    %v2150 = vld [vmem:[#allocation8 + $0x468] sm:$0xff]
    %v2151 = vld [vmem:[#allocation8 + $0x470] sm:$0xff]
    %v2152 = vld [vmem:[#allocation8 + $0x478] sm:$0xff]
    %v2153 = vld [vmem:[#allocation8 + $0x480] sm:$0xff]
    %v2154 = vld [vmem:[#allocation8 + $0x488] sm:$0xff]
    %v2155 = vld [vmem:[#allocation8 + $0x490] sm:$0xff]
    %v2156 = vld [vmem:[#allocation8 + $0x498] sm:$0xff]
    %v2157 = vld [vmem:[#allocation8 + $0x4a0] sm:$0xff]
    %v2158 = vld [vmem:[#allocation8 + $0x4a8] sm:$0xff]
    %v2159 = vld [vmem:[#allocation8 + $0x4b0] sm:$0xff]
    %v2160 = vld [vmem:[#allocation8 + $0x4b8] sm:$0xff]
    %v2161 = vld [vmem:[#allocation8 + $0x4c0] sm:$0xff]
    %v2162 = vld [vmem:[#allocation8 + $0x4c8] sm:$0xff]
    %v2163 = vld [vmem:[#allocation8 + $0x4d0] sm:$0xff]
    %v2164 = vld [vmem:[#allocation8 + $0x4d8] sm:$0xff]
    %v2165 = vld [vmem:[#allocation8 + $0x4e0] sm:$0xff]
    %v2166 = vld [vmem:[#allocation8 + $0x4e8] sm:$0xff]
    %v2167 = vld [vmem:[#allocation8 + $0x4f0] sm:$0xff]
    %v2168 = vld [vmem:[#allocation8 + $0x4f8] sm:$0xff]
    %v2169 = vld [vmem:[#allocation8 + $0x500] sm:$0xff]
    %v2170 = vld [vmem:[#allocation8 + $0x508] sm:$0xff]
    %v2171 = vld [vmem:[#allocation8 + $0x510] sm:$0xff]
    %v2172 = vld [vmem:[#allocation8 + $0x518] sm:$0xff]
    %v2173 = vld [vmem:[#allocation8 + $0x520] sm:$0xff]
    %v2174 = vld [vmem:[#allocation8 + $0x528] sm:$0xff]
    %v2175 = vld [vmem:[#allocation8 + $0x530] sm:$0xff]
    %v2176 = vld [vmem:[#allocation8 + $0x538] sm:$0xff]
    %v2177 = vld [vmem:[#allocation8 + $0x540] sm:$0xff]
    %v2178 = vld [vmem:[#allocation8 + $0x548] sm:$0xff]
    %v2179 = vld [vmem:[#allocation8 + $0x550] sm:$0xff]
    %v2180 = vld [vmem:[#allocation8 + $0x558] sm:$0xff]
    %v2181 = vld [vmem:[#allocation8 + $0x560] sm:$0xff]
    %v2182 = vld [vmem:[#allocation8 + $0x568] sm:$0xff]
    %v2183 = vld [vmem:[#allocation8 + $0x570] sm:$0xff]
    %v2184 = vld [vmem:[#allocation8 + $0x578] sm:$0xff]
    %v2185 = vld [vmem:[#allocation8 + $0x580] sm:$0xff]
    %v2186 = vld [vmem:[#allocation8 + $0x588] sm:$0xff]
    %v2187 = vld [vmem:[#allocation8 + $0x590] sm:$0xff]
    %v2188 = vld [vmem:[#allocation8 + $0x598] sm:$0xff]
    %v2189 = vld [vmem:[#allocation8 + $0x5a0] sm:$0xff]
    %v2190 = vld [vmem:[#allocation8 + $0x5a8] sm:$0xff]
    %v2191 = vld [vmem:[#allocation8 + $0x5b0] sm:$0xff]
    %v2192 = vld [vmem:[#allocation8 + $0x5b8] sm:$0xff]
    %v2193 = vld [vmem:[#allocation8 + $0x5c0] sm:$0xff]
    %v2194 = vld [vmem:[#allocation8 + $0x5c8] sm:$0xff]
    %v2195 = vld [vmem:[#allocation8 + $0x5d0] sm:$0xff]
    %v2196 = vld [vmem:[#allocation8 + $0x5d8] sm:$0xff]
    %v2197 = vld [vmem:[#allocation8 + $0x5e0] sm:$0xff]
    %v2198 = vld [vmem:[#allocation8 + $0x5e8] sm:$0xff]
    %v2199 = vld [vmem:[#allocation8 + $0x5f0] sm:$0xff]
    %v2200 = vld [vmem:[#allocation8 + $0x5f8] sm:$0xff]
    %v2201 = vld [vmem:[#allocation8 + $0x600] sm:$0xff]
    %v2202 = vld [vmem:[#allocation8 + $0x608] sm:$0xff]
    %v2203 = vld [vmem:[#allocation8 + $0x610] sm:$0xff]
    %v2204 = vld [vmem:[#allocation8 + $0x618] sm:$0xff]
    %v2205 = vld [vmem:[#allocation8 + $0x620] sm:$0xff]
    %v2206 = vld [vmem:[#allocation8 + $0x628] sm:$0xff]
    %v2207 = vld [vmem:[#allocation8 + $0x630] sm:$0xff]
    %v2208 = vld [vmem:[#allocation8 + $0x638] sm:$0xff]
    %v2209 = vld [vmem:[#allocation8 + $0x640] sm:$0xff]
    %v2210 = vld [vmem:[#allocation8 + $0x648] sm:$0xff]
    %v2211 = vld [vmem:[#allocation8 + $0x650] sm:$0xff]
    %v2212 = vld [vmem:[#allocation8 + $0x658] sm:$0xff]
    %v2213 = vld [vmem:[#allocation8 + $0x660] sm:$0xff]
    %v2214 = vld [vmem:[#allocation8 + $0x668] sm:$0xff]
    %v2215 = vld [vmem:[#allocation8 + $0x670] sm:$0xff]
    %v2216 = vld [vmem:[#allocation8 + $0x678] sm:$0xff]
    %v2217 = vld [vmem:[#allocation8 + $0x680] sm:$0xff]
    %v2218 = vld [vmem:[#allocation8 + $0x688] sm:$0xff]
    %v2219 = vld [vmem:[#allocation8 + $0x690] sm:$0xff]
    %v2220 = vld [vmem:[#allocation8 + $0x698] sm:$0xff]
    %v2221 = vld [vmem:[#allocation8 + $0x6a0] sm:$0xff]
    %v2222 = vld [vmem:[#allocation8 + $0x6a8] sm:$0xff]
    %v2223 = vld [vmem:[#allocation8 + $0x6b0] sm:$0xff]
    %v2224 = vld [vmem:[#allocation8 + $0x6b8] sm:$0xff]
    %v2225 = vld [vmem:[#allocation8 + $0x6c0] sm:$0xff]
    %v2226 = vld [vmem:[#allocation8 + $0x6c8] sm:$0xff]
    %v2227 = vld [vmem:[#allocation8 + $0x6d0] sm:$0xff]
    %v2228 = vld [vmem:[#allocation8 + $0x6d8] sm:$0xff]
    %v2229 = vld [vmem:[#allocation8 + $0x6e0] sm:$0xff]
    %v2230 = vld [vmem:[#allocation8 + $0x6e8] sm:$0xff]
    %v2231 = vld [vmem:[#allocation8 + $0x6f0] sm:$0xff]
    %v2232 = vld [vmem:[#allocation8 + $0x6f8] sm:$0xff]
    %v2233 = vld [vmem:[#allocation8 + $0x700] sm:$0xff]
    %v2234 = vld [vmem:[#allocation8 + $0x708] sm:$0xff]
    %v2235 = vld [vmem:[#allocation8 + $0x710] sm:$0xff]
    %v2236 = vld [vmem:[#allocation8 + $0x718] sm:$0xff]
    %v2237 = vld [vmem:[#allocation8 + $0x720] sm:$0xff]
    %v2238 = vld [vmem:[#allocation8 + $0x728] sm:$0xff]
    %v2239 = vld [vmem:[#allocation8 + $0x730] sm:$0xff]
    %v2240 = vld [vmem:[#allocation8 + $0x738] sm:$0xff]
    %v2241 = vld [vmem:[#allocation8 + $0x740] sm:$0xff]
    %v2242 = vld [vmem:[#allocation8 + $0x748] sm:$0xff]
    %v2243 = vld [vmem:[#allocation8 + $0x750] sm:$0xff]
    %v2244 = vld [vmem:[#allocation8 + $0x758] sm:$0xff]
    %v2245 = vld [vmem:[#allocation8 + $0x760] sm:$0xff]
    %v2246 = vld [vmem:[#allocation8 + $0x768] sm:$0xff]
    %v2247 = vld [vmem:[#allocation8 + $0x770] sm:$0xff]
    %v2248 = vld [vmem:[#allocation8 + $0x778] sm:$0xff]
    %v2249 = vld [vmem:[#allocation8 + $0x780] sm:$0xff]
    %v2250 = vld [vmem:[#allocation8 + $0x788] sm:$0xff]
    %v2251 = vld [vmem:[#allocation8 + $0x790] sm:$0xff]
    %v2252 = vld [vmem:[#allocation8 + $0x798] sm:$0xff]
    %v2253 = vld [vmem:[#allocation8 + $0x7a0] sm:$0xff]
    %v2254 = vld [vmem:[#allocation8 + $0x7a8] sm:$0xff]
    %v2255 = vld [vmem:[#allocation8 + $0x7b0] sm:$0xff]
    %v2256 = vld [vmem:[#allocation8 + $0x7b8] sm:$0xff]
    %v2257 = vld [vmem:[#allocation8 + $0x7c0] sm:$0xff]
    %v2258 = vld [vmem:[#allocation8 + $0x7c8] sm:$0xff]
    %v2259 = vld [vmem:[#allocation8 + $0x7d0] sm:$0xff]
    %v2260 = vld [vmem:[#allocation8 + $0x7d8] sm:$0xff]
    %v2261 = vld [vmem:[#allocation8 + $0x7e0] sm:$0xff]
    %v2262 = vld [vmem:[#allocation8 + $0x7e8] sm:$0xff]
    %v2263 = vld [vmem:[#allocation8 + $0x7f0] sm:$0xff]
    %v2264 = vld [vmem:[#allocation8 + $0x7f8] sm:$0xff]
    %v2265 = vld [vmem:[#allocation10] sm:$0xff]
    %v2267 = vlaneseq
    %v2268 = vshrl.u32 %v2267, 7
    %v2269 = vsub.s32 0, %v2268
    %v2270 = vrot.slane %v2265, %v2269
    %v2271 = vlaneseq
    %v2272 = vshrl.u32 %v2271, 7
    %v2273 = vsub.s32 1, %v2272
    %v2274 = vrot.slane %v2265, %v2273
    %v2275 = vlaneseq
    %v2276 = vshrl.u32 %v2275, 7
    %v2277 = vsub.s32 2, %v2276
    %v2278 = vrot.slane %v2265, %v2277
    %v2279 = vlaneseq
    %v2280 = vshrl.u32 %v2279, 7
    %v2281 = vsub.s32 3, %v2280
    %v2282 = vrot.slane %v2265, %v2281
    %v2283 = vlaneseq
    %v2284 = vshrl.u32 %v2283, 7
    %v2285 = vsub.s32 4, %v2284
    %v2286 = vrot.slane %v2265, %v2285
    %v2287 = vlaneseq
    %v2288 = vshrl.u32 %v2287, 7
    %v2289 = vsub.s32 5, %v2288
    %v2290 = vrot.slane %v2265, %v2289
    %v2291 = vlaneseq
    %v2292 = vshrl.u32 %v2291, 7
    %v2293 = vsub.s32 6, %v2292
    %v2294 = vrot.slane %v2265, %v2293
    %v2295 = vlaneseq
    %v2296 = vshrl.u32 %v2295, 7
    %v2297 = vsub.s32 7, %v2296
    %v2298 = vrot.slane %v2265, %v2297
    %v2563 = vunpack.c.l.b16 %v2009
    %v2564 = vunpack.c.h.b16 %v2009
    %v2565 = vunpack.c.l.b16 %v2010
    %v2566 = vunpack.c.h.b16 %v2010
    %v2567 = vunpack.c.l.b16 %v2011
    %v2568 = vunpack.c.h.b16 %v2011
    %v2569 = vunpack.c.l.b16 %v2012
    %v2570 = vunpack.c.h.b16 %v2012
    %v2571 = vunpack.c.l.b16 %v2013
    %v2572 = vunpack.c.h.b16 %v2013
    %v2573 = vunpack.c.l.b16 %v2014
    %v2574 = vunpack.c.h.b16 %v2014
    %v2575 = vunpack.c.l.b16 %v2015
    %v2576 = vunpack.c.h.b16 %v2015
    %v2577 = vunpack.c.l.b16 %v2016
    %v2578 = vunpack.c.h.b16 %v2016
    %v2579 = vunpack.c.l.b16 %v2017
    %v2580 = vunpack.c.h.b16 %v2017
    %v2581 = vunpack.c.l.b16 %v2018
    %v2582 = vunpack.c.h.b16 %v2018
    %v2583 = vunpack.c.l.b16 %v2019
    %v2584 = vunpack.c.h.b16 %v2019
    %v2585 = vunpack.c.l.b16 %v2020
    %v2586 = vunpack.c.h.b16 %v2020
    %v2587 = vunpack.c.l.b16 %v2021
    %v2588 = vunpack.c.h.b16 %v2021
    %v2589 = vunpack.c.l.b16 %v2022
    %v2590 = vunpack.c.h.b16 %v2022
    %v2591 = vunpack.c.l.b16 %v2023
    %v2592 = vunpack.c.h.b16 %v2023
    %v2593 = vunpack.c.l.b16 %v2024
    %v2594 = vunpack.c.h.b16 %v2024
    %v2595 = vunpack.c.l.b16 %v2025
    %v2596 = vunpack.c.h.b16 %v2025
    %v2597 = vunpack.c.l.b16 %v2026
    %v2598 = vunpack.c.h.b16 %v2026
    %v2599 = vunpack.c.l.b16 %v2027
    %v2600 = vunpack.c.h.b16 %v2027
    %v2601 = vunpack.c.l.b16 %v2028
    %v2602 = vunpack.c.h.b16 %v2028
    %v2603 = vunpack.c.l.b16 %v2029
    %v2604 = vunpack.c.h.b16 %v2029
    %v2605 = vunpack.c.l.b16 %v2030
    %v2606 = vunpack.c.h.b16 %v2030
    %v2607 = vunpack.c.l.b16 %v2031
    %v2608 = vunpack.c.h.b16 %v2031
    %v2609 = vunpack.c.l.b16 %v2032
    %v2610 = vunpack.c.h.b16 %v2032
    %v2611 = vunpack.c.l.b16 %v2033
    %v2612 = vunpack.c.h.b16 %v2033
    %v2613 = vunpack.c.l.b16 %v2034
    %v2614 = vunpack.c.h.b16 %v2034
    %v2615 = vunpack.c.l.b16 %v2035
    %v2616 = vunpack.c.h.b16 %v2035
    %v2617 = vunpack.c.l.b16 %v2036
    %v2618 = vunpack.c.h.b16 %v2036
    %v2619 = vunpack.c.l.b16 %v2037
    %v2620 = vunpack.c.h.b16 %v2037
    %v2621 = vunpack.c.l.b16 %v2038
    %v2622 = vunpack.c.h.b16 %v2038
    %v2623 = vunpack.c.l.b16 %v2039
    %v2624 = vunpack.c.h.b16 %v2039
    %v2625 = vunpack.c.l.b16 %v2040
    %v2626 = vunpack.c.h.b16 %v2040
    %v2627 = vunpack.c.l.b16 %v2041
    %v2628 = vunpack.c.h.b16 %v2041
    %v2629 = vunpack.c.l.b16 %v2042
    %v2630 = vunpack.c.h.b16 %v2042
    %v2631 = vunpack.c.l.b16 %v2043
    %v2632 = vunpack.c.h.b16 %v2043
    %v2633 = vunpack.c.l.b16 %v2044
    %v2634 = vunpack.c.h.b16 %v2044
    %v2635 = vunpack.c.l.b16 %v2045
    %v2636 = vunpack.c.h.b16 %v2045
    %v2637 = vunpack.c.l.b16 %v2046
    %v2638 = vunpack.c.h.b16 %v2046
    %v2639 = vunpack.c.l.b16 %v2047
    %v2640 = vunpack.c.h.b16 %v2047
    %v2641 = vunpack.c.l.b16 %v2048
    %v2642 = vunpack.c.h.b16 %v2048
    %v2643 = vunpack.c.l.b16 %v2049
    %v2644 = vunpack.c.h.b16 %v2049
    %v2645 = vunpack.c.l.b16 %v2050
    %v2646 = vunpack.c.h.b16 %v2050
    %v2647 = vunpack.c.l.b16 %v2051
    %v2648 = vunpack.c.h.b16 %v2051
    %v2649 = vunpack.c.l.b16 %v2052
    %v2650 = vunpack.c.h.b16 %v2052
    %v2651 = vunpack.c.l.b16 %v2053
    %v2652 = vunpack.c.h.b16 %v2053
    %v2653 = vunpack.c.l.b16 %v2054
    %v2654 = vunpack.c.h.b16 %v2054
    %v2655 = vunpack.c.l.b16 %v2055
    %v2656 = vunpack.c.h.b16 %v2055
    %v2657 = vunpack.c.l.b16 %v2056
    %v2658 = vunpack.c.h.b16 %v2056
    %v2659 = vunpack.c.l.b16 %v2057
    %v2660 = vunpack.c.h.b16 %v2057
    %v2661 = vunpack.c.l.b16 %v2058
    %v2662 = vunpack.c.h.b16 %v2058
    %v2663 = vunpack.c.l.b16 %v2059
    %v2664 = vunpack.c.h.b16 %v2059
    %v2665 = vunpack.c.l.b16 %v2060
    %v2666 = vunpack.c.h.b16 %v2060
    %v2667 = vunpack.c.l.b16 %v2061
    %v2668 = vunpack.c.h.b16 %v2061
    %v2669 = vunpack.c.l.b16 %v2062
    %v2670 = vunpack.c.h.b16 %v2062
    %v2671 = vunpack.c.l.b16 %v2063
    %v2672 = vunpack.c.h.b16 %v2063
    %v2673 = vunpack.c.l.b16 %v2064
    %v2674 = vunpack.c.h.b16 %v2064
    %v2675 = vunpack.c.l.b16 %v2065
    %v2676 = vunpack.c.h.b16 %v2065
    %v2677 = vunpack.c.l.b16 %v2066
    %v2678 = vunpack.c.h.b16 %v2066
    %v2679 = vunpack.c.l.b16 %v2067
    %v2680 = vunpack.c.h.b16 %v2067
    %v2681 = vunpack.c.l.b16 %v2068
    %v2682 = vunpack.c.h.b16 %v2068
    %v2683 = vunpack.c.l.b16 %v2069
    %v2684 = vunpack.c.h.b16 %v2069
    %v2685 = vunpack.c.l.b16 %v2070
    %v2686 = vunpack.c.h.b16 %v2070
    %v2687 = vunpack.c.l.b16 %v2071
    %v2688 = vunpack.c.h.b16 %v2071
    %v2689 = vunpack.c.l.b16 %v2072
    %v2690 = vunpack.c.h.b16 %v2072
    %v2691 = vunpack.c.l.b16 %v2073
    %v2692 = vunpack.c.h.b16 %v2073
    %v2693 = vunpack.c.l.b16 %v2074
    %v2694 = vunpack.c.h.b16 %v2074
    %v2695 = vunpack.c.l.b16 %v2075
    %v2696 = vunpack.c.h.b16 %v2075
    %v2697 = vunpack.c.l.b16 %v2076
    %v2698 = vunpack.c.h.b16 %v2076
    %v2699 = vunpack.c.l.b16 %v2077
    %v2700 = vunpack.c.h.b16 %v2077
    %v2701 = vunpack.c.l.b16 %v2078
    %v2702 = vunpack.c.h.b16 %v2078
    %v2703 = vunpack.c.l.b16 %v2079
    %v2704 = vunpack.c.h.b16 %v2079
    %v2705 = vunpack.c.l.b16 %v2080
    %v2706 = vunpack.c.h.b16 %v2080
    %v2707 = vunpack.c.l.b16 %v2081
    %v2708 = vunpack.c.h.b16 %v2081
    %v2709 = vunpack.c.l.b16 %v2082
    %v2710 = vunpack.c.h.b16 %v2082
    %v2711 = vunpack.c.l.b16 %v2083
    %v2712 = vunpack.c.h.b16 %v2083
    %v2713 = vunpack.c.l.b16 %v2084
    %v2714 = vunpack.c.h.b16 %v2084
    %v2715 = vunpack.c.l.b16 %v2085
    %v2716 = vunpack.c.h.b16 %v2085
    %v2717 = vunpack.c.l.b16 %v2086
    %v2718 = vunpack.c.h.b16 %v2086
    %v2719 = vunpack.c.l.b16 %v2087
    %v2720 = vunpack.c.h.b16 %v2087
    %v2721 = vunpack.c.l.b16 %v2088
    %v2722 = vunpack.c.h.b16 %v2088
    %v2723 = vunpack.c.l.b16 %v2089
    %v2724 = vunpack.c.h.b16 %v2089
    %v2725 = vunpack.c.l.b16 %v2090
    %v2726 = vunpack.c.h.b16 %v2090
    %v2727 = vunpack.c.l.b16 %v2091
    %v2728 = vunpack.c.h.b16 %v2091
    %v2729 = vunpack.c.l.b16 %v2092
    %v2730 = vunpack.c.h.b16 %v2092
    %v2731 = vunpack.c.l.b16 %v2093
    %v2732 = vunpack.c.h.b16 %v2093
    %v2733 = vunpack.c.l.b16 %v2094
    %v2734 = vunpack.c.h.b16 %v2094
    %v2735 = vunpack.c.l.b16 %v2095
    %v2736 = vunpack.c.h.b16 %v2095
    %v2737 = vunpack.c.l.b16 %v2096
    %v2738 = vunpack.c.h.b16 %v2096
    %v2739 = vunpack.c.l.b16 %v2097
    %v2740 = vunpack.c.h.b16 %v2097
    %v2741 = vunpack.c.l.b16 %v2098
    %v2742 = vunpack.c.h.b16 %v2098
    %v2743 = vunpack.c.l.b16 %v2099
    %v2744 = vunpack.c.h.b16 %v2099
    %v2745 = vunpack.c.l.b16 %v2100
    %v2746 = vunpack.c.h.b16 %v2100
    %v2747 = vunpack.c.l.b16 %v2101
    %v2748 = vunpack.c.h.b16 %v2101
    %v2749 = vunpack.c.l.b16 %v2102
    %v2750 = vunpack.c.h.b16 %v2102
    %v2751 = vunpack.c.l.b16 %v2103
    %v2752 = vunpack.c.h.b16 %v2103
    %v2753 = vunpack.c.l.b16 %v2104
    %v2754 = vunpack.c.h.b16 %v2104
    %v2755 = vunpack.c.l.b16 %v2105
    %v2756 = vunpack.c.h.b16 %v2105
    %v2757 = vunpack.c.l.b16 %v2106
    %v2758 = vunpack.c.h.b16 %v2106
    %v2759 = vunpack.c.l.b16 %v2107
    %v2760 = vunpack.c.h.b16 %v2107
    %v2761 = vunpack.c.l.b16 %v2108
    %v2762 = vunpack.c.h.b16 %v2108
    %v2763 = vunpack.c.l.b16 %v2109
    %v2764 = vunpack.c.h.b16 %v2109
    %v2765 = vunpack.c.l.b16 %v2110
    %v2766 = vunpack.c.h.b16 %v2110
    %v2767 = vunpack.c.l.b16 %v2111
    %v2768 = vunpack.c.h.b16 %v2111
    %v2769 = vunpack.c.l.b16 %v2112
    %v2770 = vunpack.c.h.b16 %v2112
    %v2771 = vunpack.c.l.b16 %v2113
    %v2772 = vunpack.c.h.b16 %v2113
    %v2773 = vunpack.c.l.b16 %v2114
    %v2774 = vunpack.c.h.b16 %v2114
    %v2775 = vunpack.c.l.b16 %v2115
    %v2776 = vunpack.c.h.b16 %v2115
    %v2777 = vunpack.c.l.b16 %v2116
    %v2778 = vunpack.c.h.b16 %v2116
    %v2779 = vunpack.c.l.b16 %v2117
    %v2780 = vunpack.c.h.b16 %v2117
    %v2781 = vunpack.c.l.b16 %v2118
    %v2782 = vunpack.c.h.b16 %v2118
    %v2783 = vunpack.c.l.b16 %v2119
    %v2784 = vunpack.c.h.b16 %v2119
    %v2785 = vunpack.c.l.b16 %v2120
    %v2786 = vunpack.c.h.b16 %v2120
    %v2787 = vunpack.c.l.b16 %v2121
    %v2788 = vunpack.c.h.b16 %v2121
    %v2789 = vunpack.c.l.b16 %v2122
    %v2790 = vunpack.c.h.b16 %v2122
    %v2791 = vunpack.c.l.b16 %v2123
    %v2792 = vunpack.c.h.b16 %v2123
    %v2793 = vunpack.c.l.b16 %v2124
    %v2794 = vunpack.c.h.b16 %v2124
    %v2795 = vunpack.c.l.b16 %v2125
    %v2796 = vunpack.c.h.b16 %v2125
    %v2797 = vunpack.c.l.b16 %v2126
    %v2798 = vunpack.c.h.b16 %v2126
    %v2799 = vunpack.c.l.b16 %v2127
    %v2800 = vunpack.c.h.b16 %v2127
    %v2801 = vunpack.c.l.b16 %v2128
    %v2802 = vunpack.c.h.b16 %v2128
    %v2803 = vunpack.c.l.b16 %v2129
    %v2804 = vunpack.c.h.b16 %v2129
    %v2805 = vunpack.c.l.b16 %v2130
    %v2806 = vunpack.c.h.b16 %v2130
    %v2807 = vunpack.c.l.b16 %v2131
    %v2808 = vunpack.c.h.b16 %v2131
    %v2809 = vunpack.c.l.b16 %v2132
    %v2810 = vunpack.c.h.b16 %v2132
    %v2811 = vunpack.c.l.b16 %v2133
    %v2812 = vunpack.c.h.b16 %v2133
    %v2813 = vunpack.c.l.b16 %v2134
    %v2814 = vunpack.c.h.b16 %v2134
    %v2815 = vunpack.c.l.b16 %v2135
    %v2816 = vunpack.c.h.b16 %v2135
    %v2817 = vunpack.c.l.b16 %v2136
    %v2818 = vunpack.c.h.b16 %v2136
    %v2819 = vunpack.c.l.b16 %v2137
    %v2820 = vunpack.c.h.b16 %v2137
    %v2821 = vunpack.c.l.b16 %v2138
    %v2822 = vunpack.c.h.b16 %v2138
    %v2823 = vunpack.c.l.b16 %v2139
    %v2824 = vunpack.c.h.b16 %v2139
    %v2825 = vunpack.c.l.b16 %v2140
    %v2826 = vunpack.c.h.b16 %v2140
    %v2827 = vunpack.c.l.b16 %v2141
    %v2828 = vunpack.c.h.b16 %v2141
    %v2829 = vunpack.c.l.b16 %v2142
    %v2830 = vunpack.c.h.b16 %v2142
    %v2831 = vunpack.c.l.b16 %v2143
    %v2832 = vunpack.c.h.b16 %v2143
    %v2833 = vunpack.c.l.b16 %v2144
    %v2834 = vunpack.c.h.b16 %v2144
    %v2835 = vunpack.c.l.b16 %v2145
    %v2836 = vunpack.c.h.b16 %v2145
    %v2837 = vunpack.c.l.b16 %v2146
    %v2838 = vunpack.c.h.b16 %v2146
    %v2839 = vunpack.c.l.b16 %v2147
    %v2840 = vunpack.c.h.b16 %v2147
    %v2841 = vunpack.c.l.b16 %v2148
    %v2842 = vunpack.c.h.b16 %v2148
    %v2843 = vunpack.c.l.b16 %v2149
    %v2844 = vunpack.c.h.b16 %v2149
    %v2845 = vunpack.c.l.b16 %v2150
    %v2846 = vunpack.c.h.b16 %v2150
    %v2847 = vunpack.c.l.b16 %v2151
    %v2848 = vunpack.c.h.b16 %v2151
    %v2849 = vunpack.c.l.b16 %v2152
    %v2850 = vunpack.c.h.b16 %v2152
    %v2851 = vunpack.c.l.b16 %v2153
    %v2852 = vunpack.c.h.b16 %v2153
    %v2853 = vunpack.c.l.b16 %v2154
    %v2854 = vunpack.c.h.b16 %v2154
    %v2855 = vunpack.c.l.b16 %v2155
    %v2856 = vunpack.c.h.b16 %v2155
    %v2857 = vunpack.c.l.b16 %v2156
    %v2858 = vunpack.c.h.b16 %v2156
    %v2859 = vunpack.c.l.b16 %v2157
    %v2860 = vunpack.c.h.b16 %v2157
    %v2861 = vunpack.c.l.b16 %v2158
    %v2862 = vunpack.c.h.b16 %v2158
    %v2863 = vunpack.c.l.b16 %v2159
    %v2864 = vunpack.c.h.b16 %v2159
    %v2865 = vunpack.c.l.b16 %v2160
    %v2866 = vunpack.c.h.b16 %v2160
    %v2867 = vunpack.c.l.b16 %v2161
    %v2868 = vunpack.c.h.b16 %v2161
    %v2869 = vunpack.c.l.b16 %v2162
    %v2870 = vunpack.c.h.b16 %v2162
    %v2871 = vunpack.c.l.b16 %v2163
    %v2872 = vunpack.c.h.b16 %v2163
    %v2873 = vunpack.c.l.b16 %v2164
    %v2874 = vunpack.c.h.b16 %v2164
    %v2875 = vunpack.c.l.b16 %v2165
    %v2876 = vunpack.c.h.b16 %v2165
    %v2877 = vunpack.c.l.b16 %v2166
    %v2878 = vunpack.c.h.b16 %v2166
    %v2879 = vunpack.c.l.b16 %v2167
    %v2880 = vunpack.c.h.b16 %v2167
    %v2881 = vunpack.c.l.b16 %v2168
    %v2882 = vunpack.c.h.b16 %v2168
    %v2883 = vunpack.c.l.b16 %v2169
    %v2884 = vunpack.c.h.b16 %v2169
    %v2885 = vunpack.c.l.b16 %v2170
    %v2886 = vunpack.c.h.b16 %v2170
    %v2887 = vunpack.c.l.b16 %v2171
    %v2888 = vunpack.c.h.b16 %v2171
    %v2889 = vunpack.c.l.b16 %v2172
    %v2890 = vunpack.c.h.b16 %v2172
    %v2891 = vunpack.c.l.b16 %v2173
    %v2892 = vunpack.c.h.b16 %v2173
    %v2893 = vunpack.c.l.b16 %v2174
    %v2894 = vunpack.c.h.b16 %v2174
    %v2895 = vunpack.c.l.b16 %v2175
    %v2896 = vunpack.c.h.b16 %v2175
    %v2897 = vunpack.c.l.b16 %v2176
    %v2898 = vunpack.c.h.b16 %v2176
    %v2899 = vunpack.c.l.b16 %v2177
    %v2900 = vunpack.c.h.b16 %v2177
    %v2901 = vunpack.c.l.b16 %v2178
    %v2902 = vunpack.c.h.b16 %v2178
    %v2903 = vunpack.c.l.b16 %v2179
    %v2904 = vunpack.c.h.b16 %v2179
    %v2905 = vunpack.c.l.b16 %v2180
    %v2906 = vunpack.c.h.b16 %v2180
    %v2907 = vunpack.c.l.b16 %v2181
    %v2908 = vunpack.c.h.b16 %v2181
    %v2909 = vunpack.c.l.b16 %v2182
    %v2910 = vunpack.c.h.b16 %v2182
    %v2911 = vunpack.c.l.b16 %v2183
    %v2912 = vunpack.c.h.b16 %v2183
    %v2913 = vunpack.c.l.b16 %v2184
    %v2914 = vunpack.c.h.b16 %v2184
    %v2915 = vunpack.c.l.b16 %v2185
    %v2916 = vunpack.c.h.b16 %v2185
    %v2917 = vunpack.c.l.b16 %v2186
    %v2918 = vunpack.c.h.b16 %v2186
    %v2919 = vunpack.c.l.b16 %v2187
    %v2920 = vunpack.c.h.b16 %v2187
    %v2921 = vunpack.c.l.b16 %v2188
    %v2922 = vunpack.c.h.b16 %v2188
    %v2923 = vunpack.c.l.b16 %v2189
    %v2924 = vunpack.c.h.b16 %v2189
    %v2925 = vunpack.c.l.b16 %v2190
    %v2926 = vunpack.c.h.b16 %v2190
    %v2927 = vunpack.c.l.b16 %v2191
    %v2928 = vunpack.c.h.b16 %v2191
    %v2929 = vunpack.c.l.b16 %v2192
    %v2930 = vunpack.c.h.b16 %v2192
    %v2931 = vunpack.c.l.b16 %v2193
    %v2932 = vunpack.c.h.b16 %v2193
    %v2933 = vunpack.c.l.b16 %v2194
    %v2934 = vunpack.c.h.b16 %v2194
    %v2935 = vunpack.c.l.b16 %v2195
    %v2936 = vunpack.c.h.b16 %v2195
    %v2937 = vunpack.c.l.b16 %v2196
    %v2938 = vunpack.c.h.b16 %v2196
    %v2939 = vunpack.c.l.b16 %v2197
    %v2940 = vunpack.c.h.b16 %v2197
    %v2941 = vunpack.c.l.b16 %v2198
    %v2942 = vunpack.c.h.b16 %v2198
    %v2943 = vunpack.c.l.b16 %v2199
    %v2944 = vunpack.c.h.b16 %v2199
    %v2945 = vunpack.c.l.b16 %v2200
    %v2946 = vunpack.c.h.b16 %v2200
    %v2947 = vunpack.c.l.b16 %v2201
    %v2948 = vunpack.c.h.b16 %v2201
    %v2949 = vunpack.c.l.b16 %v2202
    %v2950 = vunpack.c.h.b16 %v2202
    %v2951 = vunpack.c.l.b16 %v2203
    %v2952 = vunpack.c.h.b16 %v2203
    %v2953 = vunpack.c.l.b16 %v2204
    %v2954 = vunpack.c.h.b16 %v2204
    %v2955 = vunpack.c.l.b16 %v2205
    %v2956 = vunpack.c.h.b16 %v2205
    %v2957 = vunpack.c.l.b16 %v2206
    %v2958 = vunpack.c.h.b16 %v2206
    %v2959 = vunpack.c.l.b16 %v2207
    %v2960 = vunpack.c.h.b16 %v2207
    %v2961 = vunpack.c.l.b16 %v2208
    %v2962 = vunpack.c.h.b16 %v2208
    %v2963 = vunpack.c.l.b16 %v2209
    %v2964 = vunpack.c.h.b16 %v2209
    %v2965 = vunpack.c.l.b16 %v2210
    %v2966 = vunpack.c.h.b16 %v2210
    %v2967 = vunpack.c.l.b16 %v2211
    %v2968 = vunpack.c.h.b16 %v2211
    %v2969 = vunpack.c.l.b16 %v2212
    %v2970 = vunpack.c.h.b16 %v2212
    %v2971 = vunpack.c.l.b16 %v2213
    %v2972 = vunpack.c.h.b16 %v2213
    %v2973 = vunpack.c.l.b16 %v2214
    %v2974 = vunpack.c.h.b16 %v2214
    %v2975 = vunpack.c.l.b16 %v2215
    %v2976 = vunpack.c.h.b16 %v2215
    %v2977 = vunpack.c.l.b16 %v2216
    %v2978 = vunpack.c.h.b16 %v2216
    %v2979 = vunpack.c.l.b16 %v2217
    %v2980 = vunpack.c.h.b16 %v2217
    %v2981 = vunpack.c.l.b16 %v2218
    %v2982 = vunpack.c.h.b16 %v2218
    %v2983 = vunpack.c.l.b16 %v2219
    %v2984 = vunpack.c.h.b16 %v2219
    %v2985 = vunpack.c.l.b16 %v2220
    %v2986 = vunpack.c.h.b16 %v2220
    %v2987 = vunpack.c.l.b16 %v2221
    %v2988 = vunpack.c.h.b16 %v2221
    %v2989 = vunpack.c.l.b16 %v2222
    %v2990 = vunpack.c.h.b16 %v2222
    %v2991 = vunpack.c.l.b16 %v2223
    %v2992 = vunpack.c.h.b16 %v2223
    %v2993 = vunpack.c.l.b16 %v2224
    %v2994 = vunpack.c.h.b16 %v2224
    %v2995 = vunpack.c.l.b16 %v2225
    %v2996 = vunpack.c.h.b16 %v2225
    %v2997 = vunpack.c.l.b16 %v2226
    %v2998 = vunpack.c.h.b16 %v2226
    %v2999 = vunpack.c.l.b16 %v2227
    %v3000 = vunpack.c.h.b16 %v2227
    %v3001 = vunpack.c.l.b16 %v2228
    %v3002 = vunpack.c.h.b16 %v2228
    %v3003 = vunpack.c.l.b16 %v2229
    %v3004 = vunpack.c.h.b16 %v2229
    %v3005 = vunpack.c.l.b16 %v2230
    %v3006 = vunpack.c.h.b16 %v2230
    %v3007 = vunpack.c.l.b16 %v2231
    %v3008 = vunpack.c.h.b16 %v2231
    %v3009 = vunpack.c.l.b16 %v2232
    %v3010 = vunpack.c.h.b16 %v2232
    %v3011 = vunpack.c.l.b16 %v2233
    %v3012 = vunpack.c.h.b16 %v2233
    %v3013 = vunpack.c.l.b16 %v2234
    %v3014 = vunpack.c.h.b16 %v2234
    %v3015 = vunpack.c.l.b16 %v2235
    %v3016 = vunpack.c.h.b16 %v2235
    %v3017 = vunpack.c.l.b16 %v2236
    %v3018 = vunpack.c.h.b16 %v2236
    %v3019 = vunpack.c.l.b16 %v2237
    %v3020 = vunpack.c.h.b16 %v2237
    %v3021 = vunpack.c.l.b16 %v2238
    %v3022 = vunpack.c.h.b16 %v2238
    %v3023 = vunpack.c.l.b16 %v2239
    %v3024 = vunpack.c.h.b16 %v2239
    %v3025 = vunpack.c.l.b16 %v2240
    %v3026 = vunpack.c.h.b16 %v2240
    %v3027 = vunpack.c.l.b16 %v2241
    %v3028 = vunpack.c.h.b16 %v2241
    %v3029 = vunpack.c.l.b16 %v2242
    %v3030 = vunpack.c.h.b16 %v2242
    %v3031 = vunpack.c.l.b16 %v2243
    %v3032 = vunpack.c.h.b16 %v2243
    %v3033 = vunpack.c.l.b16 %v2244
    %v3034 = vunpack.c.h.b16 %v2244
    %v3035 = vunpack.c.l.b16 %v2245
    %v3036 = vunpack.c.h.b16 %v2245
    %v3037 = vunpack.c.l.b16 %v2246
    %v3038 = vunpack.c.h.b16 %v2246
    %v3039 = vunpack.c.l.b16 %v2247
    %v3040 = vunpack.c.h.b16 %v2247
    %v3041 = vunpack.c.l.b16 %v2248
    %v3042 = vunpack.c.h.b16 %v2248
    %v3043 = vunpack.c.l.b16 %v2249
    %v3044 = vunpack.c.h.b16 %v2249
    %v3045 = vunpack.c.l.b16 %v2250
    %v3046 = vunpack.c.h.b16 %v2250
    %v3047 = vunpack.c.l.b16 %v2251
    %v3048 = vunpack.c.h.b16 %v2251
    %v3049 = vunpack.c.l.b16 %v2252
    %v3050 = vunpack.c.h.b16 %v2252
    %v3051 = vunpack.c.l.b16 %v2253
    %v3052 = vunpack.c.h.b16 %v2253
    %v3053 = vunpack.c.l.b16 %v2254
    %v3054 = vunpack.c.h.b16 %v2254
    %v3055 = vunpack.c.l.b16 %v2255
    %v3056 = vunpack.c.h.b16 %v2255
    %v3057 = vunpack.c.l.b16 %v2256
    %v3058 = vunpack.c.h.b16 %v2256
    %v3059 = vunpack.c.l.b16 %v2257
    %v3060 = vunpack.c.h.b16 %v2257
    %v3061 = vunpack.c.l.b16 %v2258
    %v3062 = vunpack.c.h.b16 %v2258
    %v3063 = vunpack.c.l.b16 %v2259
    %v3064 = vunpack.c.h.b16 %v2259
    %v3065 = vunpack.c.l.b16 %v2260
    %v3066 = vunpack.c.h.b16 %v2260
    %v3067 = vunpack.c.l.b16 %v2261
    %v3068 = vunpack.c.h.b16 %v2261
    %v3069 = vunpack.c.l.b16 %v2262
    %v3070 = vunpack.c.h.b16 %v2262
    %v3071 = vunpack.c.l.b16 %v2263
    %v3072 = vunpack.c.h.b16 %v2263
    %v3073 = vunpack.c.l.b16 %v2264
    %v3074 = vunpack.c.h.b16 %v2264
    %v3075 = vpack.c.b16 %v2571, %v2563
    %v3076 = vpack.c.b16 %v2572, %v2564
    %v3077 = vpack.c.b16 %v2573, %v2565
    %v3078 = vpack.c.b16 %v2574, %v2566
    %v3079 = vpack.c.b16 %v2575, %v2567
    %v3080 = vpack.c.b16 %v2576, %v2568
    %v3081 = vpack.c.b16 %v2577, %v2569
    %v3082 = vpack.c.b16 %v2578, %v2570
    %v3083 = vpack.c.b16 %v2587, %v2579
    %v3084 = vpack.c.b16 %v2588, %v2580
    %v3085 = vpack.c.b16 %v2589, %v2581
    %v3086 = vpack.c.b16 %v2590, %v2582
    %v3087 = vpack.c.b16 %v2591, %v2583
    %v3088 = vpack.c.b16 %v2592, %v2584
    %v3089 = vpack.c.b16 %v2593, %v2585
    %v3090 = vpack.c.b16 %v2594, %v2586
    %v3091 = vpack.c.b16 %v2603, %v2595
    %v3092 = vpack.c.b16 %v2604, %v2596
    %v3093 = vpack.c.b16 %v2605, %v2597
    %v3094 = vpack.c.b16 %v2606, %v2598
    %v3095 = vpack.c.b16 %v2607, %v2599
    %v3096 = vpack.c.b16 %v2608, %v2600
    %v3097 = vpack.c.b16 %v2609, %v2601
    %v3098 = vpack.c.b16 %v2610, %v2602
    %v3099 = vpack.c.b16 %v2619, %v2611
    %v3100 = vpack.c.b16 %v2620, %v2612
    %v3101 = vpack.c.b16 %v2621, %v2613
    %v3102 = vpack.c.b16 %v2622, %v2614
    %v3103 = vpack.c.b16 %v2623, %v2615
    %v3104 = vpack.c.b16 %v2624, %v2616
    %v3105 = vpack.c.b16 %v2625, %v2617
    %v3106 = vpack.c.b16 %v2626, %v2618
    %v3107 = vpack.c.b16 %v2635, %v2627
    %v3108 = vpack.c.b16 %v2636, %v2628
    %v3109 = vpack.c.b16 %v2637, %v2629
    %v3110 = vpack.c.b16 %v2638, %v2630
    %v3111 = vpack.c.b16 %v2639, %v2631
    %v3112 = vpack.c.b16 %v2640, %v2632
    %v3113 = vpack.c.b16 %v2641, %v2633
    %v3114 = vpack.c.b16 %v2642, %v2634
    %v3115 = vpack.c.b16 %v2651, %v2643
    %v3116 = vpack.c.b16 %v2652, %v2644
    %v3117 = vpack.c.b16 %v2653, %v2645
    %v3118 = vpack.c.b16 %v2654, %v2646
    %v3119 = vpack.c.b16 %v2655, %v2647
    %v3120 = vpack.c.b16 %v2656, %v2648
    %v3121 = vpack.c.b16 %v2657, %v2649
    %v3122 = vpack.c.b16 %v2658, %v2650
    %v3123 = vpack.c.b16 %v2667, %v2659
    %v3124 = vpack.c.b16 %v2668, %v2660
    %v3125 = vpack.c.b16 %v2669, %v2661
    %v3126 = vpack.c.b16 %v2670, %v2662
    %v3127 = vpack.c.b16 %v2671, %v2663
    %v3128 = vpack.c.b16 %v2672, %v2664
    %v3129 = vpack.c.b16 %v2673, %v2665
    %v3130 = vpack.c.b16 %v2674, %v2666
    %v3131 = vpack.c.b16 %v2683, %v2675
    %v3132 = vpack.c.b16 %v2684, %v2676
    %v3133 = vpack.c.b16 %v2685, %v2677
    %v3134 = vpack.c.b16 %v2686, %v2678
    %v3135 = vpack.c.b16 %v2687, %v2679
    %v3136 = vpack.c.b16 %v2688, %v2680
    %v3137 = vpack.c.b16 %v2689, %v2681
    %v3138 = vpack.c.b16 %v2690, %v2682
    %v3139 = vpack.c.b16 %v2699, %v2691
    %v3140 = vpack.c.b16 %v2700, %v2692
    %v3141 = vpack.c.b16 %v2701, %v2693
    %v3142 = vpack.c.b16 %v2702, %v2694
    %v3143 = vpack.c.b16 %v2703, %v2695
    %v3144 = vpack.c.b16 %v2704, %v2696
    %v3145 = vpack.c.b16 %v2705, %v2697
    %v3146 = vpack.c.b16 %v2706, %v2698
    %v3147 = vpack.c.b16 %v2715, %v2707
    %v3148 = vpack.c.b16 %v2716, %v2708
    %v3149 = vpack.c.b16 %v2717, %v2709
    %v3150 = vpack.c.b16 %v2718, %v2710
    %v3151 = vpack.c.b16 %v2719, %v2711
    %v3152 = vpack.c.b16 %v2720, %v2712
    %v3153 = vpack.c.b16 %v2721, %v2713
    %v3154 = vpack.c.b16 %v2722, %v2714
    %v3155 = vpack.c.b16 %v2731, %v2723
    %v3156 = vpack.c.b16 %v2732, %v2724
    %v3157 = vpack.c.b16 %v2733, %v2725
    %v3158 = vpack.c.b16 %v2734, %v2726
    %v3159 = vpack.c.b16 %v2735, %v2727
    %v3160 = vpack.c.b16 %v2736, %v2728
    %v3161 = vpack.c.b16 %v2737, %v2729
    %v3162 = vpack.c.b16 %v2738, %v2730
    %v3163 = vpack.c.b16 %v2747, %v2739
    %v3164 = vpack.c.b16 %v2748, %v2740
    %v3165 = vpack.c.b16 %v2749, %v2741
    %v3166 = vpack.c.b16 %v2750, %v2742
    %v3167 = vpack.c.b16 %v2751, %v2743
    %v3168 = vpack.c.b16 %v2752, %v2744
    %v3169 = vpack.c.b16 %v2753, %v2745
    %v3170 = vpack.c.b16 %v2754, %v2746
    %v3171 = vpack.c.b16 %v2763, %v2755
    %v3172 = vpack.c.b16 %v2764, %v2756
    %v3173 = vpack.c.b16 %v2765, %v2757
    %v3174 = vpack.c.b16 %v2766, %v2758
    %v3175 = vpack.c.b16 %v2767, %v2759
    %v3176 = vpack.c.b16 %v2768, %v2760
    %v3177 = vpack.c.b16 %v2769, %v2761
    %v3178 = vpack.c.b16 %v2770, %v2762
    %v3179 = vpack.c.b16 %v2779, %v2771
    %v3180 = vpack.c.b16 %v2780, %v2772
    %v3181 = vpack.c.b16 %v2781, %v2773
    %v3182 = vpack.c.b16 %v2782, %v2774
    %v3183 = vpack.c.b16 %v2783, %v2775
    %v3184 = vpack.c.b16 %v2784, %v2776
    %v3185 = vpack.c.b16 %v2785, %v2777
    %v3186 = vpack.c.b16 %v2786, %v2778
    %v3187 = vpack.c.b16 %v2795, %v2787
    %v3188 = vpack.c.b16 %v2796, %v2788
    %v3189 = vpack.c.b16 %v2797, %v2789
    %v3190 = vpack.c.b16 %v2798, %v2790
    %v3191 = vpack.c.b16 %v2799, %v2791
    %v3192 = vpack.c.b16 %v2800, %v2792
    %v3193 = vpack.c.b16 %v2801, %v2793
    %v3194 = vpack.c.b16 %v2802, %v2794
    %v3195 = vpack.c.b16 %v2811, %v2803
    %v3196 = vpack.c.b16 %v2812, %v2804
    %v3197 = vpack.c.b16 %v2813, %v2805
    %v3198 = vpack.c.b16 %v2814, %v2806
    %v3199 = vpack.c.b16 %v2815, %v2807
    %v3200 = vpack.c.b16 %v2816, %v2808
    %v3201 = vpack.c.b16 %v2817, %v2809
    %v3202 = vpack.c.b16 %v2818, %v2810
    %v3203 = vpack.c.b16 %v2827, %v2819
    %v3204 = vpack.c.b16 %v2828, %v2820
    %v3205 = vpack.c.b16 %v2829, %v2821
    %v3206 = vpack.c.b16 %v2830, %v2822
    %v3207 = vpack.c.b16 %v2831, %v2823
    %v3208 = vpack.c.b16 %v2832, %v2824
    %v3209 = vpack.c.b16 %v2833, %v2825
    %v3210 = vpack.c.b16 %v2834, %v2826
    %v3211 = vpack.c.b16 %v2843, %v2835
    %v3212 = vpack.c.b16 %v2844, %v2836
    %v3213 = vpack.c.b16 %v2845, %v2837
    %v3214 = vpack.c.b16 %v2846, %v2838
    %v3215 = vpack.c.b16 %v2847, %v2839
    %v3216 = vpack.c.b16 %v2848, %v2840
    %v3217 = vpack.c.b16 %v2849, %v2841
    %v3218 = vpack.c.b16 %v2850, %v2842
    %v3219 = vpack.c.b16 %v2859, %v2851
    %v3220 = vpack.c.b16 %v2860, %v2852
    %v3221 = vpack.c.b16 %v2861, %v2853
    %v3222 = vpack.c.b16 %v2862, %v2854
    %v3223 = vpack.c.b16 %v2863, %v2855
    %v3224 = vpack.c.b16 %v2864, %v2856
    %v3225 = vpack.c.b16 %v2865, %v2857
    %v3226 = vpack.c.b16 %v2866, %v2858
    %v3227 = vpack.c.b16 %v2875, %v2867
    %v3228 = vpack.c.b16 %v2876, %v2868
    %v3229 = vpack.c.b16 %v2877, %v2869
    %v3230 = vpack.c.b16 %v2878, %v2870
    %v3231 = vpack.c.b16 %v2879, %v2871
    %v3232 = vpack.c.b16 %v2880, %v2872
    %v3233 = vpack.c.b16 %v2881, %v2873
    %v3234 = vpack.c.b16 %v2882, %v2874
    %v3235 = vpack.c.b16 %v2891, %v2883
    %v3236 = vpack.c.b16 %v2892, %v2884
    %v3237 = vpack.c.b16 %v2893, %v2885
    %v3238 = vpack.c.b16 %v2894, %v2886
    %v3239 = vpack.c.b16 %v2895, %v2887
    %v3240 = vpack.c.b16 %v2896, %v2888
    %v3241 = vpack.c.b16 %v2897, %v2889
    %v3242 = vpack.c.b16 %v2898, %v2890
    %v3243 = vpack.c.b16 %v2907, %v2899
    %v3244 = vpack.c.b16 %v2908, %v2900
    %v3245 = vpack.c.b16 %v2909, %v2901
    %v3246 = vpack.c.b16 %v2910, %v2902
    %v3247 = vpack.c.b16 %v2911, %v2903
    %v3248 = vpack.c.b16 %v2912, %v2904
    %v3249 = vpack.c.b16 %v2913, %v2905
    %v3250 = vpack.c.b16 %v2914, %v2906
    %v3251 = vpack.c.b16 %v2923, %v2915
    %v3252 = vpack.c.b16 %v2924, %v2916
    %v3253 = vpack.c.b16 %v2925, %v2917
    %v3254 = vpack.c.b16 %v2926, %v2918
    %v3255 = vpack.c.b16 %v2927, %v2919
    %v3256 = vpack.c.b16 %v2928, %v2920
    %v3257 = vpack.c.b16 %v2929, %v2921
    %v3258 = vpack.c.b16 %v2930, %v2922
    %v3259 = vpack.c.b16 %v2939, %v2931
    %v3260 = vpack.c.b16 %v2940, %v2932
    %v3261 = vpack.c.b16 %v2941, %v2933
    %v3262 = vpack.c.b16 %v2942, %v2934
    %v3263 = vpack.c.b16 %v2943, %v2935
    %v3264 = vpack.c.b16 %v2944, %v2936
    %v3265 = vpack.c.b16 %v2945, %v2937
    %v3266 = vpack.c.b16 %v2946, %v2938
    %v3267 = vpack.c.b16 %v2955, %v2947
    %v3268 = vpack.c.b16 %v2956, %v2948
    %v3269 = vpack.c.b16 %v2957, %v2949
    %v3270 = vpack.c.b16 %v2958, %v2950
    %v3271 = vpack.c.b16 %v2959, %v2951
    %v3272 = vpack.c.b16 %v2960, %v2952
    %v3273 = vpack.c.b16 %v2961, %v2953
    %v3274 = vpack.c.b16 %v2962, %v2954
    %v3275 = vpack.c.b16 %v2971, %v2963
    %v3276 = vpack.c.b16 %v2972, %v2964
    %v3277 = vpack.c.b16 %v2973, %v2965
    %v3278 = vpack.c.b16 %v2974, %v2966
    %v3279 = vpack.c.b16 %v2975, %v2967
    %v3280 = vpack.c.b16 %v2976, %v2968
    %v3281 = vpack.c.b16 %v2977, %v2969
    %v3282 = vpack.c.b16 %v2978, %v2970
    %v3283 = vpack.c.b16 %v2987, %v2979
    %v3284 = vpack.c.b16 %v2988, %v2980
    %v3285 = vpack.c.b16 %v2989, %v2981
    %v3286 = vpack.c.b16 %v2990, %v2982
    %v3287 = vpack.c.b16 %v2991, %v2983
    %v3288 = vpack.c.b16 %v2992, %v2984
    %v3289 = vpack.c.b16 %v2993, %v2985
    %v3290 = vpack.c.b16 %v2994, %v2986
    %v3291 = vpack.c.b16 %v3003, %v2995
    %v3292 = vpack.c.b16 %v3004, %v2996
    %v3293 = vpack.c.b16 %v3005, %v2997
    %v3294 = vpack.c.b16 %v3006, %v2998
    %v3295 = vpack.c.b16 %v3007, %v2999
    %v3296 = vpack.c.b16 %v3008, %v3000
    %v3297 = vpack.c.b16 %v3009, %v3001
    %v3298 = vpack.c.b16 %v3010, %v3002
    %v3299 = vpack.c.b16 %v3019, %v3011
    %v3300 = vpack.c.b16 %v3020, %v3012
    %v3301 = vpack.c.b16 %v3021, %v3013
    %v3302 = vpack.c.b16 %v3022, %v3014
    %v3303 = vpack.c.b16 %v3023, %v3015
    %v3304 = vpack.c.b16 %v3024, %v3016
    %v3305 = vpack.c.b16 %v3025, %v3017
    %v3306 = vpack.c.b16 %v3026, %v3018
    %v3307 = vpack.c.b16 %v3035, %v3027
    %v3308 = vpack.c.b16 %v3036, %v3028
    %v3309 = vpack.c.b16 %v3037, %v3029
    %v3310 = vpack.c.b16 %v3038, %v3030
    %v3311 = vpack.c.b16 %v3039, %v3031
    %v3312 = vpack.c.b16 %v3040, %v3032
    %v3313 = vpack.c.b16 %v3041, %v3033
    %v3314 = vpack.c.b16 %v3042, %v3034
    %v3315 = vpack.c.b16 %v3051, %v3043
    %v3316 = vpack.c.b16 %v3052, %v3044
    %v3317 = vpack.c.b16 %v3053, %v3045
    %v3318 = vpack.c.b16 %v3054, %v3046
    %v3319 = vpack.c.b16 %v3055, %v3047
    %v3320 = vpack.c.b16 %v3056, %v3048
    %v3321 = vpack.c.b16 %v3057, %v3049
    %v3322 = vpack.c.b16 %v3058, %v3050
    %v3323 = vpack.c.b16 %v3067, %v3059
    %v3324 = vpack.c.b16 %v3068, %v3060
    %v3325 = vpack.c.b16 %v3069, %v3061
    %v3326 = vpack.c.b16 %v3070, %v3062
    %v3327 = vpack.c.b16 %v3071, %v3063
    %v3328 = vpack.c.b16 %v3072, %v3064
    %v3329 = vpack.c.b16 %v3073, %v3065
    %v3330 = vpack.c.b16 %v3074, %v3066
    %3587 = vmatprep.subr.bf16.mxu0 %v3076
    %3588 = vmatpush1.bf16.msra.mxu0 %v3075
    %3589 = vmatprep.subr.bf16.mxu0 %v3084
    %3590 = vmatpush1.bf16.msra.mxu0 %v3083
    %3591 = vmatprep.subr.bf16.mxu0 %v3092
    %3592 = vmatpush1.bf16.msra.mxu0 %v3091
    %3593 = vmatprep.subr.bf16.mxu0 %v3100
    %3594 = vmatpush1.bf16.msra.mxu0 %v3099
    %3595 = vmatprep.subr.bf16.mxu0 %v3108
    %3596 = vmatpush1.bf16.msra.mxu0 %v3107
    %3597 = vmatprep.subr.bf16.mxu0 %v3116
    %3598 = vmatpush1.bf16.msra.mxu0 %v3115
    %3599 = vmatprep.subr.bf16.mxu0 %v3124
    %3600 = vmatpush1.bf16.msra.mxu0 %v3123
    %3601 = vmatprep.subr.bf16.mxu0 %v3132
    %3602 = vmatpush1.bf16.msra.mxu0 %v3131
    %3603 = vmatprep.subr.bf16.mxu0 %v3140
    %3604 = vmatpush1.bf16.msra.mxu0 %v3139
    %3605 = vmatprep.subr.bf16.mxu0 %v3148
    %3606 = vmatpush1.bf16.msra.mxu0 %v3147
    %3607 = vmatprep.subr.bf16.mxu0 %v3156
    %3608 = vmatpush1.bf16.msra.mxu0 %v3155
    %3609 = vmatprep.subr.bf16.mxu0 %v3164
    %3610 = vmatpush1.bf16.msra.mxu0 %v3163
    %3611 = vmatprep.subr.bf16.mxu0 %v3172
    %3612 = vmatpush1.bf16.msra.mxu0 %v3171
    %3613 = vmatprep.subr.bf16.mxu0 %v3180
    %3614 = vmatpush1.bf16.msra.mxu0 %v3179
    %3615 = vmatprep.subr.bf16.mxu0 %v3188
    %3616 = vmatpush1.bf16.msra.mxu0 %v3187
    %3617 = vmatprep.subr.bf16.mxu0 %v3196
    %3618 = vmatpush1.bf16.msra.mxu0 %v3195
    %3619 = vmatprep.mubr.bf16.mxu0 %v2006
    %3620 = vmatmul.mubr.bf16.gmra.mrb[0].mxu0 %v2005
    %v3621 = vpop.f32.mrb[0].mxu0
    %v3622 = vadd.f32 %v2270, %v3621
    %v3623 = vpop.f32.mrb[0].mxu0
    %v3624 = vadd.f32 %v2274, %v3623
    %v3625 = vpop.f32.mrb[0].mxu0
    %v3626 = vpop.f32.mrb[0].mxu0
    %3627 = vdwg.mxu0
    %3628 = vmatprep.subr.bf16.mxu0 %v3204
    %3629 = vmatpush1.bf16.msra.mxu0 %v3203
    %3630 = vmatprep.subr.bf16.mxu0 %v3212
    %3631 = vmatpush1.bf16.msra.mxu0 %v3211
    %3632 = vmatprep.subr.bf16.mxu0 %v3220
    %3633 = vmatpush1.bf16.msra.mxu0 %v3219
    %3634 = vmatprep.subr.bf16.mxu0 %v3228
    %3635 = vmatpush1.bf16.msra.mxu0 %v3227
    %3636 = vmatprep.subr.bf16.mxu0 %v3236
    %3637 = vmatpush1.bf16.msra.mxu0 %v3235
    %3638 = vmatprep.subr.bf16.mxu0 %v3244
    %3639 = vmatpush1.bf16.msra.mxu0 %v3243
    %3640 = vmatprep.subr.bf16.mxu0 %v3252
    %3641 = vmatpush1.bf16.msra.mxu0 %v3251
    %3642 = vmatprep.subr.bf16.mxu0 %v3260
    %3643 = vmatpush1.bf16.msra.mxu0 %v3259
    %3644 = vmatprep.subr.bf16.mxu0 %v3268
    %3645 = vmatpush1.bf16.msra.mxu0 %v3267
    %3646 = vmatprep.subr.bf16.mxu0 %v3276
    %3647 = vmatpush1.bf16.msra.mxu0 %v3275
    %3648 = vmatprep.subr.bf16.mxu0 %v3284
    %3649 = vmatpush1.bf16.msra.mxu0 %v3283
    %3650 = vmatprep.subr.bf16.mxu0 %v3292
    %3651 = vmatpush1.bf16.msra.mxu0 %v3291
    %3652 = vmatprep.subr.bf16.mxu0 %v3300
    %3653 = vmatpush1.bf16.msra.mxu0 %v3299
    %3654 = vmatprep.subr.bf16.mxu0 %v3308
    %3655 = vmatpush1.bf16.msra.mxu0 %v3307
    %3656 = vmatprep.subr.bf16.mxu0 %v3316
    %3657 = vmatpush1.bf16.msra.mxu0 %v3315
    %3658 = vmatprep.subr.bf16.mxu0 %v3324
    %3659 = vmatpush1.bf16.msra.mxu0 %v3323
    %3660 = vmatprep.mubr.bf16.mxu0 %v2008
    %3661 = vmatmul.mubr.bf16.gmra.mrb[0].mxu0 %v2007
    %v3662 = vpop.f32.mrb[0].mxu0
    %v3663 = vadd.f32 %v3622, %v3662
    %v3664 = vpop.f32.mrb[0].mxu0
    %v3665 = vadd.f32 %v3624, %v3664
    %v3666 = vpop.f32.mrb[0].mxu0
    %v3667 = vpop.f32.mrb[0].mxu0
    %3668 = vdwg.mxu0
    %3669 = vmatprep.subr.bf16.mxu0 %v3078
    %3670 = vmatpush1.bf16.msra.mxu0 %v3077
    %3671 = vmatprep.subr.bf16.mxu0 %v3086
    %3672 = vmatpush1.bf16.msra.mxu0 %v3085
    %3673 = vmatprep.subr.bf16.mxu0 %v3094
    %3674 = vmatpush1.bf16.msra.mxu0 %v3093
    %3675 = vmatprep.subr.bf16.mxu0 %v3102
    %3676 = vmatpush1.bf16.msra.mxu0 %v3101
    %3677 = vmatprep.subr.bf16.mxu0 %v3110
    %3678 = vmatpush1.bf16.msra.mxu0 %v3109
    %3679 = vmatprep.subr.bf16.mxu0 %v3118
    %3680 = vmatpush1.bf16.msra.mxu0 %v3117
    %3681 = vmatprep.subr.bf16.mxu0 %v3126
    %3682 = vmatpush1.bf16.msra.mxu0 %v3125
    %3683 = vmatprep.subr.bf16.mxu0 %v3134
    %3684 = vmatpush1.bf16.msra.mxu0 %v3133
    %3685 = vmatprep.subr.bf16.mxu0 %v3142
    %3686 = vmatpush1.bf16.msra.mxu0 %v3141
    %3687 = vmatprep.subr.bf16.mxu0 %v3150
    %3688 = vmatpush1.bf16.msra.mxu0 %v3149
    %3689 = vmatprep.subr.bf16.mxu0 %v3158
    %3690 = vmatpush1.bf16.msra.mxu0 %v3157
    %3691 = vmatprep.subr.bf16.mxu0 %v3166
    %3692 = vmatpush1.bf16.msra.mxu0 %v3165
    %3693 = vmatprep.subr.bf16.mxu0 %v3174
    %3694 = vmatpush1.bf16.msra.mxu0 %v3173
    %3695 = vmatprep.subr.bf16.mxu0 %v3182
    %3696 = vmatpush1.bf16.msra.mxu0 %v3181
    %3697 = vmatprep.subr.bf16.mxu0 %v3190
    %3698 = vmatpush1.bf16.msra.mxu0 %v3189
    %3699 = vmatprep.subr.bf16.mxu0 %v3198
    %3700 = vmatpush1.bf16.msra.mxu0 %v3197
    %3701 = vmatprep.mubr.bf16.mxu0 %v2006
    %3702 = vmatmul.mubr.bf16.gmra.mrb[0].mxu0 %v2005
    %v3703 = vpop.f32.mrb[0].mxu0
    %v3704 = vadd.f32 %v2278, %v3703
    %v3705 = vpop.f32.mrb[0].mxu0
    %v3706 = vadd.f32 %v2282, %v3705
    %v3707 = vpop.f32.mrb[0].mxu0
    %v3708 = vpop.f32.mrb[0].mxu0
    %3709 = vdwg.mxu0
    %3710 = vmatprep.subr.bf16.mxu0 %v3206
    %3711 = vmatpush1.bf16.msra.mxu0 %v3205
    %3712 = vmatprep.subr.bf16.mxu0 %v3214
    %3713 = vmatpush1.bf16.msra.mxu0 %v3213
    %3714 = vmatprep.subr.bf16.mxu0 %v3222
    %3715 = vmatpush1.bf16.msra.mxu0 %v3221
    %3716 = vmatprep.subr.bf16.mxu0 %v3230
    %3717 = vmatpush1.bf16.msra.mxu0 %v3229
    %3718 = vmatprep.subr.bf16.mxu0 %v3238
    %3719 = vmatpush1.bf16.msra.mxu0 %v3237
    %3720 = vmatprep.subr.bf16.mxu0 %v3246
    %3721 = vmatpush1.bf16.msra.mxu0 %v3245
    %3722 = vmatprep.subr.bf16.mxu0 %v3254
    %3723 = vmatpush1.bf16.msra.mxu0 %v3253
    %3724 = vmatprep.subr.bf16.mxu0 %v3262
    %3725 = vmatpush1.bf16.msra.mxu0 %v3261
    %3726 = vmatprep.subr.bf16.mxu0 %v3270
    %3727 = vmatpush1.bf16.msra.mxu0 %v3269
    %3728 = vmatprep.subr.bf16.mxu0 %v3278
    %3729 = vmatpush1.bf16.msra.mxu0 %v3277
    %3730 = vmatprep.subr.bf16.mxu0 %v3286
    %3731 = vmatpush1.bf16.msra.mxu0 %v3285
    %3732 = vmatprep.subr.bf16.mxu0 %v3294
    %3733 = vmatpush1.bf16.msra.mxu0 %v3293
    %3734 = vmatprep.subr.bf16.mxu0 %v3302
    %3735 = vmatpush1.bf16.msra.mxu0 %v3301
    %3736 = vmatprep.subr.bf16.mxu0 %v3310
    %3737 = vmatpush1.bf16.msra.mxu0 %v3309
    %3738 = vmatprep.subr.bf16.mxu0 %v3318
    %3739 = vmatpush1.bf16.msra.mxu0 %v3317
    %3740 = vmatprep.subr.bf16.mxu0 %v3326
    %3741 = vmatpush1.bf16.msra.mxu0 %v3325
    %3742 = vmatprep.mubr.bf16.mxu0 %v2008
    %3743 = vmatmul.mubr.bf16.gmra.mrb[0].mxu0 %v2007
    %v3744 = vpop.f32.mrb[0].mxu0
    %v3745 = vadd.f32 %v3704, %v3744
    %v3746 = vpop.f32.mrb[0].mxu0
    %v3747 = vadd.f32 %v3706, %v3746
    %v3748 = vpop.f32.mrb[0].mxu0
    %v3749 = vpop.f32.mrb[0].mxu0
    %3750 = vdwg.mxu0
    %3751 = vmatprep.subr.bf16.mxu0 %v3080
    %3752 = vmatpush1.bf16.msra.mxu0 %v3079
    %3753 = vmatprep.subr.bf16.mxu0 %v3088
    %3754 = vmatpush1.bf16.msra.mxu0 %v3087
    %3755 = vmatprep.subr.bf16.mxu0 %v3096
    %3756 = vmatpush1.bf16.msra.mxu0 %v3095
    %3757 = vmatprep.subr.bf16.mxu0 %v3104
    %3758 = vmatpush1.bf16.msra.mxu0 %v3103
    %3759 = vmatprep.subr.bf16.mxu0 %v3112
    %3760 = vmatpush1.bf16.msra.mxu0 %v3111
    %3761 = vmatprep.subr.bf16.mxu0 %v3120
    %3762 = vmatpush1.bf16.msra.mxu0 %v3119
    %3763 = vmatprep.subr.bf16.mxu0 %v3128
    %3764 = vmatpush1.bf16.msra.mxu0 %v3127
    %3765 = vmatprep.subr.bf16.mxu0 %v3136
    %3766 = vmatpush1.bf16.msra.mxu0 %v3135
    %3767 = vmatprep.subr.bf16.mxu0 %v3144
    %3768 = vmatpush1.bf16.msra.mxu0 %v3143
    %3769 = vmatprep.subr.bf16.mxu0 %v3152
    %3770 = vmatpush1.bf16.msra.mxu0 %v3151
    %3771 = vmatprep.subr.bf16.mxu0 %v3160
    %3772 = vmatpush1.bf16.msra.mxu0 %v3159
    %3773 = vmatprep.subr.bf16.mxu0 %v3168
    %3774 = vmatpush1.bf16.msra.mxu0 %v3167
    %3775 = vmatprep.subr.bf16.mxu0 %v3176
    %3776 = vmatpush1.bf16.msra.mxu0 %v3175
    %3777 = vmatprep.subr.bf16.mxu0 %v3184
    %3778 = vmatpush1.bf16.msra.mxu0 %v3183
    %3779 = vmatprep.subr.bf16.mxu0 %v3192
    %3780 = vmatpush1.bf16.msra.mxu0 %v3191
    %3781 = vmatprep.subr.bf16.mxu0 %v3200
    %3782 = vmatpush1.bf16.msra.mxu0 %v3199
    %3783 = vmatprep.mubr.bf16.mxu0 %v2006
    %3784 = vmatmul.mubr.bf16.gmra.mrb[0].mxu0 %v2005
    %v3785 = vpop.f32.mrb[0].mxu0
    %v3786 = vadd.f32 %v2286, %v3785
    %v3787 = vpop.f32.mrb[0].mxu0
    %v3788 = vadd.f32 %v2290, %v3787
    %v3789 = vpop.f32.mrb[0].mxu0
    %v3790 = vpop.f32.mrb[0].mxu0
    %3791 = vdwg.mxu0
    %3792 = vmatprep.subr.bf16.mxu0 %v3208
    %3793 = vmatpush1.bf16.msra.mxu0 %v3207
    %3794 = vmatprep.subr.bf16.mxu0 %v3216
    %3795 = vmatpush1.bf16.msra.mxu0 %v3215
    %3796 = vmatprep.subr.bf16.mxu0 %v3224
    %3797 = vmatpush1.bf16.msra.mxu0 %v3223
    %3798 = vmatprep.subr.bf16.mxu0 %v3232
    %3799 = vmatpush1.bf16.msra.mxu0 %v3231
    %3800 = vmatprep.subr.bf16.mxu0 %v3240
    %3801 = vmatpush1.bf16.msra.mxu0 %v3239
    %3802 = vmatprep.subr.bf16.mxu0 %v3248
    %3803 = vmatpush1.bf16.msra.mxu0 %v3247
    %3804 = vmatprep.subr.bf16.mxu0 %v3256
    %3805 = vmatpush1.bf16.msra.mxu0 %v3255
    %3806 = vmatprep.subr.bf16.mxu0 %v3264
    %3807 = vmatpush1.bf16.msra.mxu0 %v3263
    %3808 = vmatprep.subr.bf16.mxu0 %v3272
    %3809 = vmatpush1.bf16.msra.mxu0 %v3271
    %3810 = vmatprep.subr.bf16.mxu0 %v3280
    %3811 = vmatpush1.bf16.msra.mxu0 %v3279
    %3812 = vmatprep.subr.bf16.mxu0 %v3288
    %3813 = vmatpush1.bf16.msra.mxu0 %v3287
    %3814 = vmatprep.subr.bf16.mxu0 %v3296
    %3815 = vmatpush1.bf16.msra.mxu0 %v3295
    %3816 = vmatprep.subr.bf16.mxu0 %v3304
    %3817 = vmatpush1.bf16.msra.mxu0 %v3303
    %3818 = vmatprep.subr.bf16.mxu0 %v3312
    %3819 = vmatpush1.bf16.msra.mxu0 %v3311
    %3820 = vmatprep.subr.bf16.mxu0 %v3320
    %3821 = vmatpush1.bf16.msra.mxu0 %v3319
    %3822 = vmatprep.subr.bf16.mxu0 %v3328
    %3823 = vmatpush1.bf16.msra.mxu0 %v3327
    %3824 = vmatprep.mubr.bf16.mxu0 %v2008
    %3825 = vmatmul.mubr.bf16.gmra.mrb[0].mxu0 %v2007
    %v3826 = vpop.f32.mrb[0].mxu0
    %v3827 = vadd.f32 %v3786, %v3826
    %v3828 = vpop.f32.mrb[0].mxu0
    %v3829 = vadd.f32 %v3788, %v3828
    %v3830 = vpop.f32.mrb[0].mxu0
    %v3831 = vpop.f32.mrb[0].mxu0
    %3832 = vdwg.mxu0
    %3833 = vmatprep.subr.bf16.mxu0 %v3082
    %3834 = vmatpush1.bf16.msra.mxu0 %v3081
    %3835 = vmatprep.subr.bf16.mxu0 %v3090
    %3836 = vmatpush1.bf16.msra.mxu0 %v3089
    %3837 = vmatprep.subr.bf16.mxu0 %v3098
    %3838 = vmatpush1.bf16.msra.mxu0 %v3097
    %3839 = vmatprep.subr.bf16.mxu0 %v3106
    %3840 = vmatpush1.bf16.msra.mxu0 %v3105
    %3841 = vmatprep.subr.bf16.mxu0 %v3114
    %3842 = vmatpush1.bf16.msra.mxu0 %v3113
    %3843 = vmatprep.subr.bf16.mxu0 %v3122
    %3844 = vmatpush1.bf16.msra.mxu0 %v3121
    %3845 = vmatprep.subr.bf16.mxu0 %v3130
    %3846 = vmatpush1.bf16.msra.mxu0 %v3129
    %3847 = vmatprep.subr.bf16.mxu0 %v3138
    %3848 = vmatpush1.bf16.msra.mxu0 %v3137
    %3849 = vmatprep.subr.bf16.mxu0 %v3146
    %3850 = vmatpush1.bf16.msra.mxu0 %v3145
    %3851 = vmatprep.subr.bf16.mxu0 %v3154
    %3852 = vmatpush1.bf16.msra.mxu0 %v3153
    %3853 = vmatprep.subr.bf16.mxu0 %v3162
    %3854 = vmatpush1.bf16.msra.mxu0 %v3161
    %3855 = vmatprep.subr.bf16.mxu0 %v3170
    %3856 = vmatpush1.bf16.msra.mxu0 %v3169
    %3857 = vmatprep.subr.bf16.mxu0 %v3178
    %3858 = vmatpush1.bf16.msra.mxu0 %v3177
    %3859 = vmatprep.subr.bf16.mxu0 %v3186
    %3860 = vmatpush1.bf16.msra.mxu0 %v3185
    %3861 = vmatprep.subr.bf16.mxu0 %v3194
    %3862 = vmatpush1.bf16.msra.mxu0 %v3193
    %3863 = vmatprep.subr.bf16.mxu0 %v3202
    %3864 = vmatpush1.bf16.msra.mxu0 %v3201
    %3865 = vmatprep.mubr.bf16.mxu0 %v2006
    %3866 = vmatmul.mubr.bf16.gmra.mrb[0].mxu0 %v2005
    %v3867 = vpop.f32.mrb[0].mxu0
    %v3868 = vadd.f32 %v2294, %v3867
    %v3869 = vpop.f32.mrb[0].mxu0
    %v3870 = vadd.f32 %v2298, %v3869
    %v3871 = vpop.f32.mrb[0].mxu0
    %v3872 = vpop.f32.mrb[0].mxu0
    %3873 = vdwg.mxu0
    %3874 = vmatprep.subr.bf16.mxu0 %v3210
    %3875 = vmatpush1.bf16.msra.mxu0 %v3209
    %3876 = vmatprep.subr.bf16.mxu0 %v3218
    %3877 = vmatpush1.bf16.msra.mxu0 %v3217
    %3878 = vmatprep.subr.bf16.mxu0 %v3226
    %3879 = vmatpush1.bf16.msra.mxu0 %v3225
    %3880 = vmatprep.subr.bf16.mxu0 %v3234
    %3881 = vmatpush1.bf16.msra.mxu0 %v3233
    %3882 = vmatprep.subr.bf16.mxu0 %v3242
    %3883 = vmatpush1.bf16.msra.mxu0 %v3241
    %3884 = vmatprep.subr.bf16.mxu0 %v3250
    %3885 = vmatpush1.bf16.msra.mxu0 %v3249
    %3886 = vmatprep.subr.bf16.mxu0 %v3258
    %3887 = vmatpush1.bf16.msra.mxu0 %v3257
    %3888 = vmatprep.subr.bf16.mxu0 %v3266
    %3889 = vmatpush1.bf16.msra.mxu0 %v3265
    %3890 = vmatprep.subr.bf16.mxu0 %v3274
    %3891 = vmatpush1.bf16.msra.mxu0 %v3273
    %3892 = vmatprep.subr.bf16.mxu0 %v3282
    %3893 = vmatpush1.bf16.msra.mxu0 %v3281
    %3894 = vmatprep.subr.bf16.mxu0 %v3290
    %3895 = vmatpush1.bf16.msra.mxu0 %v3289
    %3896 = vmatprep.subr.bf16.mxu0 %v3298
    %3897 = vmatpush1.bf16.msra.mxu0 %v3297
    %3898 = vmatprep.subr.bf16.mxu0 %v3306
    %3899 = vmatpush1.bf16.msra.mxu0 %v3305
    %3900 = vmatprep.subr.bf16.mxu0 %v3314
    %3901 = vmatpush1.bf16.msra.mxu0 %v3313
    %3902 = vmatprep.subr.bf16.mxu0 %v3322
    %3903 = vmatpush1.bf16.msra.mxu0 %v3321
    %3904 = vmatprep.subr.bf16.mxu0 %v3330
    %3905 = vmatpush1.bf16.msra.mxu0 %v3329
    %3906 = vmatprep.mubr.bf16.mxu0 %v2008
    %3907 = vmatmul.mubr.bf16.gmra.mrb[0].mxu0 %v2007
    %v3908 = vpop.f32.mrb[0].mxu0
    %v3909 = vadd.f32 %v3868, %v3908
    %v3910 = vpop.f32.mrb[0].mxu0
    %v3911 = vadd.f32 %v3870, %v3910
    %v3912 = vpop.f32.mrb[0].mxu0
    %v3913 = vpop.f32.mrb[0].mxu0
    %3914 = vdwg.mxu0
    %v3915 = vmax.f32 %v3663, %v3827
    %v3916 = vmax.f32 %v3665, %v3829
    %v3917 = vmax.f32 %v3745, %v3909
    %v3918 = vmax.f32 %v3747, %v3911
    %v3919 = vmax.f32 %v3915, %v3916
    %v3920 = vmax.f32 %v3917, %v3918
    %v3921 = vmax.f32 %v3919, %v3920
    %3922 = vmax.xlane.f32.xlu0 %v3921
    %v3923 = vpop.xlane.xlu0 %3922
    %v3924 = vsub.f32 %v3663, %v3923
    %v3925 = vsub.f32 %v3665, %v3923
    %v3926 = vsub.f32 %v3745, %v3923
    %v3927 = vsub.f32 %v3747, %v3923
    %v3928 = vsub.f32 %v3827, %v3923
    %v3929 = vsub.f32 %v3829, %v3923
    %v3930 = vsub.f32 %v3909, %v3923
    %v3931 = vsub.f32 %v3911, %v3923
    %v3932 = vmul.f32 %v3924, 1.442695
    %v3933 = vpow.pop %v3932
    %v3934 = vmul.f32 %v3925, 1.442695
    %v3935 = vpow.pop %v3934
    %v3936 = vmul.f32 %v3926, 1.442695
    %v3937 = vpow.pop %v3936
    %v3938 = vmul.f32 %v3927, 1.442695
    %v3939 = vpow.pop %v3938
    %v3940 = vmul.f32 %v3928, 1.442695
    %v3941 = vpow.pop %v3940
    %v3942 = vmul.f32 %v3929, 1.442695
    %v3943 = vpow.pop %v3942
    %v3944 = vmul.f32 %v3930, 1.442695
    %v3945 = vpow.pop %v3944
    %v3946 = vmul.f32 %v3931, 1.442695
    %v3947 = vpow.pop %v3946
    %v3948 = vadd.f32 %v3933, %v3935
    %v3949 = vadd.f32 %v3948, %v3937
    %v3950 = vadd.f32 %v3949, %v3939
    %v3951 = vadd.f32 %v3950, %v3941
    %v3952 = vadd.f32 %v3951, %v3943
    %v3953 = vadd.f32 %v3952, %v3945
    %v3954 = vadd.f32 %v3953, %v3947
    %3955 = vadd.xlane.f32.xlu0 %v3954
    %v3956 = vpop.xlane.xlu0 %3955
    %v3957 = vlog2.pop %v3956
    %v3958 = vmul.f32 %v3957, 0.6931472
    %v3959 = vadd.f32 %v3958, %v3923
    %v3960 = vsub.f32 %v3663, %v3959
    %v3961 = vsub.f32 %v3665, %v3959
    %v3962 = vsub.f32 %v3745, %v3959
    %v3963 = vsub.f32 %v3747, %v3959
    %v3964 = vsub.f32 %v3827, %v3959
    %v3965 = vsub.f32 %v3829, %v3959
    %v3966 = vsub.f32 %v3909, %v3959
    %v3967 = vsub.f32 %v3911, %v3959
    %3968 = vst [vmem:[#allocation11] sm:$0xff] %v3960
    %3969 = vst [vmem:[#allocation11 + $0x8] sm:$0xff] %v3961
    %3970 = vst [vmem:[#allocation11 + $0x10] sm:$0xff] %v3962
    %3971 = vst [vmem:[#allocation11 + $0x18] sm:$0xff] %v3963
    %3972 = vst [vmem:[#allocation11 + $0x20] sm:$0xff] %v3964
    %3973 = vst [vmem:[#allocation11 + $0x28] sm:$0xff] %v3965
    %3974 = vst [vmem:[#allocation11 + $0x30] sm:$0xff] %v3966
    %3975 = vst [vmem:[#allocation11 + $0x38] sm:$0xff] %v3967
    // Predicated region
    $region42: #{net_forward.5} parent=1 // pred_check
      _
    $region43: #{net_forward.5} parent=1 // pred_check_branch
      %3977 = sbr.rel (0) target = $region45
    $region44: #{net_forward.5} parent=1 // pred_region
      %s3979 = ssub.s32 1024, 1024
      %3980 = vsyncadd [#allocation4], %s3979
      %s3982 = sshll.u32 [#allocation11], 4
      %s3983 = int_to_ptr.vmem [resolvable:$true] %s3982
      %3985 = dma.vmem_to_hbm [thread:$0]  %s3983, 1024, %s5, [#allocation4]
    $region45: #{net_forward.5} parent=1 // pred_fallthru
      _
    // Predicated region
    $region46: #{net_forward.5} parent=1 // pred_check
      _
    $region47: #{net_forward.5} parent=1 // pred_check_branch
      %3987 = sbr.rel (0) target = $region49
    $region48: #{net_forward.5} parent=1 // pred_region
      %3988 = dma.done [#allocation4], 1024
    $region49: #{net_forward.5} parent=1 // pred_fallthru
      _
    %3989 = vsyncpa [#allocation3], 1
    %3990 = vsyncpa [#allocation6], 1
    %3991 = vsyncpa [#allocation9], 1
    %3992 = vsyncpa [#allocation4], 1

</llo_original>
